<compile_context>
chip_gen: v5e
topology: v5e:2x2
jax: 0.10.0
libtpu: 0.0.40
codegen_flags: <defaults>
</compile_context>

<pallas_src>
import functools
import math

import jax
import jax.numpy as jnp
import numpy as np
from jax.experimental import pallas as pl
from jax.experimental.pallas import tpu as pltpu

EPS = 1e-6  # LayerNorm eps (matches LayerNorm(features, eps=1e-6))


# ---------------------------------------------------------------------------
# In-kernel building blocks (traced inside the Pallas kernel body)
# ---------------------------------------------------------------------------
def _layer_norm(x, a, b):
  # Annotated-transformer LayerNorm: a * (x - mean) / (std + eps) + b
  # PyTorch tensor.std() is unbiased (ddof = 1).  Kept in f32.
  mean = jnp.mean(x, axis=-1, keepdims=True)
  d = x - mean
  var = jnp.sum(d * d, axis=-1, keepdims=True) / (x.shape[-1] - 1)
  return a * d / (jnp.sqrt(var) + EPS) + b


def _mha(q_in, kv_in, bias, wq, bq, wk, bk, wv, bv, wo, bo):
  """Multi-head attention for one batch element, all heads batched.

  q_in:  (Tq, D) f32      kv_in: (S, D) f32
  bias:  additive mask, broadcastable to (Tq, S)  (0 visible / -1e9 masked)
  wq/wk/wv: (H, D, dk) bf16      bq/bk/bv: (H, 1, dk) f32
  wo:       (H, dk, D) bf16      bo:       (1, D) f32
  """
  num_heads, _, dk = wq.shape
  tq, d_model = q_in.shape
  s_len = kv_in.shape[0]
  scale = 1.0 / math.sqrt(dk)

  q_b = jnp.broadcast_to(q_in.astype(jnp.bfloat16)[None],
                         (num_heads, tq, d_model))
  kv_b = jnp.broadcast_to(kv_in.astype(jnp.bfloat16)[None],
                          (num_heads, s_len, d_model))

  # Projections: one batched contraction each (heads = leading batch dim).
  q = jnp.einsum("htd,hdf->htf", q_b, wq,
                 preferred_element_type=jnp.float32) + bq
  k = jnp.einsum("hsd,hdf->hsf", kv_b, wk,
                 preferred_element_type=jnp.float32) + bk
  v = jnp.einsum("hsd,hdf->hsf", kv_b, wv,
                 preferred_element_type=jnp.float32) + bv

  q = (q * scale).astype(jnp.bfloat16)
  k = k.astype(jnp.bfloat16)
  v = v.astype(jnp.bfloat16)

  # Scores: single batched QK^T (contraction expressed in dot dims, no .T).
  s = jnp.einsum("hqd,hkd->hqk", q, k, preferred_element_type=jnp.float32)
  s = s + bias[None]                       # hoisted additive mask

  # Explicit softmax with EUP reciprocal; statistics in f32.
  m = jnp.max(s, axis=-1, keepdims=True)
  p = jnp.exp(s - m)
  l = jnp.sum(p, axis=-1, keepdims=True)
  p = (p * pl.reciprocal(l, approx=True)).astype(jnp.bfloat16)

  # PV and output projection (batched over heads, then summed over heads).
  o = jnp.einsum("hqk,hkd->hqd", p, v, preferred_element_type=jnp.float32)
  proj = jnp.einsum("hqd,hdf->hqf", o.astype(jnp.bfloat16), wo,
                    preferred_element_type=jnp.float32)
  return jnp.sum(proj, axis=0) + bo


# ---------------------------------------------------------------------------
# Pallas kernel: one full decoder layer (optionally fusing the final norm)
# ---------------------------------------------------------------------------
def decoder_layer_kernel(*refs, apply_final_norm):
  (xt_ref, xf_ref, mem_ref, tmask_ref, smask_ref,
   sa_wq, sa_bq, sa_wk, sa_bk, sa_wv, sa_bv, sa_wo, sa_bo,
   ca_wq, ca_bq, ca_wk, ca_bk, ca_wv, ca_bv, ca_wo, ca_bo,
   ff_w1, ff_b1, ff_w2, ff_b2,
   n0_a, n0_b, n1_a, n1_b, n2_a, n2_b,
   fn_a, fn_b,
   out_ref) = refs

  x_t = xt_ref[0]        # (TQ, D) query tile of the residual stream (f32)
  x_full = xf_ref[0]     # (T, D)  full sequence (self-attn K/V source)
  mem = mem_ref[0]       # (S, D)  encoder memory

  # Additive mask biases, computed once per sublayer (0 keep / -1e9 masked).
  tgt_bias = (tmask_ref[0].astype(jnp.float32) - 1.0) * 1e9   # (TQ, T)
  src_bias = (smask_ref[0].astype(jnp.float32) - 1.0) * 1e9   # (1, S)

  # Sublayer 0: masked self-attention (pre-norm residual). K/V over full seq.
  n_q = _layer_norm(x_t, n0_a[...], n0_b[...])
  n_kv = _layer_norm(x_full, n0_a[...], n0_b[...])
  x_t = x_t + _mha(n_q, n_kv, tgt_bias,
                   sa_wq[...], sa_bq[...], sa_wk[...], sa_bk[...],
                   sa_wv[...], sa_bv[...], sa_wo[...], sa_bo[...])

  # Sublayer 1: cross-attention over encoder memory.
  n_q = _layer_norm(x_t, n1_a[...], n1_b[...])
  x_t = x_t + _mha(n_q, mem, src_bias,
                   ca_wq[...], ca_bq[...], ca_wk[...], ca_bk[...],
                   ca_wv[...], ca_bv[...], ca_wo[...], ca_bo[...])

  # Sublayer 2: position-wise feed-forward  w2(relu(w1(n))).
  n_q = _layer_norm(x_t, n2_a[...], n2_b[...])
  h1 = jnp.maximum(
      jnp.dot(n_q.astype(jnp.bfloat16), ff_w1[...],
              preferred_element_type=jnp.float32) + ff_b1[...], 0.0)
  x_t = x_t + jnp.dot(h1.astype(jnp.bfloat16), ff_w2[...],
                      preferred_element_type=jnp.float32) + ff_b2[...]

  # Final decoder LayerNorm fused into the last layer (no extra pallas_call).
  if apply_final_norm:
    x_t = _layer_norm(x_t, fn_a[...], fn_b[...])

  out_ref[0] = x_t


# ---------------------------------------------------------------------------
# Wrapper
# ---------------------------------------------------------------------------
def _pick_q_tile(t):
  for cand in (256, 128, 64, 32, 16, 8):
    if t % cand == 0:
      return cand
  return t


def _replicated_spec(shape):
  zeros = (0,) * len(shape)
  return pl.BlockSpec(shape, lambda b, q: zeros)


def _prep_layer(p, num_heads):
  """Reshape/cast canonical f32 params into kernel-friendly bf16 layouts."""
  d_model = p["sa_wq"].shape[0]
  dk = d_model // num_heads

  def w_in(w):   # (D, D) -> (H, D, dk) bf16  (per-head input projection)
    return w.reshape(d_model, num_heads, dk).transpose(1, 0, 2).astype(jnp.bfloat16)

  def b_in(b):   # (1, D) -> (H, 1, dk) f32
    return b.reshape(num_heads, dk)[:, None, :].astype(jnp.float32)

  def w_out(w):  # (D, D) -> (H, dk, D) bf16  (per-head output projection)
    return w.reshape(num_heads, dk, d_model).astype(jnp.bfloat16)

  out = []
  for pre in ("sa", "ca"):
    out += [w_in(p[f"{pre}_wq"]), b_in(p[f"{pre}_bq"]),
            w_in(p[f"{pre}_wk"]), b_in(p[f"{pre}_bk"]),
            w_in(p[f"{pre}_wv"]), b_in(p[f"{pre}_bv"]),
            w_out(p[f"{pre}_wo"]), p[f"{pre}_bo"].astype(jnp.float32)]
  out += [p["ff_w1"].astype(jnp.bfloat16), p["ff_b1"].astype(jnp.float32),
          p["ff_w2"].astype(jnp.bfloat16), p["ff_b2"].astype(jnp.float32)]
  out += [p[f"n{i}_{c}"].astype(jnp.float32) for i in range(3) for c in ("a", "b")]
  return out


def decoder_forward(x, memory, src_mask, tgt_mask, params, num_heads):
  batch, t_len, d_model = x.shape
  s_len = memory.shape[1]
  tq = _pick_q_tile(t_len)
  nq = t_len // tq

  # Ship masks as bf16 (exact for 0/1 values) to halve mask DMA.
  tgt_mask_b = tgt_mask.astype(jnp.bfloat16)
  src_mask_b = src_mask.astype(jnp.bfloat16)
  fn_a = params["norm_a"].astype(jnp.float32)
  fn_b = params["norm_b"].astype(jnp.float32)

  n_layers = len(params["layers"])
  for li, layer_p in enumerate(params["layers"]):
    weights = _prep_layer(layer_p, num_heads) + [fn_a, fn_b]

    in_specs = [
        pl.BlockSpec((1, tq, d_model), lambda b, q: (b, q, 0)),     # x (query tile)
        pl.BlockSpec((1, t_len, d_model), lambda b, q: (b, 0, 0)),  # x (full, K/V)
        pl.BlockSpec((1, s_len, d_model), lambda b, q: (b, 0, 0)),  # memory
        pl.BlockSpec((1, tq, t_len), lambda b, q: (b, q, 0)),       # tgt_mask tile
        pl.BlockSpec((1, 1, s_len), lambda b, q: (b, 0, 0)),        # src_mask
    ] + [_replicated_spec(w.shape) for w in weights]

    x = pl.pallas_call(
        functools.partial(decoder_layer_kernel,
                          apply_final_norm=(li == n_layers - 1)),
        out_shape=jax.ShapeDtypeStruct((batch, t_len, d_model), jnp.float32),
        grid=(batch, nq),
        in_specs=in_specs,
        out_specs=pl.BlockSpec((1, tq, d_model), lambda b, q: (b, q, 0)),
        compiler_params=pltpu.CompilerParams(
            dimension_semantics=("parallel", "parallel"),
            vmem_limit_bytes=48 * 1024 * 1024),
    )(x, x, memory, tgt_mask_b, src_mask_b, *weights)

  return x


# ---------------------------------------------------------------------------
# Pure-JAX f32 reference (mirrors the PyTorch forward semantics, dropout = 0)
# ---------------------------------------------------------------------------
def ref_decoder(x, memory, src_mask, tgt_mask, params, num_heads):
  def ln(y, a, b):
    mean = y.mean(-1, keepdims=True)
    d = y - mean
    var = (d * d).sum(-1, keepdims=True) / (y.shape[-1] - 1)
    return a * d / (jnp.sqrt(var) + EPS) + b

  def mha(q_in, kv_in, mask, p, pre):
    D = q_in.shape[-1]
    dk = D // num_heads
    q = q_in @ p[pre + "_wq"] + p[pre + "_bq"]
    k = kv_in @ p[pre + "_wk"] + p[pre + "_bk"]
    v = kv_in @ p[pre + "_wv"] + p[pre + "_bv"]
    B, Tq = q.shape[0], q.shape[1]
    Tk = k.shape[1]
    q = q.reshape(B, Tq, num_heads, dk).transpose(0, 2, 1, 3)
    k = k.reshape(B, Tk, num_heads, dk).transpose(0, 2, 1, 3)
    v = v.reshape(B, Tk, num_heads, dk).transpose(0, 2, 1, 3)
    s = jnp.einsum("bhqd,bhkd->bhqk", q, k) / math.sqrt(dk)
    s = jnp.where(mask[:, None] == 0.0, -1e9, s)
    pa = jax.nn.softmax(s, -1)
    o = jnp.einsum("bhqk,bhkd->bhqd", pa, v).transpose(0, 2, 1, 3)
    o = o.reshape(B, Tq, D)
    return o @ p[pre + "_wo"] + p[pre + "_bo"]

  for p in params["layers"]:
    n = ln(x, p["n0_a"], p["n0_b"])
    x = x + mha(n, n, tgt_mask, p, "sa")
    n = ln(x, p["n1_a"], p["n1_b"])
    x = x + mha(n, memory, src_mask, p, "ca")
    n = ln(x, p["n2_a"], p["n2_b"])
    x = x + jnp.maximum(n @ p["ff_w1"] + p["ff_b1"], 0.0) @ p["ff_w2"] + p["ff_b2"]
  return ln(x, params["norm_a"], params["norm_b"])


# ---------------------------------------------------------------------------
# Deterministic parameter init (synthetic, no checkpoint)
# ---------------------------------------------------------------------------
def init_params(key, d_model, d_ff, n_layers):
  def rnd(k, shape, scale=0.05):
    return (scale * jax.random.normal(k, shape)).astype(jnp.float32)

  layers = []
  for li in range(n_layers):
    lk = jax.random.fold_in(key, li)
    p = {}
    for ai, pre in enumerate(("sa", "ca")):
      ak = jax.random.fold_in(lk, ai)
      for wi, nm in enumerate(("wq", "wk", "wv", "wo")):
        p[f"{pre}_{nm}"] = rnd(jax.random.fold_in(ak, 2 * wi), (d_model, d_model))
        p[f"{pre}_b{nm[1]}"] = rnd(jax.random.fold_in(ak, 2 * wi + 1), (1, d_model))
    fk = jax.random.fold_in(lk, 7)
    p["ff_w1"] = rnd(jax.random.fold_in(fk, 0), (d_model, d_ff))
    p["ff_b1"] = rnd(jax.random.fold_in(fk, 1), (1, d_ff))
    p["ff_w2"] = rnd(jax.random.fold_in(fk, 2), (d_ff, d_model))
    p["ff_b2"] = rnd(jax.random.fold_in(fk, 3), (1, d_model))
    for ni in range(3):
      p[f"n{ni}_a"] = jnp.ones((1, d_model), jnp.float32)
      p[f"n{ni}_b"] = jnp.zeros((1, d_model), jnp.float32)
    layers.append(p)
  return {
      "layers": layers,
      "norm_a": jnp.ones((1, d_model), jnp.float32),
      "norm_b": jnp.zeros((1, d_model), jnp.float32),
  }


if __name__ == "__main__":
  B, T, S, D, H, DFF, N = 2, 8, 8, 32, 4, 64, 2
  root = jax.random.PRNGKey(0)
  kx, km, kp = jax.random.split(root, 3)

  x = jax.random.normal(kx, (B, T, D), jnp.float32)
  memory = jax.random.normal(km, (B, S, D), jnp.float32)
  # causal (subsequent) mask for the target side, all-visible source mask
  tgt_mask = jnp.tril(jnp.ones((T, T), jnp.float32))[None].repeat(B, axis=0)
  src_mask = jnp.ones((B, 1, S), jnp.float32)

  params = init_params(kp, D, DFF, N)

  fwd = jax.jit(functools.partial(decoder_forward, num_heads=H))
  out = fwd(x, memory, src_mask, tgt_mask, params)
  out = jax.block_until_ready(out)

  ref = ref_decoder(x, memory, src_mask, tgt_mask, params, H)
  # bf16 matmuls + approx-reciprocal softmax vs the f32 reference -> 2e-2 tol.
  np.testing.assert_allclose(np.asarray(out), np.asarray(ref), atol=2e-2, rtol=2e-2)

  print("KERNEL_OK")
</pallas_src>

<mosaic_0001>
module attributes {stable_mosaic.version = 11 : i64} {
  func.func @decoder_layer_kernel(%arg0: i32, %arg1: i32, %arg2: memref<1x8x32xf32, #tpu.memory_space<vmem>>, %arg3: memref<1x8x32xf32, #tpu.memory_space<vmem>>, %arg4: memref<1x8x32xf32, #tpu.memory_space<vmem>>, %arg5: memref<1x8x8xbf16, #tpu.memory_space<vmem>>, %arg6: memref<1x1x8xbf16, #tpu.memory_space<vmem>>, %arg7: memref<4x32x8xbf16, #tpu.memory_space<vmem>>, %arg8: memref<4x1x8xf32, #tpu.memory_space<vmem>>, %arg9: memref<4x32x8xbf16, #tpu.memory_space<vmem>>, %arg10: memref<4x1x8xf32, #tpu.memory_space<vmem>>, %arg11: memref<4x32x8xbf16, #tpu.memory_space<vmem>>, %arg12: memref<4x1x8xf32, #tpu.memory_space<vmem>>, %arg13: memref<4x8x32xbf16, #tpu.memory_space<vmem>>, %arg14: memref<1x32xf32, #tpu.memory_space<vmem>>, %arg15: memref<4x32x8xbf16, #tpu.memory_space<vmem>>, %arg16: memref<4x1x8xf32, #tpu.memory_space<vmem>>, %arg17: memref<4x32x8xbf16, #tpu.memory_space<vmem>>, %arg18: memref<4x1x8xf32, #tpu.memory_space<vmem>>, %arg19: memref<4x32x8xbf16, #tpu.memory_space<vmem>>, %arg20: memref<4x1x8xf32, #tpu.memory_space<vmem>>, %arg21: memref<4x8x32xbf16, #tpu.memory_space<vmem>>, %arg22: memref<1x32xf32, #tpu.memory_space<vmem>>, %arg23: memref<32x64xbf16, #tpu.memory_space<vmem>>, %arg24: memref<1x64xf32, #tpu.memory_space<vmem>>, %arg25: memref<64x32xbf16, #tpu.memory_space<vmem>>, %arg26: memref<1x32xf32, #tpu.memory_space<vmem>>, %arg27: memref<1x32xf32, #tpu.memory_space<vmem>>, %arg28: memref<1x32xf32, #tpu.memory_space<vmem>>, %arg29: memref<1x32xf32, #tpu.memory_space<vmem>>, %arg30: memref<1x32xf32, #tpu.memory_space<vmem>>, %arg31: memref<1x32xf32, #tpu.memory_space<vmem>>, %arg32: memref<1x32xf32, #tpu.memory_space<vmem>>, %arg33: memref<1x32xf32, #tpu.memory_space<vmem>>, %arg34: memref<1x32xf32, #tpu.memory_space<vmem>>, %arg35: memref<1x8x32xf32, #tpu.memory_space<vmem>>) attributes {dimension_semantics = [#tpu.dimension_semantics<parallel>, #tpu.dimension_semantics<parallel>], iteration_bounds = array<i64: 2, 1>, scalar_prefetch = 0 : i64, scratch_operands = 0 : i64, tpu.core_type = #tpu.core_type<tc>, window_params = [{transform_indices = @transform_0, window_bounds = array<i64: 1, 8, 32>}, {transform_indices = @transform_1, window_bounds = array<i64: 1, 8, 32>}, {transform_indices = @transform_2, window_bounds = array<i64: 1, 8, 32>}, {transform_indices = @transform_3, window_bounds = array<i64: 1, 8, 8>}, {transform_indices = @transform_4, window_bounds = array<i64: 1, 1, 8>}, {pipeline_mode = #tpu.pipeline_mode<synchronous>, transform_indices = @transform_5, window_bounds = array<i64: 4, 32, 8>}, {pipeline_mode = #tpu.pipeline_mode<synchronous>, transform_indices = @transform_6, window_bounds = array<i64: 4, 1, 8>}, {pipeline_mode = #tpu.pipeline_mode<synchronous>, transform_indices = @transform_7, window_bounds = array<i64: 4, 32, 8>}, {pipeline_mode = #tpu.pipeline_mode<synchronous>, transform_indices = @transform_8, window_bounds = array<i64: 4, 1, 8>}, {pipeline_mode = #tpu.pipeline_mode<synchronous>, transform_indices = @transform_9, window_bounds = array<i64: 4, 32, 8>}, {pipeline_mode = #tpu.pipeline_mode<synchronous>, transform_indices = @transform_10, window_bounds = array<i64: 4, 1, 8>}, {pipeline_mode = #tpu.pipeline_mode<synchronous>, transform_indices = @transform_11, window_bounds = array<i64: 4, 8, 32>}, {pipeline_mode = #tpu.pipeline_mode<synchronous>, transform_indices = @transform_12, window_bounds = array<i64: 1, 32>}, {pipeline_mode = #tpu.pipeline_mode<synchronous>, transform_indices = @transform_13, window_bounds = array<i64: 4, 32, 8>}, {pipeline_mode = #tpu.pipeline_mode<synchronous>, transform_indices = @transform_14, window_bounds = array<i64: 4, 1, 8>}, {pipeline_mode = #tpu.pipeline_mode<synchronous>, transform_indices = @transform_15, window_bounds = array<i64: 4, 32, 8>}, {pipeline_mode = #tpu.pipeline_mode<synchronous>, transform_indices = @transform_16, window_bounds = array<i64: 4, 1, 8>}, {pipeline_mode = #tpu.pipeline_mode<synchronous>, transform_indices = @transform_17, window_bounds = array<i64: 4, 32, 8>}, {pipeline_mode = #tpu.pipeline_mode<synchronous>, transform_indices = @transform_18, window_bounds = array<i64: 4, 1, 8>}, {pipeline_mode = #tpu.pipeline_mode<synchronous>, transform_indices = @transform_19, window_bounds = array<i64: 4, 8, 32>}, {pipeline_mode = #tpu.pipeline_mode<synchronous>, transform_indices = @transform_20, window_bounds = array<i64: 1, 32>}, {pipeline_mode = #tpu.pipeline_mode<synchronous>, transform_indices = @transform_21, window_bounds = array<i64: 32, 64>}, {pipeline_mode = #tpu.pipeline_mode<synchronous>, transform_indices = @transform_22, window_bounds = array<i64: 1, 64>}, {pipeline_mode = #tpu.pipeline_mode<synchronous>, transform_indices = @transform_23, window_bounds = array<i64: 64, 32>}, {pipeline_mode = #tpu.pipeline_mode<synchronous>, transform_indices = @transform_24, window_bounds = array<i64: 1, 32>}, {pipeline_mode = #tpu.pipeline_mode<synchronous>, transform_indices = @transform_25, window_bounds = array<i64: 1, 32>}, {pipeline_mode = #tpu.pipeline_mode<synchronous>, transform_indices = @transform_26, window_bounds = array<i64: 1, 32>}, {pipeline_mode = #tpu.pipeline_mode<synchronous>, transform_indices = @transform_27, window_bounds = array<i64: 1, 32>}, {pipeline_mode = #tpu.pipeline_mode<synchronous>, transform_indices = @transform_28, window_bounds = array<i64: 1, 32>}, {pipeline_mode = #tpu.pipeline_mode<synchronous>, transform_indices = @transform_29, window_bounds = array<i64: 1, 32>}, {pipeline_mode = #tpu.pipeline_mode<synchronous>, transform_indices = @transform_30, window_bounds = array<i64: 1, 32>}, {pipeline_mode = #tpu.pipeline_mode<synchronous>, transform_indices = @transform_31, window_bounds = array<i64: 1, 32>}, {pipeline_mode = #tpu.pipeline_mode<synchronous>, transform_indices = @transform_32, window_bounds = array<i64: 1, 32>}, {transform_indices = @transform_33, window_bounds = array<i64: 1, 8, 32>}]} {
    %c0 = arith.constant 0 : index
    %c0_0 = arith.constant 0 : index
    %c0_1 = arith.constant 0 : index
    %0 = vector.load %arg2[%c0, %c0_0, %c0_1] : memref<1x8x32xf32, #tpu.memory_space<vmem>>, vector<1x8x32xf32>
    %1 = vector.shape_cast %0 : vector<1x8x32xf32> to vector<8x32xf32>
    %c0_2 = arith.constant 0 : index
    %c0_3 = arith.constant 0 : index
    %c0_4 = arith.constant 0 : index
    %2 = vector.load %arg3[%c0_2, %c0_3, %c0_4] : memref<1x8x32xf32, #tpu.memory_space<vmem>>, vector<1x8x32xf32>
    %3 = vector.shape_cast %2 : vector<1x8x32xf32> to vector<8x32xf32>
    %c0_5 = arith.constant 0 : index
    %c0_6 = arith.constant 0 : index
    %c0_7 = arith.constant 0 : index
    %4 = vector.load %arg4[%c0_5, %c0_6, %c0_7] : memref<1x8x32xf32, #tpu.memory_space<vmem>>, vector<1x8x32xf32>
    %5 = vector.shape_cast %4 : vector<1x8x32xf32> to vector<8x32xf32>
    %c0_8 = arith.constant 0 : index
    %c0_9 = arith.constant 0 : index
    %c0_10 = arith.constant 0 : index
    %6 = vector.load %arg5[%c0_8, %c0_9, %c0_10] : memref<1x8x8xbf16, #tpu.memory_space<vmem>>, vector<1x8x8xbf16>
    %7 = vector.shape_cast %6 : vector<1x8x8xbf16> to vector<8x8xbf16>
    %8 = arith.extf %7 : vector<8x8xbf16> to vector<8x8xf32>
    %cst = arith.constant 1.000000e+00 : f32
    %9 = vector.broadcast %cst : f32 to vector<8x8xf32>
    %10 = arith.subf %8, %9 : vector<8x8xf32>
    %cst_11 = arith.constant 1.000000e+09 : f32
    %11 = vector.broadcast %cst_11 : f32 to vector<8x8xf32>
    %12 = arith.mulf %10, %11 : vector<8x8xf32>
    %c0_12 = arith.constant 0 : index
    %c0_13 = arith.constant 0 : index
    %c0_14 = arith.constant 0 : index
    %13 = vector.load %arg6[%c0_12, %c0_13, %c0_14] : memref<1x1x8xbf16, #tpu.memory_space<vmem>>, vector<1x1x8xbf16>
    %14 = vector.shape_cast %13 : vector<1x1x8xbf16> to vector<1x8xbf16>
    %15 = arith.extf %14 : vector<1x8xbf16> to vector<1x8xf32>
    %cst_15 = arith.constant 1.000000e+00 : f32
    %16 = vector.broadcast %cst_15 : f32 to vector<1x8xf32>
    %17 = arith.subf %15, %16 : vector<1x8xf32>
    %cst_16 = arith.constant 1.000000e+09 : f32
    %18 = vector.broadcast %cst_16 : f32 to vector<1x8xf32>
    %19 = arith.mulf %17, %18 : vector<1x8xf32>
    %c0_17 = arith.constant 0 : index
    %c0_18 = arith.constant 0 : index
    %20 = vector.load %arg27[%c0_17, %c0_18] : memref<1x32xf32, #tpu.memory_space<vmem>>, vector<1x32xf32>
    %c0_19 = arith.constant 0 : index
    %c0_20 = arith.constant 0 : index
    %21 = vector.load %arg28[%c0_19, %c0_20] : memref<1x32xf32, #tpu.memory_space<vmem>>, vector<1x32xf32>
    %cst_21 = arith.constant dense<0.000000e+00> : vector<8xf32>
    %22 = vector.multi_reduction <add>, %1, %cst_21 [1] : vector<8x32xf32> to vector<8xf32>
    %23 = vector.shape_cast %22 : vector<8xf32> to vector<8x1xf32>
    %cst_22 = arith.constant 3.200000e+01 : f32
    %24 = vector.broadcast %cst_22 : f32 to vector<8x1xf32>
    %25 = arith.divf %23, %24 : vector<8x1xf32>
    %26 = vector.broadcast %25 : vector<8x1xf32> to vector<8x32xf32>
    %27 = arith.subf %1, %26 : vector<8x32xf32>
    %28 = arith.mulf %27, %27 : vector<8x32xf32>
    %cst_23 = arith.constant dense<0.000000e+00> : vector<8xf32>
    %29 = vector.multi_reduction <add>, %28, %cst_23 [1] : vector<8x32xf32> to vector<8xf32>
    %30 = vector.shape_cast %29 : vector<8xf32> to vector<8x1xf32>
    %cst_24 = arith.constant 3.100000e+01 : f32
    %31 = vector.broadcast %cst_24 : f32 to vector<8x1xf32>
    %32 = arith.divf %30, %31 : vector<8x1xf32>
    %33 = vector.broadcast %20 : vector<1x32xf32> to vector<8x32xf32>
    %34 = arith.mulf %33, %27 : vector<8x32xf32>
    %35 = math.sqrt %32 : vector<8x1xf32>
    %cst_25 = arith.constant 9.99999997E-7 : f32
    %36 = vector.broadcast %cst_25 : f32 to vector<8x1xf32>
    %37 = arith.addf %35, %36 : vector<8x1xf32>
    %38 = vector.broadcast %37 : vector<8x1xf32> to vector<8x32xf32>
    %39 = arith.divf %34, %38 : vector<8x32xf32>
    %40 = vector.broadcast %21 : vector<1x32xf32> to vector<8x32xf32>
    %41 = arith.addf %39, %40 : vector<8x32xf32>
    %c0_26 = arith.constant 0 : index
    %c0_27 = arith.constant 0 : index
    %42 = vector.load %arg27[%c0_26, %c0_27] : memref<1x32xf32, #tpu.memory_space<vmem>>, vector<1x32xf32>
    %c0_28 = arith.constant 0 : index
    %c0_29 = arith.constant 0 : index
    %43 = vector.load %arg28[%c0_28, %c0_29] : memref<1x32xf32, #tpu.memory_space<vmem>>, vector<1x32xf32>
    %cst_30 = arith.constant dense<0.000000e+00> : vector<8xf32>
    %44 = vector.multi_reduction <add>, %3, %cst_30 [1] : vector<8x32xf32> to vector<8xf32>
    %45 = vector.shape_cast %44 : vector<8xf32> to vector<8x1xf32>
    %cst_31 = arith.constant 3.200000e+01 : f32
    %46 = vector.broadcast %cst_31 : f32 to vector<8x1xf32>
    %47 = arith.divf %45, %46 : vector<8x1xf32>
    %48 = vector.broadcast %47 : vector<8x1xf32> to vector<8x32xf32>
    %49 = arith.subf %3, %48 : vector<8x32xf32>
    %50 = arith.mulf %49, %49 : vector<8x32xf32>
    %cst_32 = arith.constant dense<0.000000e+00> : vector<8xf32>
    %51 = vector.multi_reduction <add>, %50, %cst_32 [1] : vector<8x32xf32> to vector<8xf32>
    %52 = vector.shape_cast %51 : vector<8xf32> to vector<8x1xf32>
    %cst_33 = arith.constant 3.100000e+01 : f32
    %53 = vector.broadcast %cst_33 : f32 to vector<8x1xf32>
    %54 = arith.divf %52, %53 : vector<8x1xf32>
    %55 = vector.broadcast %42 : vector<1x32xf32> to vector<8x32xf32>
    %56 = arith.mulf %55, %49 : vector<8x32xf32>
    %57 = math.sqrt %54 : vector<8x1xf32>
    %cst_34 = arith.constant 9.99999997E-7 : f32
    %58 = vector.broadcast %cst_34 : f32 to vector<8x1xf32>
    %59 = arith.addf %57, %58 : vector<8x1xf32>
    %60 = vector.broadcast %59 : vector<8x1xf32> to vector<8x32xf32>
    %61 = arith.divf %56, %60 : vector<8x32xf32>
    %62 = vector.broadcast %43 : vector<1x32xf32> to vector<8x32xf32>
    %63 = arith.addf %61, %62 : vector<8x32xf32>
    %c0_35 = arith.constant 0 : index
    %c0_36 = arith.constant 0 : index
    %c0_37 = arith.constant 0 : index
    %64 = vector.load %arg7[%c0_35, %c0_36, %c0_37] : memref<4x32x8xbf16, #tpu.memory_space<vmem>>, vector<4x32x8xbf16>
    %c0_38 = arith.constant 0 : index
    %c0_39 = arith.constant 0 : index
    %c0_40 = arith.constant 0 : index
    %65 = vector.load %arg8[%c0_38, %c0_39, %c0_40] : memref<4x1x8xf32, #tpu.memory_space<vmem>>, vector<4x1x8xf32>
    %c0_41 = arith.constant 0 : index
    %c0_42 = arith.constant 0 : index
    %c0_43 = arith.constant 0 : index
    %66 = vector.load %arg9[%c0_41, %c0_42, %c0_43] : memref<4x32x8xbf16, #tpu.memory_space<vmem>>, vector<4x32x8xbf16>
    %c0_44 = arith.constant 0 : index
    %c0_45 = arith.constant 0 : index
    %c0_46 = arith.constant 0 : index
    %67 = vector.load %arg10[%c0_44, %c0_45, %c0_46] : memref<4x1x8xf32, #tpu.memory_space<vmem>>, vector<4x1x8xf32>
    %c0_47 = arith.constant 0 : index
    %c0_48 = arith.constant 0 : index
    %c0_49 = arith.constant 0 : index
    %68 = vector.load %arg11[%c0_47, %c0_48, %c0_49] : memref<4x32x8xbf16, #tpu.memory_space<vmem>>, vector<4x32x8xbf16>
    %c0_50 = arith.constant 0 : index
    %c0_51 = arith.constant 0 : index
    %c0_52 = arith.constant 0 : index
    %69 = vector.load %arg12[%c0_50, %c0_51, %c0_52] : memref<4x1x8xf32, #tpu.memory_space<vmem>>, vector<4x1x8xf32>
    %c0_53 = arith.constant 0 : index
    %c0_54 = arith.constant 0 : index
    %c0_55 = arith.constant 0 : index
    %70 = vector.load %arg13[%c0_53, %c0_54, %c0_55] : memref<4x8x32xbf16, #tpu.memory_space<vmem>>, vector<4x8x32xbf16>
    %c0_56 = arith.constant 0 : index
    %c0_57 = arith.constant 0 : index
    %71 = vector.load %arg14[%c0_56, %c0_57] : memref<1x32xf32, #tpu.memory_space<vmem>>, vector<1x32xf32>
    %72 = arith.truncf %41 : vector<8x32xf32> to vector<8x32xbf16>
    %73 = vector.shape_cast %72 : vector<8x32xbf16> to vector<1x8x32xbf16>
    %74 = vector.shape_cast %73 : vector<1x8x32xbf16> to vector<1x8x32xbf16>
    %75 = vector.broadcast %74 : vector<1x8x32xbf16> to vector<4x8x32xbf16>
    %76 = arith.truncf %63 : vector<8x32xf32> to vector<8x32xbf16>
    %77 = vector.shape_cast %76 : vector<8x32xbf16> to vector<1x8x32xbf16>
    %78 = vector.shape_cast %77 : vector<1x8x32xbf16> to vector<1x8x32xbf16>
    %79 = vector.broadcast %78 : vector<1x8x32xbf16> to vector<4x8x32xbf16>
    "tpu.trace_start"() <{level = 10 : i32, message = "htd,hdf->htf"}> : () -> ()
    %cst_58 = arith.constant dense<0.000000e+00> : vector<4x8x8xf32>
    %80 = tpu.matmul %75, %64, %cst_58 {dimension_numbers = #tpu.dot_dimension_numbers<[2], [1], [1], [2], [0, 0, 0, 1, 1, 2], [0], [0]>} : vector<4x8x32xbf16>, vector<4x32x8xbf16>, vector<4x8x8xf32> -> vector<4x8x8xf32>
    "tpu.trace_stop"() : () -> ()
    %81 = vector.broadcast %65 : vector<4x1x8xf32> to vector<4x8x8xf32>
    %82 = arith.addf %80, %81 : vector<4x8x8xf32>
    "tpu.trace_start"() <{level = 10 : i32, message = "hsd,hdf->hsf"}> : () -> ()
    %cst_59 = arith.constant dense<0.000000e+00> : vector<4x8x8xf32>
    %83 = tpu.matmul %79, %66, %cst_59 {dimension_numbers = #tpu.dot_dimension_numbers<[2], [1], [1], [2], [0, 0, 0, 1, 1, 2], [0], [0]>} : vector<4x8x32xbf16>, vector<4x32x8xbf16>, vector<4x8x8xf32> -> vector<4x8x8xf32>
    "tpu.trace_stop"() : () -> ()
    %84 = vector.broadcast %67 : vector<4x1x8xf32> to vector<4x8x8xf32>
    %85 = arith.addf %83, %84 : vector<4x8x8xf32>
    "tpu.trace_start"() <{level = 10 : i32, message = "hsd,hdf->hsf"}> : () -> ()
    %cst_60 = arith.constant dense<0.000000e+00> : vector<4x8x8xf32>
    %86 = tpu.matmul %79, %68, %cst_60 {dimension_numbers = #tpu.dot_dimension_numbers<[2], [1], [1], [2], [0, 0, 0, 1, 1, 2], [0], [0]>} : vector<4x8x32xbf16>, vector<4x32x8xbf16>, vector<4x8x8xf32> -> vector<4x8x8xf32>
    "tpu.trace_stop"() : () -> ()
    %87 = vector.broadcast %69 : vector<4x1x8xf32> to vector<4x8x8xf32>
    %88 = arith.addf %86, %87 : vector<4x8x8xf32>
    %cst_61 = arith.constant 0.353553385 : f32
    %89 = vector.broadcast %cst_61 : f32 to vector<4x8x8xf32>
    %90 = arith.mulf %82, %89 : vector<4x8x8xf32>
    %91 = arith.truncf %90 : vector<4x8x8xf32> to vector<4x8x8xbf16>
    %92 = arith.truncf %85 : vector<4x8x8xf32> to vector<4x8x8xbf16>
    %93 = arith.truncf %88 : vector<4x8x8xf32> to vector<4x8x8xbf16>
    "tpu.trace_start"() <{level = 10 : i32, message = "hqd,hkd->hqk"}> : () -> ()
    %cst_62 = arith.constant dense<0.000000e+00> : vector<4x8x8xf32>
    %94 = tpu.matmul %91, %92, %cst_62 {dimension_numbers = #tpu.dot_dimension_numbers<[2], [2], [1], [1], [0, 0, 0, 1, 1, 1], [0], [0]>} : vector<4x8x8xbf16>, vector<4x8x8xbf16>, vector<4x8x8xf32> -> vector<4x8x8xf32>
    "tpu.trace_stop"() : () -> ()
    %95 = vector.shape_cast %12 : vector<8x8xf32> to vector<1x8x8xf32>
    %96 = vector.broadcast %95 : vector<1x8x8xf32> to vector<4x8x8xf32>
    %97 = arith.addf %94, %96 : vector<4x8x8xf32>
    %cst_63 = arith.constant dense<0xFF800000> : vector<4x8xf32>
    %98 = vector.multi_reduction <maximumf>, %97, %cst_63 [2] : vector<4x8x8xf32> to vector<4x8xf32>
    %99 = vector.shape_cast %98 : vector<4x8xf32> to vector<4x8x1xf32>
    %100 = vector.broadcast %99 : vector<4x8x1xf32> to vector<4x8x8xf32>
    %101 = arith.subf %97, %100 : vector<4x8x8xf32>
    %102 = math.exp %101 : vector<4x8x8xf32>
    %cst_64 = arith.constant dense<0.000000e+00> : vector<4x8xf32>
    %103 = vector.multi_reduction <add>, %102, %cst_64 [2] : vector<4x8x8xf32> to vector<4x8xf32>
    %104 = vector.shape_cast %103 : vector<4x8xf32> to vector<4x8x1xf32>
    %105 = tpu.reciprocal %104 {approx = true} : vector<4x8x1xf32> -> vector<4x8x1xf32>
    %106 = vector.broadcast %105 : vector<4x8x1xf32> to vector<4x8x8xf32>
    %107 = arith.mulf %102, %106 : vector<4x8x8xf32>
    %108 = arith.truncf %107 : vector<4x8x8xf32> to vector<4x8x8xbf16>
    "tpu.trace_start"() <{level = 10 : i32, message = "hqk,hkd->hqd"}> : () -> ()
    %cst_65 = arith.constant dense<0.000000e+00> : vector<4x8x8xf32>
    %109 = tpu.matmul %108, %93, %cst_65 {dimension_numbers = #tpu.dot_dimension_numbers<[2], [1], [1], [2], [0, 0, 0, 1, 1, 2], [0], [0]>} : vector<4x8x8xbf16>, vector<4x8x8xbf16>, vector<4x8x8xf32> -> vector<4x8x8xf32>
    "tpu.trace_stop"() : () -> ()
    %110 = arith.truncf %109 : vector<4x8x8xf32> to vector<4x8x8xbf16>
    "tpu.trace_start"() <{level = 10 : i32, message = "hqd,hdf->hqf"}> : () -> ()
    %cst_66 = arith.constant dense<0.000000e+00> : vector<4x8x32xf32>
    %111 = tpu.matmul %110, %70, %cst_66 {dimension_numbers = #tpu.dot_dimension_numbers<[2], [1], [1], [2], [0, 0, 0, 1, 1, 2], [0], [0]>} : vector<4x8x8xbf16>, vector<4x8x32xbf16>, vector<4x8x32xf32> -> vector<4x8x32xf32>
    "tpu.trace_stop"() : () -> ()
    %cst_67 = arith.constant dense<0.000000e+00> : vector<8x32xf32>
    %112 = vector.multi_reduction <add>, %111, %cst_67 [0] : vector<4x8x32xf32> to vector<8x32xf32>
    %113 = vector.broadcast %71 : vector<1x32xf32> to vector<8x32xf32>
    %114 = arith.addf %112, %113 : vector<8x32xf32>
    %115 = arith.addf %1, %114 : vector<8x32xf32>
    %c0_68 = arith.constant 0 : index
    %c0_69 = arith.constant 0 : index
    %116 = vector.load %arg29[%c0_68, %c0_69] : memref<1x32xf32, #tpu.memory_space<vmem>>, vector<1x32xf32>
    %c0_70 = arith.constant 0 : index
    %c0_71 = arith.constant 0 : index
    %117 = vector.load %arg30[%c0_70, %c0_71] : memref<1x32xf32, #tpu.memory_space<vmem>>, vector<1x32xf32>
    %cst_72 = arith.constant dense<0.000000e+00> : vector<8xf32>
    %118 = vector.multi_reduction <add>, %115, %cst_72 [1] : vector<8x32xf32> to vector<8xf32>
    %119 = vector.shape_cast %118 : vector<8xf32> to vector<8x1xf32>
    %cst_73 = arith.constant 3.200000e+01 : f32
    %120 = vector.broadcast %cst_73 : f32 to vector<8x1xf32>
    %121 = arith.divf %119, %120 : vector<8x1xf32>
    %122 = vector.broadcast %121 : vector<8x1xf32> to vector<8x32xf32>
    %123 = arith.subf %115, %122 : vector<8x32xf32>
    %124 = arith.mulf %123, %123 : vector<8x32xf32>
    %cst_74 = arith.constant dense<0.000000e+00> : vector<8xf32>
    %125 = vector.multi_reduction <add>, %124, %cst_74 [1] : vector<8x32xf32> to vector<8xf32>
    %126 = vector.shape_cast %125 : vector<8xf32> to vector<8x1xf32>
    %cst_75 = arith.constant 3.100000e+01 : f32
    %127 = vector.broadcast %cst_75 : f32 to vector<8x1xf32>
    %128 = arith.divf %126, %127 : vector<8x1xf32>
    %129 = vector.broadcast %116 : vector<1x32xf32> to vector<8x32xf32>
    %130 = arith.mulf %129, %123 : vector<8x32xf32>
    %131 = math.sqrt %128 : vector<8x1xf32>
    %cst_76 = arith.constant 9.99999997E-7 : f32
    %132 = vector.broadcast %cst_76 : f32 to vector<8x1xf32>
    %133 = arith.addf %131, %132 : vector<8x1xf32>
    %134 = vector.broadcast %133 : vector<8x1xf32> to vector<8x32xf32>
    %135 = arith.divf %130, %134 : vector<8x32xf32>
    %136 = vector.broadcast %117 : vector<1x32xf32> to vector<8x32xf32>
    %137 = arith.addf %135, %136 : vector<8x32xf32>
    %c0_77 = arith.constant 0 : index
    %c0_78 = arith.constant 0 : index
    %c0_79 = arith.constant 0 : index
    %138 = vector.load %arg15[%c0_77, %c0_78, %c0_79] : memref<4x32x8xbf16, #tpu.memory_space<vmem>>, vector<4x32x8xbf16>
    %c0_80 = arith.constant 0 : index
    %c0_81 = arith.constant 0 : index
    %c0_82 = arith.constant 0 : index
    %139 = vector.load %arg16[%c0_80, %c0_81, %c0_82] : memref<4x1x8xf32, #tpu.memory_space<vmem>>, vector<4x1x8xf32>
    %c0_83 = arith.constant 0 : index
    %c0_84 = arith.constant 0 : index
    %c0_85 = arith.constant 0 : index
    %140 = vector.load %arg17[%c0_83, %c0_84, %c0_85] : memref<4x32x8xbf16, #tpu.memory_space<vmem>>, vector<4x32x8xbf16>
    %c0_86 = arith.constant 0 : index
    %c0_87 = arith.constant 0 : index
    %c0_88 = arith.constant 0 : index
    %141 = vector.load %arg18[%c0_86, %c0_87, %c0_88] : memref<4x1x8xf32, #tpu.memory_space<vmem>>, vector<4x1x8xf32>
    %c0_89 = arith.constant 0 : index
    %c0_90 = arith.constant 0 : index
    %c0_91 = arith.constant 0 : index
    %142 = vector.load %arg19[%c0_89, %c0_90, %c0_91] : memref<4x32x8xbf16, #tpu.memory_space<vmem>>, vector<4x32x8xbf16>
    %c0_92 = arith.constant 0 : index
    %c0_93 = arith.constant 0 : index
    %c0_94 = arith.constant 0 : index
    %143 = vector.load %arg20[%c0_92, %c0_93, %c0_94] : memref<4x1x8xf32, #tpu.memory_space<vmem>>, vector<4x1x8xf32>
    %c0_95 = arith.constant 0 : index
    %c0_96 = arith.constant 0 : index
    %c0_97 = arith.constant 0 : index
    %144 = vector.load %arg21[%c0_95, %c0_96, %c0_97] : memref<4x8x32xbf16, #tpu.memory_space<vmem>>, vector<4x8x32xbf16>
    %c0_98 = arith.constant 0 : index
    %c0_99 = arith.constant 0 : index
    %145 = vector.load %arg22[%c0_98, %c0_99] : memref<1x32xf32, #tpu.memory_space<vmem>>, vector<1x32xf32>
    %146 = arith.truncf %137 : vector<8x32xf32> to vector<8x32xbf16>
    %147 = vector.shape_cast %146 : vector<8x32xbf16> to vector<1x8x32xbf16>
    %148 = vector.shape_cast %147 : vector<1x8x32xbf16> to vector<1x8x32xbf16>
    %149 = vector.broadcast %148 : vector<1x8x32xbf16> to vector<4x8x32xbf16>
    %150 = arith.truncf %5 : vector<8x32xf32> to vector<8x32xbf16>
    %151 = vector.shape_cast %150 : vector<8x32xbf16> to vector<1x8x32xbf16>
    %152 = vector.shape_cast %151 : vector<1x8x32xbf16> to vector<1x8x32xbf16>
    %153 = vector.broadcast %152 : vector<1x8x32xbf16> to vector<4x8x32xbf16>
    "tpu.trace_start"() <{level = 10 : i32, message = "htd,hdf->htf"}> : () -> ()
    %cst_100 = arith.constant dense<0.000000e+00> : vector<4x8x8xf32>
    %154 = tpu.matmul %149, %138, %cst_100 {dimension_numbers = #tpu.dot_dimension_numbers<[2], [1], [1], [2], [0, 0, 0, 1, 1, 2], [0], [0]>} : vector<4x8x32xbf16>, vector<4x32x8xbf16>, vector<4x8x8xf32> -> vector<4x8x8xf32>
    "tpu.trace_stop"() : () -> ()
    %155 = vector.broadcast %139 : vector<4x1x8xf32> to vector<4x8x8xf32>
    %156 = arith.addf %154, %155 : vector<4x8x8xf32>
    "tpu.trace_start"() <{level = 10 : i32, message = "hsd,hdf->hsf"}> : () -> ()
    %cst_101 = arith.constant dense<0.000000e+00> : vector<4x8x8xf32>
    %157 = tpu.matmul %153, %140, %cst_101 {dimension_numbers = #tpu.dot_dimension_numbers<[2], [1], [1], [2], [0, 0, 0, 1, 1, 2], [0], [0]>} : vector<4x8x32xbf16>, vector<4x32x8xbf16>, vector<4x8x8xf32> -> vector<4x8x8xf32>
    "tpu.trace_stop"() : () -> ()
    %158 = vector.broadcast %141 : vector<4x1x8xf32> to vector<4x8x8xf32>
    %159 = arith.addf %157, %158 : vector<4x8x8xf32>
    "tpu.trace_start"() <{level = 10 : i32, message = "hsd,hdf->hsf"}> : () -> ()
    %cst_102 = arith.constant dense<0.000000e+00> : vector<4x8x8xf32>
    %160 = tpu.matmul %153, %142, %cst_102 {dimension_numbers = #tpu.dot_dimension_numbers<[2], [1], [1], [2], [0, 0, 0, 1, 1, 2], [0], [0]>} : vector<4x8x32xbf16>, vector<4x32x8xbf16>, vector<4x8x8xf32> -> vector<4x8x8xf32>
    "tpu.trace_stop"() : () -> ()
    %161 = vector.broadcast %143 : vector<4x1x8xf32> to vector<4x8x8xf32>
    %162 = arith.addf %160, %161 : vector<4x8x8xf32>
    %cst_103 = arith.constant 0.353553385 : f32
    %163 = vector.broadcast %cst_103 : f32 to vector<4x8x8xf32>
    %164 = arith.mulf %156, %163 : vector<4x8x8xf32>
    %165 = arith.truncf %164 : vector<4x8x8xf32> to vector<4x8x8xbf16>
    %166 = arith.truncf %159 : vector<4x8x8xf32> to vector<4x8x8xbf16>
    %167 = arith.truncf %162 : vector<4x8x8xf32> to vector<4x8x8xbf16>
    "tpu.trace_start"() <{level = 10 : i32, message = "hqd,hkd->hqk"}> : () -> ()
    %cst_104 = arith.constant dense<0.000000e+00> : vector<4x8x8xf32>
    %168 = tpu.matmul %165, %166, %cst_104 {dimension_numbers = #tpu.dot_dimension_numbers<[2], [2], [1], [1], [0, 0, 0, 1, 1, 1], [0], [0]>} : vector<4x8x8xbf16>, vector<4x8x8xbf16>, vector<4x8x8xf32> -> vector<4x8x8xf32>
    "tpu.trace_stop"() : () -> ()
    %169 = vector.shape_cast %19 : vector<1x8xf32> to vector<1x1x8xf32>
    %170 = vector.broadcast %169 : vector<1x1x8xf32> to vector<4x8x8xf32>
    %171 = arith.addf %168, %170 : vector<4x8x8xf32>
    %cst_105 = arith.constant dense<0xFF800000> : vector<4x8xf32>
    %172 = vector.multi_reduction <maximumf>, %171, %cst_105 [2] : vector<4x8x8xf32> to vector<4x8xf32>
    %173 = vector.shape_cast %172 : vector<4x8xf32> to vector<4x8x1xf32>
    %174 = vector.broadcast %173 : vector<4x8x1xf32> to vector<4x8x8xf32>
    %175 = arith.subf %171, %174 : vector<4x8x8xf32>
    %176 = math.exp %175 : vector<4x8x8xf32>
    %cst_106 = arith.constant dense<0.000000e+00> : vector<4x8xf32>
    %177 = vector.multi_reduction <add>, %176, %cst_106 [2] : vector<4x8x8xf32> to vector<4x8xf32>
    %178 = vector.shape_cast %177 : vector<4x8xf32> to vector<4x8x1xf32>
    %179 = tpu.reciprocal %178 {approx = true} : vector<4x8x1xf32> -> vector<4x8x1xf32>
    %180 = vector.broadcast %179 : vector<4x8x1xf32> to vector<4x8x8xf32>
    %181 = arith.mulf %176, %180 : vector<4x8x8xf32>
    %182 = arith.truncf %181 : vector<4x8x8xf32> to vector<4x8x8xbf16>
    "tpu.trace_start"() <{level = 10 : i32, message = "hqk,hkd->hqd"}> : () -> ()
    %cst_107 = arith.constant dense<0.000000e+00> : vector<4x8x8xf32>
    %183 = tpu.matmul %182, %167, %cst_107 {dimension_numbers = #tpu.dot_dimension_numbers<[2], [1], [1], [2], [0, 0, 0, 1, 1, 2], [0], [0]>} : vector<4x8x8xbf16>, vector<4x8x8xbf16>, vector<4x8x8xf32> -> vector<4x8x8xf32>
    "tpu.trace_stop"() : () -> ()
    %184 = arith.truncf %183 : vector<4x8x8xf32> to vector<4x8x8xbf16>
    "tpu.trace_start"() <{level = 10 : i32, message = "hqd,hdf->hqf"}> : () -> ()
    %cst_108 = arith.constant dense<0.000000e+00> : vector<4x8x32xf32>
    %185 = tpu.matmul %184, %144, %cst_108 {dimension_numbers = #tpu.dot_dimension_numbers<[2], [1], [1], [2], [0, 0, 0, 1, 1, 2], [0], [0]>} : vector<4x8x8xbf16>, vector<4x8x32xbf16>, vector<4x8x32xf32> -> vector<4x8x32xf32>
    "tpu.trace_stop"() : () -> ()
    %cst_109 = arith.constant dense<0.000000e+00> : vector<8x32xf32>
    %186 = vector.multi_reduction <add>, %185, %cst_109 [0] : vector<4x8x32xf32> to vector<8x32xf32>
    %187 = vector.broadcast %145 : vector<1x32xf32> to vector<8x32xf32>
    %188 = arith.addf %186, %187 : vector<8x32xf32>
    %189 = arith.addf %115, %188 : vector<8x32xf32>
    %c0_110 = arith.constant 0 : index
    %c0_111 = arith.constant 0 : index
    %190 = vector.load %arg31[%c0_110, %c0_111] : memref<1x32xf32, #tpu.memory_space<vmem>>, vector<1x32xf32>
    %c0_112 = arith.constant 0 : index
    %c0_113 = arith.constant 0 : index
    %191 = vector.load %arg32[%c0_112, %c0_113] : memref<1x32xf32, #tpu.memory_space<vmem>>, vector<1x32xf32>
    %cst_114 = arith.constant dense<0.000000e+00> : vector<8xf32>
    %192 = vector.multi_reduction <add>, %189, %cst_114 [1] : vector<8x32xf32> to vector<8xf32>
    %193 = vector.shape_cast %192 : vector<8xf32> to vector<8x1xf32>
    %cst_115 = arith.constant 3.200000e+01 : f32
    %194 = vector.broadcast %cst_115 : f32 to vector<8x1xf32>
    %195 = arith.divf %193, %194 : vector<8x1xf32>
    %196 = vector.broadcast %195 : vector<8x1xf32> to vector<8x32xf32>
    %197 = arith.subf %189, %196 : vector<8x32xf32>
    %198 = arith.mulf %197, %197 : vector<8x32xf32>
    %cst_116 = arith.constant dense<0.000000e+00> : vector<8xf32>
    %199 = vector.multi_reduction <add>, %198, %cst_116 [1] : vector<8x32xf32> to vector<8xf32>
    %200 = vector.shape_cast %199 : vector<8xf32> to vector<8x1xf32>
    %cst_117 = arith.constant 3.100000e+01 : f32
    %201 = vector.broadcast %cst_117 : f32 to vector<8x1xf32>
    %202 = arith.divf %200, %201 : vector<8x1xf32>
    %203 = vector.broadcast %190 : vector<1x32xf32> to vector<8x32xf32>
    %204 = arith.mulf %203, %197 : vector<8x32xf32>
    %205 = math.sqrt %202 : vector<8x1xf32>
    %cst_118 = arith.constant 9.99999997E-7 : f32
    %206 = vector.broadcast %cst_118 : f32 to vector<8x1xf32>
    %207 = arith.addf %205, %206 : vector<8x1xf32>
    %208 = vector.broadcast %207 : vector<8x1xf32> to vector<8x32xf32>
    %209 = arith.divf %204, %208 : vector<8x32xf32>
    %210 = vector.broadcast %191 : vector<1x32xf32> to vector<8x32xf32>
    %211 = arith.addf %209, %210 : vector<8x32xf32>
    %212 = arith.truncf %211 : vector<8x32xf32> to vector<8x32xbf16>
    %c0_119 = arith.constant 0 : index
    %c0_120 = arith.constant 0 : index
    %213 = vector.load %arg23[%c0_119, %c0_120] : memref<32x64xbf16, #tpu.memory_space<vmem>>, vector<32x64xbf16>
    %cst_121 = arith.constant dense<0.000000e+00> : vector<8x64xf32>
    %214 = tpu.matmul %212, %213, %cst_121 {dimension_numbers = #tpu.dot_dimension_numbers<[1], [0], [0], [1], [0, 0, 1, 1], [], []>} : vector<8x32xbf16>, vector<32x64xbf16>, vector<8x64xf32> -> vector<8x64xf32>
    %c0_122 = arith.constant 0 : index
    %c0_123 = arith.constant 0 : index
    %215 = vector.load %arg24[%c0_122, %c0_123] : memref<1x64xf32, #tpu.memory_space<vmem>>, vector<1x64xf32>
    %216 = vector.broadcast %215 : vector<1x64xf32> to vector<8x64xf32>
    %217 = arith.addf %214, %216 : vector<8x64xf32>
    %cst_124 = arith.constant 0.000000e+00 : f32
    %218 = vector.broadcast %cst_124 : f32 to vector<8x64xf32>
    %219 = arith.maximumf %217, %218 : vector<8x64xf32>
    %220 = arith.truncf %219 : vector<8x64xf32> to vector<8x64xbf16>
    %c0_125 = arith.constant 0 : index
    %c0_126 = arith.constant 0 : index
    %221 = vector.load %arg25[%c0_125, %c0_126] : memref<64x32xbf16, #tpu.memory_space<vmem>>, vector<64x32xbf16>
    %cst_127 = arith.constant dense<0.000000e+00> : vector<8x32xf32>
    %222 = tpu.matmul %220, %221, %cst_127 {dimension_numbers = #tpu.dot_dimension_numbers<[1], [0], [0], [1], [0, 0, 1, 1], [], []>} : vector<8x64xbf16>, vector<64x32xbf16>, vector<8x32xf32> -> vector<8x32xf32>
    %223 = arith.addf %189, %222 : vector<8x32xf32>
    %c0_128 = arith.constant 0 : index
    %c0_129 = arith.constant 0 : index
    %224 = vector.load %arg26[%c0_128, %c0_129] : memref<1x32xf32, #tpu.memory_space<vmem>>, vector<1x32xf32>
    %225 = vector.broadcast %224 : vector<1x32xf32> to vector<8x32xf32>
    %226 = arith.addf %223, %225 : vector<8x32xf32>
    %c0_130 = arith.constant 0 : index
    %c0_131 = arith.constant 0 : index
    %227 = vector.load %arg33[%c0_130, %c0_131] : memref<1x32xf32, #tpu.memory_space<vmem>>, vector<1x32xf32>
    %c0_132 = arith.constant 0 : index
    %c0_133 = arith.constant 0 : index
    %228 = vector.load %arg34[%c0_132, %c0_133] : memref<1x32xf32, #tpu.memory_space<vmem>>, vector<1x32xf32>
    %cst_134 = arith.constant dense<0.000000e+00> : vector<8xf32>
    %229 = vector.multi_reduction <add>, %226, %cst_134 [1] : vector<8x32xf32> to vector<8xf32>
    %230 = vector.shape_cast %229 : vector<8xf32> to vector<8x1xf32>
    %cst_135 = arith.constant 3.200000e+01 : f32
    %231 = vector.broadcast %cst_135 : f32 to vector<8x1xf32>
    %232 = arith.divf %230, %231 : vector<8x1xf32>
    %233 = vector.broadcast %232 : vector<8x1xf32> to vector<8x32xf32>
    %234 = arith.subf %226, %233 : vector<8x32xf32>
    %235 = arith.mulf %234, %234 : vector<8x32xf32>
    %cst_136 = arith.constant dense<0.000000e+00> : vector<8xf32>
    %236 = vector.multi_reduction <add>, %235, %cst_136 [1] : vector<8x32xf32> to vector<8xf32>
    %237 = vector.shape_cast %236 : vector<8xf32> to vector<8x1xf32>
    %cst_137 = arith.constant 3.100000e+01 : f32
    %238 = vector.broadcast %cst_137 : f32 to vector<8x1xf32>
    %239 = arith.divf %237, %238 : vector<8x1xf32>
    %240 = vector.broadcast %227 : vector<1x32xf32> to vector<8x32xf32>
    %241 = arith.mulf %240, %234 : vector<8x32xf32>
    %242 = math.sqrt %239 : vector<8x1xf32>
    %cst_138 = arith.constant 9.99999997E-7 : f32
    %243 = vector.broadcast %cst_138 : f32 to vector<8x1xf32>
    %244 = arith.addf %242, %243 : vector<8x1xf32>
    %245 = vector.broadcast %244 : vector<8x1xf32> to vector<8x32xf32>
    %246 = arith.divf %241, %245 : vector<8x32xf32>
    %247 = vector.broadcast %228 : vector<1x32xf32> to vector<8x32xf32>
    %248 = arith.addf %246, %247 : vector<8x32xf32>
    %c0_139 = arith.constant 0 : index
    %c0_140 = arith.constant 0 : index
    %c0_141 = arith.constant 0 : index
    %249 = vector.load %arg35[%c0_139, %c0_140, %c0_141] : memref<1x8x32xf32, #tpu.memory_space<vmem>>, vector<1x8x32xf32>
    %250 = vector.shape_cast %249 : vector<1x8x32xf32> to vector<8x32xf32>
    %251 = vector.shape_cast %248 : vector<8x32xf32> to vector<1x8x32xf32>
    tpu.vector_store %arg35[%c0_139, %c0_140, %c0_141], %251 {strides = array<i32>} : memref<1x8x32xf32, #tpu.memory_space<vmem>>, vector<1x8x32xf32>,
    return
  }
  func.func @transform_0(%arg0: i32, %arg1: i32) -> (i32, i32, i32) {
    %c0_i32 = arith.constant 0 : i32
    %c0_i32_0 = arith.constant 0 : i32
    return %arg0, %arg1, %c0_i32 : i32, i32, i32
  }
  func.func @transform_1(%arg0: i32, %arg1: i32) -> (i32, i32, i32) {
    %c0_i32 = arith.constant 0 : i32
    %c0_i32_0 = arith.constant 0 : i32
    %c0_i32_1 = arith.constant 0 : i32
    return %arg0, %c0_i32, %c0_i32_0 : i32, i32, i32
  }
  func.func @transform_2(%arg0: i32, %arg1: i32) -> (i32, i32, i32) {
    %c0_i32 = arith.constant 0 : i32
    %c0_i32_0 = arith.constant 0 : i32
    %c0_i32_1 = arith.constant 0 : i32
    return %arg0, %c0_i32, %c0_i32_0 : i32, i32, i32
  }
  func.func @transform_3(%arg0: i32, %arg1: i32) -> (i32, i32, i32) {
    %c0_i32 = arith.constant 0 : i32
    %c0_i32_0 = arith.constant 0 : i32
    return %arg0, %arg1, %c0_i32 : i32, i32, i32
  }
  func.func @transform_4(%arg0: i32, %arg1: i32) -> (i32, i32, i32) {
    %c0_i32 = arith.constant 0 : i32
    %c0_i32_0 = arith.constant 0 : i32
    %c0_i32_1 = arith.constant 0 : i32
    return %arg0, %c0_i32, %c0_i32_0 : i32, i32, i32
  }
  func.func @transform_5(%arg0: i32, %arg1: i32) -> (i32, i32, i32) {
    %c0_i32 = arith.constant 0 : i32
    %c0_i32_0 = arith.constant 0 : i32
    %c0_i32_1 = arith.constant 0 : i32
    %c0_i32_2 = arith.constant 0 : i32
    return %c0_i32, %c0_i32_0, %c0_i32_1 : i32, i32, i32
  }
  func.func @transform_6(%arg0: i32, %arg1: i32) -> (i32, i32, i32) {
    %c0_i32 = arith.constant 0 : i32
    %c0_i32_0 = arith.constant 0 : i32
    %c0_i32_1 = arith.constant 0 : i32
    %c0_i32_2 = arith.constant 0 : i32
    return %c0_i32, %c0_i32_0, %c0_i32_1 : i32, i32, i32
  }
  func.func @transform_7(%arg0: i32, %arg1: i32) -> (i32, i32, i32) {
    %c0_i32 = arith.constant 0 : i32
    %c0_i32_0 = arith.constant 0 : i32
    %c0_i32_1 = arith.constant 0 : i32
    %c0_i32_2 = arith.constant 0 : i32
    return %c0_i32, %c0_i32_0, %c0_i32_1 : i32, i32, i32
  }
  func.func @transform_8(%arg0: i32, %arg1: i32) -> (i32, i32, i32) {
    %c0_i32 = arith.constant 0 : i32
    %c0_i32_0 = arith.constant 0 : i32
    %c0_i32_1 = arith.constant 0 : i32
    %c0_i32_2 = arith.constant 0 : i32
    return %c0_i32, %c0_i32_0, %c0_i32_1 : i32, i32, i32
  }
  func.func @transform_9(%arg0: i32, %arg1: i32) -> (i32, i32, i32) {
    %c0_i32 = arith.constant 0 : i32
    %c0_i32_0 = arith.constant 0 : i32
    %c0_i32_1 = arith.constant 0 : i32
    %c0_i32_2 = arith.constant 0 : i32
    return %c0_i32, %c0_i32_0, %c0_i32_1 : i32, i32, i32
  }
  func.func @transform_10(%arg0: i32, %arg1: i32) -> (i32, i32, i32) {
    %c0_i32 = arith.constant 0 : i32
    %c0_i32_0 = arith.constant 0 : i32
    %c0_i32_1 = arith.constant 0 : i32
    %c0_i32_2 = arith.constant 0 : i32
    return %c0_i32, %c0_i32_0, %c0_i32_1 : i32, i32, i32
  }
  func.func @transform_11(%arg0: i32, %arg1: i32) -> (i32, i32, i32) {
    %c0_i32 = arith.constant 0 : i32
    %c0_i32_0 = arith.constant 0 : i32
    %c0_i32_1 = arith.constant 0 : i32
    %c0_i32_2 = arith.constant 0 : i32
    return %c0_i32, %c0_i32_0, %c0_i32_1 : i32, i32, i32
  }
  func.func @transform_12(%arg0: i32, %arg1: i32) -> (i32, i32) {
    %c0_i32 = arith.constant 0 : i32
    %c0_i32_0 = arith.constant 0 : i32
    %c0_i32_1 = arith.constant 0 : i32
    return %c0_i32, %c0_i32_0 : i32, i32
  }
  func.func @transform_13(%arg0: i32, %arg1: i32) -> (i32, i32, i32) {
    %c0_i32 = arith.constant 0 : i32
    %c0_i32_0 = arith.constant 0 : i32
    %c0_i32_1 = arith.constant 0 : i32
    %c0_i32_2 = arith.constant 0 : i32
    return %c0_i32, %c0_i32_0, %c0_i32_1 : i32, i32, i32
  }
  func.func @transform_14(%arg0: i32, %arg1: i32) -> (i32, i32, i32) {
    %c0_i32 = arith.constant 0 : i32
    %c0_i32_0 = arith.constant 0 : i32
    %c0_i32_1 = arith.constant 0 : i32
    %c0_i32_2 = arith.constant 0 : i32
    return %c0_i32, %c0_i32_0, %c0_i32_1 : i32, i32, i32
  }
  func.func @transform_15(%arg0: i32, %arg1: i32) -> (i32, i32, i32) {
    %c0_i32 = arith.constant 0 : i32
    %c0_i32_0 = arith.constant 0 : i32
    %c0_i32_1 = arith.constant 0 : i32
    %c0_i32_2 = arith.constant 0 : i32
    return %c0_i32, %c0_i32_0, %c0_i32_1 : i32, i32, i32
  }
  func.func @transform_16(%arg0: i32, %arg1: i32) -> (i32, i32, i32) {
    %c0_i32 = arith.constant 0 : i32
    %c0_i32_0 = arith.constant 0 : i32
    %c0_i32_1 = arith.constant 0 : i32
    %c0_i32_2 = arith.constant 0 : i32
    return %c0_i32, %c0_i32_0, %c0_i32_1 : i32, i32, i32
  }
  func.func @transform_17(%arg0: i32, %arg1: i32) -> (i32, i32, i32) {
    %c0_i32 = arith.constant 0 : i32
    %c0_i32_0 = arith.constant 0 : i32
    %c0_i32_1 = arith.constant 0 : i32
    %c0_i32_2 = arith.constant 0 : i32
    return %c0_i32, %c0_i32_0, %c0_i32_1 : i32, i32, i32
  }
  func.func @transform_18(%arg0: i32, %arg1: i32) -> (i32, i32, i32) {
    %c0_i32 = arith.constant 0 : i32
    %c0_i32_0 = arith.constant 0 : i32
    %c0_i32_1 = arith.constant 0 : i32
    %c0_i32_2 = arith.constant 0 : i32
    return %c0_i32, %c0_i32_0, %c0_i32_1 : i32, i32, i32
  }
  func.func @transform_19(%arg0: i32, %arg1: i32) -> (i32, i32, i32) {
    %c0_i32 = arith.constant 0 : i32
    %c0_i32_0 = arith.constant 0 : i32
    %c0_i32_1 = arith.constant 0 : i32
    %c0_i32_2 = arith.constant 0 : i32
    return %c0_i32, %c0_i32_0, %c0_i32_1 : i32, i32, i32
  }
  func.func @transform_20(%arg0: i32, %arg1: i32) -> (i32, i32) {
    %c0_i32 = arith.constant 0 : i32
    %c0_i32_0 = arith.constant 0 : i32
    %c0_i32_1 = arith.constant 0 : i32
    return %c0_i32, %c0_i32_0 : i32, i32
  }
  func.func @transform_21(%arg0: i32, %arg1: i32) -> (i32, i32) {
    %c0_i32 = arith.constant 0 : i32
    %c0_i32_0 = arith.constant 0 : i32
    %c0_i32_1 = arith.constant 0 : i32
    return %c0_i32, %c0_i32_0 : i32, i32
  }
  func.func @transform_22(%arg0: i32, %arg1: i32) -> (i32, i32) {
    %c0_i32 = arith.constant 0 : i32
    %c0_i32_0 = arith.constant 0 : i32
    %c0_i32_1 = arith.constant 0 : i32
    return %c0_i32, %c0_i32_0 : i32, i32
  }
  func.func @transform_23(%arg0: i32, %arg1: i32) -> (i32, i32) {
    %c0_i32 = arith.constant 0 : i32
    %c0_i32_0 = arith.constant 0 : i32
    %c0_i32_1 = arith.constant 0 : i32
    return %c0_i32, %c0_i32_0 : i32, i32
  }
  func.func @transform_24(%arg0: i32, %arg1: i32) -> (i32, i32) {
    %c0_i32 = arith.constant 0 : i32
    %c0_i32_0 = arith.constant 0 : i32
    %c0_i32_1 = arith.constant 0 : i32
    return %c0_i32, %c0_i32_0 : i32, i32
  }
  func.func @transform_25(%arg0: i32, %arg1: i32) -> (i32, i32) {
    %c0_i32 = arith.constant 0 : i32
    %c0_i32_0 = arith.constant 0 : i32
    %c0_i32_1 = arith.constant 0 : i32
    return %c0_i32, %c0_i32_0 : i32, i32
  }
  func.func @transform_26(%arg0: i32, %arg1: i32) -> (i32, i32) {
    %c0_i32 = arith.constant 0 : i32
    %c0_i32_0 = arith.constant 0 : i32
    %c0_i32_1 = arith.constant 0 : i32
    return %c0_i32, %c0_i32_0 : i32, i32
  }
  func.func @transform_27(%arg0: i32, %arg1: i32) -> (i32, i32) {
    %c0_i32 = arith.constant 0 : i32
    %c0_i32_0 = arith.constant 0 : i32
    %c0_i32_1 = arith.constant 0 : i32
    return %c0_i32, %c0_i32_0 : i32, i32
  }
  func.func @transform_28(%arg0: i32, %arg1: i32) -> (i32, i32) {
    %c0_i32 = arith.constant 0 : i32
    %c0_i32_0 = arith.constant 0 : i32
    %c0_i32_1 = arith.constant 0 : i32
    return %c0_i32, %c0_i32_0 : i32, i32
  }
  func.func @transform_29(%arg0: i32, %arg1: i32) -> (i32, i32) {
    %c0_i32 = arith.constant 0 : i32
    %c0_i32_0 = arith.constant 0 : i32
    %c0_i32_1 = arith.constant 0 : i32
    return %c0_i32, %c0_i32_0 : i32, i32
  }
  func.func @transform_30(%arg0: i32, %arg1: i32) -> (i32, i32) {
    %c0_i32 = arith.constant 0 : i32
    %c0_i32_0 = arith.constant 0 : i32
    %c0_i32_1 = arith.constant 0 : i32
    return %c0_i32, %c0_i32_0 : i32, i32
  }
  func.func @transform_31(%arg0: i32, %arg1: i32) -> (i32, i32) {
    %c0_i32 = arith.constant 0 : i32
    %c0_i32_0 = arith.constant 0 : i32
    %c0_i32_1 = arith.constant 0 : i32
    return %c0_i32, %c0_i32_0 : i32, i32
  }
  func.func @transform_32(%arg0: i32, %arg1: i32) -> (i32, i32) {
    %c0_i32 = arith.constant 0 : i32
    %c0_i32_0 = arith.constant 0 : i32
    %c0_i32_1 = arith.constant 0 : i32
    return %c0_i32, %c0_i32_0 : i32, i32
  }
  func.func @transform_33(%arg0: i32, %arg1: i32) -> (i32, i32, i32) {
    %c0_i32 = arith.constant 0 : i32
    %c0_i32_0 = arith.constant 0 : i32
    return %arg0, %arg1, %c0_i32 : i32, i32, i32
  }
}

module attributes {stable_mosaic.version = 11 : i64} {
  func.func @decoder_layer_kernel(%arg0: i32, %arg1: i32, %arg2: memref<1x8x32xf32, #tpu.memory_space<vmem>>, %arg3: memref<1x8x32xf32, #tpu.memory_space<vmem>>, %arg4: memref<1x8x32xf32, #tpu.memory_space<vmem>>, %arg5: memref<1x8x8xbf16, #tpu.memory_space<vmem>>, %arg6: memref<1x1x8xbf16, #tpu.memory_space<vmem>>, %arg7: memref<4x32x8xbf16, #tpu.memory_space<vmem>>, %arg8: memref<4x1x8xf32, #tpu.memory_space<vmem>>, %arg9: memref<4x32x8xbf16, #tpu.memory_space<vmem>>, %arg10: memref<4x1x8xf32, #tpu.memory_space<vmem>>, %arg11: memref<4x32x8xbf16, #tpu.memory_space<vmem>>, %arg12: memref<4x1x8xf32, #tpu.memory_space<vmem>>, %arg13: memref<4x8x32xbf16, #tpu.memory_space<vmem>>, %arg14: memref<1x32xf32, #tpu.memory_space<vmem>>, %arg15: memref<4x32x8xbf16, #tpu.memory_space<vmem>>, %arg16: memref<4x1x8xf32, #tpu.memory_space<vmem>>, %arg17: memref<4x32x8xbf16, #tpu.memory_space<vmem>>, %arg18: memref<4x1x8xf32, #tpu.memory_space<vmem>>, %arg19: memref<4x32x8xbf16, #tpu.memory_space<vmem>>, %arg20: memref<4x1x8xf32, #tpu.memory_space<vmem>>, %arg21: memref<4x8x32xbf16, #tpu.memory_space<vmem>>, %arg22: memref<1x32xf32, #tpu.memory_space<vmem>>, %arg23: memref<32x64xbf16, #tpu.memory_space<vmem>>, %arg24: memref<1x64xf32, #tpu.memory_space<vmem>>, %arg25: memref<64x32xbf16, #tpu.memory_space<vmem>>, %arg26: memref<1x32xf32, #tpu.memory_space<vmem>>, %arg27: memref<1x32xf32, #tpu.memory_space<vmem>>, %arg28: memref<1x32xf32, #tpu.memory_space<vmem>>, %arg29: memref<1x32xf32, #tpu.memory_space<vmem>>, %arg30: memref<1x32xf32, #tpu.memory_space<vmem>>, %arg31: memref<1x32xf32, #tpu.memory_space<vmem>>, %arg32: memref<1x32xf32, #tpu.memory_space<vmem>>, %arg33: memref<1x32xf32, #tpu.memory_space<vmem>>, %arg34: memref<1x32xf32, #tpu.memory_space<vmem>>, %arg35: memref<1x8x32xf32, #tpu.memory_space<vmem>>) attributes {dimension_semantics = [#tpu.dimension_semantics<parallel>, #tpu.dimension_semantics<parallel>], iteration_bounds = array<i64: 2, 1>, scalar_prefetch = 0 : i64, scratch_operands = 0 : i64, tpu.core_type = #tpu.core_type<tc>, window_params = [{transform_indices = @transform_0, window_bounds = array<i64: 1, 8, 32>}, {transform_indices = @transform_1, window_bounds = array<i64: 1, 8, 32>}, {transform_indices = @transform_2, window_bounds = array<i64: 1, 8, 32>}, {transform_indices = @transform_3, window_bounds = array<i64: 1, 8, 8>}, {transform_indices = @transform_4, window_bounds = array<i64: 1, 1, 8>}, {pipeline_mode = #tpu.pipeline_mode<synchronous>, transform_indices = @transform_5, window_bounds = array<i64: 4, 32, 8>}, {pipeline_mode = #tpu.pipeline_mode<synchronous>, transform_indices = @transform_6, window_bounds = array<i64: 4, 1, 8>}, {pipeline_mode = #tpu.pipeline_mode<synchronous>, transform_indices = @transform_7, window_bounds = array<i64: 4, 32, 8>}, {pipeline_mode = #tpu.pipeline_mode<synchronous>, transform_indices = @transform_8, window_bounds = array<i64: 4, 1, 8>}, {pipeline_mode = #tpu.pipeline_mode<synchronous>, transform_indices = @transform_9, window_bounds = array<i64: 4, 32, 8>}, {pipeline_mode = #tpu.pipeline_mode<synchronous>, transform_indices = @transform_10, window_bounds = array<i64: 4, 1, 8>}, {pipeline_mode = #tpu.pipeline_mode<synchronous>, transform_indices = @transform_11, window_bounds = array<i64: 4, 8, 32>}, {pipeline_mode = #tpu.pipeline_mode<synchronous>, transform_indices = @transform_12, window_bounds = array<i64: 1, 32>}, {pipeline_mode = #tpu.pipeline_mode<synchronous>, transform_indices = @transform_13, window_bounds = array<i64: 4, 32, 8>}, {pipeline_mode = #tpu.pipeline_mode<synchronous>, transform_indices = @transform_14, window_bounds = array<i64: 4, 1, 8>}, {pipeline_mode = #tpu.pipeline_mode<synchronous>, transform_indices = @transform_15, window_bounds = array<i64: 4, 32, 8>}, {pipeline_mode = #tpu.pipeline_mode<synchronous>, transform_indices = @transform_16, window_bounds = array<i64: 4, 1, 8>}, {pipeline_mode = #tpu.pipeline_mode<synchronous>, transform_indices = @transform_17, window_bounds = array<i64: 4, 32, 8>}, {pipeline_mode = #tpu.pipeline_mode<synchronous>, transform_indices = @transform_18, window_bounds = array<i64: 4, 1, 8>}, {pipeline_mode = #tpu.pipeline_mode<synchronous>, transform_indices = @transform_19, window_bounds = array<i64: 4, 8, 32>}, {pipeline_mode = #tpu.pipeline_mode<synchronous>, transform_indices = @transform_20, window_bounds = array<i64: 1, 32>}, {pipeline_mode = #tpu.pipeline_mode<synchronous>, transform_indices = @transform_21, window_bounds = array<i64: 32, 64>}, {pipeline_mode = #tpu.pipeline_mode<synchronous>, transform_indices = @transform_22, window_bounds = array<i64: 1, 64>}, {pipeline_mode = #tpu.pipeline_mode<synchronous>, transform_indices = @transform_23, window_bounds = array<i64: 64, 32>}, {pipeline_mode = #tpu.pipeline_mode<synchronous>, transform_indices = @transform_24, window_bounds = array<i64: 1, 32>}, {pipeline_mode = #tpu.pipeline_mode<synchronous>, transform_indices = @transform_25, window_bounds = array<i64: 1, 32>}, {pipeline_mode = #tpu.pipeline_mode<synchronous>, transform_indices = @transform_26, window_bounds = array<i64: 1, 32>}, {pipeline_mode = #tpu.pipeline_mode<synchronous>, transform_indices = @transform_27, window_bounds = array<i64: 1, 32>}, {pipeline_mode = #tpu.pipeline_mode<synchronous>, transform_indices = @transform_28, window_bounds = array<i64: 1, 32>}, {pipeline_mode = #tpu.pipeline_mode<synchronous>, transform_indices = @transform_29, window_bounds = array<i64: 1, 32>}, {pipeline_mode = #tpu.pipeline_mode<synchronous>, transform_indices = @transform_30, window_bounds = array<i64: 1, 32>}, {pipeline_mode = #tpu.pipeline_mode<synchronous>, transform_indices = @transform_31, window_bounds = array<i64: 1, 32>}, {pipeline_mode = #tpu.pipeline_mode<synchronous>, transform_indices = @transform_32, window_bounds = array<i64: 1, 32>}, {transform_indices = @transform_33, window_bounds = array<i64: 1, 8, 32>}]} {
    %c0 = arith.constant 0 : index
    %c0_0 = arith.constant 0 : index
    %c0_1 = arith.constant 0 : index
    %0 = vector.load %arg2[%c0, %c0_0, %c0_1] : memref<1x8x32xf32, #tpu.memory_space<vmem>>, vector<1x8x32xf32>
    %1 = vector.shape_cast %0 : vector<1x8x32xf32> to vector<8x32xf32>
    %c0_2 = arith.constant 0 : index
    %c0_3 = arith.constant 0 : index
    %c0_4 = arith.constant 0 : index
    %2 = vector.load %arg3[%c0_2, %c0_3, %c0_4] : memref<1x8x32xf32, #tpu.memory_space<vmem>>, vector<1x8x32xf32>
    %3 = vector.shape_cast %2 : vector<1x8x32xf32> to vector<8x32xf32>
    %c0_5 = arith.constant 0 : index
    %c0_6 = arith.constant 0 : index
    %c0_7 = arith.constant 0 : index
    %4 = vector.load %arg4[%c0_5, %c0_6, %c0_7] : memref<1x8x32xf32, #tpu.memory_space<vmem>>, vector<1x8x32xf32>
    %5 = vector.shape_cast %4 : vector<1x8x32xf32> to vector<8x32xf32>
    %c0_8 = arith.constant 0 : index
    %c0_9 = arith.constant 0 : index
    %c0_10 = arith.constant 0 : index
    %6 = vector.load %arg5[%c0_8, %c0_9, %c0_10] : memref<1x8x8xbf16, #tpu.memory_space<vmem>>, vector<1x8x8xbf16>
    %7 = vector.shape_cast %6 : vector<1x8x8xbf16> to vector<8x8xbf16>
    %8 = arith.extf %7 : vector<8x8xbf16> to vector<8x8xf32>
    %cst = arith.constant 1.000000e+00 : f32
    %9 = vector.broadcast %cst : f32 to vector<8x8xf32>
    %10 = arith.subf %8, %9 : vector<8x8xf32>
    %cst_11 = arith.constant 1.000000e+09 : f32
    %11 = vector.broadcast %cst_11 : f32 to vector<8x8xf32>
    %12 = arith.mulf %10, %11 : vector<8x8xf32>
    %c0_12 = arith.constant 0 : index
    %c0_13 = arith.constant 0 : index
    %c0_14 = arith.constant 0 : index
    %13 = vector.load %arg6[%c0_12, %c0_13, %c0_14] : memref<1x1x8xbf16, #tpu.memory_space<vmem>>, vector<1x1x8xbf16>
    %14 = vector.shape_cast %13 : vector<1x1x8xbf16> to vector<1x8xbf16>
    %15 = arith.extf %14 : vector<1x8xbf16> to vector<1x8xf32>
    %cst_15 = arith.constant 1.000000e+00 : f32
    %16 = vector.broadcast %cst_15 : f32 to vector<1x8xf32>
    %17 = arith.subf %15, %16 : vector<1x8xf32>
    %cst_16 = arith.constant 1.000000e+09 : f32
    %18 = vector.broadcast %cst_16 : f32 to vector<1x8xf32>
    %19 = arith.mulf %17, %18 : vector<1x8xf32>
    %c0_17 = arith.constant 0 : index
    %c0_18 = arith.constant 0 : index
    %20 = vector.load %arg27[%c0_17, %c0_18] : memref<1x32xf32, #tpu.memory_space<vmem>>, vector<1x32xf32>
    %c0_19 = arith.constant 0 : index
    %c0_20 = arith.constant 0 : index
    %21 = vector.load %arg28[%c0_19, %c0_20] : memref<1x32xf32, #tpu.memory_space<vmem>>, vector<1x32xf32>
    %cst_21 = arith.constant dense<0.000000e+00> : vector<8xf32>
    %22 = vector.multi_reduction <add>, %1, %cst_21 [1] : vector<8x32xf32> to vector<8xf32>
    %23 = vector.shape_cast %22 : vector<8xf32> to vector<8x1xf32>
    %cst_22 = arith.constant 3.200000e+01 : f32
    %24 = vector.broadcast %cst_22 : f32 to vector<8x1xf32>
    %25 = arith.divf %23, %24 : vector<8x1xf32>
    %26 = vector.broadcast %25 : vector<8x1xf32> to vector<8x32xf32>
    %27 = arith.subf %1, %26 : vector<8x32xf32>
    %28 = arith.mulf %27, %27 : vector<8x32xf32>
    %cst_23 = arith.constant dense<0.000000e+00> : vector<8xf32>
    %29 = vector.multi_reduction <add>, %28, %cst_23 [1] : vector<8x32xf32> to vector<8xf32>
    %30 = vector.shape_cast %29 : vector<8xf32> to vector<8x1xf32>
    %cst_24 = arith.constant 3.100000e+01 : f32
    %31 = vector.broadcast %cst_24 : f32 to vector<8x1xf32>
    %32 = arith.divf %30, %31 : vector<8x1xf32>
    %33 = vector.broadcast %20 : vector<1x32xf32> to vector<8x32xf32>
    %34 = arith.mulf %33, %27 : vector<8x32xf32>
    %35 = math.sqrt %32 : vector<8x1xf32>
    %cst_25 = arith.constant 9.99999997E-7 : f32
    %36 = vector.broadcast %cst_25 : f32 to vector<8x1xf32>
    %37 = arith.addf %35, %36 : vector<8x1xf32>
    %38 = vector.broadcast %37 : vector<8x1xf32> to vector<8x32xf32>
    %39 = arith.divf %34, %38 : vector<8x32xf32>
    %40 = vector.broadcast %21 : vector<1x32xf32> to vector<8x32xf32>
    %41 = arith.addf %39, %40 : vector<8x32xf32>
    %c0_26 = arith.constant 0 : index
    %c0_27 = arith.constant 0 : index
    %42 = vector.load %arg27[%c0_26, %c0_27] : memref<1x32xf32, #tpu.memory_space<vmem>>, vector<1x32xf32>
    %c0_28 = arith.constant 0 : index
    %c0_29 = arith.constant 0 : index
    %43 = vector.load %arg28[%c0_28, %c0_29] : memref<1x32xf32, #tpu.memory_space<vmem>>, vector<1x32xf32>
    %cst_30 = arith.constant dense<0.000000e+00> : vector<8xf32>
    %44 = vector.multi_reduction <add>, %3, %cst_30 [1] : vector<8x32xf32> to vector<8xf32>
    %45 = vector.shape_cast %44 : vector<8xf32> to vector<8x1xf32>
    %cst_31 = arith.constant 3.200000e+01 : f32
    %46 = vector.broadcast %cst_31 : f32 to vector<8x1xf32>
    %47 = arith.divf %45, %46 : vector<8x1xf32>
    %48 = vector.broadcast %47 : vector<8x1xf32> to vector<8x32xf32>
    %49 = arith.subf %3, %48 : vector<8x32xf32>
    %50 = arith.mulf %49, %49 : vector<8x32xf32>
    %cst_32 = arith.constant dense<0.000000e+00> : vector<8xf32>
    %51 = vector.multi_reduction <add>, %50, %cst_32 [1] : vector<8x32xf32> to vector<8xf32>
    %52 = vector.shape_cast %51 : vector<8xf32> to vector<8x1xf32>
    %cst_33 = arith.constant 3.100000e+01 : f32
    %53 = vector.broadcast %cst_33 : f32 to vector<8x1xf32>
    %54 = arith.divf %52, %53 : vector<8x1xf32>
    %55 = vector.broadcast %42 : vector<1x32xf32> to vector<8x32xf32>
    %56 = arith.mulf %55, %49 : vector<8x32xf32>
    %57 = math.sqrt %54 : vector<8x1xf32>
    %cst_34 = arith.constant 9.99999997E-7 : f32
    %58 = vector.broadcast %cst_34 : f32 to vector<8x1xf32>
    %59 = arith.addf %57, %58 : vector<8x1xf32>
    %60 = vector.broadcast %59 : vector<8x1xf32> to vector<8x32xf32>
    %61 = arith.divf %56, %60 : vector<8x32xf32>
    %62 = vector.broadcast %43 : vector<1x32xf32> to vector<8x32xf32>
    %63 = arith.addf %61, %62 : vector<8x32xf32>
    %c0_35 = arith.constant 0 : index
    %c0_36 = arith.constant 0 : index
    %c0_37 = arith.constant 0 : index
    %64 = vector.load %arg7[%c0_35, %c0_36, %c0_37] : memref<4x32x8xbf16, #tpu.memory_space<vmem>>, vector<4x32x8xbf16>
    %c0_38 = arith.constant 0 : index
    %c0_39 = arith.constant 0 : index
    %c0_40 = arith.constant 0 : index
    %65 = vector.load %arg8[%c0_38, %c0_39, %c0_40] : memref<4x1x8xf32, #tpu.memory_space<vmem>>, vector<4x1x8xf32>
    %c0_41 = arith.constant 0 : index
    %c0_42 = arith.constant 0 : index
    %c0_43 = arith.constant 0 : index
    %66 = vector.load %arg9[%c0_41, %c0_42, %c0_43] : memref<4x32x8xbf16, #tpu.memory_space<vmem>>, vector<4x32x8xbf16>
    %c0_44 = arith.constant 0 : index
    %c0_45 = arith.constant 0 : index
    %c0_46 = arith.constant 0 : index
    %67 = vector.load %arg10[%c0_44, %c0_45, %c0_46] : memref<4x1x8xf32, #tpu.memory_space<vmem>>, vector<4x1x8xf32>
    %c0_47 = arith.constant 0 : index
    %c0_48 = arith.constant 0 : index
    %c0_49 = arith.constant 0 : index
    %68 = vector.load %arg11[%c0_47, %c0_48, %c0_49] : memref<4x32x8xbf16, #tpu.memory_space<vmem>>, vector<4x32x8xbf16>
    %c0_50 = arith.constant 0 : index
    %c0_51 = arith.constant 0 : index
    %c0_52 = arith.constant 0 : index
    %69 = vector.load %arg12[%c0_50, %c0_51, %c0_52] : memref<4x1x8xf32, #tpu.memory_space<vmem>>, vector<4x1x8xf32>
    %c0_53 = arith.constant 0 : index
    %c0_54 = arith.constant 0 : index
    %c0_55 = arith.constant 0 : index
    %70 = vector.load %arg13[%c0_53, %c0_54, %c0_55] : memref<4x8x32xbf16, #tpu.memory_space<vmem>>, vector<4x8x32xbf16>
    %c0_56 = arith.constant 0 : index
    %c0_57 = arith.constant 0 : index
    %71 = vector.load %arg14[%c0_56, %c0_57] : memref<1x32xf32, #tpu.memory_space<vmem>>, vector<1x32xf32>
    %72 = arith.truncf %41 : vector<8x32xf32> to vector<8x32xbf16>
    %73 = vector.shape_cast %72 : vector<8x32xbf16> to vector<1x8x32xbf16>
    %74 = vector.shape_cast %73 : vector<1x8x32xbf16> to vector<1x8x32xbf16>
    %75 = vector.broadcast %74 : vector<1x8x32xbf16> to vector<4x8x32xbf16>
    %76 = arith.truncf %63 : vector<8x32xf32> to vector<8x32xbf16>
    %77 = vector.shape_cast %76 : vector<8x32xbf16> to vector<1x8x32xbf16>
    %78 = vector.shape_cast %77 : vector<1x8x32xbf16> to vector<1x8x32xbf16>
    %79 = vector.broadcast %78 : vector<1x8x32xbf16> to vector<4x8x32xbf16>
    "tpu.trace_start"() <{level = 10 : i32, message = "htd,hdf->htf"}> : () -> ()
    %cst_58 = arith.constant dense<0.000000e+00> : vector<4x8x8xf32>
    %80 = tpu.matmul %75, %64, %cst_58 {dimension_numbers = #tpu.dot_dimension_numbers<[2], [1], [1], [2], [0, 0, 0, 1, 1, 2], [0], [0]>} : vector<4x8x32xbf16>, vector<4x32x8xbf16>, vector<4x8x8xf32> -> vector<4x8x8xf32>
    "tpu.trace_stop"() : () -> ()
    %81 = vector.broadcast %65 : vector<4x1x8xf32> to vector<4x8x8xf32>
    %82 = arith.addf %80, %81 : vector<4x8x8xf32>
    "tpu.trace_start"() <{level = 10 : i32, message = "hsd,hdf->hsf"}> : () -> ()
    %cst_59 = arith.constant dense<0.000000e+00> : vector<4x8x8xf32>
    %83 = tpu.matmul %79, %66, %cst_59 {dimension_numbers = #tpu.dot_dimension_numbers<[2], [1], [1], [2], [0, 0, 0, 1, 1, 2], [0], [0]>} : vector<4x8x32xbf16>, vector<4x32x8xbf16>, vector<4x8x8xf32> -> vector<4x8x8xf32>
    "tpu.trace_stop"() : () -> ()
    %84 = vector.broadcast %67 : vector<4x1x8xf32> to vector<4x8x8xf32>
    %85 = arith.addf %83, %84 : vector<4x8x8xf32>
    "tpu.trace_start"() <{level = 10 : i32, message = "hsd,hdf->hsf"}> : () -> ()
    %cst_60 = arith.constant dense<0.000000e+00> : vector<4x8x8xf32>
    %86 = tpu.matmul %79, %68, %cst_60 {dimension_numbers = #tpu.dot_dimension_numbers<[2], [1], [1], [2], [0, 0, 0, 1, 1, 2], [0], [0]>} : vector<4x8x32xbf16>, vector<4x32x8xbf16>, vector<4x8x8xf32> -> vector<4x8x8xf32>
    "tpu.trace_stop"() : () -> ()
    %87 = vector.broadcast %69 : vector<4x1x8xf32> to vector<4x8x8xf32>
    %88 = arith.addf %86, %87 : vector<4x8x8xf32>
    %cst_61 = arith.constant 0.353553385 : f32
    %89 = vector.broadcast %cst_61 : f32 to vector<4x8x8xf32>
    %90 = arith.mulf %82, %89 : vector<4x8x8xf32>
    %91 = arith.truncf %90 : vector<4x8x8xf32> to vector<4x8x8xbf16>
    %92 = arith.truncf %85 : vector<4x8x8xf32> to vector<4x8x8xbf16>
    %93 = arith.truncf %88 : vector<4x8x8xf32> to vector<4x8x8xbf16>
    "tpu.trace_start"() <{level = 10 : i32, message = "hqd,hkd->hqk"}> : () -> ()
    %cst_62 = arith.constant dense<0.000000e+00> : vector<4x8x8xf32>
    %94 = tpu.matmul %91, %92, %cst_62 {dimension_numbers = #tpu.dot_dimension_numbers<[2], [2], [1], [1], [0, 0, 0, 1, 1, 1], [0], [0]>} : vector<4x8x8xbf16>, vector<4x8x8xbf16>, vector<4x8x8xf32> -> vector<4x8x8xf32>
    "tpu.trace_stop"() : () -> ()
    %95 = vector.shape_cast %12 : vector<8x8xf32> to vector<1x8x8xf32>
    %96 = vector.broadcast %95 : vector<1x8x8xf32> to vector<4x8x8xf32>
    %97 = arith.addf %94, %96 : vector<4x8x8xf32>
    %cst_63 = arith.constant dense<0xFF800000> : vector<4x8xf32>
    %98 = vector.multi_reduction <maximumf>, %97, %cst_63 [2] : vector<4x8x8xf32> to vector<4x8xf32>
    %99 = vector.shape_cast %98 : vector<4x8xf32> to vector<4x8x1xf32>
    %100 = vector.broadcast %99 : vector<4x8x1xf32> to vector<4x8x8xf32>
    %101 = arith.subf %97, %100 : vector<4x8x8xf32>
    %102 = math.exp %101 : vector<4x8x8xf32>
    %cst_64 = arith.constant dense<0.000000e+00> : vector<4x8xf32>
    %103 = vector.multi_reduction <add>, %102, %cst_64 [2] : vector<4x8x8xf32> to vector<4x8xf32>
    %104 = vector.shape_cast %103 : vector<4x8xf32> to vector<4x8x1xf32>
    %105 = tpu.reciprocal %104 {approx = true} : vector<4x8x1xf32> -> vector<4x8x1xf32>
    %106 = vector.broadcast %105 : vector<4x8x1xf32> to vector<4x8x8xf32>
    %107 = arith.mulf %102, %106 : vector<4x8x8xf32>
    %108 = arith.truncf %107 : vector<4x8x8xf32> to vector<4x8x8xbf16>
    "tpu.trace_start"() <{level = 10 : i32, message = "hqk,hkd->hqd"}> : () -> ()
    %cst_65 = arith.constant dense<0.000000e+00> : vector<4x8x8xf32>
    %109 = tpu.matmul %108, %93, %cst_65 {dimension_numbers = #tpu.dot_dimension_numbers<[2], [1], [1], [2], [0, 0, 0, 1, 1, 2], [0], [0]>} : vector<4x8x8xbf16>, vector<4x8x8xbf16>, vector<4x8x8xf32> -> vector<4x8x8xf32>
    "tpu.trace_stop"() : () -> ()
    %110 = arith.truncf %109 : vector<4x8x8xf32> to vector<4x8x8xbf16>
    "tpu.trace_start"() <{level = 10 : i32, message = "hqd,hdf->hqf"}> : () -> ()
    %cst_66 = arith.constant dense<0.000000e+00> : vector<4x8x32xf32>
    %111 = tpu.matmul %110, %70, %cst_66 {dimension_numbers = #tpu.dot_dimension_numbers<[2], [1], [1], [2], [0, 0, 0, 1, 1, 2], [0], [0]>} : vector<4x8x8xbf16>, vector<4x8x32xbf16>, vector<4x8x32xf32> -> vector<4x8x32xf32>
    "tpu.trace_stop"() : () -> ()
    %cst_67 = arith.constant dense<0.000000e+00> : vector<8x32xf32>
    %112 = vector.multi_reduction <add>, %111, %cst_67 [0] : vector<4x8x32xf32> to vector<8x32xf32>
    %113 = vector.broadcast %71 : vector<1x32xf32> to vector<8x32xf32>
    %114 = arith.addf %112, %113 : vector<8x32xf32>
    %115 = arith.addf %1, %114 : vector<8x32xf32>
    %c0_68 = arith.constant 0 : index
    %c0_69 = arith.constant 0 : index
    %116 = vector.load %arg29[%c0_68, %c0_69] : memref<1x32xf32, #tpu.memory_space<vmem>>, vector<1x32xf32>
    %c0_70 = arith.constant 0 : index
    %c0_71 = arith.constant 0 : index
    %117 = vector.load %arg30[%c0_70, %c0_71] : memref<1x32xf32, #tpu.memory_space<vmem>>, vector<1x32xf32>
    %cst_72 = arith.constant dense<0.000000e+00> : vector<8xf32>
    %118 = vector.multi_reduction <add>, %115, %cst_72 [1] : vector<8x32xf32> to vector<8xf32>
    %119 = vector.shape_cast %118 : vector<8xf32> to vector<8x1xf32>
    %cst_73 = arith.constant 3.200000e+01 : f32
    %120 = vector.broadcast %cst_73 : f32 to vector<8x1xf32>
    %121 = arith.divf %119, %120 : vector<8x1xf32>
    %122 = vector.broadcast %121 : vector<8x1xf32> to vector<8x32xf32>
    %123 = arith.subf %115, %122 : vector<8x32xf32>
    %124 = arith.mulf %123, %123 : vector<8x32xf32>
    %cst_74 = arith.constant dense<0.000000e+00> : vector<8xf32>
    %125 = vector.multi_reduction <add>, %124, %cst_74 [1] : vector<8x32xf32> to vector<8xf32>
    %126 = vector.shape_cast %125 : vector<8xf32> to vector<8x1xf32>
    %cst_75 = arith.constant 3.100000e+01 : f32
    %127 = vector.broadcast %cst_75 : f32 to vector<8x1xf32>
    %128 = arith.divf %126, %127 : vector<8x1xf32>
    %129 = vector.broadcast %116 : vector<1x32xf32> to vector<8x32xf32>
    %130 = arith.mulf %129, %123 : vector<8x32xf32>
    %131 = math.sqrt %128 : vector<8x1xf32>
    %cst_76 = arith.constant 9.99999997E-7 : f32
    %132 = vector.broadcast %cst_76 : f32 to vector<8x1xf32>
    %133 = arith.addf %131, %132 : vector<8x1xf32>
    %134 = vector.broadcast %133 : vector<8x1xf32> to vector<8x32xf32>
    %135 = arith.divf %130, %134 : vector<8x32xf32>
    %136 = vector.broadcast %117 : vector<1x32xf32> to vector<8x32xf32>
    %137 = arith.addf %135, %136 : vector<8x32xf32>
    %c0_77 = arith.constant 0 : index
    %c0_78 = arith.constant 0 : index
    %c0_79 = arith.constant 0 : index
    %138 = vector.load %arg15[%c0_77, %c0_78, %c0_79] : memref<4x32x8xbf16, #tpu.memory_space<vmem>>, vector<4x32x8xbf16>
    %c0_80 = arith.constant 0 : index
    %c0_81 = arith.constant 0 : index
    %c0_82 = arith.constant 0 : index
    %139 = vector.load %arg16[%c0_80, %c0_81, %c0_82] : memref<4x1x8xf32, #tpu.memory_space<vmem>>, vector<4x1x8xf32>
    %c0_83 = arith.constant 0 : index
    %c0_84 = arith.constant 0 : index
    %c0_85 = arith.constant 0 : index
    %140 = vector.load %arg17[%c0_83, %c0_84, %c0_85] : memref<4x32x8xbf16, #tpu.memory_space<vmem>>, vector<4x32x8xbf16>
    %c0_86 = arith.constant 0 : index
    %c0_87 = arith.constant 0 : index
    %c0_88 = arith.constant 0 : index
    %141 = vector.load %arg18[%c0_86, %c0_87, %c0_88] : memref<4x1x8xf32, #tpu.memory_space<vmem>>, vector<4x1x8xf32>
    %c0_89 = arith.constant 0 : index
    %c0_90 = arith.constant 0 : index
    %c0_91 = arith.constant 0 : index
    %142 = vector.load %arg19[%c0_89, %c0_90, %c0_91] : memref<4x32x8xbf16, #tpu.memory_space<vmem>>, vector<4x32x8xbf16>
    %c0_92 = arith.constant 0 : index
    %c0_93 = arith.constant 0 : index
    %c0_94 = arith.constant 0 : index
    %143 = vector.load %arg20[%c0_92, %c0_93, %c0_94] : memref<4x1x8xf32, #tpu.memory_space<vmem>>, vector<4x1x8xf32>
    %c0_95 = arith.constant 0 : index
    %c0_96 = arith.constant 0 : index
    %c0_97 = arith.constant 0 : index
    %144 = vector.load %arg21[%c0_95, %c0_96, %c0_97] : memref<4x8x32xbf16, #tpu.memory_space<vmem>>, vector<4x8x32xbf16>
    %c0_98 = arith.constant 0 : index
    %c0_99 = arith.constant 0 : index
    %145 = vector.load %arg22[%c0_98, %c0_99] : memref<1x32xf32, #tpu.memory_space<vmem>>, vector<1x32xf32>
    %146 = arith.truncf %137 : vector<8x32xf32> to vector<8x32xbf16>
    %147 = vector.shape_cast %146 : vector<8x32xbf16> to vector<1x8x32xbf16>
    %148 = vector.shape_cast %147 : vector<1x8x32xbf16> to vector<1x8x32xbf16>
    %149 = vector.broadcast %148 : vector<1x8x32xbf16> to vector<4x8x32xbf16>
    %150 = arith.truncf %5 : vector<8x32xf32> to vector<8x32xbf16>
    %151 = vector.shape_cast %150 : vector<8x32xbf16> to vector<1x8x32xbf16>
    %152 = vector.shape_cast %151 : vector<1x8x32xbf16> to vector<1x8x32xbf16>
    %153 = vector.broadcast %152 : vector<1x8x32xbf16> to vector<4x8x32xbf16>
    "tpu.trace_start"() <{level = 10 : i32, message = "htd,hdf->htf"}> : () -> ()
    %cst_100 = arith.constant dense<0.000000e+00> : vector<4x8x8xf32>
    %154 = tpu.matmul %149, %138, %cst_100 {dimension_numbers = #tpu.dot_dimension_numbers<[2], [1], [1], [2], [0, 0, 0, 1, 1, 2], [0], [0]>} : vector<4x8x32xbf16>, vector<4x32x8xbf16>, vector<4x8x8xf32> -> vector<4x8x8xf32>
    "tpu.trace_stop"() : () -> ()
    %155 = vector.broadcast %139 : vector<4x1x8xf32> to vector<4x8x8xf32>
    %156 = arith.addf %154, %155 : vector<4x8x8xf32>
    "tpu.trace_start"() <{level = 10 : i32, message = "hsd,hdf->hsf"}> : () -> ()
    %cst_101 = arith.constant dense<0.000000e+00> : vector<4x8x8xf32>
    %157 = tpu.matmul %153, %140, %cst_101 {dimension_numbers = #tpu.dot_dimension_numbers<[2], [1], [1], [2], [0, 0, 0, 1, 1, 2], [0], [0]>} : vector<4x8x32xbf16>, vector<4x32x8xbf16>, vector<4x8x8xf32> -> vector<4x8x8xf32>
    "tpu.trace_stop"() : () -> ()
    %158 = vector.broadcast %141 : vector<4x1x8xf32> to vector<4x8x8xf32>
    %159 = arith.addf %157, %158 : vector<4x8x8xf32>
    "tpu.trace_start"() <{level = 10 : i32, message = "hsd,hdf->hsf"}> : () -> ()
    %cst_102 = arith.constant dense<0.000000e+00> : vector<4x8x8xf32>
    %160 = tpu.matmul %153, %142, %cst_102 {dimension_numbers = #tpu.dot_dimension_numbers<[2], [1], [1], [2], [0, 0, 0, 1, 1, 2], [0], [0]>} : vector<4x8x32xbf16>, vector<4x32x8xbf16>, vector<4x8x8xf32> -> vector<4x8x8xf32>
    "tpu.trace_stop"() : () -> ()
    %161 = vector.broadcast %143 : vector<4x1x8xf32> to vector<4x8x8xf32>
    %162 = arith.addf %160, %161 : vector<4x8x8xf32>
    %cst_103 = arith.constant 0.353553385 : f32
    %163 = vector.broadcast %cst_103 : f32 to vector<4x8x8xf32>
    %164 = arith.mulf %156, %163 : vector<4x8x8xf32>
    %165 = arith.truncf %164 : vector<4x8x8xf32> to vector<4x8x8xbf16>
    %166 = arith.truncf %159 : vector<4x8x8xf32> to vector<4x8x8xbf16>
    %167 = arith.truncf %162 : vector<4x8x8xf32> to vector<4x8x8xbf16>
    "tpu.trace_start"() <{level = 10 : i32, message = "hqd,hkd->hqk"}> : () -> ()
    %cst_104 = arith.constant dense<0.000000e+00> : vector<4x8x8xf32>
    %168 = tpu.matmul %165, %166, %cst_104 {dimension_numbers = #tpu.dot_dimension_numbers<[2], [2], [1], [1], [0, 0, 0, 1, 1, 1], [0], [0]>} : vector<4x8x8xbf16>, vector<4x8x8xbf16>, vector<4x8x8xf32> -> vector<4x8x8xf32>
    "tpu.trace_stop"() : () -> ()
    %169 = vector.shape_cast %19 : vector<1x8xf32> to vector<1x1x8xf32>
    %170 = vector.broadcast %169 : vector<1x1x8xf32> to vector<4x8x8xf32>
    %171 = arith.addf %168, %170 : vector<4x8x8xf32>
    %cst_105 = arith.constant dense<0xFF800000> : vector<4x8xf32>
    %172 = vector.multi_reduction <maximumf>, %171, %cst_105 [2] : vector<4x8x8xf32> to vector<4x8xf32>
    %173 = vector.shape_cast %172 : vector<4x8xf32> to vector<4x8x1xf32>
    %174 = vector.broadcast %173 : vector<4x8x1xf32> to vector<4x8x8xf32>
    %175 = arith.subf %171, %174 : vector<4x8x8xf32>
    %176 = math.exp %175 : vector<4x8x8xf32>
    %cst_106 = arith.constant dense<0.000000e+00> : vector<4x8xf32>
    %177 = vector.multi_reduction <add>, %176, %cst_106 [2] : vector<4x8x8xf32> to vector<4x8xf32>
    %178 = vector.shape_cast %177 : vector<4x8xf32> to vector<4x8x1xf32>
    %179 = tpu.reciprocal %178 {approx = true} : vector<4x8x1xf32> -> vector<4x8x1xf32>
    %180 = vector.broadcast %179 : vector<4x8x1xf32> to vector<4x8x8xf32>
    %181 = arith.mulf %176, %180 : vector<4x8x8xf32>
    %182 = arith.truncf %181 : vector<4x8x8xf32> to vector<4x8x8xbf16>
    "tpu.trace_start"() <{level = 10 : i32, message = "hqk,hkd->hqd"}> : () -> ()
    %cst_107 = arith.constant dense<0.000000e+00> : vector<4x8x8xf32>
    %183 = tpu.matmul %182, %167, %cst_107 {dimension_numbers = #tpu.dot_dimension_numbers<[2], [1], [1], [2], [0, 0, 0, 1, 1, 2], [0], [0]>} : vector<4x8x8xbf16>, vector<4x8x8xbf16>, vector<4x8x8xf32> -> vector<4x8x8xf32>
    "tpu.trace_stop"() : () -> ()
    %184 = arith.truncf %183 : vector<4x8x8xf32> to vector<4x8x8xbf16>
    "tpu.trace_start"() <{level = 10 : i32, message = "hqd,hdf->hqf"}> : () -> ()
    %cst_108 = arith.constant dense<0.000000e+00> : vector<4x8x32xf32>
    %185 = tpu.matmul %184, %144, %cst_108 {dimension_numbers = #tpu.dot_dimension_numbers<[2], [1], [1], [2], [0, 0, 0, 1, 1, 2], [0], [0]>} : vector<4x8x8xbf16>, vector<4x8x32xbf16>, vector<4x8x32xf32> -> vector<4x8x32xf32>
    "tpu.trace_stop"() : () -> ()
    %cst_109 = arith.constant dense<0.000000e+00> : vector<8x32xf32>
    %186 = vector.multi_reduction <add>, %185, %cst_109 [0] : vector<4x8x32xf32> to vector<8x32xf32>
    %187 = vector.broadcast %145 : vector<1x32xf32> to vector<8x32xf32>
    %188 = arith.addf %186, %187 : vector<8x32xf32>
    %189 = arith.addf %115, %188 : vector<8x32xf32>
    %c0_110 = arith.constant 0 : index
    %c0_111 = arith.constant 0 : index
    %190 = vector.load %arg31[%c0_110, %c0_111] : memref<1x32xf32, #tpu.memory_space<vmem>>, vector<1x32xf32>
    %c0_112 = arith.constant 0 : index
    %c0_113 = arith.constant 0 : index
    %191 = vector.load %arg32[%c0_112, %c0_113] : memref<1x32xf32, #tpu.memory_space<vmem>>, vector<1x32xf32>
    %cst_114 = arith.constant dense<0.000000e+00> : vector<8xf32>
    %192 = vector.multi_reduction <add>, %189, %cst_114 [1] : vector<8x32xf32> to vector<8xf32>
    %193 = vector.shape_cast %192 : vector<8xf32> to vector<8x1xf32>
    %cst_115 = arith.constant 3.200000e+01 : f32
    %194 = vector.broadcast %cst_115 : f32 to vector<8x1xf32>
    %195 = arith.divf %193, %194 : vector<8x1xf32>
    %196 = vector.broadcast %195 : vector<8x1xf32> to vector<8x32xf32>
    %197 = arith.subf %189, %196 : vector<8x32xf32>
    %198 = arith.mulf %197, %197 : vector<8x32xf32>
    %cst_116 = arith.constant dense<0.000000e+00> : vector<8xf32>
    %199 = vector.multi_reduction <add>, %198, %cst_116 [1] : vector<8x32xf32> to vector<8xf32>
    %200 = vector.shape_cast %199 : vector<8xf32> to vector<8x1xf32>
    %cst_117 = arith.constant 3.100000e+01 : f32
    %201 = vector.broadcast %cst_117 : f32 to vector<8x1xf32>
    %202 = arith.divf %200, %201 : vector<8x1xf32>
    %203 = vector.broadcast %190 : vector<1x32xf32> to vector<8x32xf32>
    %204 = arith.mulf %203, %197 : vector<8x32xf32>
    %205 = math.sqrt %202 : vector<8x1xf32>
    %cst_118 = arith.constant 9.99999997E-7 : f32
    %206 = vector.broadcast %cst_118 : f32 to vector<8x1xf32>
    %207 = arith.addf %205, %206 : vector<8x1xf32>
    %208 = vector.broadcast %207 : vector<8x1xf32> to vector<8x32xf32>
    %209 = arith.divf %204, %208 : vector<8x32xf32>
    %210 = vector.broadcast %191 : vector<1x32xf32> to vector<8x32xf32>
    %211 = arith.addf %209, %210 : vector<8x32xf32>
    %212 = arith.truncf %211 : vector<8x32xf32> to vector<8x32xbf16>
    %c0_119 = arith.constant 0 : index
    %c0_120 = arith.constant 0 : index
    %213 = vector.load %arg23[%c0_119, %c0_120] : memref<32x64xbf16, #tpu.memory_space<vmem>>, vector<32x64xbf16>
    %cst_121 = arith.constant dense<0.000000e+00> : vector<8x64xf32>
    %214 = tpu.matmul %212, %213, %cst_121 {dimension_numbers = #tpu.dot_dimension_numbers<[1], [0], [0], [1], [0, 0, 1, 1], [], []>} : vector<8x32xbf16>, vector<32x64xbf16>, vector<8x64xf32> -> vector<8x64xf32>
    %c0_122 = arith.constant 0 : index
    %c0_123 = arith.constant 0 : index
    %215 = vector.load %arg24[%c0_122, %c0_123] : memref<1x64xf32, #tpu.memory_space<vmem>>, vector<1x64xf32>
    %216 = vector.broadcast %215 : vector<1x64xf32> to vector<8x64xf32>
    %217 = arith.addf %214, %216 : vector<8x64xf32>
    %cst_124 = arith.constant 0.000000e+00 : f32
    %218 = vector.broadcast %cst_124 : f32 to vector<8x64xf32>
    %219 = arith.maximumf %217, %218 : vector<8x64xf32>
    %220 = arith.truncf %219 : vector<8x64xf32> to vector<8x64xbf16>
    %c0_125 = arith.constant 0 : index
    %c0_126 = arith.constant 0 : index
    %221 = vector.load %arg25[%c0_125, %c0_126] : memref<64x32xbf16, #tpu.memory_space<vmem>>, vector<64x32xbf16>
    %cst_127 = arith.constant dense<0.000000e+00> : vector<8x32xf32>
    %222 = tpu.matmul %220, %221, %cst_127 {dimension_numbers = #tpu.dot_dimension_numbers<[1], [0], [0], [1], [0, 0, 1, 1], [], []>} : vector<8x64xbf16>, vector<64x32xbf16>, vector<8x32xf32> -> vector<8x32xf32>
    %223 = arith.addf %189, %222 : vector<8x32xf32>
    %c0_128 = arith.constant 0 : index
    %c0_129 = arith.constant 0 : index
    %224 = vector.load %arg26[%c0_128, %c0_129] : memref<1x32xf32, #tpu.memory_space<vmem>>, vector<1x32xf32>
    %225 = vector.broadcast %224 : vector<1x32xf32> to vector<8x32xf32>
    %226 = arith.addf %223, %225 : vector<8x32xf32>
    %c0_130 = arith.constant 0 : index
    %c0_131 = arith.constant 0 : index
    %c0_132 = arith.constant 0 : index
    %227 = vector.load %arg35[%c0_130, %c0_131, %c0_132] : memref<1x8x32xf32, #tpu.memory_space<vmem>>, vector<1x8x32xf32>
    %228 = vector.shape_cast %227 : vector<1x8x32xf32> to vector<8x32xf32>
    %229 = vector.shape_cast %226 : vector<8x32xf32> to vector<1x8x32xf32>
    tpu.vector_store %arg35[%c0_130, %c0_131, %c0_132], %229 {strides = array<i32>} : memref<1x8x32xf32, #tpu.memory_space<vmem>>, vector<1x8x32xf32>,
    return
  }
  func.func @transform_0(%arg0: i32, %arg1: i32) -> (i32, i32, i32) {
    %c0_i32 = arith.constant 0 : i32
    %c0_i32_0 = arith.constant 0 : i32
    return %arg0, %arg1, %c0_i32 : i32, i32, i32
  }
  func.func @transform_1(%arg0: i32, %arg1: i32) -> (i32, i32, i32) {
    %c0_i32 = arith.constant 0 : i32
    %c0_i32_0 = arith.constant 0 : i32
    %c0_i32_1 = arith.constant 0 : i32
    return %arg0, %c0_i32, %c0_i32_0 : i32, i32, i32
  }
  func.func @transform_2(%arg0: i32, %arg1: i32) -> (i32, i32, i32) {
    %c0_i32 = arith.constant 0 : i32
    %c0_i32_0 = arith.constant 0 : i32
    %c0_i32_1 = arith.constant 0 : i32
    return %arg0, %c0_i32, %c0_i32_0 : i32, i32, i32
  }
  func.func @transform_3(%arg0: i32, %arg1: i32) -> (i32, i32, i32) {
    %c0_i32 = arith.constant 0 : i32
    %c0_i32_0 = arith.constant 0 : i32
    return %arg0, %arg1, %c0_i32 : i32, i32, i32
  }
  func.func @transform_4(%arg0: i32, %arg1: i32) -> (i32, i32, i32) {
    %c0_i32 = arith.constant 0 : i32
    %c0_i32_0 = arith.constant 0 : i32
    %c0_i32_1 = arith.constant 0 : i32
    return %arg0, %c0_i32, %c0_i32_0 : i32, i32, i32
  }
  func.func @transform_5(%arg0: i32, %arg1: i32) -> (i32, i32, i32) {
    %c0_i32 = arith.constant 0 : i32
    %c0_i32_0 = arith.constant 0 : i32
    %c0_i32_1 = arith.constant 0 : i32
    %c0_i32_2 = arith.constant 0 : i32
    return %c0_i32, %c0_i32_0, %c0_i32_1 : i32, i32, i32
  }
  func.func @transform_6(%arg0: i32, %arg1: i32) -> (i32, i32, i32) {
    %c0_i32 = arith.constant 0 : i32
    %c0_i32_0 = arith.constant 0 : i32
    %c0_i32_1 = arith.constant 0 : i32
    %c0_i32_2 = arith.constant 0 : i32
    return %c0_i32, %c0_i32_0, %c0_i32_1 : i32, i32, i32
  }
  func.func @transform_7(%arg0: i32, %arg1: i32) -> (i32, i32, i32) {
    %c0_i32 = arith.constant 0 : i32
    %c0_i32_0 = arith.constant 0 : i32
    %c0_i32_1 = arith.constant 0 : i32
    %c0_i32_2 = arith.constant 0 : i32
    return %c0_i32, %c0_i32_0, %c0_i32_1 : i32, i32, i32
  }
  func.func @transform_8(%arg0: i32, %arg1: i32) -> (i32, i32, i32) {
    %c0_i32 = arith.constant 0 : i32
    %c0_i32_0 = arith.constant 0 : i32
    %c0_i32_1 = arith.constant 0 : i32
    %c0_i32_2 = arith.constant 0 : i32
    return %c0_i32, %c0_i32_0, %c0_i32_1 : i32, i32, i32
  }
  func.func @transform_9(%arg0: i32, %arg1: i32) -> (i32, i32, i32) {
    %c0_i32 = arith.constant 0 : i32
    %c0_i32_0 = arith.constant 0 : i32
    %c0_i32_1 = arith.constant 0 : i32
    %c0_i32_2 = arith.constant 0 : i32
    return %c0_i32, %c0_i32_0, %c0_i32_1 : i32, i32, i32
  }
  func.func @transform_10(%arg0: i32, %arg1: i32) -> (i32, i32, i32) {
    %c0_i32 = arith.constant 0 : i32
    %c0_i32_0 = arith.constant 0 : i32
    %c0_i32_1 = arith.constant 0 : i32
    %c0_i32_2 = arith.constant 0 : i32
    return %c0_i32, %c0_i32_0, %c0_i32_1 : i32, i32, i32
  }
  func.func @transform_11(%arg0: i32, %arg1: i32) -> (i32, i32, i32) {
    %c0_i32 = arith.constant 0 : i32
    %c0_i32_0 = arith.constant 0 : i32
    %c0_i32_1 = arith.constant 0 : i32
    %c0_i32_2 = arith.constant 0 : i32
    return %c0_i32, %c0_i32_0, %c0_i32_1 : i32, i32, i32
  }
  func.func @transform_12(%arg0: i32, %arg1: i32) -> (i32, i32) {
    %c0_i32 = arith.constant 0 : i32
    %c0_i32_0 = arith.constant 0 : i32
    %c0_i32_1 = arith.constant 0 : i32
    return %c0_i32, %c0_i32_0 : i32, i32
  }
  func.func @transform_13(%arg0: i32, %arg1: i32) -> (i32, i32, i32) {
    %c0_i32 = arith.constant 0 : i32
    %c0_i32_0 = arith.constant 0 : i32
    %c0_i32_1 = arith.constant 0 : i32
    %c0_i32_2 = arith.constant 0 : i32
    return %c0_i32, %c0_i32_0, %c0_i32_1 : i32, i32, i32
  }
  func.func @transform_14(%arg0: i32, %arg1: i32) -> (i32, i32, i32) {
    %c0_i32 = arith.constant 0 : i32
    %c0_i32_0 = arith.constant 0 : i32
    %c0_i32_1 = arith.constant 0 : i32
    %c0_i32_2 = arith.constant 0 : i32
    return %c0_i32, %c0_i32_0, %c0_i32_1 : i32, i32, i32
  }
  func.func @transform_15(%arg0: i32, %arg1: i32) -> (i32, i32, i32) {
    %c0_i32 = arith.constant 0 : i32
    %c0_i32_0 = arith.constant 0 : i32
    %c0_i32_1 = arith.constant 0 : i32
    %c0_i32_2 = arith.constant 0 : i32
    return %c0_i32, %c0_i32_0, %c0_i32_1 : i32, i32, i32
  }
  func.func @transform_16(%arg0: i32, %arg1: i32) -> (i32, i32, i32) {
    %c0_i32 = arith.constant 0 : i32
    %c0_i32_0 = arith.constant 0 : i32
    %c0_i32_1 = arith.constant 0 : i32
    %c0_i32_2 = arith.constant 0 : i32
    return %c0_i32, %c0_i32_0, %c0_i32_1 : i32, i32, i32
  }
  func.func @transform_17(%arg0: i32, %arg1: i32) -> (i32, i32, i32) {
    %c0_i32 = arith.constant 0 : i32
    %c0_i32_0 = arith.constant 0 : i32
    %c0_i32_1 = arith.constant 0 : i32
    %c0_i32_2 = arith.constant 0 : i32
    return %c0_i32, %c0_i32_0, %c0_i32_1 : i32, i32, i32
  }
  func.func @transform_18(%arg0: i32, %arg1: i32) -> (i32, i32, i32) {
    %c0_i32 = arith.constant 0 : i32
    %c0_i32_0 = arith.constant 0 : i32
    %c0_i32_1 = arith.constant 0 : i32
    %c0_i32_2 = arith.constant 0 : i32
    return %c0_i32, %c0_i32_0, %c0_i32_1 : i32, i32, i32
  }
  func.func @transform_19(%arg0: i32, %arg1: i32) -> (i32, i32, i32) {
    %c0_i32 = arith.constant 0 : i32
    %c0_i32_0 = arith.constant 0 : i32
    %c0_i32_1 = arith.constant 0 : i32
    %c0_i32_2 = arith.constant 0 : i32
    return %c0_i32, %c0_i32_0, %c0_i32_1 : i32, i32, i32
  }
  func.func @transform_20(%arg0: i32, %arg1: i32) -> (i32, i32) {
    %c0_i32 = arith.constant 0 : i32
    %c0_i32_0 = arith.constant 0 : i32
    %c0_i32_1 = arith.constant 0 : i32
    return %c0_i32, %c0_i32_0 : i32, i32
  }
  func.func @transform_21(%arg0: i32, %arg1: i32) -> (i32, i32) {
    %c0_i32 = arith.constant 0 : i32
    %c0_i32_0 = arith.constant 0 : i32
    %c0_i32_1 = arith.constant 0 : i32
    return %c0_i32, %c0_i32_0 : i32, i32
  }
  func.func @transform_22(%arg0: i32, %arg1: i32) -> (i32, i32) {
    %c0_i32 = arith.constant 0 : i32
    %c0_i32_0 = arith.constant 0 : i32
    %c0_i32_1 = arith.constant 0 : i32
    return %c0_i32, %c0_i32_0 : i32, i32
  }
  func.func @transform_23(%arg0: i32, %arg1: i32) -> (i32, i32) {
    %c0_i32 = arith.constant 0 : i32
    %c0_i32_0 = arith.constant 0 : i32
    %c0_i32_1 = arith.constant 0 : i32
    return %c0_i32, %c0_i32_0 : i32, i32
  }
  func.func @transform_24(%arg0: i32, %arg1: i32) -> (i32, i32) {
    %c0_i32 = arith.constant 0 : i32
    %c0_i32_0 = arith.constant 0 : i32
    %c0_i32_1 = arith.constant 0 : i32
    return %c0_i32, %c0_i32_0 : i32, i32
  }
  func.func @transform_25(%arg0: i32, %arg1: i32) -> (i32, i32) {
    %c0_i32 = arith.constant 0 : i32
    %c0_i32_0 = arith.constant 0 : i32
    %c0_i32_1 = arith.constant 0 : i32
    return %c0_i32, %c0_i32_0 : i32, i32
  }
  func.func @transform_26(%arg0: i32, %arg1: i32) -> (i32, i32) {
    %c0_i32 = arith.constant 0 : i32
    %c0_i32_0 = arith.constant 0 : i32
    %c0_i32_1 = arith.constant 0 : i32
    return %c0_i32, %c0_i32_0 : i32, i32
  }
  func.func @transform_27(%arg0: i32, %arg1: i32) -> (i32, i32) {
    %c0_i32 = arith.constant 0 : i32
    %c0_i32_0 = arith.constant 0 : i32
    %c0_i32_1 = arith.constant 0 : i32
    return %c0_i32, %c0_i32_0 : i32, i32
  }
  func.func @transform_28(%arg0: i32, %arg1: i32) -> (i32, i32) {
    %c0_i32 = arith.constant 0 : i32
    %c0_i32_0 = arith.constant 0 : i32
    %c0_i32_1 = arith.constant 0 : i32
    return %c0_i32, %c0_i32_0 : i32, i32
  }
  func.func @transform_29(%arg0: i32, %arg1: i32) -> (i32, i32) {
    %c0_i32 = arith.constant 0 : i32
    %c0_i32_0 = arith.constant 0 : i32
    %c0_i32_1 = arith.constant 0 : i32
    return %c0_i32, %c0_i32_0 : i32, i32
  }
  func.func @transform_30(%arg0: i32, %arg1: i32) -> (i32, i32) {
    %c0_i32 = arith.constant 0 : i32
    %c0_i32_0 = arith.constant 0 : i32
    %c0_i32_1 = arith.constant 0 : i32
    return %c0_i32, %c0_i32_0 : i32, i32
  }
  func.func @transform_31(%arg0: i32, %arg1: i32) -> (i32, i32) {
    %c0_i32 = arith.constant 0 : i32
    %c0_i32_0 = arith.constant 0 : i32
    %c0_i32_1 = arith.constant 0 : i32
    return %c0_i32, %c0_i32_0 : i32, i32
  }
  func.func @transform_32(%arg0: i32, %arg1: i32) -> (i32, i32) {
    %c0_i32 = arith.constant 0 : i32
    %c0_i32_0 = arith.constant 0 : i32
    %c0_i32_1 = arith.constant 0 : i32
    return %c0_i32, %c0_i32_0 : i32, i32
  }
  func.func @transform_33(%arg0: i32, %arg1: i32) -> (i32, i32, i32) {
    %c0_i32 = arith.constant 0 : i32
    %c0_i32_0 = arith.constant 0 : i32
    return %arg0, %arg1, %c0_i32 : i32, i32, i32
  }
}

</mosaic_0001>

<llo_original>
// kernel: decoder_forward.2
$region0: #{decoder_forward.2}
  #allocation0 [shape = 'u32[]', space=smem, size = 0x4, offset = 0x4, fixed_abs, tag = 'smem constant byte address 0x4 - core index']
  #allocation1 [shape = 'u32[72,128]{1,0:T(1,128)}', space=vmem, size = 0x9000, scoped, tag = 'internal scratch']
  %s0 = inlined_call_operand.smem [shape: u32[34], index: -1, kind: input, shape index: {}]
  %s1 = sld [smem:[%s0]]
  %s2 = scalar_lea.smem %s0, 1
  %s3 = sld [smem:[%s2]]
  %s4 = scalar_lea.smem %s0, 2
  %s5 = sld [smem:[%s4]]
  %s6 = scalar_lea.smem %s0, 3
  %s7 = sld [smem:[%s6]]
  %s8 = scalar_lea.smem %s0, 4
  %s9 = sld [smem:[%s8]]
  %s10 = scalar_lea.smem %s0, 5
  %s11 = sld [smem:[%s10]]
  %s12 = scalar_lea.smem %s0, 6
  %s13 = sld [smem:[%s12]]
  %s14 = scalar_lea.smem %s0, 7
  %s15 = sld [smem:[%s14]]
  %s16 = scalar_lea.smem %s0, 8
  %s17 = sld [smem:[%s16]]
  %s18 = scalar_lea.smem %s0, 9
  %s19 = sld [smem:[%s18]]
  %s20 = scalar_lea.smem %s0, 10
  %s21 = sld [smem:[%s20]]
  %s22 = scalar_lea.smem %s0, 11
  %s23 = sld [smem:[%s22]]
  %s24 = scalar_lea.smem %s0, 12
  %s25 = sld [smem:[%s24]]
  %s26 = scalar_lea.smem %s0, 13
  %s27 = sld [smem:[%s26]]
  %s28 = scalar_lea.smem %s0, 14
  %s29 = sld [smem:[%s28]]
  %s30 = scalar_lea.smem %s0, 15
  %s31 = sld [smem:[%s30]]
  %s32 = scalar_lea.smem %s0, 16
  %s33 = sld [smem:[%s32]]
  %s34 = scalar_lea.smem %s0, 17
  %s35 = sld [smem:[%s34]]
  %s36 = scalar_lea.smem %s0, 18
  %s37 = sld [smem:[%s36]]
  %s38 = scalar_lea.smem %s0, 19
  %s39 = sld [smem:[%s38]]
  %s40 = scalar_lea.smem %s0, 20
  %s41 = sld [smem:[%s40]]
  %s42 = scalar_lea.smem %s0, 21
  %s43 = sld [smem:[%s42]]
  %s44 = scalar_lea.smem %s0, 22
  %s45 = sld [smem:[%s44]]
  %s46 = scalar_lea.smem %s0, 23
  %s47 = sld [smem:[%s46]]
  %s48 = scalar_lea.smem %s0, 24
  %s49 = sld [smem:[%s48]]
  %s50 = scalar_lea.smem %s0, 25
  %s51 = sld [smem:[%s50]]
  %s52 = scalar_lea.smem %s0, 26
  %s53 = sld [smem:[%s52]]
  %s54 = scalar_lea.smem %s0, 27
  %s55 = sld [smem:[%s54]]
  %s56 = scalar_lea.smem %s0, 28
  %s57 = sld [smem:[%s56]]
  %s58 = scalar_lea.smem %s0, 29
  %s59 = sld [smem:[%s58]]
  %s60 = scalar_lea.smem %s0, 30
  %s61 = sld [smem:[%s60]]
  %s62 = scalar_lea.smem %s0, 31
  %s63 = sld [smem:[%s62]]
  %s64 = scalar_lea.smem %s0, 32
  %s65 = sld [smem:[%s64]]
  %s66 = scalar_lea.smem %s0, 33
  %s67 = sld [smem:[%s66]]
  %s68 = sld [smem:[#allocation0]]
  $region165: #{decoder_forward.2} parent=0
    _
  %s70 = ssub.s32 1, %s68
  %s71 = scalar_select 0, %s70, %s68
  loop: start=0, step=1, limit=4
  $region2: #{decoder_forward.2} parent=0 // loop_pre_header
    _
  $region3: #{decoder_forward.2} parent=0 // loop_header
    %s73 = sphi 0, %s77
    %p74 = scmp.ge.s32.totalorder %s73, 4
    %s80 = sphi 0, %s92
    %s81 = sphi 0, %s88
    %s82 = sphi 0, %s80
    %s83 = sphi 0, %s81
    %s84 = sphi 0, %s82
    %s85 = sphi 0, %s83
    %s97 = sphi 0, %s99
    %s100 = sphi 0, %s97
    %s101 = sphi 0, %s100
    %s117 = sphi 0, %s101
    %s123 = sphi 0, %s125
    %s126 = sphi 0, %s123
    %s127 = sphi 0, %s126
    %s143 = sphi 0, %s127
    %s149 = sphi 0, %s151
    %s152 = sphi 0, %s149
    %s153 = sphi 0, %s152
    %s169 = sphi 0, %s153
    %s177 = sphi 0, %s179
    %s180 = sphi 0, %s177
    %s181 = sphi 0, %s180
    %s197 = sphi 0, %s181
    %s203 = sphi 0, %s205
    %s206 = sphi 0, %s203
    %s207 = sphi 0, %s206
    %s223 = sphi 0, %s207
    %s227 = sphi 0, %s227
    %s229 = sphi 0, %s227
    %s230 = sphi 0, %s229
    %s244 = sphi 0, %s230
    %s248 = sphi 0, %s248
    %s250 = sphi 0, %s248
    %s251 = sphi 0, %s250
    %s265 = sphi 0, %s251
    %s269 = sphi 0, %s269
    %s271 = sphi 0, %s269
    %s272 = sphi 0, %s271
    %s286 = sphi 0, %s272
    %s290 = sphi 0, %s290
    %s292 = sphi 0, %s290
    %s293 = sphi 0, %s292
    %s307 = sphi 0, %s293
    %s311 = sphi 0, %s311
    %s313 = sphi 0, %s311
    %s314 = sphi 0, %s313
    %s328 = sphi 0, %s314
    %s332 = sphi 0, %s332
    %s334 = sphi 0, %s332
    %s335 = sphi 0, %s334
    %s349 = sphi 0, %s335
    %s353 = sphi 0, %s353
    %s355 = sphi 0, %s353
    %s356 = sphi 0, %s355
    %s370 = sphi 0, %s356
    %s374 = sphi 0, %s374
    %s376 = sphi 0, %s374
    %s377 = sphi 0, %s376
    %s391 = sphi 0, %s377
    %s395 = sphi 0, %s395
    %s397 = sphi 0, %s395
    %s398 = sphi 0, %s397
    %s412 = sphi 0, %s398
    %s416 = sphi 0, %s416
    %s418 = sphi 0, %s416
    %s419 = sphi 0, %s418
    %s433 = sphi 0, %s419
    %s437 = sphi 0, %s437
    %s439 = sphi 0, %s437
    %s440 = sphi 0, %s439
    %s454 = sphi 0, %s440
    %s458 = sphi 0, %s458
    %s460 = sphi 0, %s458
    %s461 = sphi 0, %s460
    %s475 = sphi 0, %s461
    %s479 = sphi 0, %s479
    %s481 = sphi 0, %s479
    %s482 = sphi 0, %s481
    %s496 = sphi 0, %s482
    %s500 = sphi 0, %s500
    %s502 = sphi 0, %s500
    %s503 = sphi 0, %s502
    %s517 = sphi 0, %s503
    %s521 = sphi 0, %s521
    %s523 = sphi 0, %s521
    %s524 = sphi 0, %s523
    %s538 = sphi 0, %s524
    %s542 = sphi 0, %s542
    %s544 = sphi 0, %s542
    %s545 = sphi 0, %s544
    %s559 = sphi 0, %s545
    %s563 = sphi 0, %s563
    %s565 = sphi 0, %s563
    %s566 = sphi 0, %s565
    %s580 = sphi 0, %s566
    %s584 = sphi 0, %s584
    %s586 = sphi 0, %s584
    %s587 = sphi 0, %s586
    %s601 = sphi 0, %s587
    %s605 = sphi 0, %s605
    %s607 = sphi 0, %s605
    %s608 = sphi 0, %s607
    %s622 = sphi 0, %s608
    %s626 = sphi 0, %s626
    %s628 = sphi 0, %s626
    %s629 = sphi 0, %s628
    %s643 = sphi 0, %s629
    %s647 = sphi 0, %s647
    %s649 = sphi 0, %s647
    %s650 = sphi 0, %s649
    %s664 = sphi 0, %s650
    %s668 = sphi 0, %s668
    %s670 = sphi 0, %s668
    %s671 = sphi 0, %s670
    %s685 = sphi 0, %s671
    %s689 = sphi 0, %s689
    %s691 = sphi 0, %s689
    %s692 = sphi 0, %s691
    %s706 = sphi 0, %s692
    %s710 = sphi 0, %s710
    %s712 = sphi 0, %s710
    %s713 = sphi 0, %s712
    %s727 = sphi 0, %s713
    %s731 = sphi 0, %s731
    %s733 = sphi 0, %s731
    %s734 = sphi 0, %s733
    %s748 = sphi 0, %s734
    %s752 = sphi 0, %s752
    %s754 = sphi 0, %s752
    %s755 = sphi 0, %s754
    %s769 = sphi 0, %s755
    %s773 = sphi 0, %s773
    %s775 = sphi 0, %s773
    %s776 = sphi 0, %s775
    %s790 = sphi 0, %s776
    %s794 = sphi 0, %s794
    %s796 = sphi 0, %s794
    %s797 = sphi 0, %s796
    %s811 = sphi 0, %s797
    %s819 = sphi 0, %s821
    %s822 = sphi 0, %s819
    %s823 = sphi 0, %s822
    %s839 = sphi 0, %s823
  $region4: #{decoder_forward.2} parent=0 // loop_header_branch
    %76 = sbr.rel (%p74) target = $region8
  $region5: #{decoder_forward.2} parent=0 // loop_body
    %s78 = ssub.s32 %s73, 1
    %s79 = ssub.s32 %s73, 2
    %s86 = sadd.s32 1, %s81
    %p87 = scmp.ge.s32.totalorder %s86, 1
    %s88 = scalar_select %p87, 0, %s86
    %s89 = sadd.s32 1, %s80
    %s90 = scalar_select %p87, %s89, %s80
    %p91 = scmp.ge.s32.totalorder %s90, 2
    %s92 = scalar_select %p91, 0, %s90
    %s93 = ssub.s32 %s80, %s92
    %s94 = ssub.s32 %s81, %s88
    %s95 = sor.u32 %s93, %s94
    %p96 = scmp.eq.s32.totalorder %s95, 0
    %s98 = sadd.s32 %s97, 1
    %s99 = scalar_select %p96, %s97, %s98
    %p102 = pneg %p96
    %p103 = scmp.eq.s32.totalorder %s73, 1
    %p104 = por %p102, %p103
    %p105 = scmp.ne.s32.totalorder %s97, %s100
    %p106 = scmp.eq.s32.totalorder %s73, 0
    %p107 = por %p105, %p106
    %p108 = scmp.ne.s32.totalorder %s97, %s100
    %p109 = scmp.eq.s32.totalorder %s78, 1
    %p110 = por %p108, %p109
    %p111 = scmp.ne.s32.totalorder %s100, %s101
    %p112 = scmp.eq.s32.totalorder %s78, 0
    %p113 = por %p111, %p112
    %p114 = scmp.ne.s32.totalorder %s100, %s101
    %p115 = scmp.eq.s32.totalorder %s79, 1
    %p116 = por %p114, %p115
    %p118 = scmp.ne.s32.totalorder %s101, %s117
    %p119 = scmp.eq.s32.totalorder %s79, 0
    %p120 = por %p118, %p119
    %s121 = ssub.s32 %s80, %s92
    %p122 = scmp.eq.s32.totalorder %s121, 0
    %s124 = sadd.s32 %s123, 1
    %s125 = scalar_select %p122, %s123, %s124
    %p128 = pneg %p122
    %p129 = scmp.eq.s32.totalorder %s73, 1
    %p130 = por %p128, %p129
    %p131 = scmp.ne.s32.totalorder %s123, %s126
    %p132 = scmp.eq.s32.totalorder %s73, 0
    %p133 = por %p131, %p132
    %p134 = scmp.ne.s32.totalorder %s123, %s126
    %p135 = scmp.eq.s32.totalorder %s78, 1
    %p136 = por %p134, %p135
    %p137 = scmp.ne.s32.totalorder %s126, %s127
    %p138 = scmp.eq.s32.totalorder %s78, 0
    %p139 = por %p137, %p138
    %p140 = scmp.ne.s32.totalorder %s126, %s127
    %p141 = scmp.eq.s32.totalorder %s79, 1
    %p142 = por %p140, %p141
    %p144 = scmp.ne.s32.totalorder %s127, %s143
    %p145 = scmp.eq.s32.totalorder %s79, 0
    %p146 = por %p144, %p145
    %s147 = ssub.s32 %s80, %s92
    %p148 = scmp.eq.s32.totalorder %s147, 0
    %s150 = sadd.s32 %s149, 1
    %s151 = scalar_select %p148, %s149, %s150
    %p154 = pneg %p148
    %p155 = scmp.eq.s32.totalorder %s73, 1
    %p156 = por %p154, %p155
    %p157 = scmp.ne.s32.totalorder %s149, %s152
    %p158 = scmp.eq.s32.totalorder %s73, 0
    %p159 = por %p157, %p158
    %p160 = scmp.ne.s32.totalorder %s149, %s152
    %p161 = scmp.eq.s32.totalorder %s78, 1
    %p162 = por %p160, %p161
    %p163 = scmp.ne.s32.totalorder %s152, %s153
    %p164 = scmp.eq.s32.totalorder %s78, 0
    %p165 = por %p163, %p164
    %p166 = scmp.ne.s32.totalorder %s152, %s153
    %p167 = scmp.eq.s32.totalorder %s79, 1
    %p168 = por %p166, %p167
    %p170 = scmp.ne.s32.totalorder %s153, %s169
    %p171 = scmp.eq.s32.totalorder %s79, 0
    %p172 = por %p170, %p171
    %s173 = ssub.s32 %s80, %s92
    %s174 = ssub.s32 %s81, %s88
    %s175 = sor.u32 %s173, %s174
    %p176 = scmp.eq.s32.totalorder %s175, 0
    %s178 = sadd.s32 %s177, 1
    %s179 = scalar_select %p176, %s177, %s178
    %p182 = pneg %p176
    %p183 = scmp.eq.s32.totalorder %s73, 1
    %p184 = por %p182, %p183
    %p185 = scmp.ne.s32.totalorder %s177, %s180
    %p186 = scmp.eq.s32.totalorder %s73, 0
    %p187 = por %p185, %p186
    %p188 = scmp.ne.s32.totalorder %s177, %s180
    %p189 = scmp.eq.s32.totalorder %s78, 1
    %p190 = por %p188, %p189
    %p191 = scmp.ne.s32.totalorder %s180, %s181
    %p192 = scmp.eq.s32.totalorder %s78, 0
    %p193 = por %p191, %p192
    %p194 = scmp.ne.s32.totalorder %s180, %s181
    %p195 = scmp.eq.s32.totalorder %s79, 1
    %p196 = por %p194, %p195
    %p198 = scmp.ne.s32.totalorder %s181, %s197
    %p199 = scmp.eq.s32.totalorder %s79, 0
    %p200 = por %p198, %p199
    %s201 = ssub.s32 %s80, %s92
    %p202 = scmp.eq.s32.totalorder %s201, 0
    %s204 = sadd.s32 %s203, 1
    %s205 = scalar_select %p202, %s203, %s204
    %p208 = pneg %p202
    %p209 = scmp.eq.s32.totalorder %s73, 1
    %p210 = por %p208, %p209
    %p211 = scmp.ne.s32.totalorder %s203, %s206
    %p212 = scmp.eq.s32.totalorder %s73, 0
    %p213 = por %p211, %p212
    %p214 = scmp.ne.s32.totalorder %s203, %s206
    %p215 = scmp.eq.s32.totalorder %s78, 1
    %p216 = por %p214, %p215
    %p217 = scmp.ne.s32.totalorder %s206, %s207
    %p218 = scmp.eq.s32.totalorder %s78, 0
    %p219 = por %p217, %p218
    %p220 = scmp.ne.s32.totalorder %s206, %s207
    %p221 = scmp.eq.s32.totalorder %s79, 1
    %p222 = por %p220, %p221
    %p224 = scmp.ne.s32.totalorder %s207, %s223
    %p225 = scmp.eq.s32.totalorder %s79, 0
    %p226 = por %p224, %p225
    %s228 = sadd.s32 %s227, 1
    %p231 = scmp.eq.s32.totalorder %s73, 1
    %p232 = scmp.ne.s32.totalorder %s227, %s229
    %p233 = scmp.eq.s32.totalorder %s73, 0
    %p234 = por %p232, %p233
    %p235 = scmp.ne.s32.totalorder %s227, %s229
    %p236 = scmp.eq.s32.totalorder %s78, 1
    %p237 = por %p235, %p236
    %p238 = scmp.ne.s32.totalorder %s229, %s230
    %p239 = scmp.eq.s32.totalorder %s78, 0
    %p240 = por %p238, %p239
    %p241 = scmp.ne.s32.totalorder %s229, %s230
    %p242 = scmp.eq.s32.totalorder %s79, 1
    %p243 = por %p241, %p242
    %p245 = scmp.ne.s32.totalorder %s230, %s244
    %p246 = scmp.eq.s32.totalorder %s79, 0
    %p247 = por %p245, %p246
    %s249 = sadd.s32 %s248, 1
    %p252 = scmp.eq.s32.totalorder %s73, 1
    %p253 = scmp.ne.s32.totalorder %s248, %s250
    %p254 = scmp.eq.s32.totalorder %s73, 0
    %p255 = por %p253, %p254
    %p256 = scmp.ne.s32.totalorder %s248, %s250
    %p257 = scmp.eq.s32.totalorder %s78, 1
    %p258 = por %p256, %p257
    %p259 = scmp.ne.s32.totalorder %s250, %s251
    %p260 = scmp.eq.s32.totalorder %s78, 0
    %p261 = por %p259, %p260
    %p262 = scmp.ne.s32.totalorder %s250, %s251
    %p263 = scmp.eq.s32.totalorder %s79, 1
    %p264 = por %p262, %p263
    %p266 = scmp.ne.s32.totalorder %s251, %s265
    %p267 = scmp.eq.s32.totalorder %s79, 0
    %p268 = por %p266, %p267
    %s270 = sadd.s32 %s269, 1
    %p273 = scmp.eq.s32.totalorder %s73, 1
    %p274 = scmp.ne.s32.totalorder %s269, %s271
    %p275 = scmp.eq.s32.totalorder %s73, 0
    %p276 = por %p274, %p275
    %p277 = scmp.ne.s32.totalorder %s269, %s271
    %p278 = scmp.eq.s32.totalorder %s78, 1
    %p279 = por %p277, %p278
    %p280 = scmp.ne.s32.totalorder %s271, %s272
    %p281 = scmp.eq.s32.totalorder %s78, 0
    %p282 = por %p280, %p281
    %p283 = scmp.ne.s32.totalorder %s271, %s272
    %p284 = scmp.eq.s32.totalorder %s79, 1
    %p285 = por %p283, %p284
    %p287 = scmp.ne.s32.totalorder %s272, %s286
    %p288 = scmp.eq.s32.totalorder %s79, 0
    %p289 = por %p287, %p288
    %s291 = sadd.s32 %s290, 1
    %p294 = scmp.eq.s32.totalorder %s73, 1
    %p295 = scmp.ne.s32.totalorder %s290, %s292
    %p296 = scmp.eq.s32.totalorder %s73, 0
    %p297 = por %p295, %p296
    %p298 = scmp.ne.s32.totalorder %s290, %s292
    %p299 = scmp.eq.s32.totalorder %s78, 1
    %p300 = por %p298, %p299
    %p301 = scmp.ne.s32.totalorder %s292, %s293
    %p302 = scmp.eq.s32.totalorder %s78, 0
    %p303 = por %p301, %p302
    %p304 = scmp.ne.s32.totalorder %s292, %s293
    %p305 = scmp.eq.s32.totalorder %s79, 1
    %p306 = por %p304, %p305
    %p308 = scmp.ne.s32.totalorder %s293, %s307
    %p309 = scmp.eq.s32.totalorder %s79, 0
    %p310 = por %p308, %p309
    %s312 = sadd.s32 %s311, 1
    %p315 = scmp.eq.s32.totalorder %s73, 1
    %p316 = scmp.ne.s32.totalorder %s311, %s313
    %p317 = scmp.eq.s32.totalorder %s73, 0
    %p318 = por %p316, %p317
    %p319 = scmp.ne.s32.totalorder %s311, %s313
    %p320 = scmp.eq.s32.totalorder %s78, 1
    %p321 = por %p319, %p320
    %p322 = scmp.ne.s32.totalorder %s313, %s314
    %p323 = scmp.eq.s32.totalorder %s78, 0
    %p324 = por %p322, %p323
    %p325 = scmp.ne.s32.totalorder %s313, %s314
    %p326 = scmp.eq.s32.totalorder %s79, 1
    %p327 = por %p325, %p326
    %p329 = scmp.ne.s32.totalorder %s314, %s328
    %p330 = scmp.eq.s32.totalorder %s79, 0
    %p331 = por %p329, %p330
    %s333 = sadd.s32 %s332, 1
    %p336 = scmp.eq.s32.totalorder %s73, 1
    %p337 = scmp.ne.s32.totalorder %s332, %s334
    %p338 = scmp.eq.s32.totalorder %s73, 0
    %p339 = por %p337, %p338
    %p340 = scmp.ne.s32.totalorder %s332, %s334
    %p341 = scmp.eq.s32.totalorder %s78, 1
    %p342 = por %p340, %p341
    %p343 = scmp.ne.s32.totalorder %s334, %s335
    %p344 = scmp.eq.s32.totalorder %s78, 0
    %p345 = por %p343, %p344
    %p346 = scmp.ne.s32.totalorder %s334, %s335
    %p347 = scmp.eq.s32.totalorder %s79, 1
    %p348 = por %p346, %p347
    %p350 = scmp.ne.s32.totalorder %s335, %s349
    %p351 = scmp.eq.s32.totalorder %s79, 0
    %p352 = por %p350, %p351
    %s354 = sadd.s32 %s353, 1
    %p357 = scmp.eq.s32.totalorder %s73, 1
    %p358 = scmp.ne.s32.totalorder %s353, %s355
    %p359 = scmp.eq.s32.totalorder %s73, 0
    %p360 = por %p358, %p359
    %p361 = scmp.ne.s32.totalorder %s353, %s355
    %p362 = scmp.eq.s32.totalorder %s78, 1
    %p363 = por %p361, %p362
    %p364 = scmp.ne.s32.totalorder %s355, %s356
    %p365 = scmp.eq.s32.totalorder %s78, 0
    %p366 = por %p364, %p365
    %p367 = scmp.ne.s32.totalorder %s355, %s356
    %p368 = scmp.eq.s32.totalorder %s79, 1
    %p369 = por %p367, %p368
    %p371 = scmp.ne.s32.totalorder %s356, %s370
    %p372 = scmp.eq.s32.totalorder %s79, 0
    %p373 = por %p371, %p372
    %s375 = sadd.s32 %s374, 1
    %p378 = scmp.eq.s32.totalorder %s73, 1
    %p379 = scmp.ne.s32.totalorder %s374, %s376
    %p380 = scmp.eq.s32.totalorder %s73, 0
    %p381 = por %p379, %p380
    %p382 = scmp.ne.s32.totalorder %s374, %s376
    %p383 = scmp.eq.s32.totalorder %s78, 1
    %p384 = por %p382, %p383
    %p385 = scmp.ne.s32.totalorder %s376, %s377
    %p386 = scmp.eq.s32.totalorder %s78, 0
    %p387 = por %p385, %p386
    %p388 = scmp.ne.s32.totalorder %s376, %s377
    %p389 = scmp.eq.s32.totalorder %s79, 1
    %p390 = por %p388, %p389
    %p392 = scmp.ne.s32.totalorder %s377, %s391
    %p393 = scmp.eq.s32.totalorder %s79, 0
    %p394 = por %p392, %p393
    %s396 = sadd.s32 %s395, 1
    %p399 = scmp.eq.s32.totalorder %s73, 1
    %p400 = scmp.ne.s32.totalorder %s395, %s397
    %p401 = scmp.eq.s32.totalorder %s73, 0
    %p402 = por %p400, %p401
    %p403 = scmp.ne.s32.totalorder %s395, %s397
    %p404 = scmp.eq.s32.totalorder %s78, 1
    %p405 = por %p403, %p404
    %p406 = scmp.ne.s32.totalorder %s397, %s398
    %p407 = scmp.eq.s32.totalorder %s78, 0
    %p408 = por %p406, %p407
    %p409 = scmp.ne.s32.totalorder %s397, %s398
    %p410 = scmp.eq.s32.totalorder %s79, 1
    %p411 = por %p409, %p410
    %p413 = scmp.ne.s32.totalorder %s398, %s412
    %p414 = scmp.eq.s32.totalorder %s79, 0
    %p415 = por %p413, %p414
    %s417 = sadd.s32 %s416, 1
    %p420 = scmp.eq.s32.totalorder %s73, 1
    %p421 = scmp.ne.s32.totalorder %s416, %s418
    %p422 = scmp.eq.s32.totalorder %s73, 0
    %p423 = por %p421, %p422
    %p424 = scmp.ne.s32.totalorder %s416, %s418
    %p425 = scmp.eq.s32.totalorder %s78, 1
    %p426 = por %p424, %p425
    %p427 = scmp.ne.s32.totalorder %s418, %s419
    %p428 = scmp.eq.s32.totalorder %s78, 0
    %p429 = por %p427, %p428
    %p430 = scmp.ne.s32.totalorder %s418, %s419
    %p431 = scmp.eq.s32.totalorder %s79, 1
    %p432 = por %p430, %p431
    %p434 = scmp.ne.s32.totalorder %s419, %s433
    %p435 = scmp.eq.s32.totalorder %s79, 0
    %p436 = por %p434, %p435
    %s438 = sadd.s32 %s437, 1
    %p441 = scmp.eq.s32.totalorder %s73, 1
    %p442 = scmp.ne.s32.totalorder %s437, %s439
    %p443 = scmp.eq.s32.totalorder %s73, 0
    %p444 = por %p442, %p443
    %p445 = scmp.ne.s32.totalorder %s437, %s439
    %p446 = scmp.eq.s32.totalorder %s78, 1
    %p447 = por %p445, %p446
    %p448 = scmp.ne.s32.totalorder %s439, %s440
    %p449 = scmp.eq.s32.totalorder %s78, 0
    %p450 = por %p448, %p449
    %p451 = scmp.ne.s32.totalorder %s439, %s440
    %p452 = scmp.eq.s32.totalorder %s79, 1
    %p453 = por %p451, %p452
    %p455 = scmp.ne.s32.totalorder %s440, %s454
    %p456 = scmp.eq.s32.totalorder %s79, 0
    %p457 = por %p455, %p456
    %s459 = sadd.s32 %s458, 1
    %p462 = scmp.eq.s32.totalorder %s73, 1
    %p463 = scmp.ne.s32.totalorder %s458, %s460
    %p464 = scmp.eq.s32.totalorder %s73, 0
    %p465 = por %p463, %p464
    %p466 = scmp.ne.s32.totalorder %s458, %s460
    %p467 = scmp.eq.s32.totalorder %s78, 1
    %p468 = por %p466, %p467
    %p469 = scmp.ne.s32.totalorder %s460, %s461
    %p470 = scmp.eq.s32.totalorder %s78, 0
    %p471 = por %p469, %p470
    %p472 = scmp.ne.s32.totalorder %s460, %s461
    %p473 = scmp.eq.s32.totalorder %s79, 1
    %p474 = por %p472, %p473
    %p476 = scmp.ne.s32.totalorder %s461, %s475
    %p477 = scmp.eq.s32.totalorder %s79, 0
    %p478 = por %p476, %p477
    %s480 = sadd.s32 %s479, 1
    %p483 = scmp.eq.s32.totalorder %s73, 1
    %p484 = scmp.ne.s32.totalorder %s479, %s481
    %p485 = scmp.eq.s32.totalorder %s73, 0
    %p486 = por %p484, %p485
    %p487 = scmp.ne.s32.totalorder %s479, %s481
    %p488 = scmp.eq.s32.totalorder %s78, 1
    %p489 = por %p487, %p488
    %p490 = scmp.ne.s32.totalorder %s481, %s482
    %p491 = scmp.eq.s32.totalorder %s78, 0
    %p492 = por %p490, %p491
    %p493 = scmp.ne.s32.totalorder %s481, %s482
    %p494 = scmp.eq.s32.totalorder %s79, 1
    %p495 = por %p493, %p494
    %p497 = scmp.ne.s32.totalorder %s482, %s496
    %p498 = scmp.eq.s32.totalorder %s79, 0
    %p499 = por %p497, %p498
    %s501 = sadd.s32 %s500, 1
    %p504 = scmp.eq.s32.totalorder %s73, 1
    %p505 = scmp.ne.s32.totalorder %s500, %s502
    %p506 = scmp.eq.s32.totalorder %s73, 0
    %p507 = por %p505, %p506
    %p508 = scmp.ne.s32.totalorder %s500, %s502
    %p509 = scmp.eq.s32.totalorder %s78, 1
    %p510 = por %p508, %p509
    %p511 = scmp.ne.s32.totalorder %s502, %s503
    %p512 = scmp.eq.s32.totalorder %s78, 0
    %p513 = por %p511, %p512
    %p514 = scmp.ne.s32.totalorder %s502, %s503
    %p515 = scmp.eq.s32.totalorder %s79, 1
    %p516 = por %p514, %p515
    %p518 = scmp.ne.s32.totalorder %s503, %s517
    %p519 = scmp.eq.s32.totalorder %s79, 0
    %p520 = por %p518, %p519
    %s522 = sadd.s32 %s521, 1
    %p525 = scmp.eq.s32.totalorder %s73, 1
    %p526 = scmp.ne.s32.totalorder %s521, %s523
    %p527 = scmp.eq.s32.totalorder %s73, 0
    %p528 = por %p526, %p527
    %p529 = scmp.ne.s32.totalorder %s521, %s523
    %p530 = scmp.eq.s32.totalorder %s78, 1
    %p531 = por %p529, %p530
    %p532 = scmp.ne.s32.totalorder %s523, %s524
    %p533 = scmp.eq.s32.totalorder %s78, 0
    %p534 = por %p532, %p533
    %p535 = scmp.ne.s32.totalorder %s523, %s524
    %p536 = scmp.eq.s32.totalorder %s79, 1
    %p537 = por %p535, %p536
    %p539 = scmp.ne.s32.totalorder %s524, %s538
    %p540 = scmp.eq.s32.totalorder %s79, 0
    %p541 = por %p539, %p540
    %s543 = sadd.s32 %s542, 1
    %p546 = scmp.eq.s32.totalorder %s73, 1
    %p547 = scmp.ne.s32.totalorder %s542, %s544
    %p548 = scmp.eq.s32.totalorder %s73, 0
    %p549 = por %p547, %p548
    %p550 = scmp.ne.s32.totalorder %s542, %s544
    %p551 = scmp.eq.s32.totalorder %s78, 1
    %p552 = por %p550, %p551
    %p553 = scmp.ne.s32.totalorder %s544, %s545
    %p554 = scmp.eq.s32.totalorder %s78, 0
    %p555 = por %p553, %p554
    %p556 = scmp.ne.s32.totalorder %s544, %s545
    %p557 = scmp.eq.s32.totalorder %s79, 1
    %p558 = por %p556, %p557
    %p560 = scmp.ne.s32.totalorder %s545, %s559
    %p561 = scmp.eq.s32.totalorder %s79, 0
    %p562 = por %p560, %p561
    %s564 = sadd.s32 %s563, 1
    %p567 = scmp.eq.s32.totalorder %s73, 1
    %p568 = scmp.ne.s32.totalorder %s563, %s565
    %p569 = scmp.eq.s32.totalorder %s73, 0
    %p570 = por %p568, %p569
    %p571 = scmp.ne.s32.totalorder %s563, %s565
    %p572 = scmp.eq.s32.totalorder %s78, 1
    %p573 = por %p571, %p572
    %p574 = scmp.ne.s32.totalorder %s565, %s566
    %p575 = scmp.eq.s32.totalorder %s78, 0
    %p576 = por %p574, %p575
    %p577 = scmp.ne.s32.totalorder %s565, %s566
    %p578 = scmp.eq.s32.totalorder %s79, 1
    %p579 = por %p577, %p578
    %p581 = scmp.ne.s32.totalorder %s566, %s580
    %p582 = scmp.eq.s32.totalorder %s79, 0
    %p583 = por %p581, %p582
    %s585 = sadd.s32 %s584, 1
    %p588 = scmp.eq.s32.totalorder %s73, 1
    %p589 = scmp.ne.s32.totalorder %s584, %s586
    %p590 = scmp.eq.s32.totalorder %s73, 0
    %p591 = por %p589, %p590
    %p592 = scmp.ne.s32.totalorder %s584, %s586
    %p593 = scmp.eq.s32.totalorder %s78, 1
    %p594 = por %p592, %p593
    %p595 = scmp.ne.s32.totalorder %s586, %s587
    %p596 = scmp.eq.s32.totalorder %s78, 0
    %p597 = por %p595, %p596
    %p598 = scmp.ne.s32.totalorder %s586, %s587
    %p599 = scmp.eq.s32.totalorder %s79, 1
    %p600 = por %p598, %p599
    %p602 = scmp.ne.s32.totalorder %s587, %s601
    %p603 = scmp.eq.s32.totalorder %s79, 0
    %p604 = por %p602, %p603
    %s606 = sadd.s32 %s605, 1
    %p609 = scmp.eq.s32.totalorder %s73, 1
    %p610 = scmp.ne.s32.totalorder %s605, %s607
    %p611 = scmp.eq.s32.totalorder %s73, 0
    %p612 = por %p610, %p611
    %p613 = scmp.ne.s32.totalorder %s605, %s607
    %p614 = scmp.eq.s32.totalorder %s78, 1
    %p615 = por %p613, %p614
    %p616 = scmp.ne.s32.totalorder %s607, %s608
    %p617 = scmp.eq.s32.totalorder %s78, 0
    %p618 = por %p616, %p617
    %p619 = scmp.ne.s32.totalorder %s607, %s608
    %p620 = scmp.eq.s32.totalorder %s79, 1
    %p621 = por %p619, %p620
    %p623 = scmp.ne.s32.totalorder %s608, %s622
    %p624 = scmp.eq.s32.totalorder %s79, 0
    %p625 = por %p623, %p624
    %s627 = sadd.s32 %s626, 1
    %p630 = scmp.eq.s32.totalorder %s73, 1
    %p631 = scmp.ne.s32.totalorder %s626, %s628
    %p632 = scmp.eq.s32.totalorder %s73, 0
    %p633 = por %p631, %p632
    %p634 = scmp.ne.s32.totalorder %s626, %s628
    %p635 = scmp.eq.s32.totalorder %s78, 1
    %p636 = por %p634, %p635
    %p637 = scmp.ne.s32.totalorder %s628, %s629
    %p638 = scmp.eq.s32.totalorder %s78, 0
    %p639 = por %p637, %p638
    %p640 = scmp.ne.s32.totalorder %s628, %s629
    %p641 = scmp.eq.s32.totalorder %s79, 1
    %p642 = por %p640, %p641
    %p644 = scmp.ne.s32.totalorder %s629, %s643
    %p645 = scmp.eq.s32.totalorder %s79, 0
    %p646 = por %p644, %p645
    %s648 = sadd.s32 %s647, 1
    %p651 = scmp.eq.s32.totalorder %s73, 1
    %p652 = scmp.ne.s32.totalorder %s647, %s649
    %p653 = scmp.eq.s32.totalorder %s73, 0
    %p654 = por %p652, %p653
    %p655 = scmp.ne.s32.totalorder %s647, %s649
    %p656 = scmp.eq.s32.totalorder %s78, 1
    %p657 = por %p655, %p656
    %p658 = scmp.ne.s32.totalorder %s649, %s650
    %p659 = scmp.eq.s32.totalorder %s78, 0
    %p660 = por %p658, %p659
    %p661 = scmp.ne.s32.totalorder %s649, %s650
    %p662 = scmp.eq.s32.totalorder %s79, 1
    %p663 = por %p661, %p662
    %p665 = scmp.ne.s32.totalorder %s650, %s664
    %p666 = scmp.eq.s32.totalorder %s79, 0
    %p667 = por %p665, %p666
    %s669 = sadd.s32 %s668, 1
    %p672 = scmp.eq.s32.totalorder %s73, 1
    %p673 = scmp.ne.s32.totalorder %s668, %s670
    %p674 = scmp.eq.s32.totalorder %s73, 0
    %p675 = por %p673, %p674
    %p676 = scmp.ne.s32.totalorder %s668, %s670
    %p677 = scmp.eq.s32.totalorder %s78, 1
    %p678 = por %p676, %p677
    %p679 = scmp.ne.s32.totalorder %s670, %s671
    %p680 = scmp.eq.s32.totalorder %s78, 0
    %p681 = por %p679, %p680
    %p682 = scmp.ne.s32.totalorder %s670, %s671
    %p683 = scmp.eq.s32.totalorder %s79, 1
    %p684 = por %p682, %p683
    %p686 = scmp.ne.s32.totalorder %s671, %s685
    %p687 = scmp.eq.s32.totalorder %s79, 0
    %p688 = por %p686, %p687
    %s690 = sadd.s32 %s689, 1
    %p693 = scmp.eq.s32.totalorder %s73, 1
    %p694 = scmp.ne.s32.totalorder %s689, %s691
    %p695 = scmp.eq.s32.totalorder %s73, 0
    %p696 = por %p694, %p695
    %p697 = scmp.ne.s32.totalorder %s689, %s691
    %p698 = scmp.eq.s32.totalorder %s78, 1
    %p699 = por %p697, %p698
    %p700 = scmp.ne.s32.totalorder %s691, %s692
    %p701 = scmp.eq.s32.totalorder %s78, 0
    %p702 = por %p700, %p701
    %p703 = scmp.ne.s32.totalorder %s691, %s692
    %p704 = scmp.eq.s32.totalorder %s79, 1
    %p705 = por %p703, %p704
    %p707 = scmp.ne.s32.totalorder %s692, %s706
    %p708 = scmp.eq.s32.totalorder %s79, 0
    %p709 = por %p707, %p708
    %s711 = sadd.s32 %s710, 1
    %p714 = scmp.eq.s32.totalorder %s73, 1
    %p715 = scmp.ne.s32.totalorder %s710, %s712
    %p716 = scmp.eq.s32.totalorder %s73, 0
    %p717 = por %p715, %p716
    %p718 = scmp.ne.s32.totalorder %s710, %s712
    %p719 = scmp.eq.s32.totalorder %s78, 1
    %p720 = por %p718, %p719
    %p721 = scmp.ne.s32.totalorder %s712, %s713
    %p722 = scmp.eq.s32.totalorder %s78, 0
    %p723 = por %p721, %p722
    %p724 = scmp.ne.s32.totalorder %s712, %s713
    %p725 = scmp.eq.s32.totalorder %s79, 1
    %p726 = por %p724, %p725
    %p728 = scmp.ne.s32.totalorder %s713, %s727
    %p729 = scmp.eq.s32.totalorder %s79, 0
    %p730 = por %p728, %p729
    %s732 = sadd.s32 %s731, 1
    %p735 = scmp.eq.s32.totalorder %s73, 1
    %p736 = scmp.ne.s32.totalorder %s731, %s733
    %p737 = scmp.eq.s32.totalorder %s73, 0
    %p738 = por %p736, %p737
    %p739 = scmp.ne.s32.totalorder %s731, %s733
    %p740 = scmp.eq.s32.totalorder %s78, 1
    %p741 = por %p739, %p740
    %p742 = scmp.ne.s32.totalorder %s733, %s734
    %p743 = scmp.eq.s32.totalorder %s78, 0
    %p744 = por %p742, %p743
    %p745 = scmp.ne.s32.totalorder %s733, %s734
    %p746 = scmp.eq.s32.totalorder %s79, 1
    %p747 = por %p745, %p746
    %p749 = scmp.ne.s32.totalorder %s734, %s748
    %p750 = scmp.eq.s32.totalorder %s79, 0
    %p751 = por %p749, %p750
    %s753 = sadd.s32 %s752, 1
    %p756 = scmp.eq.s32.totalorder %s73, 1
    %p757 = scmp.ne.s32.totalorder %s752, %s754
    %p758 = scmp.eq.s32.totalorder %s73, 0
    %p759 = por %p757, %p758
    %p760 = scmp.ne.s32.totalorder %s752, %s754
    %p761 = scmp.eq.s32.totalorder %s78, 1
    %p762 = por %p760, %p761
    %p763 = scmp.ne.s32.totalorder %s754, %s755
    %p764 = scmp.eq.s32.totalorder %s78, 0
    %p765 = por %p763, %p764
    %p766 = scmp.ne.s32.totalorder %s754, %s755
    %p767 = scmp.eq.s32.totalorder %s79, 1
    %p768 = por %p766, %p767
    %p770 = scmp.ne.s32.totalorder %s755, %s769
    %p771 = scmp.eq.s32.totalorder %s79, 0
    %p772 = por %p770, %p771
    %s774 = sadd.s32 %s773, 1
    %p777 = scmp.eq.s32.totalorder %s73, 1
    %p778 = scmp.ne.s32.totalorder %s773, %s775
    %p779 = scmp.eq.s32.totalorder %s73, 0
    %p780 = por %p778, %p779
    %p781 = scmp.ne.s32.totalorder %s773, %s775
    %p782 = scmp.eq.s32.totalorder %s78, 1
    %p783 = por %p781, %p782
    %p784 = scmp.ne.s32.totalorder %s775, %s776
    %p785 = scmp.eq.s32.totalorder %s78, 0
    %p786 = por %p784, %p785
    %p787 = scmp.ne.s32.totalorder %s775, %s776
    %p788 = scmp.eq.s32.totalorder %s79, 1
    %p789 = por %p787, %p788
    %p791 = scmp.ne.s32.totalorder %s776, %s790
    %p792 = scmp.eq.s32.totalorder %s79, 0
    %p793 = por %p791, %p792
    %s795 = sadd.s32 %s794, 1
    %p798 = scmp.eq.s32.totalorder %s73, 1
    %p799 = scmp.ne.s32.totalorder %s794, %s796
    %p800 = scmp.eq.s32.totalorder %s73, 0
    %p801 = por %p799, %p800
    %p802 = scmp.ne.s32.totalorder %s794, %s796
    %p803 = scmp.eq.s32.totalorder %s78, 1
    %p804 = por %p802, %p803
    %p805 = scmp.ne.s32.totalorder %s796, %s797
    %p806 = scmp.eq.s32.totalorder %s78, 0
    %p807 = por %p805, %p806
    %p808 = scmp.ne.s32.totalorder %s796, %s797
    %p809 = scmp.eq.s32.totalorder %s79, 1
    %p810 = por %p808, %p809
    %p812 = scmp.ne.s32.totalorder %s797, %s811
    %p813 = scmp.eq.s32.totalorder %s79, 0
    %p814 = por %p812, %p813
    %s815 = ssub.s32 %s80, %s92
    %s816 = ssub.s32 %s81, %s88
    %s817 = sor.u32 %s815, %s816
    %p818 = scmp.eq.s32.totalorder %s817, 0
    %s820 = sadd.s32 %s819, 1
    %s821 = scalar_select %p818, %s819, %s820
    %p824 = pneg %p818
    %p825 = scmp.eq.s32.totalorder %s73, 1
    %p826 = por %p824, %p825
    %p827 = scmp.ne.s32.totalorder %s819, %s822
    %p828 = scmp.eq.s32.totalorder %s73, 0
    %p829 = por %p827, %p828
    %p830 = scmp.ne.s32.totalorder %s819, %s822
    %p831 = scmp.eq.s32.totalorder %s78, 1
    %p832 = por %p830, %p831
    %p833 = scmp.ne.s32.totalorder %s822, %s823
    %p834 = scmp.eq.s32.totalorder %s78, 0
    %p835 = por %p833, %p834
    %p836 = scmp.ne.s32.totalorder %s822, %s823
    %p837 = scmp.eq.s32.totalorder %s79, 1
    %p838 = por %p836, %p837
    %p840 = scmp.ne.s32.totalorder %s823, %s839
    %p841 = scmp.eq.s32.totalorder %s79, 0
    %p842 = por %p840, %p841
    %p843 = scmp.le.s32.totalorder 1, %s73
    %p844 = scmp.lt.s32.totalorder %s73, 3
    %p845 = pnand %p843, %p844
    %p846 = pneg %p845
    // Predicated region
    $region9: #{decoder_forward.2} parent=5 // pred_check
      _
    $region10: #{decoder_forward.2} parent=5 // pred_check_branch
      %848 = sbr.rel (%p845) target = $region12
    $region11: #{decoder_forward.2} parent=5 // pred_region
      %s849 = ssub.s32 %s73, 1
      // Predicated region
      $region13: #{decoder_forward.2} parent=11 // pred_check
        %p850 = pneg %p240
      $region14: #{decoder_forward.2} parent=11 // pred_check_branch
        %852 = sbr.rel (%p850) target = $region16
      $region15: #{decoder_forward.2} parent=11 // pred_region
        _
      $region16: #{decoder_forward.2} parent=11 // pred_fallthru
        _
      // Predicated region
      $region17: #{decoder_forward.2} parent=11 // pred_check
        %p853 = pneg %p261
      $region18: #{decoder_forward.2} parent=11 // pred_check_branch
        %855 = sbr.rel (%p853) target = $region20
      $region19: #{decoder_forward.2} parent=11 // pred_region
        _
      $region20: #{decoder_forward.2} parent=11 // pred_fallthru
        _
      // Predicated region
      $region21: #{decoder_forward.2} parent=11 // pred_check
        %p856 = pneg %p282
      $region22: #{decoder_forward.2} parent=11 // pred_check_branch
        %858 = sbr.rel (%p856) target = $region24
      $region23: #{decoder_forward.2} parent=11 // pred_region
        _
      $region24: #{decoder_forward.2} parent=11 // pred_fallthru
        _
      // Predicated region
      $region25: #{decoder_forward.2} parent=11 // pred_check
        %p859 = pneg %p303
      $region26: #{decoder_forward.2} parent=11 // pred_check_branch
        %861 = sbr.rel (%p859) target = $region28
      $region27: #{decoder_forward.2} parent=11 // pred_region
        _
      $region28: #{decoder_forward.2} parent=11 // pred_fallthru
        _
      // Predicated region
      $region29: #{decoder_forward.2} parent=11 // pred_check
        %p862 = pneg %p324
      $region30: #{decoder_forward.2} parent=11 // pred_check_branch
        %864 = sbr.rel (%p862) target = $region32
      $region31: #{decoder_forward.2} parent=11 // pred_region
        _
      $region32: #{decoder_forward.2} parent=11 // pred_fallthru
        _
      // Predicated region
      $region33: #{decoder_forward.2} parent=11 // pred_check
        %p865 = pneg %p345
      $region34: #{decoder_forward.2} parent=11 // pred_check_branch
        %867 = sbr.rel (%p865) target = $region36
      $region35: #{decoder_forward.2} parent=11 // pred_region
        _
      $region36: #{decoder_forward.2} parent=11 // pred_fallthru
        _
      // Predicated region
      $region37: #{decoder_forward.2} parent=11 // pred_check
        %p868 = pneg %p366
      $region38: #{decoder_forward.2} parent=11 // pred_check_branch
        %870 = sbr.rel (%p868) target = $region40
      $region39: #{decoder_forward.2} parent=11 // pred_region
        _
      $region40: #{decoder_forward.2} parent=11 // pred_fallthru
        _
      // Predicated region
      $region41: #{decoder_forward.2} parent=11 // pred_check
        %p871 = pneg %p387
      $region42: #{decoder_forward.2} parent=11 // pred_check_branch
        %873 = sbr.rel (%p871) target = $region44
      $region43: #{decoder_forward.2} parent=11 // pred_region
        _
      $region44: #{decoder_forward.2} parent=11 // pred_fallthru
        _
      // Predicated region
      $region45: #{decoder_forward.2} parent=11 // pred_check
        %p874 = pneg %p408
      $region46: #{decoder_forward.2} parent=11 // pred_check_branch
        %876 = sbr.rel (%p874) target = $region48
      $region47: #{decoder_forward.2} parent=11 // pred_region
        _
      $region48: #{decoder_forward.2} parent=11 // pred_fallthru
        _
      // Predicated region
      $region49: #{decoder_forward.2} parent=11 // pred_check
        %p877 = pneg %p429
      $region50: #{decoder_forward.2} parent=11 // pred_check_branch
        %879 = sbr.rel (%p877) target = $region52
      $region51: #{decoder_forward.2} parent=11 // pred_region
        _
      $region52: #{decoder_forward.2} parent=11 // pred_fallthru
        _
      // Predicated region
      $region53: #{decoder_forward.2} parent=11 // pred_check
        %p880 = pneg %p450
      $region54: #{decoder_forward.2} parent=11 // pred_check_branch
        %882 = sbr.rel (%p880) target = $region56
      $region55: #{decoder_forward.2} parent=11 // pred_region
        _
      $region56: #{decoder_forward.2} parent=11 // pred_fallthru
        _
      // Predicated region
      $region57: #{decoder_forward.2} parent=11 // pred_check
        %p883 = pneg %p471
      $region58: #{decoder_forward.2} parent=11 // pred_check_branch
        %885 = sbr.rel (%p883) target = $region60
      $region59: #{decoder_forward.2} parent=11 // pred_region
        _
      $region60: #{decoder_forward.2} parent=11 // pred_fallthru
        _
      // Predicated region
      $region61: #{decoder_forward.2} parent=11 // pred_check
        %p886 = pneg %p492
      $region62: #{decoder_forward.2} parent=11 // pred_check_branch
        %888 = sbr.rel (%p886) target = $region64
      $region63: #{decoder_forward.2} parent=11 // pred_region
        _
      $region64: #{decoder_forward.2} parent=11 // pred_fallthru
        _
      // Predicated region
      $region65: #{decoder_forward.2} parent=11 // pred_check
        %p889 = pneg %p513
      $region66: #{decoder_forward.2} parent=11 // pred_check_branch
        %891 = sbr.rel (%p889) target = $region68
      $region67: #{decoder_forward.2} parent=11 // pred_region
        _
      $region68: #{decoder_forward.2} parent=11 // pred_fallthru
        _
      // Predicated region
      $region69: #{decoder_forward.2} parent=11 // pred_check
        %p892 = pneg %p534
      $region70: #{decoder_forward.2} parent=11 // pred_check_branch
        %894 = sbr.rel (%p892) target = $region72
      $region71: #{decoder_forward.2} parent=11 // pred_region
        _
      $region72: #{decoder_forward.2} parent=11 // pred_fallthru
        _
      // Predicated region
      $region73: #{decoder_forward.2} parent=11 // pred_check
        %p895 = pneg %p555
      $region74: #{decoder_forward.2} parent=11 // pred_check_branch
        %897 = sbr.rel (%p895) target = $region76
      $region75: #{decoder_forward.2} parent=11 // pred_region
        _
      $region76: #{decoder_forward.2} parent=11 // pred_fallthru
        _
      // Predicated region
      $region77: #{decoder_forward.2} parent=11 // pred_check
        %p898 = pneg %p576
      $region78: #{decoder_forward.2} parent=11 // pred_check_branch
        %900 = sbr.rel (%p898) target = $region80
      $region79: #{decoder_forward.2} parent=11 // pred_region
        _
      $region80: #{decoder_forward.2} parent=11 // pred_fallthru
        _
      // Predicated region
      $region81: #{decoder_forward.2} parent=11 // pred_check
        %p901 = pneg %p597
      $region82: #{decoder_forward.2} parent=11 // pred_check_branch
        %903 = sbr.rel (%p901) target = $region84
      $region83: #{decoder_forward.2} parent=11 // pred_region
        _
      $region84: #{decoder_forward.2} parent=11 // pred_fallthru
        _
      // Predicated region
      $region85: #{decoder_forward.2} parent=11 // pred_check
        %p904 = pneg %p618
      $region86: #{decoder_forward.2} parent=11 // pred_check_branch
        %906 = sbr.rel (%p904) target = $region88
      $region87: #{decoder_forward.2} parent=11 // pred_region
        _
      $region88: #{decoder_forward.2} parent=11 // pred_fallthru
        _
      // Predicated region
      $region89: #{decoder_forward.2} parent=11 // pred_check
        %p907 = pneg %p639
      $region90: #{decoder_forward.2} parent=11 // pred_check_branch
        %909 = sbr.rel (%p907) target = $region92
      $region91: #{decoder_forward.2} parent=11 // pred_region
        _
      $region92: #{decoder_forward.2} parent=11 // pred_fallthru
        _
      // Predicated region
      $region93: #{decoder_forward.2} parent=11 // pred_check
        %p910 = pneg %p660
      $region94: #{decoder_forward.2} parent=11 // pred_check_branch
        %912 = sbr.rel (%p910) target = $region96
      $region95: #{decoder_forward.2} parent=11 // pred_region
        _
      $region96: #{decoder_forward.2} parent=11 // pred_fallthru
        _
      // Predicated region
      $region97: #{decoder_forward.2} parent=11 // pred_check
        %p913 = pneg %p681
      $region98: #{decoder_forward.2} parent=11 // pred_check_branch
        %915 = sbr.rel (%p913) target = $region100
      $region99: #{decoder_forward.2} parent=11 // pred_region
        _
      $region100: #{decoder_forward.2} parent=11 // pred_fallthru
        _
      // Predicated region
      $region101: #{decoder_forward.2} parent=11 // pred_check
        %p916 = pneg %p702
      $region102: #{decoder_forward.2} parent=11 // pred_check_branch
        %918 = sbr.rel (%p916) target = $region104
      $region103: #{decoder_forward.2} parent=11 // pred_region
        _
      $region104: #{decoder_forward.2} parent=11 // pred_fallthru
        _
      // Predicated region
      $region105: #{decoder_forward.2} parent=11 // pred_check
        %p919 = pneg %p723
      $region106: #{decoder_forward.2} parent=11 // pred_check_branch
        %921 = sbr.rel (%p919) target = $region108
      $region107: #{decoder_forward.2} parent=11 // pred_region
        _
      $region108: #{decoder_forward.2} parent=11 // pred_fallthru
        _
      // Predicated region
      $region109: #{decoder_forward.2} parent=11 // pred_check
        %p922 = pneg %p744
      $region110: #{decoder_forward.2} parent=11 // pred_check_branch
        %924 = sbr.rel (%p922) target = $region112
      $region111: #{decoder_forward.2} parent=11 // pred_region
        _
      $region112: #{decoder_forward.2} parent=11 // pred_fallthru
        _
      // Predicated region
      $region113: #{decoder_forward.2} parent=11 // pred_check
        %p925 = pneg %p765
      $region114: #{decoder_forward.2} parent=11 // pred_check_branch
        %927 = sbr.rel (%p925) target = $region116
      $region115: #{decoder_forward.2} parent=11 // pred_region
        _
      $region116: #{decoder_forward.2} parent=11 // pred_fallthru
        _
      // Predicated region
      $region117: #{decoder_forward.2} parent=11 // pred_check
        %p928 = pneg %p786
      $region118: #{decoder_forward.2} parent=11 // pred_check_branch
        %930 = sbr.rel (%p928) target = $region120
      $region119: #{decoder_forward.2} parent=11 // pred_region
        _
      $region120: #{decoder_forward.2} parent=11 // pred_fallthru
        _
      // Predicated region
      $region121: #{decoder_forward.2} parent=11 // pred_check
        %p931 = pneg %p807
      $region122: #{decoder_forward.2} parent=11 // pred_check_branch
        %933 = sbr.rel (%p931) target = $region124
      $region123: #{decoder_forward.2} parent=11 // pred_region
        _
      $region124: #{decoder_forward.2} parent=11 // pred_fallthru
        _
    $region12: #{decoder_forward.2} parent=5 // pred_fallthru
      _
    %p934 = scmp.lt.s32.totalorder %s73, 2
    // Predicated region
    $region125: #{decoder_forward.2} parent=5 // pred_check
      %p935 = pneg %p934
    $region126: #{decoder_forward.2} parent=5 // pred_check_branch
      %937 = sbr.rel (%p935) target = $region128
    $region127: #{decoder_forward.2} parent=5 // pred_region
      // Predicated region
      $region129: #{decoder_forward.2} parent=127 // pred_check
        %p938 = pneg %p107
      $region130: #{decoder_forward.2} parent=127 // pred_check_branch
        %940 = sbr.rel (%p938) target = $region132
      $region131: #{decoder_forward.2} parent=127 // pred_region
        %p941 = scmp.lt.s32.totalorder %s80, 1
        %s942 = scalar_select %p941, %s80, 1
        %p943 = scmp.lt.s32.totalorder %s81, 0
        %s944 = scalar_select %p943, %s81, 0
        %s945 = sadd.s32 %s944, %s942
        %s946 = smul.addr %s945, 8
        %s947 = scalar_lea.vmem %s1, %s946
      $region132: #{decoder_forward.2} parent=127 // pred_fallthru
        _
      // Predicated region
      $region133: #{decoder_forward.2} parent=127 // pred_check
        %p948 = pneg %p133
      $region134: #{decoder_forward.2} parent=127 // pred_check_branch
        %950 = sbr.rel (%p948) target = $region136
      $region135: #{decoder_forward.2} parent=127 // pred_region
        %p951 = scmp.lt.s32.totalorder %s80, 1
        %s952 = scalar_select %p951, %s80, 1
        %s953 = smul.addr %s952, 8
        %s954 = scalar_lea.vmem %s3, %s953
      $region136: #{decoder_forward.2} parent=127 // pred_fallthru
        _
      // Predicated region
      $region137: #{decoder_forward.2} parent=127 // pred_check
        %p955 = pneg %p159
      $region138: #{decoder_forward.2} parent=127 // pred_check_branch
        %957 = sbr.rel (%p955) target = $region140
      $region139: #{decoder_forward.2} parent=127 // pred_region
        %p958 = scmp.lt.s32.totalorder %s80, 1
        %s959 = scalar_select %p958, %s80, 1
        %s960 = smul.addr %s959, 8
        %s961 = scalar_lea.vmem %s5, %s960
      $region140: #{decoder_forward.2} parent=127 // pred_fallthru
        _
      // Predicated region
      $region141: #{decoder_forward.2} parent=127 // pred_check
        %p962 = pneg %p187
      $region142: #{decoder_forward.2} parent=127 // pred_check_branch
        %964 = sbr.rel (%p962) target = $region144
      $region143: #{decoder_forward.2} parent=127 // pred_region
        %p965 = scmp.lt.s32.totalorder %s80, 1
        %s966 = scalar_select %p965, %s80, 1
        %p967 = scmp.lt.s32.totalorder %s81, 0
        %s968 = scalar_select %p967, %s81, 0
        %s969 = sadd.s32 %s968, %s966
        %s970 = smul.addr %s969, 4
        %s971 = scalar_lea.vmem %s7, %s970
      $region144: #{decoder_forward.2} parent=127 // pred_fallthru
        _
      // Predicated region
      $region145: #{decoder_forward.2} parent=127 // pred_check
        %p972 = pneg %p213
      $region146: #{decoder_forward.2} parent=127 // pred_check_branch
        %974 = sbr.rel (%p972) target = $region148
      $region147: #{decoder_forward.2} parent=127 // pred_region
        %p975 = scmp.lt.s32.totalorder %s80, 1
        %s976 = scalar_select %p975, %s80, 1
        %s977 = scalar_lea.vmem %s9, %s976
      $region148: #{decoder_forward.2} parent=127 // pred_fallthru
        _
    $region128: #{decoder_forward.2} parent=5 // pred_fallthru
      _
    %p978 = scmp.le.s32.totalorder 1, %s73
    %p979 = scmp.lt.s32.totalorder %s73, 3
    %p980 = pnand %p978, %p979
    %p981 = pneg %p980
    // Predicated region
    $region149: #{decoder_forward.2} parent=5 // pred_check
      _
    $region150: #{decoder_forward.2} parent=5 // pred_check_branch
      %983 = sbr.rel (%p980) target = $region152
    $region151: #{decoder_forward.2} parent=5 // pred_region
      %s984 = ssub.s32 %s73, 1
      %p985 = scmp.lt.s32.totalorder %s82, 1
      %s986 = scalar_select %p985, %s82, 1
      %p987 = scmp.lt.s32.totalorder %s83, 0
      %s988 = scalar_select %p987, %s83, 0
      %s989 = sadd.s32 %s988, %s986
      %s990 = smul.addr %s989, 8
      %s991 = scalar_lea.vmem %s1, %s990
      %p992 = pneg %p113
      %p993 = pneg %p110
      %p994 = scmp.lt.s32.totalorder %s82, 1
      %s995 = scalar_select %p994, %s82, 1
      %s996 = smul.addr %s995, 8
      %s997 = scalar_lea.vmem %s3, %s996
      %p998 = pneg %p139
      %p999 = pneg %p136
      %p1000 = scmp.lt.s32.totalorder %s82, 1
      %s1001 = scalar_select %p1000, %s82, 1
      %s1002 = smul.addr %s1001, 8
      %s1003 = scalar_lea.vmem %s5, %s1002
      %p1004 = pneg %p165
      %p1005 = pneg %p162
      %p1006 = scmp.lt.s32.totalorder %s82, 1
      %s1007 = scalar_select %p1006, %s82, 1
      %p1008 = scmp.lt.s32.totalorder %s83, 0
      %s1009 = scalar_select %p1008, %s83, 0
      %s1010 = sadd.s32 %s1009, %s1007
      %s1011 = smul.addr %s1010, 4
      %s1012 = scalar_lea.vmem %s7, %s1011
      %p1013 = pneg %p193
      %p1014 = pneg %p190
      %p1015 = scmp.lt.s32.totalorder %s82, 1
      %s1016 = scalar_select %p1015, %s82, 1
      %s1017 = scalar_lea.vmem %s9, %s1016
      %p1018 = pneg %p219
      %p1019 = pneg %p216
      %p1020 = pneg %p240
      %p1021 = pneg %p237
      %p1022 = pneg %p261
      %p1023 = pneg %p258
      %p1024 = pneg %p282
      %p1025 = pneg %p279
      %p1026 = pneg %p303
      %p1027 = pneg %p300
      %p1028 = pneg %p324
      %p1029 = pneg %p321
      %p1030 = pneg %p345
      %p1031 = pneg %p342
      %p1032 = pneg %p366
      %p1033 = pneg %p363
      %p1034 = pneg %p387
      %p1035 = pneg %p384
      %p1036 = pneg %p408
      %p1037 = pneg %p405
      %p1038 = pneg %p429
      %p1039 = pneg %p426
      %p1040 = pneg %p450
      %p1041 = pneg %p447
      %p1042 = pneg %p471
      %p1043 = pneg %p468
      %p1044 = pneg %p492
      %p1045 = pneg %p489
      %p1046 = pneg %p513
      %p1047 = pneg %p510
      %p1048 = pneg %p534
      %p1049 = pneg %p531
      %p1050 = pneg %p555
      %p1051 = pneg %p552
      %p1052 = pneg %p576
      %p1053 = pneg %p573
      %p1054 = pneg %p597
      %p1055 = pneg %p594
      %p1056 = pneg %p618
      %p1057 = pneg %p615
      %p1058 = pneg %p639
      %p1059 = pneg %p636
      %p1060 = pneg %p660
      %p1061 = pneg %p657
      %p1062 = pneg %p681
      %p1063 = pneg %p678
      %p1064 = pneg %p702
      %p1065 = pneg %p699
      %p1066 = pneg %p723
      %p1067 = pneg %p720
      %p1068 = pneg %p744
      %p1069 = pneg %p741
      %p1070 = pneg %p765
      %p1071 = pneg %p762
      %p1072 = pneg %p786
      %p1073 = pneg %p783
      %p1074 = pneg %p807
      %p1075 = pneg %p804
      %p1076 = pneg %p835
      %p1077 = pneg %p832
      %p1078 = scmp.lt.s32.totalorder %s82, 1
      %s1079 = scalar_select %p1078, %s82, 1
      %p1080 = scmp.lt.s32.totalorder %s83, 0
      %s1081 = scalar_select %p1080, %s83, 0
      %s1082 = sadd.s32 %s1081, %s1079
      %s1083 = smul.addr %s1082, 8
      %s1084 = scalar_lea.vmem %s67, %s1083
      %p1085 = scmp.lt.s32.totalorder %s82, 1
      %s1086 = scalar_select %p1085, %s82, 1
      %p1087 = scmp.lt.s32.totalorder %s83, 0
      %s1088 = scalar_select %p1087, %s83, 0
      %s1089 = sadd.s32 %s1088, %s1086
      %s1090 = smul.addr %s1089, 8
      %s1091 = scalar_lea.vmem %s1, %s1090
      %p1092 = scmp.lt.s32.totalorder %s82, 1
      %s1093 = scalar_select %p1092, %s82, 1
      %s1094 = smul.addr %s1093, 8
      %s1095 = scalar_lea.vmem %s3, %s1094
      %p1096 = scmp.lt.s32.totalorder %s82, 1
      %s1097 = scalar_select %p1096, %s82, 1
      %s1098 = smul.addr %s1097, 8
      %s1099 = scalar_lea.vmem %s5, %s1098
      %p1100 = scmp.lt.s32.totalorder %s82, 1
      %s1101 = scalar_select %p1100, %s82, 1
      %p1102 = scmp.lt.s32.totalorder %s83, 0
      %s1103 = scalar_select %p1102, %s83, 0
      %s1104 = sadd.s32 %s1103, %s1101
      %s1105 = smul.addr %s1104, 4
      %s1106 = scalar_lea.vmem %s7, %s1105
      %p1107 = scmp.lt.s32.totalorder %s82, 1
      %s1108 = scalar_select %p1107, %s82, 1
      %s1109 = scalar_lea.vmem %s9, %s1108
      %p1110 = scmp.lt.s32.totalorder %s82, 1
      %s1111 = scalar_select %p1110, %s82, 1
      %p1112 = scmp.lt.s32.totalorder %s83, 0
      %s1113 = scalar_select %p1112, %s83, 0
      %s1114 = sadd.s32 %s1113, %s1111
      %s1115 = smul.addr %s1114, 8
      %s1116 = scalar_lea.vmem %s67, %s1115
      %v1118 = vld [vmem:[%s1091] sm:$0xff]
      %v1119 = vld [vmem:[%s1095] sm:$0xff]
      %v1120 = vld [vmem:[%s1099] sm:$0xff]
      %v1121 = vld [vmem:[%s1106] sm:$0xf]
      %v1122 = vunpack.c.l.bf16 %v1121
      %v1123 = vsub.f32 %v1122, 1.0
      %v1124 = vmul.f32 %v1123, 1e+09
      %v1125 = vld [vmem:[%s1109] sm:$0x1]
      %v1126 = vunpack.c.l.bf16 %v1125
      %v1127 = vsub.f32 %v1126, 1.0
      %v1128 = vmul.f32 %v1127, 1e+09
      %v1129 = vld [vmem:[%s51] sm:$0x1]
      %v1130 = vld [vmem:[%s53] sm:$0x1]
      %vm1131 = vcmask 261120
      %v1132 = vsel %vm1131, %v1118, 0.0
      %1133 = vadd.xlane.f32.xlu0 %v1132
      %v1134 = vpop.xlane.xlu0 %1133
      %v1135 = vrcp.pop 32.0
      %v1136 = vmul.f32 32.0, %v1135
      %v1137 = vsub.f32 1.0, %v1136
      %v1138 = vmul.f32 %v1135, %v1137
      %v1139 = vadd.f32 %v1135, %v1138
      %vm1140 = vweird.f32 %v1135
      %v1141 = vsel %vm1140, %v1135, %v1139
      %v1142 = vmul.f32 %v1134, %v1141
      %v1143 = vsub.f32 %v1118, %v1142
      %v1144 = vmul.f32 %v1143, %v1143
      %v1145 = vsel %vm1131, %v1144, 0.0
      %1146 = vadd.xlane.f32.xlu0 %v1145
      %v1147 = vpop.xlane.xlu0 %1146
      %v1148 = vrcp.pop 31.0
      %v1149 = vmul.f32 31.0, %v1148
      %v1150 = vsub.f32 1.0, %v1149
      %v1151 = vmul.f32 %v1148, %v1150
      %v1152 = vadd.f32 %v1148, %v1151
      %vm1153 = vweird.f32 %v1148
      %v1154 = vsel %vm1153, %v1148, %v1152
      %v1155 = vmul.f32 %v1147, %v1154
      %v1157 = vperm.slane %v1129, 0
      %v1159 = vmul.f32 %v1157, %v1143
      %v1160 = vrsqrt.pop %v1155
      %v1161 = vmul.f32 %v1160, %v1155
      %v1162 = vmul.f32 %v1161, %v1160
      %v1163 = vmul.f32 0.5, %v1162
      %v1164 = vsub.f32 1.5, %v1163
      %v1165 = vmul.f32 %v1160, %v1164
      %v1166 = vmul.f32 %v1155, %v1165
      %vm1167 = vcmp.eq.f32.partialorder %v1155, inf
      %v1168 = vsel %vm1167, %v1155, %v1166
      %vm1169 = vcmp.eq.f32.partialorder %v1155, 0.0
      %v1170 = vand.u32 %v1155, 2147483648
      %v1171 = vsel %vm1169, %v1170, %v1168
      %v1172 = vadd.f32 %v1171, 1e-06
      %v1173 = vrcp.pop %v1172
      %v1174 = vmul.f32 %v1172, %v1173
      %v1175 = vsub.f32 1.0, %v1174
      %v1176 = vmul.f32 %v1173, %v1175
      %v1177 = vadd.f32 %v1173, %v1176
      %vm1178 = vweird.f32 %v1172
      %vm1179 = vweird.f32 %v1173
      %vm1180 = vmor %vm1178, %vm1179
      %v1181 = vsel %vm1180, %v1173, %v1177
      %v1182 = vand.u32 2147483647, %v1172
      %vm1183 = vcmp.eq.f32.partialorder %v1182, 8.507059e+37
      %v1184 = vand.u32 %v1172, 2147483648
      %v1185 = vor.u32 1.1754944e-38, %v1184
      %v1186 = vsel %vm1183, %v1185, %v1181
      %v1187 = vmul.f32 %v1159, %v1186
      %v1189 = vperm.slane %v1130, 0
      %v1191 = vadd.f32 %v1187, %v1189
      %v1192 = vsel %vm1131, %v1119, 0.0
      %1193 = vadd.xlane.f32.xlu0 %v1192
      %v1194 = vpop.xlane.xlu0 %1193
      %v1195 = vmul.f32 %v1194, %v1141
      %v1196 = vsub.f32 %v1119, %v1195
      %v1197 = vmul.f32 %v1196, %v1196
      %v1198 = vsel %vm1131, %v1197, 0.0
      %1199 = vadd.xlane.f32.xlu0 %v1198
      %v1200 = vpop.xlane.xlu0 %1199
      %v1201 = vmul.f32 %v1200, %v1154
      %v1202 = vmul.f32 %v1157, %v1196
      %v1203 = vrsqrt.pop %v1201
      %v1204 = vmul.f32 %v1203, %v1201
      %v1205 = vmul.f32 %v1204, %v1203
      %v1206 = vmul.f32 0.5, %v1205
      %v1207 = vsub.f32 1.5, %v1206
      %v1208 = vmul.f32 %v1203, %v1207
      %v1209 = vmul.f32 %v1201, %v1208
      %vm1210 = vcmp.eq.f32.partialorder %v1201, inf
      %v1211 = vsel %vm1210, %v1201, %v1209
      %vm1212 = vcmp.eq.f32.partialorder %v1201, 0.0
      %v1213 = vand.u32 %v1201, 2147483648
      %v1214 = vsel %vm1212, %v1213, %v1211
      %v1215 = vadd.f32 %v1214, 1e-06
      %v1216 = vrcp.pop %v1215
      %v1217 = vmul.f32 %v1215, %v1216
      %v1218 = vsub.f32 1.0, %v1217
      %v1219 = vmul.f32 %v1216, %v1218
      %v1220 = vadd.f32 %v1216, %v1219
      %vm1221 = vweird.f32 %v1215
      %vm1222 = vweird.f32 %v1216
      %vm1223 = vmor %vm1221, %vm1222
      %v1224 = vsel %vm1223, %v1216, %v1220
      %v1225 = vand.u32 2147483647, %v1215
      %vm1226 = vcmp.eq.f32.partialorder %v1225, 8.507059e+37
      %v1227 = vand.u32 %v1215, 2147483648
      %v1228 = vor.u32 1.1754944e-38, %v1227
      %v1229 = vsel %vm1226, %v1228, %v1224
      %v1230 = vmul.f32 %v1202, %v1229
      %v1231 = vadd.f32 %v1230, %v1189
      %v1232 = vld [vmem:[%s11] sm:$0xf]
      %v1233 = vld [vmem:[%s11 + $0x4] sm:$0xf]
      %v1234 = vld [vmem:[%s11 + $0x8] sm:$0xf]
      %v1235 = vld [vmem:[%s11 + $0xc] sm:$0xf]
      %v1236 = vld [vmem:[%s11 + $0x10] sm:$0xf]
      %v1237 = vld [vmem:[%s11 + $0x14] sm:$0xf]
      %v1238 = vld [vmem:[%s11 + $0x18] sm:$0xf]
      %v1239 = vld [vmem:[%s11 + $0x1c] sm:$0xf]
      %v1240 = vld [vmem:[%s11 + $0x20] sm:$0xf]
      %v1241 = vld [vmem:[%s11 + $0x24] sm:$0xf]
      %v1242 = vld [vmem:[%s11 + $0x28] sm:$0xf]
      %v1243 = vld [vmem:[%s11 + $0x2c] sm:$0xf]
      %v1244 = vld [vmem:[%s11 + $0x30] sm:$0xf]
      %v1245 = vld [vmem:[%s11 + $0x34] sm:$0xf]
      %v1246 = vld [vmem:[%s11 + $0x38] sm:$0xf]
      %v1247 = vld [vmem:[%s11 + $0x3c] sm:$0xf]
      %v1248 = vld [vmem:[%s13] sm:$0x1]
      %v1249 = vld [vmem:[%s13 + $0x1] sm:$0x1]
      %v1250 = vld [vmem:[%s13 + $0x2] sm:$0x1]
      %v1251 = vld [vmem:[%s13 + $0x3] sm:$0x1]
      %v1252 = vld [vmem:[%s15] sm:$0xf]
      %v1253 = vld [vmem:[%s15 + $0x4] sm:$0xf]
      %v1254 = vld [vmem:[%s15 + $0x8] sm:$0xf]
      %v1255 = vld [vmem:[%s15 + $0xc] sm:$0xf]
      %v1256 = vld [vmem:[%s15 + $0x10] sm:$0xf]
      %v1257 = vld [vmem:[%s15 + $0x14] sm:$0xf]
      %v1258 = vld [vmem:[%s15 + $0x18] sm:$0xf]
      %v1259 = vld [vmem:[%s15 + $0x1c] sm:$0xf]
      %v1260 = vld [vmem:[%s15 + $0x20] sm:$0xf]
      %v1261 = vld [vmem:[%s15 + $0x24] sm:$0xf]
      %v1262 = vld [vmem:[%s15 + $0x28] sm:$0xf]
      %v1263 = vld [vmem:[%s15 + $0x2c] sm:$0xf]
      %v1264 = vld [vmem:[%s15 + $0x30] sm:$0xf]
      %v1265 = vld [vmem:[%s15 + $0x34] sm:$0xf]
      %v1266 = vld [vmem:[%s15 + $0x38] sm:$0xf]
      %v1267 = vld [vmem:[%s15 + $0x3c] sm:$0xf]
      %v1268 = vld [vmem:[%s17] sm:$0x1]
      %v1269 = vld [vmem:[%s17 + $0x1] sm:$0x1]
      %v1270 = vld [vmem:[%s17 + $0x2] sm:$0x1]
      %v1271 = vld [vmem:[%s17 + $0x3] sm:$0x1]
      %v1272 = vld [vmem:[%s19] sm:$0xf]
      %v1273 = vld [vmem:[%s19 + $0x4] sm:$0xf]
      %v1274 = vld [vmem:[%s19 + $0x8] sm:$0xf]
      %v1275 = vld [vmem:[%s19 + $0xc] sm:$0xf]
      %v1276 = vld [vmem:[%s19 + $0x10] sm:$0xf]
      %v1277 = vld [vmem:[%s19 + $0x14] sm:$0xf]
      %v1278 = vld [vmem:[%s19 + $0x18] sm:$0xf]
      %v1279 = vld [vmem:[%s19 + $0x1c] sm:$0xf]
      %v1280 = vld [vmem:[%s19 + $0x20] sm:$0xf]
      %v1281 = vld [vmem:[%s19 + $0x24] sm:$0xf]
      %v1282 = vld [vmem:[%s19 + $0x28] sm:$0xf]
      %v1283 = vld [vmem:[%s19 + $0x2c] sm:$0xf]
      %v1284 = vld [vmem:[%s19 + $0x30] sm:$0xf]
      %v1285 = vld [vmem:[%s19 + $0x34] sm:$0xf]
      %v1286 = vld [vmem:[%s19 + $0x38] sm:$0xf]
      %v1287 = vld [vmem:[%s19 + $0x3c] sm:$0xf]
      %v1288 = vld [vmem:[%s21] sm:$0x1]
      %v1289 = vld [vmem:[%s21 + $0x1] sm:$0x1]
      %v1290 = vld [vmem:[%s21 + $0x2] sm:$0x1]
      %v1291 = vld [vmem:[%s21 + $0x3] sm:$0x1]
      %v1292 = vld [vmem:[%s23] sm:$0xf]
      %v1293 = vld [vmem:[%s23 + $0x4] sm:$0xf]
      %v1294 = vld [vmem:[%s23 + $0x8] sm:$0xf]
      %v1295 = vld [vmem:[%s23 + $0xc] sm:$0xf]
      %v1296 = vld [vmem:[%s25] sm:$0x1]
      %v1297 = vpack.c.bf16 %v1191, %v1191
      %v1298 = vpack.c.bf16 %v1231, %v1231
      %v1303 = vperm.slane %v1248, 0
      %v1304 = vperm.slane %v1249, 0
      %v1305 = vperm.slane %v1250, 0
      %v1306 = vperm.slane %v1251, 0
      %v1315 = vunpack.c.l.b16 %v1232
      %v1316 = vunpack.c.l.b16 %v1233
      %v1317 = vunpack.c.l.b16 %v1234
      %v1318 = vunpack.c.l.b16 %v1235
      %v1319 = vpack.c.b16 %v1316, %v1315
      %v1320 = vpack.c.b16 %v1318, %v1317
      %v1324 = vsel %vm1131, %v1297, 0
      %1326 = vmatpush.bf16.msra.mxu0 0
      %1327 = vmatpush.bf16.msra.mxu0 0
      %1328 = vmatpush.bf16.msra.mxu0 0
      %1329 = vmatpush.bf16.msra.mxu0 0
      %1330 = vmatpush.bf16.msra.mxu0 0
      %1331 = vmatpush.bf16.msra.mxu0 0
      %1332 = vmatpush.bf16.msra.mxu0 %v1320
      %1333 = vmatpush.bf16.msra.mxu0 %v1319
      %1334 = vmatmul.bf16.gmra.mxu0 %v1324
      %v1335 = vpop.f32.mrf.mxu0
      %v1336 = vadd.f32 %v1303, %v1335
      %v1337 = vpop.f32.mrf.mxu0
      %1338 = vdwg.mxu0
      %v1343 = vunpack.c.l.b16 %v1236
      %v1344 = vunpack.c.l.b16 %v1237
      %v1345 = vunpack.c.l.b16 %v1238
      %v1346 = vunpack.c.l.b16 %v1239
      %v1347 = vpack.c.b16 %v1344, %v1343
      %v1348 = vpack.c.b16 %v1346, %v1345
      %1351 = vmatpush.bf16.msra.mxu0 0
      %1352 = vmatpush.bf16.msra.mxu0 0
      %1353 = vmatpush.bf16.msra.mxu0 0
      %1354 = vmatpush.bf16.msra.mxu0 0
      %1355 = vmatpush.bf16.msra.mxu0 0
      %1356 = vmatpush.bf16.msra.mxu0 0
      %1357 = vmatpush.bf16.msra.mxu0 %v1348
      %1358 = vmatpush.bf16.msra.mxu0 %v1347
      %1359 = vmatmul.bf16.gmra.mxu0 %v1324
      %v1360 = vpop.f32.mrf.mxu0
      %v1361 = vadd.f32 %v1304, %v1360
      %v1362 = vpop.f32.mrf.mxu0
      %1363 = vdwg.mxu0
      %v1368 = vunpack.c.l.b16 %v1240
      %v1369 = vunpack.c.l.b16 %v1241
      %v1370 = vunpack.c.l.b16 %v1242
      %v1371 = vunpack.c.l.b16 %v1243
      %v1372 = vpack.c.b16 %v1369, %v1368
      %v1373 = vpack.c.b16 %v1371, %v1370
      %1376 = vmatpush.bf16.msra.mxu0 0
      %1377 = vmatpush.bf16.msra.mxu0 0
      %1378 = vmatpush.bf16.msra.mxu0 0
      %1379 = vmatpush.bf16.msra.mxu0 0
      %1380 = vmatpush.bf16.msra.mxu0 0
      %1381 = vmatpush.bf16.msra.mxu0 0
      %1382 = vmatpush.bf16.msra.mxu0 %v1373
      %1383 = vmatpush.bf16.msra.mxu0 %v1372
      %1384 = vmatmul.bf16.gmra.mxu0 %v1324
      %v1385 = vpop.f32.mrf.mxu0
      %v1386 = vadd.f32 %v1305, %v1385
      %v1387 = vpop.f32.mrf.mxu0
      %1388 = vdwg.mxu0
      %v1393 = vunpack.c.l.b16 %v1244
      %v1394 = vunpack.c.l.b16 %v1245
      %v1395 = vunpack.c.l.b16 %v1246
      %v1396 = vunpack.c.l.b16 %v1247
      %v1397 = vpack.c.b16 %v1394, %v1393
      %v1398 = vpack.c.b16 %v1396, %v1395
      %1401 = vmatpush.bf16.msra.mxu0 0
      %1402 = vmatpush.bf16.msra.mxu0 0
      %1403 = vmatpush.bf16.msra.mxu0 0
      %1404 = vmatpush.bf16.msra.mxu0 0
      %1405 = vmatpush.bf16.msra.mxu0 0
      %1406 = vmatpush.bf16.msra.mxu0 0
      %1407 = vmatpush.bf16.msra.mxu0 %v1398
      %1408 = vmatpush.bf16.msra.mxu0 %v1397
      %1409 = vmatmul.bf16.gmra.mxu0 %v1324
      %v1410 = vpop.f32.mrf.mxu0
      %v1411 = vadd.f32 %v1306, %v1410
      %v1412 = vpop.f32.mrf.mxu0
      %1413 = vdwg.mxu0
      %v1418 = vperm.slane %v1268, 0
      %v1419 = vperm.slane %v1269, 0
      %v1420 = vperm.slane %v1270, 0
      %v1421 = vperm.slane %v1271, 0
      %v1430 = vunpack.c.l.b16 %v1252
      %v1431 = vunpack.c.l.b16 %v1253
      %v1432 = vunpack.c.l.b16 %v1254
      %v1433 = vunpack.c.l.b16 %v1255
      %v1434 = vpack.c.b16 %v1431, %v1430
      %v1435 = vpack.c.b16 %v1433, %v1432
      %v1439 = vsel %vm1131, %v1298, 0
      %1441 = vmatpush.bf16.msra.mxu0 0
      %1442 = vmatpush.bf16.msra.mxu0 0
      %1443 = vmatpush.bf16.msra.mxu0 0
      %1444 = vmatpush.bf16.msra.mxu0 0
      %1445 = vmatpush.bf16.msra.mxu0 0
      %1446 = vmatpush.bf16.msra.mxu0 0
      %1447 = vmatpush.bf16.msra.mxu0 %v1435
      %1448 = vmatpush.bf16.msra.mxu0 %v1434
      %1449 = vmatmul.bf16.gmra.mxu0 %v1439
      %v1450 = vpop.f32.mrf.mxu0
      %v1451 = vadd.f32 %v1418, %v1450
      %v1452 = vpop.f32.mrf.mxu0
      %1453 = vdwg.mxu0
      %v1458 = vunpack.c.l.b16 %v1256
      %v1459 = vunpack.c.l.b16 %v1257
      %v1460 = vunpack.c.l.b16 %v1258
      %v1461 = vunpack.c.l.b16 %v1259
      %v1462 = vpack.c.b16 %v1459, %v1458
      %v1463 = vpack.c.b16 %v1461, %v1460
      %1466 = vmatpush.bf16.msra.mxu0 0
      %1467 = vmatpush.bf16.msra.mxu0 0
      %1468 = vmatpush.bf16.msra.mxu0 0
      %1469 = vmatpush.bf16.msra.mxu0 0
      %1470 = vmatpush.bf16.msra.mxu0 0
      %1471 = vmatpush.bf16.msra.mxu0 0
      %1472 = vmatpush.bf16.msra.mxu0 %v1463
      %1473 = vmatpush.bf16.msra.mxu0 %v1462
      %1474 = vmatmul.bf16.gmra.mxu0 %v1439
      %v1475 = vpop.f32.mrf.mxu0
      %v1476 = vadd.f32 %v1419, %v1475
      %v1477 = vpop.f32.mrf.mxu0
      %1478 = vdwg.mxu0
      %v1483 = vunpack.c.l.b16 %v1260
      %v1484 = vunpack.c.l.b16 %v1261
      %v1485 = vunpack.c.l.b16 %v1262
      %v1486 = vunpack.c.l.b16 %v1263
      %v1487 = vpack.c.b16 %v1484, %v1483
      %v1488 = vpack.c.b16 %v1486, %v1485
      %1491 = vmatpush.bf16.msra.mxu0 0
      %1492 = vmatpush.bf16.msra.mxu0 0
      %1493 = vmatpush.bf16.msra.mxu0 0
      %1494 = vmatpush.bf16.msra.mxu0 0
      %1495 = vmatpush.bf16.msra.mxu0 0
      %1496 = vmatpush.bf16.msra.mxu0 0
      %1497 = vmatpush.bf16.msra.mxu0 %v1488
      %1498 = vmatpush.bf16.msra.mxu0 %v1487
      %1499 = vmatmul.bf16.gmra.mxu0 %v1439
      %v1500 = vpop.f32.mrf.mxu0
      %v1501 = vadd.f32 %v1420, %v1500
      %v1502 = vpop.f32.mrf.mxu0
      %1503 = vdwg.mxu0
      %v1508 = vunpack.c.l.b16 %v1264
      %v1509 = vunpack.c.l.b16 %v1265
      %v1510 = vunpack.c.l.b16 %v1266
      %v1511 = vunpack.c.l.b16 %v1267
      %v1512 = vpack.c.b16 %v1509, %v1508
      %v1513 = vpack.c.b16 %v1511, %v1510
      %1516 = vmatpush.bf16.msra.mxu0 0
      %1517 = vmatpush.bf16.msra.mxu0 0
      %1518 = vmatpush.bf16.msra.mxu0 0
      %1519 = vmatpush.bf16.msra.mxu0 0
      %1520 = vmatpush.bf16.msra.mxu0 0
      %1521 = vmatpush.bf16.msra.mxu0 0
      %1522 = vmatpush.bf16.msra.mxu0 %v1513
      %1523 = vmatpush.bf16.msra.mxu0 %v1512
      %1524 = vmatmul.bf16.gmra.mxu0 %v1439
      %v1525 = vpop.f32.mrf.mxu0
      %v1526 = vadd.f32 %v1421, %v1525
      %v1527 = vpop.f32.mrf.mxu0
      %1528 = vdwg.mxu0
      %v1533 = vperm.slane %v1288, 0
      %v1534 = vperm.slane %v1289, 0
      %v1535 = vperm.slane %v1290, 0
      %v1536 = vperm.slane %v1291, 0
      %v1545 = vunpack.c.l.b16 %v1272
      %v1546 = vunpack.c.l.b16 %v1273
      %v1547 = vunpack.c.l.b16 %v1274
      %v1548 = vunpack.c.l.b16 %v1275
      %v1549 = vpack.c.b16 %v1546, %v1545
      %v1550 = vpack.c.b16 %v1548, %v1547
      %1553 = vmatpush.bf16.msra.mxu0 0
      %1554 = vmatpush.bf16.msra.mxu0 0
      %1555 = vmatpush.bf16.msra.mxu0 0
      %1556 = vmatpush.bf16.msra.mxu0 0
      %1557 = vmatpush.bf16.msra.mxu0 0
      %1558 = vmatpush.bf16.msra.mxu0 0
      %1559 = vmatpush.bf16.msra.mxu0 %v1550
      %1560 = vmatpush.bf16.msra.mxu0 %v1549
      %1561 = vmatmul.bf16.gmra.mxu0 %v1439
      %v1562 = vpop.f32.mrf.mxu0
      %v1563 = vadd.f32 %v1533, %v1562
      %v1564 = vpop.f32.mrf.mxu0
      %1565 = vdwg.mxu0
      %v1570 = vunpack.c.l.b16 %v1276
      %v1571 = vunpack.c.l.b16 %v1277
      %v1572 = vunpack.c.l.b16 %v1278
      %v1573 = vunpack.c.l.b16 %v1279
      %v1574 = vpack.c.b16 %v1571, %v1570
      %v1575 = vpack.c.b16 %v1573, %v1572
      %1578 = vmatpush.bf16.msra.mxu0 0
      %1579 = vmatpush.bf16.msra.mxu0 0
      %1580 = vmatpush.bf16.msra.mxu0 0
      %1581 = vmatpush.bf16.msra.mxu0 0
      %1582 = vmatpush.bf16.msra.mxu0 0
      %1583 = vmatpush.bf16.msra.mxu0 0
      %1584 = vmatpush.bf16.msra.mxu0 %v1575
      %1585 = vmatpush.bf16.msra.mxu0 %v1574
      %1586 = vmatmul.bf16.gmra.mxu0 %v1439
      %v1587 = vpop.f32.mrf.mxu0
      %v1588 = vadd.f32 %v1534, %v1587
      %v1589 = vpop.f32.mrf.mxu0
      %1590 = vdwg.mxu0
      %v1595 = vunpack.c.l.b16 %v1280
      %v1596 = vunpack.c.l.b16 %v1281
      %v1597 = vunpack.c.l.b16 %v1282
      %v1598 = vunpack.c.l.b16 %v1283
      %v1599 = vpack.c.b16 %v1596, %v1595
      %v1600 = vpack.c.b16 %v1598, %v1597
      %1603 = vmatpush.bf16.msra.mxu0 0
      %1604 = vmatpush.bf16.msra.mxu0 0
      %1605 = vmatpush.bf16.msra.mxu0 0
      %1606 = vmatpush.bf16.msra.mxu0 0
      %1607 = vmatpush.bf16.msra.mxu0 0
      %1608 = vmatpush.bf16.msra.mxu0 0
      %1609 = vmatpush.bf16.msra.mxu0 %v1600
      %1610 = vmatpush.bf16.msra.mxu0 %v1599
      %1611 = vmatmul.bf16.gmra.mxu0 %v1439
      %v1612 = vpop.f32.mrf.mxu0
      %v1613 = vadd.f32 %v1535, %v1612
      %v1614 = vpop.f32.mrf.mxu0
      %1615 = vdwg.mxu0
      %v1620 = vunpack.c.l.b16 %v1284
      %v1621 = vunpack.c.l.b16 %v1285
      %v1622 = vunpack.c.l.b16 %v1286
      %v1623 = vunpack.c.l.b16 %v1287
      %v1624 = vpack.c.b16 %v1621, %v1620
      %v1625 = vpack.c.b16 %v1623, %v1622
      %1628 = vmatpush.bf16.msra.mxu0 0
      %1629 = vmatpush.bf16.msra.mxu0 0
      %1630 = vmatpush.bf16.msra.mxu0 0
      %1631 = vmatpush.bf16.msra.mxu0 0
      %1632 = vmatpush.bf16.msra.mxu0 0
      %1633 = vmatpush.bf16.msra.mxu0 0
      %1634 = vmatpush.bf16.msra.mxu0 %v1625
      %1635 = vmatpush.bf16.msra.mxu0 %v1624
      %1636 = vmatmul.bf16.gmra.mxu0 %v1439
      %v1637 = vpop.f32.mrf.mxu0
      %v1638 = vadd.f32 %v1536, %v1637
      %v1639 = vpop.f32.mrf.mxu0
      %1640 = vdwg.mxu0
      %v1641 = vmul.f32 %v1336, 0.35355338
      %v1642 = vmul.f32 %v1361, 0.35355338
      %v1643 = vmul.f32 %v1386, 0.35355338
      %v1644 = vmul.f32 %v1411, 0.35355338
      %v1645 = vpack.c.bf16 %v1641, %v1641
      %v1646 = vpack.c.bf16 %v1642, %v1642
      %v1647 = vpack.c.bf16 %v1643, %v1643
      %v1648 = vpack.c.bf16 %v1644, %v1644
      %v1649 = vpack.c.bf16 %v1451, %v1451
      %v1650 = vpack.c.bf16 %v1476, %v1476
      %v1651 = vpack.c.bf16 %v1501, %v1501
      %v1652 = vpack.c.bf16 %v1526, %v1526
      %v1653 = vpack.c.bf16 %v1563, %v1563
      %v1654 = vpack.c.bf16 %v1588, %v1588
      %v1655 = vpack.c.bf16 %v1613, %v1613
      %v1656 = vpack.c.bf16 %v1638, %v1638
      %vm1657 = vcmask 64512
      %v1659 = vsel %vm1657, %v1645, 0
      %v1662 = vsel %vm1657, %v1649, 0
      %1664 = vmatpush.bf16.xpose.msra.mxu0 0
      %1665 = vmatpush.bf16.xpose.msra.mxu0 0
      %1666 = vmatpush.bf16.xpose.msra.mxu0 0
      %1667 = vmatpush.bf16.xpose.msra.mxu0 0
      %1668 = vmatpush.bf16.xpose.msra.mxu0 0
      %1669 = vmatpush.bf16.xpose.msra.mxu0 0
      %1670 = vmatpush.bf16.xpose.msra.mxu0 0
      %1671 = vmatpush.bf16.xpose.msra.mxu0 %v1662
      %1672 = vmatmul.bf16.gmra.mxu0 %v1659
      %v1673 = vpop.f32.mrf.mxu0
      %v1674 = vadd.f32 %v1124, %v1673
      %v1675 = vpop.f32.mrf.mxu0
      %1676 = vdwg.mxu0
      %v1678 = vsel %vm1657, %v1646, 0
      %v1681 = vsel %vm1657, %v1650, 0
      %1683 = vmatpush.bf16.xpose.msra.mxu0 0
      %1684 = vmatpush.bf16.xpose.msra.mxu0 0
      %1685 = vmatpush.bf16.xpose.msra.mxu0 0
      %1686 = vmatpush.bf16.xpose.msra.mxu0 0
      %1687 = vmatpush.bf16.xpose.msra.mxu0 0
      %1688 = vmatpush.bf16.xpose.msra.mxu0 0
      %1689 = vmatpush.bf16.xpose.msra.mxu0 0
      %1690 = vmatpush.bf16.xpose.msra.mxu0 %v1681
      %1691 = vmatmul.bf16.gmra.mxu0 %v1678
      %v1692 = vpop.f32.mrf.mxu0
      %v1693 = vadd.f32 %v1124, %v1692
      %v1694 = vpop.f32.mrf.mxu0
      %1695 = vdwg.mxu0
      %v1697 = vsel %vm1657, %v1647, 0
      %v1700 = vsel %vm1657, %v1651, 0
      %1702 = vmatpush.bf16.xpose.msra.mxu0 0
      %1703 = vmatpush.bf16.xpose.msra.mxu0 0
      %1704 = vmatpush.bf16.xpose.msra.mxu0 0
      %1705 = vmatpush.bf16.xpose.msra.mxu0 0
      %1706 = vmatpush.bf16.xpose.msra.mxu0 0
      %1707 = vmatpush.bf16.xpose.msra.mxu0 0
      %1708 = vmatpush.bf16.xpose.msra.mxu0 0
      %1709 = vmatpush.bf16.xpose.msra.mxu0 %v1700
      %1710 = vmatmul.bf16.gmra.mxu0 %v1697
      %v1711 = vpop.f32.mrf.mxu0
      %v1712 = vadd.f32 %v1124, %v1711
      %v1713 = vpop.f32.mrf.mxu0
      %1714 = vdwg.mxu0
      %v1716 = vsel %vm1657, %v1648, 0
      %v1719 = vsel %vm1657, %v1652, 0
      %1721 = vmatpush.bf16.xpose.msra.mxu0 0
      %1722 = vmatpush.bf16.xpose.msra.mxu0 0
      %1723 = vmatpush.bf16.xpose.msra.mxu0 0
      %1724 = vmatpush.bf16.xpose.msra.mxu0 0
      %1725 = vmatpush.bf16.xpose.msra.mxu0 0
      %1726 = vmatpush.bf16.xpose.msra.mxu0 0
      %1727 = vmatpush.bf16.xpose.msra.mxu0 0
      %1728 = vmatpush.bf16.xpose.msra.mxu0 %v1719
      %1729 = vmatmul.bf16.gmra.mxu0 %v1716
      %v1730 = vpop.f32.mrf.mxu0
      %v1731 = vadd.f32 %v1124, %v1730
      %v1732 = vpop.f32.mrf.mxu0
      %1733 = vdwg.mxu0
      %v1734 = vsel %vm1657, %v1674, -inf
      %1735 = vmax.xlane.f32.xlu0 %v1734
      %v1736 = vpop.xlane.xlu0 %1735
      %v1737 = vsel %vm1657, %v1693, -inf
      %1738 = vmax.xlane.f32.xlu0 %v1737
      %v1739 = vpop.xlane.xlu0 %1738
      %v1740 = vsel %vm1657, %v1712, -inf
      %1741 = vmax.xlane.f32.xlu0 %v1740
      %v1742 = vpop.xlane.xlu0 %1741
      %v1743 = vsel %vm1657, %v1731, -inf
      %1744 = vmax.xlane.f32.xlu0 %v1743
      %v1745 = vpop.xlane.xlu0 %1744
      %v1746 = vsub.f32 %v1674, %v1736
      %v1747 = vsub.f32 %v1693, %v1739
      %v1748 = vsub.f32 %v1712, %v1742
      %v1749 = vsub.f32 %v1731, %v1745
      %v1750 = vmul.f32 %v1746, 1.442695
      %v1751 = vpow.pop %v1750
      %v1752 = vmul.f32 %v1747, 1.442695
      %v1753 = vpow.pop %v1752
      %v1754 = vmul.f32 %v1748, 1.442695
      %v1755 = vpow.pop %v1754
      %v1756 = vmul.f32 %v1749, 1.442695
      %v1757 = vpow.pop %v1756
      %v1758 = vsel %vm1657, %v1751, 0.0
      %1759 = vadd.xlane.f32.xlu0 %v1758
      %v1760 = vpop.xlane.xlu0 %1759
      %v1761 = vsel %vm1657, %v1753, 0.0
      %1762 = vadd.xlane.f32.xlu0 %v1761
      %v1763 = vpop.xlane.xlu0 %1762
      %v1764 = vsel %vm1657, %v1755, 0.0
      %1765 = vadd.xlane.f32.xlu0 %v1764
      %v1766 = vpop.xlane.xlu0 %1765
      %v1767 = vsel %vm1657, %v1757, 0.0
      %1768 = vadd.xlane.f32.xlu0 %v1767
      %v1769 = vpop.xlane.xlu0 %1768
      %v1770 = vrcp.pop %v1760
      %v1771 = vrcp.pop %v1763
      %v1772 = vrcp.pop %v1766
      %v1773 = vrcp.pop %v1769
      %v1774 = vmul.f32 %v1751, %v1770
      %v1775 = vmul.f32 %v1753, %v1771
      %v1776 = vmul.f32 %v1755, %v1772
      %v1777 = vmul.f32 %v1757, %v1773
      %v1778 = vpack.c.bf16 %v1774, %v1774
      %v1779 = vpack.c.bf16 %v1775, %v1775
      %v1780 = vpack.c.bf16 %v1776, %v1776
      %v1781 = vpack.c.bf16 %v1777, %v1777
      %v1783 = vsel %vm1657, %v1778, 0
      %vm1785 = vcmask 1043456
      %v1787 = vsel %vm1785, %v1653, 0
      %1789 = vmatpush.bf16.msra.mxu0 0
      %1790 = vmatpush.bf16.msra.mxu0 0
      %1791 = vmatpush.bf16.msra.mxu0 0
      %1792 = vmatpush.bf16.msra.mxu0 0
      %1793 = vmatpush.bf16.msra.mxu0 0
      %1794 = vmatpush.bf16.msra.mxu0 0
      %1795 = vmatpush.bf16.msra.mxu0 0
      %1796 = vmatpush.bf16.msra.mxu0 %v1787
      %1797 = vmatmul.bf16.gmra.mxu0 %v1783
      %v1798 = vpop.f32.mrf.mxu0
      %v1799 = vadd.f32 0.0, %v1798
      %v1800 = vpop.f32.mrf.mxu0
      %1801 = vdwg.mxu0
      %v1803 = vsel %vm1657, %v1779, 0
      %v1806 = vsel %vm1785, %v1654, 0
      %1808 = vmatpush.bf16.msra.mxu0 0
      %1809 = vmatpush.bf16.msra.mxu0 0
      %1810 = vmatpush.bf16.msra.mxu0 0
      %1811 = vmatpush.bf16.msra.mxu0 0
      %1812 = vmatpush.bf16.msra.mxu0 0
      %1813 = vmatpush.bf16.msra.mxu0 0
      %1814 = vmatpush.bf16.msra.mxu0 0
      %1815 = vmatpush.bf16.msra.mxu0 %v1806
      %1816 = vmatmul.bf16.gmra.mxu0 %v1803
      %v1817 = vpop.f32.mrf.mxu0
      %v1818 = vadd.f32 0.0, %v1817
      %v1819 = vpop.f32.mrf.mxu0
      %1820 = vdwg.mxu0
      %v1822 = vsel %vm1657, %v1780, 0
      %v1825 = vsel %vm1785, %v1655, 0
      %1827 = vmatpush.bf16.msra.mxu0 0
      %1828 = vmatpush.bf16.msra.mxu0 0
      %1829 = vmatpush.bf16.msra.mxu0 0
      %1830 = vmatpush.bf16.msra.mxu0 0
      %1831 = vmatpush.bf16.msra.mxu0 0
      %1832 = vmatpush.bf16.msra.mxu0 0
      %1833 = vmatpush.bf16.msra.mxu0 0
      %1834 = vmatpush.bf16.msra.mxu0 %v1825
      %1835 = vmatmul.bf16.gmra.mxu0 %v1822
      %v1836 = vpop.f32.mrf.mxu0
      %v1837 = vadd.f32 0.0, %v1836
      %v1838 = vpop.f32.mrf.mxu0
      %1839 = vdwg.mxu0
      %v1841 = vsel %vm1657, %v1781, 0
      %v1844 = vsel %vm1785, %v1656, 0
      %1846 = vmatpush.bf16.msra.mxu0 0
      %1847 = vmatpush.bf16.msra.mxu0 0
      %1848 = vmatpush.bf16.msra.mxu0 0
      %1849 = vmatpush.bf16.msra.mxu0 0
      %1850 = vmatpush.bf16.msra.mxu0 0
      %1851 = vmatpush.bf16.msra.mxu0 0
      %1852 = vmatpush.bf16.msra.mxu0 0
      %1853 = vmatpush.bf16.msra.mxu0 %v1844
      %1854 = vmatmul.bf16.gmra.mxu0 %v1841
      %v1855 = vpop.f32.mrf.mxu0
      %v1856 = vadd.f32 0.0, %v1855
      %v1857 = vpop.f32.mrf.mxu0
      %1858 = vdwg.mxu0
      %v1859 = vpack.c.bf16 %v1799, %v1799
      %v1860 = vpack.c.bf16 %v1818, %v1818
      %v1861 = vpack.c.bf16 %v1837, %v1837
      %v1862 = vpack.c.bf16 %v1856, %v1856
      %v1864 = vsel %vm1657, %v1859, 0
      %v1867 = vsel %vm1785, %v1292, 0
      %1869 = vmatpush.bf16.msra.mxu0 0
      %1870 = vmatpush.bf16.msra.mxu0 0
      %1871 = vmatpush.bf16.msra.mxu0 0
      %1872 = vmatpush.bf16.msra.mxu0 0
      %1873 = vmatpush.bf16.msra.mxu0 0
      %1874 = vmatpush.bf16.msra.mxu0 0
      %1875 = vmatpush.bf16.msra.mxu0 0
      %1876 = vmatpush.bf16.msra.mxu0 %v1867
      %1877 = vmatmul.bf16.gmra.mxu0 %v1864
      %v1878 = vpop.f32.mrf.mxu0
      %v1879 = vadd.f32 0.0, %v1878
      %v1880 = vpop.f32.mrf.mxu0
      %1881 = vdwg.mxu0
      %v1883 = vsel %vm1657, %v1860, 0
      %v1886 = vsel %vm1785, %v1293, 0
      %1888 = vmatpush.bf16.msra.mxu0 0
      %1889 = vmatpush.bf16.msra.mxu0 0
      %1890 = vmatpush.bf16.msra.mxu0 0
      %1891 = vmatpush.bf16.msra.mxu0 0
      %1892 = vmatpush.bf16.msra.mxu0 0
      %1893 = vmatpush.bf16.msra.mxu0 0
      %1894 = vmatpush.bf16.msra.mxu0 0
      %1895 = vmatpush.bf16.msra.mxu0 %v1886
      %1896 = vmatmul.bf16.gmra.mxu0 %v1883
      %v1897 = vpop.f32.mrf.mxu0
      %v1898 = vadd.f32 0.0, %v1897
      %v1899 = vpop.f32.mrf.mxu0
      %1900 = vdwg.mxu0
      %v1902 = vsel %vm1657, %v1861, 0
      %v1905 = vsel %vm1785, %v1294, 0
      %1907 = vmatpush.bf16.msra.mxu0 0
      %1908 = vmatpush.bf16.msra.mxu0 0
      %1909 = vmatpush.bf16.msra.mxu0 0
      %1910 = vmatpush.bf16.msra.mxu0 0
      %1911 = vmatpush.bf16.msra.mxu0 0
      %1912 = vmatpush.bf16.msra.mxu0 0
      %1913 = vmatpush.bf16.msra.mxu0 0
      %1914 = vmatpush.bf16.msra.mxu0 %v1905
      %1915 = vmatmul.bf16.gmra.mxu0 %v1902
      %v1916 = vpop.f32.mrf.mxu0
      %v1917 = vadd.f32 0.0, %v1916
      %v1918 = vpop.f32.mrf.mxu0
      %1919 = vdwg.mxu0
      %v1921 = vsel %vm1657, %v1862, 0
      %v1924 = vsel %vm1785, %v1295, 0
      %1926 = vmatpush.bf16.msra.mxu0 0
      %1927 = vmatpush.bf16.msra.mxu0 0
      %1928 = vmatpush.bf16.msra.mxu0 0
      %1929 = vmatpush.bf16.msra.mxu0 0
      %1930 = vmatpush.bf16.msra.mxu0 0
      %1931 = vmatpush.bf16.msra.mxu0 0
      %1932 = vmatpush.bf16.msra.mxu0 0
      %1933 = vmatpush.bf16.msra.mxu0 %v1924
      %1934 = vmatmul.bf16.gmra.mxu0 %v1921
      %v1935 = vpop.f32.mrf.mxu0
      %v1936 = vadd.f32 0.0, %v1935
      %v1937 = vpop.f32.mrf.mxu0
      %1938 = vdwg.mxu0
      %v1939 = vsel %vm1131, %v1879, 0.0
      %v1940 = vsel %vm1131, %v1898, 0.0
      %v1941 = vadd.f32 %v1939, %v1940
      %v1942 = vsel %vm1131, %v1917, 0.0
      %v1943 = vadd.f32 %v1941, %v1942
      %v1944 = vsel %vm1131, %v1936, 0.0
      %v1945 = vadd.f32 %v1943, %v1944
      %v1947 = vperm.slane %v1296, 0
      %v1949 = vadd.f32 %v1945, %v1947
      %v1950 = vadd.f32 %v1118, %v1949
      %v1951 = vld [vmem:[%s55] sm:$0x1]
      %v1952 = vld [vmem:[%s57] sm:$0x1]
      %v1953 = vsel %vm1131, %v1950, 0.0
      %1954 = vadd.xlane.f32.xlu0 %v1953
      %v1955 = vpop.xlane.xlu0 %1954
      %v1956 = vmul.f32 %v1955, %v1141
      %v1957 = vsub.f32 %v1950, %v1956
      %v1958 = vmul.f32 %v1957, %v1957
      %v1959 = vsel %vm1131, %v1958, 0.0
      %1960 = vadd.xlane.f32.xlu0 %v1959
      %v1961 = vpop.xlane.xlu0 %1960
      %v1962 = vmul.f32 %v1961, %v1154
      %v1964 = vperm.slane %v1951, 0
      %v1966 = vmul.f32 %v1964, %v1957
      %v1967 = vrsqrt.pop %v1962
      %v1968 = vmul.f32 %v1967, %v1962
      %v1969 = vmul.f32 %v1968, %v1967
      %v1970 = vmul.f32 0.5, %v1969
      %v1971 = vsub.f32 1.5, %v1970
      %v1972 = vmul.f32 %v1967, %v1971
      %v1973 = vmul.f32 %v1962, %v1972
      %vm1974 = vcmp.eq.f32.partialorder %v1962, inf
      %v1975 = vsel %vm1974, %v1962, %v1973
      %vm1976 = vcmp.eq.f32.partialorder %v1962, 0.0
      %v1977 = vand.u32 %v1962, 2147483648
      %v1978 = vsel %vm1976, %v1977, %v1975
      %v1979 = vadd.f32 %v1978, 1e-06
      %v1980 = vrcp.pop %v1979
      %v1981 = vmul.f32 %v1979, %v1980
      %v1982 = vsub.f32 1.0, %v1981
      %v1983 = vmul.f32 %v1980, %v1982
      %v1984 = vadd.f32 %v1980, %v1983
      %vm1985 = vweird.f32 %v1979
      %vm1986 = vweird.f32 %v1980
      %vm1987 = vmor %vm1985, %vm1986
      %v1988 = vsel %vm1987, %v1980, %v1984
      %v1989 = vand.u32 2147483647, %v1979
      %vm1990 = vcmp.eq.f32.partialorder %v1989, 8.507059e+37
      %v1991 = vand.u32 %v1979, 2147483648
      %v1992 = vor.u32 1.1754944e-38, %v1991
      %v1993 = vsel %vm1990, %v1992, %v1988
      %v1994 = vmul.f32 %v1966, %v1993
      %v1996 = vperm.slane %v1952, 0
      %v1998 = vadd.f32 %v1994, %v1996
      %v1999 = vld [vmem:[%s27] sm:$0xf]
      %v2000 = vld [vmem:[%s27 + $0x4] sm:$0xf]
      %v2001 = vld [vmem:[%s27 + $0x8] sm:$0xf]
      %v2002 = vld [vmem:[%s27 + $0xc] sm:$0xf]
      %v2003 = vld [vmem:[%s27 + $0x10] sm:$0xf]
      %v2004 = vld [vmem:[%s27 + $0x14] sm:$0xf]
      %v2005 = vld [vmem:[%s27 + $0x18] sm:$0xf]
      %v2006 = vld [vmem:[%s27 + $0x1c] sm:$0xf]
      %v2007 = vld [vmem:[%s27 + $0x20] sm:$0xf]
      %v2008 = vld [vmem:[%s27 + $0x24] sm:$0xf]
      %v2009 = vld [vmem:[%s27 + $0x28] sm:$0xf]
      %v2010 = vld [vmem:[%s27 + $0x2c] sm:$0xf]
      %v2011 = vld [vmem:[%s27 + $0x30] sm:$0xf]
      %v2012 = vld [vmem:[%s27 + $0x34] sm:$0xf]
      %v2013 = vld [vmem:[%s27 + $0x38] sm:$0xf]
      %v2014 = vld [vmem:[%s27 + $0x3c] sm:$0xf]
      %v2015 = vld [vmem:[%s29] sm:$0x1]
      %v2016 = vld [vmem:[%s29 + $0x1] sm:$0x1]
      %v2017 = vld [vmem:[%s29 + $0x2] sm:$0x1]
      %v2018 = vld [vmem:[%s29 + $0x3] sm:$0x1]
      %v2019 = vld [vmem:[%s31] sm:$0xf]
      %v2020 = vld [vmem:[%s31 + $0x4] sm:$0xf]
      %v2021 = vld [vmem:[%s31 + $0x8] sm:$0xf]
      %v2022 = vld [vmem:[%s31 + $0xc] sm:$0xf]
      %v2023 = vld [vmem:[%s31 + $0x10] sm:$0xf]
      %v2024 = vld [vmem:[%s31 + $0x14] sm:$0xf]
      %v2025 = vld [vmem:[%s31 + $0x18] sm:$0xf]
      %v2026 = vld [vmem:[%s31 + $0x1c] sm:$0xf]
      %v2027 = vld [vmem:[%s31 + $0x20] sm:$0xf]
      %v2028 = vld [vmem:[%s31 + $0x24] sm:$0xf]
      %v2029 = vld [vmem:[%s31 + $0x28] sm:$0xf]
      %v2030 = vld [vmem:[%s31 + $0x2c] sm:$0xf]
      %v2031 = vld [vmem:[%s31 + $0x30] sm:$0xf]
      %v2032 = vld [vmem:[%s31 + $0x34] sm:$0xf]
      %v2033 = vld [vmem:[%s31 + $0x38] sm:$0xf]
      %v2034 = vld [vmem:[%s31 + $0x3c] sm:$0xf]
      %v2035 = vld [vmem:[%s33] sm:$0x1]
      %v2036 = vld [vmem:[%s33 + $0x1] sm:$0x1]
      %v2037 = vld [vmem:[%s33 + $0x2] sm:$0x1]
      %v2038 = vld [vmem:[%s33 + $0x3] sm:$0x1]
      %v2039 = vld [vmem:[%s35] sm:$0xf]
      %v2040 = vld [vmem:[%s35 + $0x4] sm:$0xf]
      %v2041 = vld [vmem:[%s35 + $0x8] sm:$0xf]
      %v2042 = vld [vmem:[%s35 + $0xc] sm:$0xf]
      %v2043 = vld [vmem:[%s35 + $0x10] sm:$0xf]
      %v2044 = vld [vmem:[%s35 + $0x14] sm:$0xf]
      %v2045 = vld [vmem:[%s35 + $0x18] sm:$0xf]
      %v2046 = vld [vmem:[%s35 + $0x1c] sm:$0xf]
      %v2047 = vld [vmem:[%s35 + $0x20] sm:$0xf]
      %v2048 = vld [vmem:[%s35 + $0x24] sm:$0xf]
      %v2049 = vld [vmem:[%s35 + $0x28] sm:$0xf]
      %v2050 = vld [vmem:[%s35 + $0x2c] sm:$0xf]
      %v2051 = vld [vmem:[%s35 + $0x30] sm:$0xf]
      %v2052 = vld [vmem:[%s35 + $0x34] sm:$0xf]
      %v2053 = vld [vmem:[%s35 + $0x38] sm:$0xf]
      %v2054 = vld [vmem:[%s35 + $0x3c] sm:$0xf]
      %v2055 = vld [vmem:[%s37] sm:$0x1]
      %v2056 = vld [vmem:[%s37 + $0x1] sm:$0x1]
      %v2057 = vld [vmem:[%s37 + $0x2] sm:$0x1]
      %v2058 = vld [vmem:[%s37 + $0x3] sm:$0x1]
      %v2059 = vld [vmem:[%s39] sm:$0xf]
      %v2060 = vld [vmem:[%s39 + $0x4] sm:$0xf]
      %v2061 = vld [vmem:[%s39 + $0x8] sm:$0xf]
      %v2062 = vld [vmem:[%s39 + $0xc] sm:$0xf]
      %v2063 = vld [vmem:[%s41] sm:$0x1]
      %v2064 = vpack.c.bf16 %v1998, %v1998
      %v2065 = vpack.c.bf16 %v1120, %v1120
      %v2070 = vperm.slane %v2015, 0
      %v2071 = vperm.slane %v2016, 0
      %v2072 = vperm.slane %v2017, 0
      %v2073 = vperm.slane %v2018, 0
      %v2082 = vunpack.c.l.b16 %v1999
      %v2083 = vunpack.c.l.b16 %v2000
      %v2084 = vunpack.c.l.b16 %v2001
      %v2085 = vunpack.c.l.b16 %v2002
      %v2086 = vpack.c.b16 %v2083, %v2082
      %v2087 = vpack.c.b16 %v2085, %v2084
      %v2091 = vsel %vm1131, %v2064, 0
      %2093 = vmatpush.bf16.msra.mxu0 0
      %2094 = vmatpush.bf16.msra.mxu0 0
      %2095 = vmatpush.bf16.msra.mxu0 0
      %2096 = vmatpush.bf16.msra.mxu0 0
      %2097 = vmatpush.bf16.msra.mxu0 0
      %2098 = vmatpush.bf16.msra.mxu0 0
      %2099 = vmatpush.bf16.msra.mxu0 %v2087
      %2100 = vmatpush.bf16.msra.mxu0 %v2086
      %2101 = vmatmul.bf16.gmra.mxu0 %v2091
      %v2102 = vpop.f32.mrf.mxu0
      %v2103 = vadd.f32 %v2070, %v2102
      %v2104 = vpop.f32.mrf.mxu0
      %2105 = vdwg.mxu0
      %v2110 = vunpack.c.l.b16 %v2003
      %v2111 = vunpack.c.l.b16 %v2004
      %v2112 = vunpack.c.l.b16 %v2005
      %v2113 = vunpack.c.l.b16 %v2006
      %v2114 = vpack.c.b16 %v2111, %v2110
      %v2115 = vpack.c.b16 %v2113, %v2112
      %2118 = vmatpush.bf16.msra.mxu0 0
      %2119 = vmatpush.bf16.msra.mxu0 0
      %2120 = vmatpush.bf16.msra.mxu0 0
      %2121 = vmatpush.bf16.msra.mxu0 0
      %2122 = vmatpush.bf16.msra.mxu0 0
      %2123 = vmatpush.bf16.msra.mxu0 0
      %2124 = vmatpush.bf16.msra.mxu0 %v2115
      %2125 = vmatpush.bf16.msra.mxu0 %v2114
      %2126 = vmatmul.bf16.gmra.mxu0 %v2091
      %v2127 = vpop.f32.mrf.mxu0
      %v2128 = vadd.f32 %v2071, %v2127
      %v2129 = vpop.f32.mrf.mxu0
      %2130 = vdwg.mxu0
      %v2135 = vunpack.c.l.b16 %v2007
      %v2136 = vunpack.c.l.b16 %v2008
      %v2137 = vunpack.c.l.b16 %v2009
      %v2138 = vunpack.c.l.b16 %v2010
      %v2139 = vpack.c.b16 %v2136, %v2135
      %v2140 = vpack.c.b16 %v2138, %v2137
      %2143 = vmatpush.bf16.msra.mxu0 0
      %2144 = vmatpush.bf16.msra.mxu0 0
      %2145 = vmatpush.bf16.msra.mxu0 0
      %2146 = vmatpush.bf16.msra.mxu0 0
      %2147 = vmatpush.bf16.msra.mxu0 0
      %2148 = vmatpush.bf16.msra.mxu0 0
      %2149 = vmatpush.bf16.msra.mxu0 %v2140
      %2150 = vmatpush.bf16.msra.mxu0 %v2139
      %2151 = vmatmul.bf16.gmra.mxu0 %v2091
      %v2152 = vpop.f32.mrf.mxu0
      %v2153 = vadd.f32 %v2072, %v2152
      %v2154 = vpop.f32.mrf.mxu0
      %2155 = vdwg.mxu0
      %v2160 = vunpack.c.l.b16 %v2011
      %v2161 = vunpack.c.l.b16 %v2012
      %v2162 = vunpack.c.l.b16 %v2013
      %v2163 = vunpack.c.l.b16 %v2014
      %v2164 = vpack.c.b16 %v2161, %v2160
      %v2165 = vpack.c.b16 %v2163, %v2162
      %2168 = vmatpush.bf16.msra.mxu0 0
      %2169 = vmatpush.bf16.msra.mxu0 0
      %2170 = vmatpush.bf16.msra.mxu0 0
      %2171 = vmatpush.bf16.msra.mxu0 0
      %2172 = vmatpush.bf16.msra.mxu0 0
      %2173 = vmatpush.bf16.msra.mxu0 0
      %2174 = vmatpush.bf16.msra.mxu0 %v2165
      %2175 = vmatpush.bf16.msra.mxu0 %v2164
      %2176 = vmatmul.bf16.gmra.mxu0 %v2091
      %v2177 = vpop.f32.mrf.mxu0
      %v2178 = vadd.f32 %v2073, %v2177
      %v2179 = vpop.f32.mrf.mxu0
      %2180 = vdwg.mxu0
      %v2185 = vperm.slane %v2035, 0
      %v2186 = vperm.slane %v2036, 0
      %v2187 = vperm.slane %v2037, 0
      %v2188 = vperm.slane %v2038, 0
      %v2197 = vunpack.c.l.b16 %v2019
      %v2198 = vunpack.c.l.b16 %v2020
      %v2199 = vunpack.c.l.b16 %v2021
      %v2200 = vunpack.c.l.b16 %v2022
      %v2201 = vpack.c.b16 %v2198, %v2197
      %v2202 = vpack.c.b16 %v2200, %v2199
      %v2206 = vsel %vm1131, %v2065, 0
      %2208 = vmatpush.bf16.msra.mxu0 0
      %2209 = vmatpush.bf16.msra.mxu0 0
      %2210 = vmatpush.bf16.msra.mxu0 0
      %2211 = vmatpush.bf16.msra.mxu0 0
      %2212 = vmatpush.bf16.msra.mxu0 0
      %2213 = vmatpush.bf16.msra.mxu0 0
      %2214 = vmatpush.bf16.msra.mxu0 %v2202
      %2215 = vmatpush.bf16.msra.mxu0 %v2201
      %2216 = vmatmul.bf16.gmra.mxu0 %v2206
      %v2217 = vpop.f32.mrf.mxu0
      %v2218 = vadd.f32 %v2185, %v2217
      %v2219 = vpop.f32.mrf.mxu0
      %2220 = vdwg.mxu0
      %v2225 = vunpack.c.l.b16 %v2023
      %v2226 = vunpack.c.l.b16 %v2024
      %v2227 = vunpack.c.l.b16 %v2025
      %v2228 = vunpack.c.l.b16 %v2026
      %v2229 = vpack.c.b16 %v2226, %v2225
      %v2230 = vpack.c.b16 %v2228, %v2227
      %2233 = vmatpush.bf16.msra.mxu0 0
      %2234 = vmatpush.bf16.msra.mxu0 0
      %2235 = vmatpush.bf16.msra.mxu0 0
      %2236 = vmatpush.bf16.msra.mxu0 0
      %2237 = vmatpush.bf16.msra.mxu0 0
      %2238 = vmatpush.bf16.msra.mxu0 0
      %2239 = vmatpush.bf16.msra.mxu0 %v2230
      %2240 = vmatpush.bf16.msra.mxu0 %v2229
      %2241 = vmatmul.bf16.gmra.mxu0 %v2206
      %v2242 = vpop.f32.mrf.mxu0
      %v2243 = vadd.f32 %v2186, %v2242
      %v2244 = vpop.f32.mrf.mxu0
      %2245 = vdwg.mxu0
      %v2250 = vunpack.c.l.b16 %v2027
      %v2251 = vunpack.c.l.b16 %v2028
      %v2252 = vunpack.c.l.b16 %v2029
      %v2253 = vunpack.c.l.b16 %v2030
      %v2254 = vpack.c.b16 %v2251, %v2250
      %v2255 = vpack.c.b16 %v2253, %v2252
      %2258 = vmatpush.bf16.msra.mxu0 0
      %2259 = vmatpush.bf16.msra.mxu0 0
      %2260 = vmatpush.bf16.msra.mxu0 0
      %2261 = vmatpush.bf16.msra.mxu0 0
      %2262 = vmatpush.bf16.msra.mxu0 0
      %2263 = vmatpush.bf16.msra.mxu0 0
      %2264 = vmatpush.bf16.msra.mxu0 %v2255
      %2265 = vmatpush.bf16.msra.mxu0 %v2254
      %2266 = vmatmul.bf16.gmra.mxu0 %v2206
      %v2267 = vpop.f32.mrf.mxu0
      %v2268 = vadd.f32 %v2187, %v2267
      %v2269 = vpop.f32.mrf.mxu0
      %2270 = vdwg.mxu0
      %v2275 = vunpack.c.l.b16 %v2031
      %v2276 = vunpack.c.l.b16 %v2032
      %v2277 = vunpack.c.l.b16 %v2033
      %v2278 = vunpack.c.l.b16 %v2034
      %v2279 = vpack.c.b16 %v2276, %v2275
      %v2280 = vpack.c.b16 %v2278, %v2277
      %2283 = vmatpush.bf16.msra.mxu0 0
      %2284 = vmatpush.bf16.msra.mxu0 0
      %2285 = vmatpush.bf16.msra.mxu0 0
      %2286 = vmatpush.bf16.msra.mxu0 0
      %2287 = vmatpush.bf16.msra.mxu0 0
      %2288 = vmatpush.bf16.msra.mxu0 0
      %2289 = vmatpush.bf16.msra.mxu0 %v2280
      %2290 = vmatpush.bf16.msra.mxu0 %v2279
      %2291 = vmatmul.bf16.gmra.mxu0 %v2206
      %v2292 = vpop.f32.mrf.mxu0
      %v2293 = vadd.f32 %v2188, %v2292
      %v2294 = vpop.f32.mrf.mxu0
      %2295 = vdwg.mxu0
      %v2300 = vperm.slane %v2055, 0
      %v2301 = vperm.slane %v2056, 0
      %v2302 = vperm.slane %v2057, 0
      %v2303 = vperm.slane %v2058, 0
      %v2312 = vunpack.c.l.b16 %v2039
      %v2313 = vunpack.c.l.b16 %v2040
      %v2314 = vunpack.c.l.b16 %v2041
      %v2315 = vunpack.c.l.b16 %v2042
      %v2316 = vpack.c.b16 %v2313, %v2312
      %v2317 = vpack.c.b16 %v2315, %v2314
      %2320 = vmatpush.bf16.msra.mxu0 0
      %2321 = vmatpush.bf16.msra.mxu0 0
      %2322 = vmatpush.bf16.msra.mxu0 0
      %2323 = vmatpush.bf16.msra.mxu0 0
      %2324 = vmatpush.bf16.msra.mxu0 0
      %2325 = vmatpush.bf16.msra.mxu0 0
      %2326 = vmatpush.bf16.msra.mxu0 %v2317
      %2327 = vmatpush.bf16.msra.mxu0 %v2316
      %2328 = vmatmul.bf16.gmra.mxu0 %v2206
      %v2329 = vpop.f32.mrf.mxu0
      %v2330 = vadd.f32 %v2300, %v2329
      %v2331 = vpop.f32.mrf.mxu0
      %2332 = vdwg.mxu0
      %v2337 = vunpack.c.l.b16 %v2043
      %v2338 = vunpack.c.l.b16 %v2044
      %v2339 = vunpack.c.l.b16 %v2045
      %v2340 = vunpack.c.l.b16 %v2046
      %v2341 = vpack.c.b16 %v2338, %v2337
      %v2342 = vpack.c.b16 %v2340, %v2339
      %2345 = vmatpush.bf16.msra.mxu0 0
      %2346 = vmatpush.bf16.msra.mxu0 0
      %2347 = vmatpush.bf16.msra.mxu0 0
      %2348 = vmatpush.bf16.msra.mxu0 0
      %2349 = vmatpush.bf16.msra.mxu0 0
      %2350 = vmatpush.bf16.msra.mxu0 0
      %2351 = vmatpush.bf16.msra.mxu0 %v2342
      %2352 = vmatpush.bf16.msra.mxu0 %v2341
      %2353 = vmatmul.bf16.gmra.mxu0 %v2206
      %v2354 = vpop.f32.mrf.mxu0
      %v2355 = vadd.f32 %v2301, %v2354
      %v2356 = vpop.f32.mrf.mxu0
      %2357 = vdwg.mxu0
      %v2362 = vunpack.c.l.b16 %v2047
      %v2363 = vunpack.c.l.b16 %v2048
      %v2364 = vunpack.c.l.b16 %v2049
      %v2365 = vunpack.c.l.b16 %v2050
      %v2366 = vpack.c.b16 %v2363, %v2362
      %v2367 = vpack.c.b16 %v2365, %v2364
      %2370 = vmatpush.bf16.msra.mxu0 0
      %2371 = vmatpush.bf16.msra.mxu0 0
      %2372 = vmatpush.bf16.msra.mxu0 0
      %2373 = vmatpush.bf16.msra.mxu0 0
      %2374 = vmatpush.bf16.msra.mxu0 0
      %2375 = vmatpush.bf16.msra.mxu0 0
      %2376 = vmatpush.bf16.msra.mxu0 %v2367
      %2377 = vmatpush.bf16.msra.mxu0 %v2366
      %2378 = vmatmul.bf16.gmra.mxu0 %v2206
      %v2379 = vpop.f32.mrf.mxu0
      %v2380 = vadd.f32 %v2302, %v2379
      %v2381 = vpop.f32.mrf.mxu0
      %2382 = vdwg.mxu0
      %v2387 = vunpack.c.l.b16 %v2051
      %v2388 = vunpack.c.l.b16 %v2052
      %v2389 = vunpack.c.l.b16 %v2053
      %v2390 = vunpack.c.l.b16 %v2054
      %v2391 = vpack.c.b16 %v2388, %v2387
      %v2392 = vpack.c.b16 %v2390, %v2389
      %2395 = vmatpush.bf16.msra.mxu0 0
      %2396 = vmatpush.bf16.msra.mxu0 0
      %2397 = vmatpush.bf16.msra.mxu0 0
      %2398 = vmatpush.bf16.msra.mxu0 0
      %2399 = vmatpush.bf16.msra.mxu0 0
      %2400 = vmatpush.bf16.msra.mxu0 0
      %2401 = vmatpush.bf16.msra.mxu0 %v2392
      %2402 = vmatpush.bf16.msra.mxu0 %v2391
      %2403 = vmatmul.bf16.gmra.mxu0 %v2206
      %v2404 = vpop.f32.mrf.mxu0
      %v2405 = vadd.f32 %v2303, %v2404
      %v2406 = vpop.f32.mrf.mxu0
      %2407 = vdwg.mxu0
      %v2408 = vmul.f32 %v2103, 0.35355338
      %v2409 = vmul.f32 %v2128, 0.35355338
      %v2410 = vmul.f32 %v2153, 0.35355338
      %v2411 = vmul.f32 %v2178, 0.35355338
      %v2412 = vpack.c.bf16 %v2408, %v2408
      %v2413 = vpack.c.bf16 %v2409, %v2409
      %v2414 = vpack.c.bf16 %v2410, %v2410
      %v2415 = vpack.c.bf16 %v2411, %v2411
      %v2416 = vpack.c.bf16 %v2218, %v2218
      %v2417 = vpack.c.bf16 %v2243, %v2243
      %v2418 = vpack.c.bf16 %v2268, %v2268
      %v2419 = vpack.c.bf16 %v2293, %v2293
      %v2420 = vpack.c.bf16 %v2330, %v2330
      %v2421 = vpack.c.bf16 %v2355, %v2355
      %v2422 = vpack.c.bf16 %v2380, %v2380
      %v2423 = vpack.c.bf16 %v2405, %v2405
      %v2424 = vperm.slane %v1128, 0
      %v2426 = vsel %vm1657, %v2412, 0
      %v2429 = vsel %vm1657, %v2416, 0
      %2431 = vmatpush.bf16.xpose.msra.mxu0 0
      %2432 = vmatpush.bf16.xpose.msra.mxu0 0
      %2433 = vmatpush.bf16.xpose.msra.mxu0 0
      %2434 = vmatpush.bf16.xpose.msra.mxu0 0
      %2435 = vmatpush.bf16.xpose.msra.mxu0 0
      %2436 = vmatpush.bf16.xpose.msra.mxu0 0
      %2437 = vmatpush.bf16.xpose.msra.mxu0 0
      %2438 = vmatpush.bf16.xpose.msra.mxu0 %v2429
      %2439 = vmatmul.bf16.gmra.mxu0 %v2426
      %v2440 = vpop.f32.mrf.mxu0
      %v2441 = vadd.f32 %v2424, %v2440
      %v2442 = vpop.f32.mrf.mxu0
      %2443 = vdwg.mxu0
      %v2445 = vsel %vm1657, %v2413, 0
      %v2448 = vsel %vm1657, %v2417, 0
      %2450 = vmatpush.bf16.xpose.msra.mxu0 0
      %2451 = vmatpush.bf16.xpose.msra.mxu0 0
      %2452 = vmatpush.bf16.xpose.msra.mxu0 0
      %2453 = vmatpush.bf16.xpose.msra.mxu0 0
      %2454 = vmatpush.bf16.xpose.msra.mxu0 0
      %2455 = vmatpush.bf16.xpose.msra.mxu0 0
      %2456 = vmatpush.bf16.xpose.msra.mxu0 0
      %2457 = vmatpush.bf16.xpose.msra.mxu0 %v2448
      %2458 = vmatmul.bf16.gmra.mxu0 %v2445
      %v2459 = vpop.f32.mrf.mxu0
      %v2460 = vadd.f32 %v2424, %v2459
      %v2461 = vpop.f32.mrf.mxu0
      %2462 = vdwg.mxu0
      %v2464 = vsel %vm1657, %v2414, 0
      %v2467 = vsel %vm1657, %v2418, 0
      %2469 = vmatpush.bf16.xpose.msra.mxu0 0
      %2470 = vmatpush.bf16.xpose.msra.mxu0 0
      %2471 = vmatpush.bf16.xpose.msra.mxu0 0
      %2472 = vmatpush.bf16.xpose.msra.mxu0 0
      %2473 = vmatpush.bf16.xpose.msra.mxu0 0
      %2474 = vmatpush.bf16.xpose.msra.mxu0 0
      %2475 = vmatpush.bf16.xpose.msra.mxu0 0
      %2476 = vmatpush.bf16.xpose.msra.mxu0 %v2467
      %2477 = vmatmul.bf16.gmra.mxu0 %v2464
      %v2478 = vpop.f32.mrf.mxu0
      %v2479 = vadd.f32 %v2424, %v2478
      %v2480 = vpop.f32.mrf.mxu0
      %2481 = vdwg.mxu0
      %v2483 = vsel %vm1657, %v2415, 0
      %v2486 = vsel %vm1657, %v2419, 0
      %2488 = vmatpush.bf16.xpose.msra.mxu0 0
      %2489 = vmatpush.bf16.xpose.msra.mxu0 0
      %2490 = vmatpush.bf16.xpose.msra.mxu0 0
      %2491 = vmatpush.bf16.xpose.msra.mxu0 0
      %2492 = vmatpush.bf16.xpose.msra.mxu0 0
      %2493 = vmatpush.bf16.xpose.msra.mxu0 0
      %2494 = vmatpush.bf16.xpose.msra.mxu0 0
      %2495 = vmatpush.bf16.xpose.msra.mxu0 %v2486
      %2496 = vmatmul.bf16.gmra.mxu0 %v2483
      %v2497 = vpop.f32.mrf.mxu0
      %v2498 = vadd.f32 %v2424, %v2497
      %v2499 = vpop.f32.mrf.mxu0
      %2500 = vdwg.mxu0
      %v2501 = vsel %vm1657, %v2441, -inf
      %2502 = vmax.xlane.f32.xlu0 %v2501
      %v2503 = vpop.xlane.xlu0 %2502
      %v2504 = vsel %vm1657, %v2460, -inf
      %2505 = vmax.xlane.f32.xlu0 %v2504
      %v2506 = vpop.xlane.xlu0 %2505
      %v2507 = vsel %vm1657, %v2479, -inf
      %2508 = vmax.xlane.f32.xlu0 %v2507
      %v2509 = vpop.xlane.xlu0 %2508
      %v2510 = vsel %vm1657, %v2498, -inf
      %2511 = vmax.xlane.f32.xlu0 %v2510
      %v2512 = vpop.xlane.xlu0 %2511
      %v2513 = vsub.f32 %v2441, %v2503
      %v2514 = vsub.f32 %v2460, %v2506
      %v2515 = vsub.f32 %v2479, %v2509
      %v2516 = vsub.f32 %v2498, %v2512
      %v2517 = vmul.f32 %v2513, 1.442695
      %v2518 = vpow.pop %v2517
      %v2519 = vmul.f32 %v2514, 1.442695
      %v2520 = vpow.pop %v2519
      %v2521 = vmul.f32 %v2515, 1.442695
      %v2522 = vpow.pop %v2521
      %v2523 = vmul.f32 %v2516, 1.442695
      %v2524 = vpow.pop %v2523
      %v2525 = vsel %vm1657, %v2518, 0.0
      %2526 = vadd.xlane.f32.xlu0 %v2525
      %v2527 = vpop.xlane.xlu0 %2526
      %v2528 = vsel %vm1657, %v2520, 0.0
      %2529 = vadd.xlane.f32.xlu0 %v2528
      %v2530 = vpop.xlane.xlu0 %2529
      %v2531 = vsel %vm1657, %v2522, 0.0
      %2532 = vadd.xlane.f32.xlu0 %v2531
      %v2533 = vpop.xlane.xlu0 %2532
      %v2534 = vsel %vm1657, %v2524, 0.0
      %2535 = vadd.xlane.f32.xlu0 %v2534
      %v2536 = vpop.xlane.xlu0 %2535
      %v2537 = vrcp.pop %v2527
      %v2538 = vrcp.pop %v2530
      %v2539 = vrcp.pop %v2533
      %v2540 = vrcp.pop %v2536
      %v2541 = vmul.f32 %v2518, %v2537
      %v2542 = vmul.f32 %v2520, %v2538
      %v2543 = vmul.f32 %v2522, %v2539
      %v2544 = vmul.f32 %v2524, %v2540
      %v2545 = vpack.c.bf16 %v2541, %v2541
      %v2546 = vpack.c.bf16 %v2542, %v2542
      %v2547 = vpack.c.bf16 %v2543, %v2543
      %v2548 = vpack.c.bf16 %v2544, %v2544
      %v2550 = vsel %vm1657, %v2545, 0
      %v2553 = vsel %vm1785, %v2420, 0
      %2555 = vmatpush.bf16.msra.mxu0 0
      %2556 = vmatpush.bf16.msra.mxu0 0
      %2557 = vmatpush.bf16.msra.mxu0 0
      %2558 = vmatpush.bf16.msra.mxu0 0
      %2559 = vmatpush.bf16.msra.mxu0 0
      %2560 = vmatpush.bf16.msra.mxu0 0
      %2561 = vmatpush.bf16.msra.mxu0 0
      %2562 = vmatpush.bf16.msra.mxu0 %v2553
      %2563 = vmatmul.bf16.gmra.mxu0 %v2550
      %v2564 = vpop.f32.mrf.mxu0
      %v2565 = vadd.f32 0.0, %v2564
      %v2566 = vpop.f32.mrf.mxu0
      %2567 = vdwg.mxu0
      %v2569 = vsel %vm1657, %v2546, 0
      %v2572 = vsel %vm1785, %v2421, 0
      %2574 = vmatpush.bf16.msra.mxu0 0
      %2575 = vmatpush.bf16.msra.mxu0 0
      %2576 = vmatpush.bf16.msra.mxu0 0
      %2577 = vmatpush.bf16.msra.mxu0 0
      %2578 = vmatpush.bf16.msra.mxu0 0
      %2579 = vmatpush.bf16.msra.mxu0 0
      %2580 = vmatpush.bf16.msra.mxu0 0
      %2581 = vmatpush.bf16.msra.mxu0 %v2572
      %2582 = vmatmul.bf16.gmra.mxu0 %v2569
      %v2583 = vpop.f32.mrf.mxu0
      %v2584 = vadd.f32 0.0, %v2583
      %v2585 = vpop.f32.mrf.mxu0
      %2586 = vdwg.mxu0
      %v2588 = vsel %vm1657, %v2547, 0
      %v2591 = vsel %vm1785, %v2422, 0
      %2593 = vmatpush.bf16.msra.mxu0 0
      %2594 = vmatpush.bf16.msra.mxu0 0
      %2595 = vmatpush.bf16.msra.mxu0 0
      %2596 = vmatpush.bf16.msra.mxu0 0
      %2597 = vmatpush.bf16.msra.mxu0 0
      %2598 = vmatpush.bf16.msra.mxu0 0
      %2599 = vmatpush.bf16.msra.mxu0 0
      %2600 = vmatpush.bf16.msra.mxu0 %v2591
      %2601 = vmatmul.bf16.gmra.mxu0 %v2588
      %v2602 = vpop.f32.mrf.mxu0
      %v2603 = vadd.f32 0.0, %v2602
      %v2604 = vpop.f32.mrf.mxu0
      %2605 = vdwg.mxu0
      %v2607 = vsel %vm1657, %v2548, 0
      %v2610 = vsel %vm1785, %v2423, 0
      %2612 = vmatpush.bf16.msra.mxu0 0
      %2613 = vmatpush.bf16.msra.mxu0 0
      %2614 = vmatpush.bf16.msra.mxu0 0
      %2615 = vmatpush.bf16.msra.mxu0 0
      %2616 = vmatpush.bf16.msra.mxu0 0
      %2617 = vmatpush.bf16.msra.mxu0 0
      %2618 = vmatpush.bf16.msra.mxu0 0
      %2619 = vmatpush.bf16.msra.mxu0 %v2610
      %2620 = vmatmul.bf16.gmra.mxu0 %v2607
      %v2621 = vpop.f32.mrf.mxu0
      %v2622 = vadd.f32 0.0, %v2621
      %v2623 = vpop.f32.mrf.mxu0
      %2624 = vdwg.mxu0
      %v2625 = vpack.c.bf16 %v2565, %v2565
      %v2626 = vpack.c.bf16 %v2584, %v2584
      %v2627 = vpack.c.bf16 %v2603, %v2603
      %v2628 = vpack.c.bf16 %v2622, %v2622
      %v2630 = vsel %vm1657, %v2625, 0
      %v2633 = vsel %vm1785, %v2059, 0
      %2635 = vmatpush.bf16.msra.mxu0 0
      %2636 = vmatpush.bf16.msra.mxu0 0
      %2637 = vmatpush.bf16.msra.mxu0 0
      %2638 = vmatpush.bf16.msra.mxu0 0
      %2639 = vmatpush.bf16.msra.mxu0 0
      %2640 = vmatpush.bf16.msra.mxu0 0
      %2641 = vmatpush.bf16.msra.mxu0 0
      %2642 = vmatpush.bf16.msra.mxu0 %v2633
      %2643 = vmatmul.bf16.gmra.mxu0 %v2630
      %v2644 = vpop.f32.mrf.mxu0
      %v2645 = vadd.f32 0.0, %v2644
      %v2646 = vpop.f32.mrf.mxu0
      %2647 = vdwg.mxu0
      %v2649 = vsel %vm1657, %v2626, 0
      %v2652 = vsel %vm1785, %v2060, 0
      %2654 = vmatpush.bf16.msra.mxu0 0
      %2655 = vmatpush.bf16.msra.mxu0 0
      %2656 = vmatpush.bf16.msra.mxu0 0
      %2657 = vmatpush.bf16.msra.mxu0 0
      %2658 = vmatpush.bf16.msra.mxu0 0
      %2659 = vmatpush.bf16.msra.mxu0 0
      %2660 = vmatpush.bf16.msra.mxu0 0
      %2661 = vmatpush.bf16.msra.mxu0 %v2652
      %2662 = vmatmul.bf16.gmra.mxu0 %v2649
      %v2663 = vpop.f32.mrf.mxu0
      %v2664 = vadd.f32 0.0, %v2663
      %v2665 = vpop.f32.mrf.mxu0
      %2666 = vdwg.mxu0
      %v2668 = vsel %vm1657, %v2627, 0
      %v2671 = vsel %vm1785, %v2061, 0
      %2673 = vmatpush.bf16.msra.mxu0 0
      %2674 = vmatpush.bf16.msra.mxu0 0
      %2675 = vmatpush.bf16.msra.mxu0 0
      %2676 = vmatpush.bf16.msra.mxu0 0
      %2677 = vmatpush.bf16.msra.mxu0 0
      %2678 = vmatpush.bf16.msra.mxu0 0
      %2679 = vmatpush.bf16.msra.mxu0 0
      %2680 = vmatpush.bf16.msra.mxu0 %v2671
      %2681 = vmatmul.bf16.gmra.mxu0 %v2668
      %v2682 = vpop.f32.mrf.mxu0
      %v2683 = vadd.f32 0.0, %v2682
      %v2684 = vpop.f32.mrf.mxu0
      %2685 = vdwg.mxu0
      %v2687 = vsel %vm1657, %v2628, 0
      %v2690 = vsel %vm1785, %v2062, 0
      %2692 = vmatpush.bf16.msra.mxu0 0
      %2693 = vmatpush.bf16.msra.mxu0 0
      %2694 = vmatpush.bf16.msra.mxu0 0
      %2695 = vmatpush.bf16.msra.mxu0 0
      %2696 = vmatpush.bf16.msra.mxu0 0
      %2697 = vmatpush.bf16.msra.mxu0 0
      %2698 = vmatpush.bf16.msra.mxu0 0
      %2699 = vmatpush.bf16.msra.mxu0 %v2690
      %2700 = vmatmul.bf16.gmra.mxu0 %v2687
      %v2701 = vpop.f32.mrf.mxu0
      %v2702 = vadd.f32 0.0, %v2701
      %v2703 = vpop.f32.mrf.mxu0
      %2704 = vdwg.mxu0
      %v2705 = vsel %vm1131, %v2645, 0.0
      %v2706 = vsel %vm1131, %v2664, 0.0
      %v2707 = vadd.f32 %v2705, %v2706
      %v2708 = vsel %vm1131, %v2683, 0.0
      %v2709 = vadd.f32 %v2707, %v2708
      %v2710 = vsel %vm1131, %v2702, 0.0
      %v2711 = vadd.f32 %v2709, %v2710
      %v2713 = vperm.slane %v2063, 0
      %v2715 = vadd.f32 %v2711, %v2713
      %v2716 = vadd.f32 %v1950, %v2715
      %v2717 = vld [vmem:[%s59] sm:$0x1]
      %v2718 = vld [vmem:[%s61] sm:$0x1]
      %v2719 = vsel %vm1131, %v2716, 0.0
      %2720 = vadd.xlane.f32.xlu0 %v2719
      %v2721 = vpop.xlane.xlu0 %2720
      %v2722 = vmul.f32 %v2721, %v1141
      %v2723 = vsub.f32 %v2716, %v2722
      %v2724 = vmul.f32 %v2723, %v2723
      %v2725 = vsel %vm1131, %v2724, 0.0
      %2726 = vadd.xlane.f32.xlu0 %v2725
      %v2727 = vpop.xlane.xlu0 %2726
      %v2728 = vmul.f32 %v2727, %v1154
      %v2730 = vperm.slane %v2717, 0
      %v2732 = vmul.f32 %v2730, %v2723
      %v2733 = vrsqrt.pop %v2728
      %v2734 = vmul.f32 %v2733, %v2728
      %v2735 = vmul.f32 %v2734, %v2733
      %v2736 = vmul.f32 0.5, %v2735
      %v2737 = vsub.f32 1.5, %v2736
      %v2738 = vmul.f32 %v2733, %v2737
      %v2739 = vmul.f32 %v2728, %v2738
      %vm2740 = vcmp.eq.f32.partialorder %v2728, inf
      %v2741 = vsel %vm2740, %v2728, %v2739
      %vm2742 = vcmp.eq.f32.partialorder %v2728, 0.0
      %v2743 = vand.u32 %v2728, 2147483648
      %v2744 = vsel %vm2742, %v2743, %v2741
      %v2745 = vadd.f32 %v2744, 1e-06
      %v2746 = vrcp.pop %v2745
      %v2747 = vmul.f32 %v2745, %v2746
      %v2748 = vsub.f32 1.0, %v2747
      %v2749 = vmul.f32 %v2746, %v2748
      %v2750 = vadd.f32 %v2746, %v2749
      %vm2751 = vweird.f32 %v2745
      %vm2752 = vweird.f32 %v2746
      %vm2753 = vmor %vm2751, %vm2752
      %v2754 = vsel %vm2753, %v2746, %v2750
      %v2755 = vand.u32 2147483647, %v2745
      %vm2756 = vcmp.eq.f32.partialorder %v2755, 8.507059e+37
      %v2757 = vand.u32 %v2745, 2147483648
      %v2758 = vor.u32 1.1754944e-38, %v2757
      %v2759 = vsel %vm2756, %v2758, %v2754
      %v2760 = vmul.f32 %v2732, %v2759
      %v2762 = vperm.slane %v2718, 0
      %v2764 = vadd.f32 %v2760, %v2762
      %v2765 = vpack.c.bf16 %v2764, %v2764
      %v2766 = vld [vmem:[%s43] sm:$0xf]
      %v2767 = vld [vmem:[%s43 + $0x4] sm:$0xf]
      %v2768 = vld [vmem:[%s43 + $0x8] sm:$0xf]
      %v2769 = vld [vmem:[%s43 + $0xc] sm:$0xf]
      %v2770 = vld [vmem:[%s45] sm:$0x1]
      %v2772 = vperm.slane %v2770, 0
      %v2778 = vunpack.c.l.b16 %v2766
      %v2779 = vunpack.c.l.b16 %v2767
      %v2780 = vunpack.c.l.b16 %v2768
      %v2781 = vunpack.c.l.b16 %v2769
      %v2782 = vpack.c.b16 %v2779, %v2778
      %v2783 = vpack.c.b16 %v2781, %v2780
      %v2787 = vsel %vm1131, %v2765, 0
      %2789 = vmatpush.bf16.msra.mxu0 0
      %2790 = vmatpush.bf16.msra.mxu0 0
      %2791 = vmatpush.bf16.msra.mxu0 0
      %2792 = vmatpush.bf16.msra.mxu0 0
      %2793 = vmatpush.bf16.msra.mxu0 0
      %2794 = vmatpush.bf16.msra.mxu0 0
      %2795 = vmatpush.bf16.msra.mxu0 %v2783
      %2796 = vmatpush.bf16.msra.mxu0 %v2782
      %2797 = vmatmul.bf16.gmra.mxu0 %v2787
      %v2798 = vpop.f32.mrf.mxu0
      %v2799 = vadd.f32 %v2772, %v2798
      %v2800 = vpop.f32.mrf.mxu0
      %2801 = vdwg.mxu0
      %v2802 = vmax.f32 %v2799, 0.0
      %v2803 = vpack.c.bf16 %v2802, %v2802
      %v2804 = vld [vmem:[%s47] sm:$0xf]
      %v2805 = vld [vmem:[%s47 + $0x4] sm:$0xf]
      %v2806 = vld [vmem:[%s47 + $0x8] sm:$0xf]
      %v2807 = vld [vmem:[%s47 + $0xc] sm:$0xf]
      %v2808 = vld [vmem:[%s47 + $0x10] sm:$0xf]
      %v2809 = vld [vmem:[%s47 + $0x14] sm:$0xf]
      %v2810 = vld [vmem:[%s47 + $0x18] sm:$0xf]
      %v2811 = vld [vmem:[%s47 + $0x1c] sm:$0xf]
      %v2820 = vunpack.c.l.b16 %v2804
      %v2821 = vunpack.c.l.b16 %v2805
      %v2822 = vunpack.c.l.b16 %v2806
      %v2823 = vunpack.c.l.b16 %v2807
      %v2824 = vunpack.c.l.b16 %v2808
      %v2825 = vunpack.c.l.b16 %v2809
      %v2826 = vunpack.c.l.b16 %v2810
      %v2827 = vunpack.c.l.b16 %v2811
      %v2828 = vpack.c.b16 %v2821, %v2820
      %v2829 = vpack.c.b16 %v2823, %v2822
      %v2830 = vpack.c.b16 %v2825, %v2824
      %v2831 = vpack.c.b16 %v2827, %v2826
      %vm2836 = vcmask 523264
      %v2838 = vsel %vm2836, %v2803, 0
      %2840 = vmatpush.bf16.msra.mxu0 0
      %2841 = vmatpush.bf16.msra.mxu0 0
      %2842 = vmatpush.bf16.msra.mxu0 0
      %2843 = vmatpush.bf16.msra.mxu0 0
      %2844 = vmatpush.bf16.msra.mxu0 %v2831
      %2845 = vmatpush.bf16.msra.mxu0 %v2830
      %2846 = vmatpush.bf16.msra.mxu0 %v2829
      %2847 = vmatpush.bf16.msra.mxu0 %v2828
      %2848 = vmatmul.bf16.gmra.mxu0 %v2838
      %v2849 = vpop.f32.mrf.mxu0
      %v2850 = vadd.f32 0.0, %v2849
      %v2851 = vpop.f32.mrf.mxu0
      %2852 = vdwg.mxu0
      %v2853 = vadd.f32 %v2716, %v2850
      %v2854 = vld [vmem:[%s49] sm:$0x1]
      %v2856 = vperm.slane %v2854, 0
      %v2858 = vadd.f32 %v2853, %v2856
      %2859 = vst.msk [vmem:[%s1116] sm:$0xff] %vm1131, %v2858
      %p2860 = scmp.lt.s32.totalorder %s82, 1
      %s2861 = scalar_select %p2860, %s82, 1
      %p2862 = scmp.lt.s32.totalorder %s83, 0
      %s2863 = scalar_select %p2862, %s83, 0
      %s2864 = sadd.s32 %s2863, %s2861
      %s2865 = smul.addr %s2864, 8
      %s2866 = scalar_lea.vmem %s67, %s2865
      // Predicated region
      $region153: #{decoder_forward.2} parent=151 // pred_check
        %p2867 = pneg %p832
      $region154: #{decoder_forward.2} parent=151 // pred_check_branch
        %2869 = sbr.rel (%p2867) target = $region156
      $region155: #{decoder_forward.2} parent=151 // pred_region
        _
      $region156: #{decoder_forward.2} parent=151 // pred_fallthru
        _
    $region152: #{decoder_forward.2} parent=5 // pred_fallthru
      _
    %p2870 = scmp.le.s32.totalorder 2, %s73
    // Predicated region
    $region157: #{decoder_forward.2} parent=5 // pred_check
      %p2871 = pneg %p2870
    $region158: #{decoder_forward.2} parent=5 // pred_check_branch
      %2873 = sbr.rel (%p2871) target = $region160
    $region159: #{decoder_forward.2} parent=5 // pred_region
      %s2874 = ssub.s32 %s73, 2
      // Predicated region
      $region161: #{decoder_forward.2} parent=159 // pred_check
        %p2875 = pneg %p838
      $region162: #{decoder_forward.2} parent=159 // pred_check_branch
        %2877 = sbr.rel (%p2875) target = $region164
      $region163: #{decoder_forward.2} parent=159 // pred_region
        %p2878 = scmp.lt.s32.totalorder %s84, 1
        %s2879 = scalar_select %p2878, %s84, 1
        %p2880 = scmp.lt.s32.totalorder %s85, 0
        %s2881 = scalar_select %p2880, %s85, 0
        %s2882 = sadd.s32 %s2881, %s2879
        %s2883 = smul.addr %s2882, 8
        %s2884 = scalar_lea.vmem %s67, %s2883
      $region164: #{decoder_forward.2} parent=159 // pred_fallthru
        _
    $region160: #{decoder_forward.2} parent=5 // pred_fallthru
      _
  $region6: #{decoder_forward.2} parent=0 // loop_footer
    %s77 = sadd.s32 1, %s73
  $region7: #{decoder_forward.2} parent=0 // loop_footer_branch
    %72 = sbr.rel target = $region3
  $region8: #{decoder_forward.2} parent=0 // loop_exit
    _

// kernel: decoder_forward.3
$region0: #{decoder_forward.3}
  #allocation0 [shape = 'u32[]', space=smem, size = 0x4, offset = 0x4, fixed_abs, tag = 'smem constant byte address 0x4 - core index']
  #allocation1 [shape = 'u32[72,128]{1,0:T(1,128)}', space=vmem, size = 0x9000, scoped, tag = 'internal scratch']
  %s0 = inlined_call_operand.smem [shape: u32[34], index: -1, kind: input, shape index: {}]
  %s1 = sld [smem:[%s0]]
  %s2 = scalar_lea.smem %s0, 1
  %s3 = sld [smem:[%s2]]
  %s4 = scalar_lea.smem %s0, 2
  %s5 = sld [smem:[%s4]]
  %s6 = scalar_lea.smem %s0, 3
  %s7 = sld [smem:[%s6]]
  %s8 = scalar_lea.smem %s0, 4
  %s9 = sld [smem:[%s8]]
  %s10 = scalar_lea.smem %s0, 5
  %s11 = sld [smem:[%s10]]
  %s12 = scalar_lea.smem %s0, 6
  %s13 = sld [smem:[%s12]]
  %s14 = scalar_lea.smem %s0, 7
  %s15 = sld [smem:[%s14]]
  %s16 = scalar_lea.smem %s0, 8
  %s17 = sld [smem:[%s16]]
  %s18 = scalar_lea.smem %s0, 9
  %s19 = sld [smem:[%s18]]
  %s20 = scalar_lea.smem %s0, 10
  %s21 = sld [smem:[%s20]]
  %s22 = scalar_lea.smem %s0, 11
  %s23 = sld [smem:[%s22]]
  %s24 = scalar_lea.smem %s0, 12
  %s25 = sld [smem:[%s24]]
  %s26 = scalar_lea.smem %s0, 13
  %s27 = sld [smem:[%s26]]
  %s28 = scalar_lea.smem %s0, 14
  %s29 = sld [smem:[%s28]]
  %s30 = scalar_lea.smem %s0, 15
  %s31 = sld [smem:[%s30]]
  %s32 = scalar_lea.smem %s0, 16
  %s33 = sld [smem:[%s32]]
  %s34 = scalar_lea.smem %s0, 17
  %s35 = sld [smem:[%s34]]
  %s36 = scalar_lea.smem %s0, 18
  %s37 = sld [smem:[%s36]]
  %s38 = scalar_lea.smem %s0, 19
  %s39 = sld [smem:[%s38]]
  %s40 = scalar_lea.smem %s0, 20
  %s41 = sld [smem:[%s40]]
  %s42 = scalar_lea.smem %s0, 21
  %s43 = sld [smem:[%s42]]
  %s44 = scalar_lea.smem %s0, 22
  %s45 = sld [smem:[%s44]]
  %s46 = scalar_lea.smem %s0, 23
  %s47 = sld [smem:[%s46]]
  %s48 = scalar_lea.smem %s0, 24
  %s49 = sld [smem:[%s48]]
  %s50 = scalar_lea.smem %s0, 25
  %s51 = sld [smem:[%s50]]
  %s52 = scalar_lea.smem %s0, 26
  %s53 = sld [smem:[%s52]]
  %s54 = scalar_lea.smem %s0, 27
  %s55 = sld [smem:[%s54]]
  %s56 = scalar_lea.smem %s0, 28
  %s57 = sld [smem:[%s56]]
  %s58 = scalar_lea.smem %s0, 29
  %s59 = sld [smem:[%s58]]
  %s60 = scalar_lea.smem %s0, 30
  %s61 = sld [smem:[%s60]]
  %s62 = scalar_lea.smem %s0, 31
  %s63 = sld [smem:[%s62]]
  %s64 = scalar_lea.smem %s0, 32
  %s65 = sld [smem:[%s64]]
  %s66 = scalar_lea.smem %s0, 33
  %s67 = sld [smem:[%s66]]
  %s68 = sld [smem:[#allocation0]]
  $region165: #{decoder_forward.3} parent=0
    _
  %s70 = ssub.s32 1, %s68
  %s71 = scalar_select 0, %s70, %s68
  $region1: #{decoder_forward.3} parent=0
    #allocation2 [shape = 'u8[8192]{0}', space=vmem, size = 0x2000, scoped, tag = 'output window, operand 0']
    #allocation3 [shape = 's32[2]{0}', space=sflag, size = 0x8, scoped, tag = 'scoped memory for decoder_forward.3']
    %72 = vsyncpa [#allocation3], 0
    %s73 = scalar_lea.sflag [#allocation3], 1
    %74 = vsyncpa %s73, 0
    loop: start=0, step=1, limit=4
    $region2: #{decoder_forward.3} parent=1 // loop_pre_header
      _
    $region3: #{decoder_forward.3} parent=1 // loop_header
      %s76 = sphi 0, %s80
      %p77 = scmp.ge.s32.totalorder %s76, 4
      %s83 = sphi 0, %s95
      %s84 = sphi 0, %s91
      %s85 = sphi 0, %s83
      %s86 = sphi 0, %s84
      %s87 = sphi 0, %s85
      %s88 = sphi 0, %s86
      %s100 = sphi 0, %s102
      %s103 = sphi 0, %s100
      %s104 = sphi 0, %s103
      %s120 = sphi 0, %s104
      %s126 = sphi 0, %s128
      %s129 = sphi 0, %s126
      %s130 = sphi 0, %s129
      %s146 = sphi 0, %s130
      %s152 = sphi 0, %s154
      %s155 = sphi 0, %s152
      %s156 = sphi 0, %s155
      %s172 = sphi 0, %s156
      %s180 = sphi 0, %s182
      %s183 = sphi 0, %s180
      %s184 = sphi 0, %s183
      %s200 = sphi 0, %s184
      %s206 = sphi 0, %s208
      %s209 = sphi 0, %s206
      %s210 = sphi 0, %s209
      %s226 = sphi 0, %s210
      %s230 = sphi 0, %s230
      %s232 = sphi 0, %s230
      %s233 = sphi 0, %s232
      %s247 = sphi 0, %s233
      %s251 = sphi 0, %s251
      %s253 = sphi 0, %s251
      %s254 = sphi 0, %s253
      %s268 = sphi 0, %s254
      %s272 = sphi 0, %s272
      %s274 = sphi 0, %s272
      %s275 = sphi 0, %s274
      %s289 = sphi 0, %s275
      %s293 = sphi 0, %s293
      %s295 = sphi 0, %s293
      %s296 = sphi 0, %s295
      %s310 = sphi 0, %s296
      %s314 = sphi 0, %s314
      %s316 = sphi 0, %s314
      %s317 = sphi 0, %s316
      %s331 = sphi 0, %s317
      %s335 = sphi 0, %s335
      %s337 = sphi 0, %s335
      %s338 = sphi 0, %s337
      %s352 = sphi 0, %s338
      %s356 = sphi 0, %s356
      %s358 = sphi 0, %s356
      %s359 = sphi 0, %s358
      %s373 = sphi 0, %s359
      %s377 = sphi 0, %s377
      %s379 = sphi 0, %s377
      %s380 = sphi 0, %s379
      %s394 = sphi 0, %s380
      %s398 = sphi 0, %s398
      %s400 = sphi 0, %s398
      %s401 = sphi 0, %s400
      %s415 = sphi 0, %s401
      %s419 = sphi 0, %s419
      %s421 = sphi 0, %s419
      %s422 = sphi 0, %s421
      %s436 = sphi 0, %s422
      %s440 = sphi 0, %s440
      %s442 = sphi 0, %s440
      %s443 = sphi 0, %s442
      %s457 = sphi 0, %s443
      %s461 = sphi 0, %s461
      %s463 = sphi 0, %s461
      %s464 = sphi 0, %s463
      %s478 = sphi 0, %s464
      %s482 = sphi 0, %s482
      %s484 = sphi 0, %s482
      %s485 = sphi 0, %s484
      %s499 = sphi 0, %s485
      %s503 = sphi 0, %s503
      %s505 = sphi 0, %s503
      %s506 = sphi 0, %s505
      %s520 = sphi 0, %s506
      %s524 = sphi 0, %s524
      %s526 = sphi 0, %s524
      %s527 = sphi 0, %s526
      %s541 = sphi 0, %s527
      %s545 = sphi 0, %s545
      %s547 = sphi 0, %s545
      %s548 = sphi 0, %s547
      %s562 = sphi 0, %s548
      %s566 = sphi 0, %s566
      %s568 = sphi 0, %s566
      %s569 = sphi 0, %s568
      %s583 = sphi 0, %s569
      %s587 = sphi 0, %s587
      %s589 = sphi 0, %s587
      %s590 = sphi 0, %s589
      %s604 = sphi 0, %s590
      %s608 = sphi 0, %s608
      %s610 = sphi 0, %s608
      %s611 = sphi 0, %s610
      %s625 = sphi 0, %s611
      %s629 = sphi 0, %s629
      %s631 = sphi 0, %s629
      %s632 = sphi 0, %s631
      %s646 = sphi 0, %s632
      %s650 = sphi 0, %s650
      %s652 = sphi 0, %s650
      %s653 = sphi 0, %s652
      %s667 = sphi 0, %s653
      %s671 = sphi 0, %s671
      %s673 = sphi 0, %s671
      %s674 = sphi 0, %s673
      %s688 = sphi 0, %s674
      %s692 = sphi 0, %s692
      %s694 = sphi 0, %s692
      %s695 = sphi 0, %s694
      %s709 = sphi 0, %s695
      %s713 = sphi 0, %s713
      %s715 = sphi 0, %s713
      %s716 = sphi 0, %s715
      %s730 = sphi 0, %s716
      %s734 = sphi 0, %s734
      %s736 = sphi 0, %s734
      %s737 = sphi 0, %s736
      %s751 = sphi 0, %s737
      %s755 = sphi 0, %s755
      %s757 = sphi 0, %s755
      %s758 = sphi 0, %s757
      %s772 = sphi 0, %s758
      %s776 = sphi 0, %s776
      %s778 = sphi 0, %s776
      %s779 = sphi 0, %s778
      %s793 = sphi 0, %s779
      %s797 = sphi 0, %s797
      %s799 = sphi 0, %s797
      %s800 = sphi 0, %s799
      %s814 = sphi 0, %s800
      %s822 = sphi 0, %s824
      %s825 = sphi 0, %s822
      %s826 = sphi 0, %s825
      %s842 = sphi 0, %s826
    $region4: #{decoder_forward.3} parent=1 // loop_header_branch
      %79 = sbr.rel (%p77) target = $region8
    $region5: #{decoder_forward.3} parent=1 // loop_body
      %s81 = ssub.s32 %s76, 1
      %s82 = ssub.s32 %s76, 2
      %s89 = sadd.s32 1, %s84
      %p90 = scmp.ge.s32.totalorder %s89, 1
      %s91 = scalar_select %p90, 0, %s89
      %s92 = sadd.s32 1, %s83
      %s93 = scalar_select %p90, %s92, %s83
      %p94 = scmp.ge.s32.totalorder %s93, 2
      %s95 = scalar_select %p94, 0, %s93
      %s96 = ssub.s32 %s83, %s95
      %s97 = ssub.s32 %s84, %s91
      %s98 = sor.u32 %s96, %s97
      %p99 = scmp.eq.s32.totalorder %s98, 0
      %s101 = sadd.s32 %s100, 1
      %s102 = scalar_select %p99, %s100, %s101
      %p105 = pneg %p99
      %p106 = scmp.eq.s32.totalorder %s76, 1
      %p107 = por %p105, %p106
      %p108 = scmp.ne.s32.totalorder %s100, %s103
      %p109 = scmp.eq.s32.totalorder %s76, 0
      %p110 = por %p108, %p109
      %p111 = scmp.ne.s32.totalorder %s100, %s103
      %p112 = scmp.eq.s32.totalorder %s81, 1
      %p113 = por %p111, %p112
      %p114 = scmp.ne.s32.totalorder %s103, %s104
      %p115 = scmp.eq.s32.totalorder %s81, 0
      %p116 = por %p114, %p115
      %p117 = scmp.ne.s32.totalorder %s103, %s104
      %p118 = scmp.eq.s32.totalorder %s82, 1
      %p119 = por %p117, %p118
      %p121 = scmp.ne.s32.totalorder %s104, %s120
      %p122 = scmp.eq.s32.totalorder %s82, 0
      %p123 = por %p121, %p122
      %s124 = ssub.s32 %s83, %s95
      %p125 = scmp.eq.s32.totalorder %s124, 0
      %s127 = sadd.s32 %s126, 1
      %s128 = scalar_select %p125, %s126, %s127
      %p131 = pneg %p125
      %p132 = scmp.eq.s32.totalorder %s76, 1
      %p133 = por %p131, %p132
      %p134 = scmp.ne.s32.totalorder %s126, %s129
      %p135 = scmp.eq.s32.totalorder %s76, 0
      %p136 = por %p134, %p135
      %p137 = scmp.ne.s32.totalorder %s126, %s129
      %p138 = scmp.eq.s32.totalorder %s81, 1
      %p139 = por %p137, %p138
      %p140 = scmp.ne.s32.totalorder %s129, %s130
      %p141 = scmp.eq.s32.totalorder %s81, 0
      %p142 = por %p140, %p141
      %p143 = scmp.ne.s32.totalorder %s129, %s130
      %p144 = scmp.eq.s32.totalorder %s82, 1
      %p145 = por %p143, %p144
      %p147 = scmp.ne.s32.totalorder %s130, %s146
      %p148 = scmp.eq.s32.totalorder %s82, 0
      %p149 = por %p147, %p148
      %s150 = ssub.s32 %s83, %s95
      %p151 = scmp.eq.s32.totalorder %s150, 0
      %s153 = sadd.s32 %s152, 1
      %s154 = scalar_select %p151, %s152, %s153
      %p157 = pneg %p151
      %p158 = scmp.eq.s32.totalorder %s76, 1
      %p159 = por %p157, %p158
      %p160 = scmp.ne.s32.totalorder %s152, %s155
      %p161 = scmp.eq.s32.totalorder %s76, 0
      %p162 = por %p160, %p161
      %p163 = scmp.ne.s32.totalorder %s152, %s155
      %p164 = scmp.eq.s32.totalorder %s81, 1
      %p165 = por %p163, %p164
      %p166 = scmp.ne.s32.totalorder %s155, %s156
      %p167 = scmp.eq.s32.totalorder %s81, 0
      %p168 = por %p166, %p167
      %p169 = scmp.ne.s32.totalorder %s155, %s156
      %p170 = scmp.eq.s32.totalorder %s82, 1
      %p171 = por %p169, %p170
      %p173 = scmp.ne.s32.totalorder %s156, %s172
      %p174 = scmp.eq.s32.totalorder %s82, 0
      %p175 = por %p173, %p174
      %s176 = ssub.s32 %s83, %s95
      %s177 = ssub.s32 %s84, %s91
      %s178 = sor.u32 %s176, %s177
      %p179 = scmp.eq.s32.totalorder %s178, 0
      %s181 = sadd.s32 %s180, 1
      %s182 = scalar_select %p179, %s180, %s181
      %p185 = pneg %p179
      %p186 = scmp.eq.s32.totalorder %s76, 1
      %p187 = por %p185, %p186
      %p188 = scmp.ne.s32.totalorder %s180, %s183
      %p189 = scmp.eq.s32.totalorder %s76, 0
      %p190 = por %p188, %p189
      %p191 = scmp.ne.s32.totalorder %s180, %s183
      %p192 = scmp.eq.s32.totalorder %s81, 1
      %p193 = por %p191, %p192
      %p194 = scmp.ne.s32.totalorder %s183, %s184
      %p195 = scmp.eq.s32.totalorder %s81, 0
      %p196 = por %p194, %p195
      %p197 = scmp.ne.s32.totalorder %s183, %s184
      %p198 = scmp.eq.s32.totalorder %s82, 1
      %p199 = por %p197, %p198
      %p201 = scmp.ne.s32.totalorder %s184, %s200
      %p202 = scmp.eq.s32.totalorder %s82, 0
      %p203 = por %p201, %p202
      %s204 = ssub.s32 %s83, %s95
      %p205 = scmp.eq.s32.totalorder %s204, 0
      %s207 = sadd.s32 %s206, 1
      %s208 = scalar_select %p205, %s206, %s207
      %p211 = pneg %p205
      %p212 = scmp.eq.s32.totalorder %s76, 1
      %p213 = por %p211, %p212
      %p214 = scmp.ne.s32.totalorder %s206, %s209
      %p215 = scmp.eq.s32.totalorder %s76, 0
      %p216 = por %p214, %p215
      %p217 = scmp.ne.s32.totalorder %s206, %s209
      %p218 = scmp.eq.s32.totalorder %s81, 1
      %p219 = por %p217, %p218
      %p220 = scmp.ne.s32.totalorder %s209, %s210
      %p221 = scmp.eq.s32.totalorder %s81, 0
      %p222 = por %p220, %p221
      %p223 = scmp.ne.s32.totalorder %s209, %s210
      %p224 = scmp.eq.s32.totalorder %s82, 1
      %p225 = por %p223, %p224
      %p227 = scmp.ne.s32.totalorder %s210, %s226
      %p228 = scmp.eq.s32.totalorder %s82, 0
      %p229 = por %p227, %p228
      %s231 = sadd.s32 %s230, 1
      %p234 = scmp.eq.s32.totalorder %s76, 1
      %p235 = scmp.ne.s32.totalorder %s230, %s232
      %p236 = scmp.eq.s32.totalorder %s76, 0
      %p237 = por %p235, %p236
      %p238 = scmp.ne.s32.totalorder %s230, %s232
      %p239 = scmp.eq.s32.totalorder %s81, 1
      %p240 = por %p238, %p239
      %p241 = scmp.ne.s32.totalorder %s232, %s233
      %p242 = scmp.eq.s32.totalorder %s81, 0
      %p243 = por %p241, %p242
      %p244 = scmp.ne.s32.totalorder %s232, %s233
      %p245 = scmp.eq.s32.totalorder %s82, 1
      %p246 = por %p244, %p245
      %p248 = scmp.ne.s32.totalorder %s233, %s247
      %p249 = scmp.eq.s32.totalorder %s82, 0
      %p250 = por %p248, %p249
      %s252 = sadd.s32 %s251, 1
      %p255 = scmp.eq.s32.totalorder %s76, 1
      %p256 = scmp.ne.s32.totalorder %s251, %s253
      %p257 = scmp.eq.s32.totalorder %s76, 0
      %p258 = por %p256, %p257
      %p259 = scmp.ne.s32.totalorder %s251, %s253
      %p260 = scmp.eq.s32.totalorder %s81, 1
      %p261 = por %p259, %p260
      %p262 = scmp.ne.s32.totalorder %s253, %s254
      %p263 = scmp.eq.s32.totalorder %s81, 0
      %p264 = por %p262, %p263
      %p265 = scmp.ne.s32.totalorder %s253, %s254
      %p266 = scmp.eq.s32.totalorder %s82, 1
      %p267 = por %p265, %p266
      %p269 = scmp.ne.s32.totalorder %s254, %s268
      %p270 = scmp.eq.s32.totalorder %s82, 0
      %p271 = por %p269, %p270
      %s273 = sadd.s32 %s272, 1
      %p276 = scmp.eq.s32.totalorder %s76, 1
      %p277 = scmp.ne.s32.totalorder %s272, %s274
      %p278 = scmp.eq.s32.totalorder %s76, 0
      %p279 = por %p277, %p278
      %p280 = scmp.ne.s32.totalorder %s272, %s274
      %p281 = scmp.eq.s32.totalorder %s81, 1
      %p282 = por %p280, %p281
      %p283 = scmp.ne.s32.totalorder %s274, %s275
      %p284 = scmp.eq.s32.totalorder %s81, 0
      %p285 = por %p283, %p284
      %p286 = scmp.ne.s32.totalorder %s274, %s275
      %p287 = scmp.eq.s32.totalorder %s82, 1
      %p288 = por %p286, %p287
      %p290 = scmp.ne.s32.totalorder %s275, %s289
      %p291 = scmp.eq.s32.totalorder %s82, 0
      %p292 = por %p290, %p291
      %s294 = sadd.s32 %s293, 1
      %p297 = scmp.eq.s32.totalorder %s76, 1
      %p298 = scmp.ne.s32.totalorder %s293, %s295
      %p299 = scmp.eq.s32.totalorder %s76, 0
      %p300 = por %p298, %p299
      %p301 = scmp.ne.s32.totalorder %s293, %s295
      %p302 = scmp.eq.s32.totalorder %s81, 1
      %p303 = por %p301, %p302
      %p304 = scmp.ne.s32.totalorder %s295, %s296
      %p305 = scmp.eq.s32.totalorder %s81, 0
      %p306 = por %p304, %p305
      %p307 = scmp.ne.s32.totalorder %s295, %s296
      %p308 = scmp.eq.s32.totalorder %s82, 1
      %p309 = por %p307, %p308
      %p311 = scmp.ne.s32.totalorder %s296, %s310
      %p312 = scmp.eq.s32.totalorder %s82, 0
      %p313 = por %p311, %p312
      %s315 = sadd.s32 %s314, 1
      %p318 = scmp.eq.s32.totalorder %s76, 1
      %p319 = scmp.ne.s32.totalorder %s314, %s316
      %p320 = scmp.eq.s32.totalorder %s76, 0
      %p321 = por %p319, %p320
      %p322 = scmp.ne.s32.totalorder %s314, %s316
      %p323 = scmp.eq.s32.totalorder %s81, 1
      %p324 = por %p322, %p323
      %p325 = scmp.ne.s32.totalorder %s316, %s317
      %p326 = scmp.eq.s32.totalorder %s81, 0
      %p327 = por %p325, %p326
      %p328 = scmp.ne.s32.totalorder %s316, %s317
      %p329 = scmp.eq.s32.totalorder %s82, 1
      %p330 = por %p328, %p329
      %p332 = scmp.ne.s32.totalorder %s317, %s331
      %p333 = scmp.eq.s32.totalorder %s82, 0
      %p334 = por %p332, %p333
      %s336 = sadd.s32 %s335, 1
      %p339 = scmp.eq.s32.totalorder %s76, 1
      %p340 = scmp.ne.s32.totalorder %s335, %s337
      %p341 = scmp.eq.s32.totalorder %s76, 0
      %p342 = por %p340, %p341
      %p343 = scmp.ne.s32.totalorder %s335, %s337
      %p344 = scmp.eq.s32.totalorder %s81, 1
      %p345 = por %p343, %p344
      %p346 = scmp.ne.s32.totalorder %s337, %s338
      %p347 = scmp.eq.s32.totalorder %s81, 0
      %p348 = por %p346, %p347
      %p349 = scmp.ne.s32.totalorder %s337, %s338
      %p350 = scmp.eq.s32.totalorder %s82, 1
      %p351 = por %p349, %p350
      %p353 = scmp.ne.s32.totalorder %s338, %s352
      %p354 = scmp.eq.s32.totalorder %s82, 0
      %p355 = por %p353, %p354
      %s357 = sadd.s32 %s356, 1
      %p360 = scmp.eq.s32.totalorder %s76, 1
      %p361 = scmp.ne.s32.totalorder %s356, %s358
      %p362 = scmp.eq.s32.totalorder %s76, 0
      %p363 = por %p361, %p362
      %p364 = scmp.ne.s32.totalorder %s356, %s358
      %p365 = scmp.eq.s32.totalorder %s81, 1
      %p366 = por %p364, %p365
      %p367 = scmp.ne.s32.totalorder %s358, %s359
      %p368 = scmp.eq.s32.totalorder %s81, 0
      %p369 = por %p367, %p368
      %p370 = scmp.ne.s32.totalorder %s358, %s359
      %p371 = scmp.eq.s32.totalorder %s82, 1
      %p372 = por %p370, %p371
      %p374 = scmp.ne.s32.totalorder %s359, %s373
      %p375 = scmp.eq.s32.totalorder %s82, 0
      %p376 = por %p374, %p375
      %s378 = sadd.s32 %s377, 1
      %p381 = scmp.eq.s32.totalorder %s76, 1
      %p382 = scmp.ne.s32.totalorder %s377, %s379
      %p383 = scmp.eq.s32.totalorder %s76, 0
      %p384 = por %p382, %p383
      %p385 = scmp.ne.s32.totalorder %s377, %s379
      %p386 = scmp.eq.s32.totalorder %s81, 1
      %p387 = por %p385, %p386
      %p388 = scmp.ne.s32.totalorder %s379, %s380
      %p389 = scmp.eq.s32.totalorder %s81, 0
      %p390 = por %p388, %p389
      %p391 = scmp.ne.s32.totalorder %s379, %s380
      %p392 = scmp.eq.s32.totalorder %s82, 1
      %p393 = por %p391, %p392
      %p395 = scmp.ne.s32.totalorder %s380, %s394
      %p396 = scmp.eq.s32.totalorder %s82, 0
      %p397 = por %p395, %p396
      %s399 = sadd.s32 %s398, 1
      %p402 = scmp.eq.s32.totalorder %s76, 1
      %p403 = scmp.ne.s32.totalorder %s398, %s400
      %p404 = scmp.eq.s32.totalorder %s76, 0
      %p405 = por %p403, %p404
      %p406 = scmp.ne.s32.totalorder %s398, %s400
      %p407 = scmp.eq.s32.totalorder %s81, 1
      %p408 = por %p406, %p407
      %p409 = scmp.ne.s32.totalorder %s400, %s401
      %p410 = scmp.eq.s32.totalorder %s81, 0
      %p411 = por %p409, %p410
      %p412 = scmp.ne.s32.totalorder %s400, %s401
      %p413 = scmp.eq.s32.totalorder %s82, 1
      %p414 = por %p412, %p413
      %p416 = scmp.ne.s32.totalorder %s401, %s415
      %p417 = scmp.eq.s32.totalorder %s82, 0
      %p418 = por %p416, %p417
      %s420 = sadd.s32 %s419, 1
      %p423 = scmp.eq.s32.totalorder %s76, 1
      %p424 = scmp.ne.s32.totalorder %s419, %s421
      %p425 = scmp.eq.s32.totalorder %s76, 0
      %p426 = por %p424, %p425
      %p427 = scmp.ne.s32.totalorder %s419, %s421
      %p428 = scmp.eq.s32.totalorder %s81, 1
      %p429 = por %p427, %p428
      %p430 = scmp.ne.s32.totalorder %s421, %s422
      %p431 = scmp.eq.s32.totalorder %s81, 0
      %p432 = por %p430, %p431
      %p433 = scmp.ne.s32.totalorder %s421, %s422
      %p434 = scmp.eq.s32.totalorder %s82, 1
      %p435 = por %p433, %p434
      %p437 = scmp.ne.s32.totalorder %s422, %s436
      %p438 = scmp.eq.s32.totalorder %s82, 0
      %p439 = por %p437, %p438
      %s441 = sadd.s32 %s440, 1
      %p444 = scmp.eq.s32.totalorder %s76, 1
      %p445 = scmp.ne.s32.totalorder %s440, %s442
      %p446 = scmp.eq.s32.totalorder %s76, 0
      %p447 = por %p445, %p446
      %p448 = scmp.ne.s32.totalorder %s440, %s442
      %p449 = scmp.eq.s32.totalorder %s81, 1
      %p450 = por %p448, %p449
      %p451 = scmp.ne.s32.totalorder %s442, %s443
      %p452 = scmp.eq.s32.totalorder %s81, 0
      %p453 = por %p451, %p452
      %p454 = scmp.ne.s32.totalorder %s442, %s443
      %p455 = scmp.eq.s32.totalorder %s82, 1
      %p456 = por %p454, %p455
      %p458 = scmp.ne.s32.totalorder %s443, %s457
      %p459 = scmp.eq.s32.totalorder %s82, 0
      %p460 = por %p458, %p459
      %s462 = sadd.s32 %s461, 1
      %p465 = scmp.eq.s32.totalorder %s76, 1
      %p466 = scmp.ne.s32.totalorder %s461, %s463
      %p467 = scmp.eq.s32.totalorder %s76, 0
      %p468 = por %p466, %p467
      %p469 = scmp.ne.s32.totalorder %s461, %s463
      %p470 = scmp.eq.s32.totalorder %s81, 1
      %p471 = por %p469, %p470
      %p472 = scmp.ne.s32.totalorder %s463, %s464
      %p473 = scmp.eq.s32.totalorder %s81, 0
      %p474 = por %p472, %p473
      %p475 = scmp.ne.s32.totalorder %s463, %s464
      %p476 = scmp.eq.s32.totalorder %s82, 1
      %p477 = por %p475, %p476
      %p479 = scmp.ne.s32.totalorder %s464, %s478
      %p480 = scmp.eq.s32.totalorder %s82, 0
      %p481 = por %p479, %p480
      %s483 = sadd.s32 %s482, 1
      %p486 = scmp.eq.s32.totalorder %s76, 1
      %p487 = scmp.ne.s32.totalorder %s482, %s484
      %p488 = scmp.eq.s32.totalorder %s76, 0
      %p489 = por %p487, %p488
      %p490 = scmp.ne.s32.totalorder %s482, %s484
      %p491 = scmp.eq.s32.totalorder %s81, 1
      %p492 = por %p490, %p491
      %p493 = scmp.ne.s32.totalorder %s484, %s485
      %p494 = scmp.eq.s32.totalorder %s81, 0
      %p495 = por %p493, %p494
      %p496 = scmp.ne.s32.totalorder %s484, %s485
      %p497 = scmp.eq.s32.totalorder %s82, 1
      %p498 = por %p496, %p497
      %p500 = scmp.ne.s32.totalorder %s485, %s499
      %p501 = scmp.eq.s32.totalorder %s82, 0
      %p502 = por %p500, %p501
      %s504 = sadd.s32 %s503, 1
      %p507 = scmp.eq.s32.totalorder %s76, 1
      %p508 = scmp.ne.s32.totalorder %s503, %s505
      %p509 = scmp.eq.s32.totalorder %s76, 0
      %p510 = por %p508, %p509
      %p511 = scmp.ne.s32.totalorder %s503, %s505
      %p512 = scmp.eq.s32.totalorder %s81, 1
      %p513 = por %p511, %p512
      %p514 = scmp.ne.s32.totalorder %s505, %s506
      %p515 = scmp.eq.s32.totalorder %s81, 0
      %p516 = por %p514, %p515
      %p517 = scmp.ne.s32.totalorder %s505, %s506
      %p518 = scmp.eq.s32.totalorder %s82, 1
      %p519 = por %p517, %p518
      %p521 = scmp.ne.s32.totalorder %s506, %s520
      %p522 = scmp.eq.s32.totalorder %s82, 0
      %p523 = por %p521, %p522
      %s525 = sadd.s32 %s524, 1
      %p528 = scmp.eq.s32.totalorder %s76, 1
      %p529 = scmp.ne.s32.totalorder %s524, %s526
      %p530 = scmp.eq.s32.totalorder %s76, 0
      %p531 = por %p529, %p530
      %p532 = scmp.ne.s32.totalorder %s524, %s526
      %p533 = scmp.eq.s32.totalorder %s81, 1
      %p534 = por %p532, %p533
      %p535 = scmp.ne.s32.totalorder %s526, %s527
      %p536 = scmp.eq.s32.totalorder %s81, 0
      %p537 = por %p535, %p536
      %p538 = scmp.ne.s32.totalorder %s526, %s527
      %p539 = scmp.eq.s32.totalorder %s82, 1
      %p540 = por %p538, %p539
      %p542 = scmp.ne.s32.totalorder %s527, %s541
      %p543 = scmp.eq.s32.totalorder %s82, 0
      %p544 = por %p542, %p543
      %s546 = sadd.s32 %s545, 1
      %p549 = scmp.eq.s32.totalorder %s76, 1
      %p550 = scmp.ne.s32.totalorder %s545, %s547
      %p551 = scmp.eq.s32.totalorder %s76, 0
      %p552 = por %p550, %p551
      %p553 = scmp.ne.s32.totalorder %s545, %s547
      %p554 = scmp.eq.s32.totalorder %s81, 1
      %p555 = por %p553, %p554
      %p556 = scmp.ne.s32.totalorder %s547, %s548
      %p557 = scmp.eq.s32.totalorder %s81, 0
      %p558 = por %p556, %p557
      %p559 = scmp.ne.s32.totalorder %s547, %s548
      %p560 = scmp.eq.s32.totalorder %s82, 1
      %p561 = por %p559, %p560
      %p563 = scmp.ne.s32.totalorder %s548, %s562
      %p564 = scmp.eq.s32.totalorder %s82, 0
      %p565 = por %p563, %p564
      %s567 = sadd.s32 %s566, 1
      %p570 = scmp.eq.s32.totalorder %s76, 1
      %p571 = scmp.ne.s32.totalorder %s566, %s568
      %p572 = scmp.eq.s32.totalorder %s76, 0
      %p573 = por %p571, %p572
      %p574 = scmp.ne.s32.totalorder %s566, %s568
      %p575 = scmp.eq.s32.totalorder %s81, 1
      %p576 = por %p574, %p575
      %p577 = scmp.ne.s32.totalorder %s568, %s569
      %p578 = scmp.eq.s32.totalorder %s81, 0
      %p579 = por %p577, %p578
      %p580 = scmp.ne.s32.totalorder %s568, %s569
      %p581 = scmp.eq.s32.totalorder %s82, 1
      %p582 = por %p580, %p581
      %p584 = scmp.ne.s32.totalorder %s569, %s583
      %p585 = scmp.eq.s32.totalorder %s82, 0
      %p586 = por %p584, %p585
      %s588 = sadd.s32 %s587, 1
      %p591 = scmp.eq.s32.totalorder %s76, 1
      %p592 = scmp.ne.s32.totalorder %s587, %s589
      %p593 = scmp.eq.s32.totalorder %s76, 0
      %p594 = por %p592, %p593
      %p595 = scmp.ne.s32.totalorder %s587, %s589
      %p596 = scmp.eq.s32.totalorder %s81, 1
      %p597 = por %p595, %p596
      %p598 = scmp.ne.s32.totalorder %s589, %s590
      %p599 = scmp.eq.s32.totalorder %s81, 0
      %p600 = por %p598, %p599
      %p601 = scmp.ne.s32.totalorder %s589, %s590
      %p602 = scmp.eq.s32.totalorder %s82, 1
      %p603 = por %p601, %p602
      %p605 = scmp.ne.s32.totalorder %s590, %s604
      %p606 = scmp.eq.s32.totalorder %s82, 0
      %p607 = por %p605, %p606
      %s609 = sadd.s32 %s608, 1
      %p612 = scmp.eq.s32.totalorder %s76, 1
      %p613 = scmp.ne.s32.totalorder %s608, %s610
      %p614 = scmp.eq.s32.totalorder %s76, 0
      %p615 = por %p613, %p614
      %p616 = scmp.ne.s32.totalorder %s608, %s610
      %p617 = scmp.eq.s32.totalorder %s81, 1
      %p618 = por %p616, %p617
      %p619 = scmp.ne.s32.totalorder %s610, %s611
      %p620 = scmp.eq.s32.totalorder %s81, 0
      %p621 = por %p619, %p620
      %p622 = scmp.ne.s32.totalorder %s610, %s611
      %p623 = scmp.eq.s32.totalorder %s82, 1
      %p624 = por %p622, %p623
      %p626 = scmp.ne.s32.totalorder %s611, %s625
      %p627 = scmp.eq.s32.totalorder %s82, 0
      %p628 = por %p626, %p627
      %s630 = sadd.s32 %s629, 1
      %p633 = scmp.eq.s32.totalorder %s76, 1
      %p634 = scmp.ne.s32.totalorder %s629, %s631
      %p635 = scmp.eq.s32.totalorder %s76, 0
      %p636 = por %p634, %p635
      %p637 = scmp.ne.s32.totalorder %s629, %s631
      %p638 = scmp.eq.s32.totalorder %s81, 1
      %p639 = por %p637, %p638
      %p640 = scmp.ne.s32.totalorder %s631, %s632
      %p641 = scmp.eq.s32.totalorder %s81, 0
      %p642 = por %p640, %p641
      %p643 = scmp.ne.s32.totalorder %s631, %s632
      %p644 = scmp.eq.s32.totalorder %s82, 1
      %p645 = por %p643, %p644
      %p647 = scmp.ne.s32.totalorder %s632, %s646
      %p648 = scmp.eq.s32.totalorder %s82, 0
      %p649 = por %p647, %p648
      %s651 = sadd.s32 %s650, 1
      %p654 = scmp.eq.s32.totalorder %s76, 1
      %p655 = scmp.ne.s32.totalorder %s650, %s652
      %p656 = scmp.eq.s32.totalorder %s76, 0
      %p657 = por %p655, %p656
      %p658 = scmp.ne.s32.totalorder %s650, %s652
      %p659 = scmp.eq.s32.totalorder %s81, 1
      %p660 = por %p658, %p659
      %p661 = scmp.ne.s32.totalorder %s652, %s653
      %p662 = scmp.eq.s32.totalorder %s81, 0
      %p663 = por %p661, %p662
      %p664 = scmp.ne.s32.totalorder %s652, %s653
      %p665 = scmp.eq.s32.totalorder %s82, 1
      %p666 = por %p664, %p665
      %p668 = scmp.ne.s32.totalorder %s653, %s667
      %p669 = scmp.eq.s32.totalorder %s82, 0
      %p670 = por %p668, %p669
      %s672 = sadd.s32 %s671, 1
      %p675 = scmp.eq.s32.totalorder %s76, 1
      %p676 = scmp.ne.s32.totalorder %s671, %s673
      %p677 = scmp.eq.s32.totalorder %s76, 0
      %p678 = por %p676, %p677
      %p679 = scmp.ne.s32.totalorder %s671, %s673
      %p680 = scmp.eq.s32.totalorder %s81, 1
      %p681 = por %p679, %p680
      %p682 = scmp.ne.s32.totalorder %s673, %s674
      %p683 = scmp.eq.s32.totalorder %s81, 0
      %p684 = por %p682, %p683
      %p685 = scmp.ne.s32.totalorder %s673, %s674
      %p686 = scmp.eq.s32.totalorder %s82, 1
      %p687 = por %p685, %p686
      %p689 = scmp.ne.s32.totalorder %s674, %s688
      %p690 = scmp.eq.s32.totalorder %s82, 0
      %p691 = por %p689, %p690
      %s693 = sadd.s32 %s692, 1
      %p696 = scmp.eq.s32.totalorder %s76, 1
      %p697 = scmp.ne.s32.totalorder %s692, %s694
      %p698 = scmp.eq.s32.totalorder %s76, 0
      %p699 = por %p697, %p698
      %p700 = scmp.ne.s32.totalorder %s692, %s694
      %p701 = scmp.eq.s32.totalorder %s81, 1
      %p702 = por %p700, %p701
      %p703 = scmp.ne.s32.totalorder %s694, %s695
      %p704 = scmp.eq.s32.totalorder %s81, 0
      %p705 = por %p703, %p704
      %p706 = scmp.ne.s32.totalorder %s694, %s695
      %p707 = scmp.eq.s32.totalorder %s82, 1
      %p708 = por %p706, %p707
      %p710 = scmp.ne.s32.totalorder %s695, %s709
      %p711 = scmp.eq.s32.totalorder %s82, 0
      %p712 = por %p710, %p711
      %s714 = sadd.s32 %s713, 1
      %p717 = scmp.eq.s32.totalorder %s76, 1
      %p718 = scmp.ne.s32.totalorder %s713, %s715
      %p719 = scmp.eq.s32.totalorder %s76, 0
      %p720 = por %p718, %p719
      %p721 = scmp.ne.s32.totalorder %s713, %s715
      %p722 = scmp.eq.s32.totalorder %s81, 1
      %p723 = por %p721, %p722
      %p724 = scmp.ne.s32.totalorder %s715, %s716
      %p725 = scmp.eq.s32.totalorder %s81, 0
      %p726 = por %p724, %p725
      %p727 = scmp.ne.s32.totalorder %s715, %s716
      %p728 = scmp.eq.s32.totalorder %s82, 1
      %p729 = por %p727, %p728
      %p731 = scmp.ne.s32.totalorder %s716, %s730
      %p732 = scmp.eq.s32.totalorder %s82, 0
      %p733 = por %p731, %p732
      %s735 = sadd.s32 %s734, 1
      %p738 = scmp.eq.s32.totalorder %s76, 1
      %p739 = scmp.ne.s32.totalorder %s734, %s736
      %p740 = scmp.eq.s32.totalorder %s76, 0
      %p741 = por %p739, %p740
      %p742 = scmp.ne.s32.totalorder %s734, %s736
      %p743 = scmp.eq.s32.totalorder %s81, 1
      %p744 = por %p742, %p743
      %p745 = scmp.ne.s32.totalorder %s736, %s737
      %p746 = scmp.eq.s32.totalorder %s81, 0
      %p747 = por %p745, %p746
      %p748 = scmp.ne.s32.totalorder %s736, %s737
      %p749 = scmp.eq.s32.totalorder %s82, 1
      %p750 = por %p748, %p749
      %p752 = scmp.ne.s32.totalorder %s737, %s751
      %p753 = scmp.eq.s32.totalorder %s82, 0
      %p754 = por %p752, %p753
      %s756 = sadd.s32 %s755, 1
      %p759 = scmp.eq.s32.totalorder %s76, 1
      %p760 = scmp.ne.s32.totalorder %s755, %s757
      %p761 = scmp.eq.s32.totalorder %s76, 0
      %p762 = por %p760, %p761
      %p763 = scmp.ne.s32.totalorder %s755, %s757
      %p764 = scmp.eq.s32.totalorder %s81, 1
      %p765 = por %p763, %p764
      %p766 = scmp.ne.s32.totalorder %s757, %s758
      %p767 = scmp.eq.s32.totalorder %s81, 0
      %p768 = por %p766, %p767
      %p769 = scmp.ne.s32.totalorder %s757, %s758
      %p770 = scmp.eq.s32.totalorder %s82, 1
      %p771 = por %p769, %p770
      %p773 = scmp.ne.s32.totalorder %s758, %s772
      %p774 = scmp.eq.s32.totalorder %s82, 0
      %p775 = por %p773, %p774
      %s777 = sadd.s32 %s776, 1
      %p780 = scmp.eq.s32.totalorder %s76, 1
      %p781 = scmp.ne.s32.totalorder %s776, %s778
      %p782 = scmp.eq.s32.totalorder %s76, 0
      %p783 = por %p781, %p782
      %p784 = scmp.ne.s32.totalorder %s776, %s778
      %p785 = scmp.eq.s32.totalorder %s81, 1
      %p786 = por %p784, %p785
      %p787 = scmp.ne.s32.totalorder %s778, %s779
      %p788 = scmp.eq.s32.totalorder %s81, 0
      %p789 = por %p787, %p788
      %p790 = scmp.ne.s32.totalorder %s778, %s779
      %p791 = scmp.eq.s32.totalorder %s82, 1
      %p792 = por %p790, %p791
      %p794 = scmp.ne.s32.totalorder %s779, %s793
      %p795 = scmp.eq.s32.totalorder %s82, 0
      %p796 = por %p794, %p795
      %s798 = sadd.s32 %s797, 1
      %p801 = scmp.eq.s32.totalorder %s76, 1
      %p802 = scmp.ne.s32.totalorder %s797, %s799
      %p803 = scmp.eq.s32.totalorder %s76, 0
      %p804 = por %p802, %p803
      %p805 = scmp.ne.s32.totalorder %s797, %s799
      %p806 = scmp.eq.s32.totalorder %s81, 1
      %p807 = por %p805, %p806
      %p808 = scmp.ne.s32.totalorder %s799, %s800
      %p809 = scmp.eq.s32.totalorder %s81, 0
      %p810 = por %p808, %p809
      %p811 = scmp.ne.s32.totalorder %s799, %s800
      %p812 = scmp.eq.s32.totalorder %s82, 1
      %p813 = por %p811, %p812
      %p815 = scmp.ne.s32.totalorder %s800, %s814
      %p816 = scmp.eq.s32.totalorder %s82, 0
      %p817 = por %p815, %p816
      %s818 = ssub.s32 %s83, %s95
      %s819 = ssub.s32 %s84, %s91
      %s820 = sor.u32 %s818, %s819
      %p821 = scmp.eq.s32.totalorder %s820, 0
      %s823 = sadd.s32 %s822, 1
      %s824 = scalar_select %p821, %s822, %s823
      %p827 = pneg %p821
      %p828 = scmp.eq.s32.totalorder %s76, 1
      %p829 = por %p827, %p828
      %p830 = scmp.ne.s32.totalorder %s822, %s825
      %p831 = scmp.eq.s32.totalorder %s76, 0
      %p832 = por %p830, %p831
      %p833 = scmp.ne.s32.totalorder %s822, %s825
      %p834 = scmp.eq.s32.totalorder %s81, 1
      %p835 = por %p833, %p834
      %p836 = scmp.ne.s32.totalorder %s825, %s826
      %p837 = scmp.eq.s32.totalorder %s81, 0
      %p838 = por %p836, %p837
      %p839 = scmp.ne.s32.totalorder %s825, %s826
      %p840 = scmp.eq.s32.totalorder %s82, 1
      %p841 = por %p839, %p840
      %p843 = scmp.ne.s32.totalorder %s826, %s842
      %p844 = scmp.eq.s32.totalorder %s82, 0
      %p845 = por %p843, %p844
      %p846 = scmp.le.s32.totalorder 1, %s76
      %p847 = scmp.lt.s32.totalorder %s76, 3
      %p848 = pnand %p846, %p847
      %p849 = pneg %p848
      // Predicated region
      $region9: #{decoder_forward.3} parent=5 // pred_check
        _
      $region10: #{decoder_forward.3} parent=5 // pred_check_branch
        %851 = sbr.rel (%p848) target = $region12
      $region11: #{decoder_forward.3} parent=5 // pred_region
        %s852 = ssub.s32 %s76, 1
        // Predicated region
        $region13: #{decoder_forward.3} parent=11 // pred_check
          %p853 = pneg %p243
        $region14: #{decoder_forward.3} parent=11 // pred_check_branch
          %855 = sbr.rel (%p853) target = $region16
        $region15: #{decoder_forward.3} parent=11 // pred_region
          _
        $region16: #{decoder_forward.3} parent=11 // pred_fallthru
          _
        // Predicated region
        $region17: #{decoder_forward.3} parent=11 // pred_check
          %p856 = pneg %p264
        $region18: #{decoder_forward.3} parent=11 // pred_check_branch
          %858 = sbr.rel (%p856) target = $region20
        $region19: #{decoder_forward.3} parent=11 // pred_region
          _
        $region20: #{decoder_forward.3} parent=11 // pred_fallthru
          _
        // Predicated region
        $region21: #{decoder_forward.3} parent=11 // pred_check
          %p859 = pneg %p285
        $region22: #{decoder_forward.3} parent=11 // pred_check_branch
          %861 = sbr.rel (%p859) target = $region24
        $region23: #{decoder_forward.3} parent=11 // pred_region
          _
        $region24: #{decoder_forward.3} parent=11 // pred_fallthru
          _
        // Predicated region
        $region25: #{decoder_forward.3} parent=11 // pred_check
          %p862 = pneg %p306
        $region26: #{decoder_forward.3} parent=11 // pred_check_branch
          %864 = sbr.rel (%p862) target = $region28
        $region27: #{decoder_forward.3} parent=11 // pred_region
          _
        $region28: #{decoder_forward.3} parent=11 // pred_fallthru
          _
        // Predicated region
        $region29: #{decoder_forward.3} parent=11 // pred_check
          %p865 = pneg %p327
        $region30: #{decoder_forward.3} parent=11 // pred_check_branch
          %867 = sbr.rel (%p865) target = $region32
        $region31: #{decoder_forward.3} parent=11 // pred_region
          _
        $region32: #{decoder_forward.3} parent=11 // pred_fallthru
          _
        // Predicated region
        $region33: #{decoder_forward.3} parent=11 // pred_check
          %p868 = pneg %p348
        $region34: #{decoder_forward.3} parent=11 // pred_check_branch
          %870 = sbr.rel (%p868) target = $region36
        $region35: #{decoder_forward.3} parent=11 // pred_region
          _
        $region36: #{decoder_forward.3} parent=11 // pred_fallthru
          _
        // Predicated region
        $region37: #{decoder_forward.3} parent=11 // pred_check
          %p871 = pneg %p369
        $region38: #{decoder_forward.3} parent=11 // pred_check_branch
          %873 = sbr.rel (%p871) target = $region40
        $region39: #{decoder_forward.3} parent=11 // pred_region
          _
        $region40: #{decoder_forward.3} parent=11 // pred_fallthru
          _
        // Predicated region
        $region41: #{decoder_forward.3} parent=11 // pred_check
          %p874 = pneg %p390
        $region42: #{decoder_forward.3} parent=11 // pred_check_branch
          %876 = sbr.rel (%p874) target = $region44
        $region43: #{decoder_forward.3} parent=11 // pred_region
          _
        $region44: #{decoder_forward.3} parent=11 // pred_fallthru
          _
        // Predicated region
        $region45: #{decoder_forward.3} parent=11 // pred_check
          %p877 = pneg %p411
        $region46: #{decoder_forward.3} parent=11 // pred_check_branch
          %879 = sbr.rel (%p877) target = $region48
        $region47: #{decoder_forward.3} parent=11 // pred_region
          _
        $region48: #{decoder_forward.3} parent=11 // pred_fallthru
          _
        // Predicated region
        $region49: #{decoder_forward.3} parent=11 // pred_check
          %p880 = pneg %p432
        $region50: #{decoder_forward.3} parent=11 // pred_check_branch
          %882 = sbr.rel (%p880) target = $region52
        $region51: #{decoder_forward.3} parent=11 // pred_region
          _
        $region52: #{decoder_forward.3} parent=11 // pred_fallthru
          _
        // Predicated region
        $region53: #{decoder_forward.3} parent=11 // pred_check
          %p883 = pneg %p453
        $region54: #{decoder_forward.3} parent=11 // pred_check_branch
          %885 = sbr.rel (%p883) target = $region56
        $region55: #{decoder_forward.3} parent=11 // pred_region
          _
        $region56: #{decoder_forward.3} parent=11 // pred_fallthru
          _
        // Predicated region
        $region57: #{decoder_forward.3} parent=11 // pred_check
          %p886 = pneg %p474
        $region58: #{decoder_forward.3} parent=11 // pred_check_branch
          %888 = sbr.rel (%p886) target = $region60
        $region59: #{decoder_forward.3} parent=11 // pred_region
          _
        $region60: #{decoder_forward.3} parent=11 // pred_fallthru
          _
        // Predicated region
        $region61: #{decoder_forward.3} parent=11 // pred_check
          %p889 = pneg %p495
        $region62: #{decoder_forward.3} parent=11 // pred_check_branch
          %891 = sbr.rel (%p889) target = $region64
        $region63: #{decoder_forward.3} parent=11 // pred_region
          _
        $region64: #{decoder_forward.3} parent=11 // pred_fallthru
          _
        // Predicated region
        $region65: #{decoder_forward.3} parent=11 // pred_check
          %p892 = pneg %p516
        $region66: #{decoder_forward.3} parent=11 // pred_check_branch
          %894 = sbr.rel (%p892) target = $region68
        $region67: #{decoder_forward.3} parent=11 // pred_region
          _
        $region68: #{decoder_forward.3} parent=11 // pred_fallthru
          _
        // Predicated region
        $region69: #{decoder_forward.3} parent=11 // pred_check
          %p895 = pneg %p537
        $region70: #{decoder_forward.3} parent=11 // pred_check_branch
          %897 = sbr.rel (%p895) target = $region72
        $region71: #{decoder_forward.3} parent=11 // pred_region
          _
        $region72: #{decoder_forward.3} parent=11 // pred_fallthru
          _
        // Predicated region
        $region73: #{decoder_forward.3} parent=11 // pred_check
          %p898 = pneg %p558
        $region74: #{decoder_forward.3} parent=11 // pred_check_branch
          %900 = sbr.rel (%p898) target = $region76
        $region75: #{decoder_forward.3} parent=11 // pred_region
          _
        $region76: #{decoder_forward.3} parent=11 // pred_fallthru
          _
        // Predicated region
        $region77: #{decoder_forward.3} parent=11 // pred_check
          %p901 = pneg %p579
        $region78: #{decoder_forward.3} parent=11 // pred_check_branch
          %903 = sbr.rel (%p901) target = $region80
        $region79: #{decoder_forward.3} parent=11 // pred_region
          _
        $region80: #{decoder_forward.3} parent=11 // pred_fallthru
          _
        // Predicated region
        $region81: #{decoder_forward.3} parent=11 // pred_check
          %p904 = pneg %p600
        $region82: #{decoder_forward.3} parent=11 // pred_check_branch
          %906 = sbr.rel (%p904) target = $region84
        $region83: #{decoder_forward.3} parent=11 // pred_region
          _
        $region84: #{decoder_forward.3} parent=11 // pred_fallthru
          _
        // Predicated region
        $region85: #{decoder_forward.3} parent=11 // pred_check
          %p907 = pneg %p621
        $region86: #{decoder_forward.3} parent=11 // pred_check_branch
          %909 = sbr.rel (%p907) target = $region88
        $region87: #{decoder_forward.3} parent=11 // pred_region
          _
        $region88: #{decoder_forward.3} parent=11 // pred_fallthru
          _
        // Predicated region
        $region89: #{decoder_forward.3} parent=11 // pred_check
          %p910 = pneg %p642
        $region90: #{decoder_forward.3} parent=11 // pred_check_branch
          %912 = sbr.rel (%p910) target = $region92
        $region91: #{decoder_forward.3} parent=11 // pred_region
          _
        $region92: #{decoder_forward.3} parent=11 // pred_fallthru
          _
        // Predicated region
        $region93: #{decoder_forward.3} parent=11 // pred_check
          %p913 = pneg %p663
        $region94: #{decoder_forward.3} parent=11 // pred_check_branch
          %915 = sbr.rel (%p913) target = $region96
        $region95: #{decoder_forward.3} parent=11 // pred_region
          _
        $region96: #{decoder_forward.3} parent=11 // pred_fallthru
          _
        // Predicated region
        $region97: #{decoder_forward.3} parent=11 // pred_check
          %p916 = pneg %p684
        $region98: #{decoder_forward.3} parent=11 // pred_check_branch
          %918 = sbr.rel (%p916) target = $region100
        $region99: #{decoder_forward.3} parent=11 // pred_region
          _
        $region100: #{decoder_forward.3} parent=11 // pred_fallthru
          _
        // Predicated region
        $region101: #{decoder_forward.3} parent=11 // pred_check
          %p919 = pneg %p705
        $region102: #{decoder_forward.3} parent=11 // pred_check_branch
          %921 = sbr.rel (%p919) target = $region104
        $region103: #{decoder_forward.3} parent=11 // pred_region
          _
        $region104: #{decoder_forward.3} parent=11 // pred_fallthru
          _
        // Predicated region
        $region105: #{decoder_forward.3} parent=11 // pred_check
          %p922 = pneg %p726
        $region106: #{decoder_forward.3} parent=11 // pred_check_branch
          %924 = sbr.rel (%p922) target = $region108
        $region107: #{decoder_forward.3} parent=11 // pred_region
          _
        $region108: #{decoder_forward.3} parent=11 // pred_fallthru
          _
        // Predicated region
        $region109: #{decoder_forward.3} parent=11 // pred_check
          %p925 = pneg %p747
        $region110: #{decoder_forward.3} parent=11 // pred_check_branch
          %927 = sbr.rel (%p925) target = $region112
        $region111: #{decoder_forward.3} parent=11 // pred_region
          _
        $region112: #{decoder_forward.3} parent=11 // pred_fallthru
          _
        // Predicated region
        $region113: #{decoder_forward.3} parent=11 // pred_check
          %p928 = pneg %p768
        $region114: #{decoder_forward.3} parent=11 // pred_check_branch
          %930 = sbr.rel (%p928) target = $region116
        $region115: #{decoder_forward.3} parent=11 // pred_region
          _
        $region116: #{decoder_forward.3} parent=11 // pred_fallthru
          _
        // Predicated region
        $region117: #{decoder_forward.3} parent=11 // pred_check
          %p931 = pneg %p789
        $region118: #{decoder_forward.3} parent=11 // pred_check_branch
          %933 = sbr.rel (%p931) target = $region120
        $region119: #{decoder_forward.3} parent=11 // pred_region
          _
        $region120: #{decoder_forward.3} parent=11 // pred_fallthru
          _
        // Predicated region
        $region121: #{decoder_forward.3} parent=11 // pred_check
          %p934 = pneg %p810
        $region122: #{decoder_forward.3} parent=11 // pred_check_branch
          %936 = sbr.rel (%p934) target = $region124
        $region123: #{decoder_forward.3} parent=11 // pred_region
          _
        $region124: #{decoder_forward.3} parent=11 // pred_fallthru
          _
      $region12: #{decoder_forward.3} parent=5 // pred_fallthru
        _
      %p937 = scmp.lt.s32.totalorder %s76, 2
      // Predicated region
      $region125: #{decoder_forward.3} parent=5 // pred_check
        %p938 = pneg %p937
      $region126: #{decoder_forward.3} parent=5 // pred_check_branch
        %940 = sbr.rel (%p938) target = $region128
      $region127: #{decoder_forward.3} parent=5 // pred_region
        // Predicated region
        $region129: #{decoder_forward.3} parent=127 // pred_check
          %p941 = pneg %p110
        $region130: #{decoder_forward.3} parent=127 // pred_check_branch
          %943 = sbr.rel (%p941) target = $region132
        $region131: #{decoder_forward.3} parent=127 // pred_region
          %p944 = scmp.lt.s32.totalorder %s83, 1
          %s945 = scalar_select %p944, %s83, 1
          %p946 = scmp.lt.s32.totalorder %s84, 0
          %s947 = scalar_select %p946, %s84, 0
          %s948 = sadd.s32 %s947, %s945
          %s949 = smul.addr %s948, 8
          %s950 = scalar_lea.vmem %s1, %s949
        $region132: #{decoder_forward.3} parent=127 // pred_fallthru
          _
        // Predicated region
        $region133: #{decoder_forward.3} parent=127 // pred_check
          %p951 = pneg %p136
        $region134: #{decoder_forward.3} parent=127 // pred_check_branch
          %953 = sbr.rel (%p951) target = $region136
        $region135: #{decoder_forward.3} parent=127 // pred_region
          %p954 = scmp.lt.s32.totalorder %s83, 1
          %s955 = scalar_select %p954, %s83, 1
          %s956 = smul.addr %s955, 8
          %s957 = scalar_lea.vmem %s3, %s956
        $region136: #{decoder_forward.3} parent=127 // pred_fallthru
          _
        // Predicated region
        $region137: #{decoder_forward.3} parent=127 // pred_check
          %p958 = pneg %p162
        $region138: #{decoder_forward.3} parent=127 // pred_check_branch
          %960 = sbr.rel (%p958) target = $region140
        $region139: #{decoder_forward.3} parent=127 // pred_region
          %p961 = scmp.lt.s32.totalorder %s83, 1
          %s962 = scalar_select %p961, %s83, 1
          %s963 = smul.addr %s962, 8
          %s964 = scalar_lea.vmem %s5, %s963
        $region140: #{decoder_forward.3} parent=127 // pred_fallthru
          _
        // Predicated region
        $region141: #{decoder_forward.3} parent=127 // pred_check
          %p965 = pneg %p190
        $region142: #{decoder_forward.3} parent=127 // pred_check_branch
          %967 = sbr.rel (%p965) target = $region144
        $region143: #{decoder_forward.3} parent=127 // pred_region
          %p968 = scmp.lt.s32.totalorder %s83, 1
          %s969 = scalar_select %p968, %s83, 1
          %p970 = scmp.lt.s32.totalorder %s84, 0
          %s971 = scalar_select %p970, %s84, 0
          %s972 = sadd.s32 %s971, %s969
          %s973 = smul.addr %s972, 4
          %s974 = scalar_lea.vmem %s7, %s973
        $region144: #{decoder_forward.3} parent=127 // pred_fallthru
          _
        // Predicated region
        $region145: #{decoder_forward.3} parent=127 // pred_check
          %p975 = pneg %p216
        $region146: #{decoder_forward.3} parent=127 // pred_check_branch
          %977 = sbr.rel (%p975) target = $region148
        $region147: #{decoder_forward.3} parent=127 // pred_region
          %p978 = scmp.lt.s32.totalorder %s83, 1
          %s979 = scalar_select %p978, %s83, 1
          %s980 = scalar_lea.vmem %s9, %s979
        $region148: #{decoder_forward.3} parent=127 // pred_fallthru
          _
      $region128: #{decoder_forward.3} parent=5 // pred_fallthru
        _
      %p981 = scmp.le.s32.totalorder 1, %s76
      %p982 = scmp.lt.s32.totalorder %s76, 3
      %p983 = pnand %p981, %p982
      %p984 = pneg %p983
      // Predicated region
      $region149: #{decoder_forward.3} parent=5 // pred_check
        _
      $region150: #{decoder_forward.3} parent=5 // pred_check_branch
        %986 = sbr.rel (%p983) target = $region152
      $region151: #{decoder_forward.3} parent=5 // pred_region
        %s987 = ssub.s32 %s76, 1
        %p988 = scmp.lt.s32.totalorder %s85, 1
        %s989 = scalar_select %p988, %s85, 1
        %p990 = scmp.lt.s32.totalorder %s86, 0
        %s991 = scalar_select %p990, %s86, 0
        %s992 = sadd.s32 %s991, %s989
        %s993 = smul.addr %s992, 8
        %s994 = scalar_lea.vmem %s1, %s993
        %p995 = pneg %p116
        %p996 = pneg %p113
        %p997 = scmp.lt.s32.totalorder %s85, 1
        %s998 = scalar_select %p997, %s85, 1
        %s999 = smul.addr %s998, 8
        %s1000 = scalar_lea.vmem %s3, %s999
        %p1001 = pneg %p142
        %p1002 = pneg %p139
        %p1003 = scmp.lt.s32.totalorder %s85, 1
        %s1004 = scalar_select %p1003, %s85, 1
        %s1005 = smul.addr %s1004, 8
        %s1006 = scalar_lea.vmem %s5, %s1005
        %p1007 = pneg %p168
        %p1008 = pneg %p165
        %p1009 = scmp.lt.s32.totalorder %s85, 1
        %s1010 = scalar_select %p1009, %s85, 1
        %p1011 = scmp.lt.s32.totalorder %s86, 0
        %s1012 = scalar_select %p1011, %s86, 0
        %s1013 = sadd.s32 %s1012, %s1010
        %s1014 = smul.addr %s1013, 4
        %s1015 = scalar_lea.vmem %s7, %s1014
        %p1016 = pneg %p196
        %p1017 = pneg %p193
        %p1018 = scmp.lt.s32.totalorder %s85, 1
        %s1019 = scalar_select %p1018, %s85, 1
        %s1020 = scalar_lea.vmem %s9, %s1019
        %p1021 = pneg %p222
        %p1022 = pneg %p219
        %p1023 = pneg %p243
        %p1024 = pneg %p240
        %p1025 = pneg %p264
        %p1026 = pneg %p261
        %p1027 = pneg %p285
        %p1028 = pneg %p282
        %p1029 = pneg %p306
        %p1030 = pneg %p303
        %p1031 = pneg %p327
        %p1032 = pneg %p324
        %p1033 = pneg %p348
        %p1034 = pneg %p345
        %p1035 = pneg %p369
        %p1036 = pneg %p366
        %p1037 = pneg %p390
        %p1038 = pneg %p387
        %p1039 = pneg %p411
        %p1040 = pneg %p408
        %p1041 = pneg %p432
        %p1042 = pneg %p429
        %p1043 = pneg %p453
        %p1044 = pneg %p450
        %p1045 = pneg %p474
        %p1046 = pneg %p471
        %p1047 = pneg %p495
        %p1048 = pneg %p492
        %p1049 = pneg %p516
        %p1050 = pneg %p513
        %p1051 = pneg %p537
        %p1052 = pneg %p534
        %p1053 = pneg %p558
        %p1054 = pneg %p555
        %p1055 = pneg %p579
        %p1056 = pneg %p576
        %p1057 = pneg %p600
        %p1058 = pneg %p597
        %p1059 = pneg %p621
        %p1060 = pneg %p618
        %p1061 = pneg %p642
        %p1062 = pneg %p639
        %p1063 = pneg %p663
        %p1064 = pneg %p660
        %p1065 = pneg %p684
        %p1066 = pneg %p681
        %p1067 = pneg %p705
        %p1068 = pneg %p702
        %p1069 = pneg %p726
        %p1070 = pneg %p723
        %p1071 = pneg %p747
        %p1072 = pneg %p744
        %p1073 = pneg %p768
        %p1074 = pneg %p765
        %p1075 = pneg %p789
        %p1076 = pneg %p786
        %p1077 = pneg %p810
        %p1078 = pneg %p807
        %p1079 = pneg %p838
        %p1080 = pneg %p835
        %s1081 = sand.u32 %s825, 1
        %s1082 = scalar_lea.sflag [#allocation3], %s1081
        %s1083 = sand.u32 %s825, 1
        %s1084 = smul.addr %s1083, 8
        %s1085 = scalar_lea.vmem [#allocation2], %s1084
        %p1086 = scmp.lt.s32.totalorder %s85, 1
        %s1087 = scalar_select %p1086, %s85, 1
        %p1088 = scmp.lt.s32.totalorder %s86, 0
        %s1089 = scalar_select %p1088, %s86, 0
        %s1090 = sadd.s32 %s1089, %s1087
        %s1091 = smul.addr %s1090, 8
        %s1092 = scalar_lea.vmem %s1, %s1091
        %p1093 = scmp.lt.s32.totalorder %s85, 1
        %s1094 = scalar_select %p1093, %s85, 1
        %s1095 = smul.addr %s1094, 8
        %s1096 = scalar_lea.vmem %s3, %s1095
        %p1097 = scmp.lt.s32.totalorder %s85, 1
        %s1098 = scalar_select %p1097, %s85, 1
        %s1099 = smul.addr %s1098, 8
        %s1100 = scalar_lea.vmem %s5, %s1099
        %p1101 = scmp.lt.s32.totalorder %s85, 1
        %s1102 = scalar_select %p1101, %s85, 1
        %p1103 = scmp.lt.s32.totalorder %s86, 0
        %s1104 = scalar_select %p1103, %s86, 0
        %s1105 = sadd.s32 %s1104, %s1102
        %s1106 = smul.addr %s1105, 4
        %s1107 = scalar_lea.vmem %s7, %s1106
        %p1108 = scmp.lt.s32.totalorder %s85, 1
        %s1109 = scalar_select %p1108, %s85, 1
        %s1110 = scalar_lea.vmem %s9, %s1109
        %v1112 = vld [vmem:[%s1092] sm:$0xff]
        %v1113 = vld [vmem:[%s1096] sm:$0xff]
        %v1114 = vld [vmem:[%s1100] sm:$0xff]
        %v1115 = vld [vmem:[%s1107] sm:$0xf]
        %v1116 = vunpack.c.l.bf16 %v1115
        %v1117 = vsub.f32 %v1116, 1.0
        %v1118 = vmul.f32 %v1117, 1e+09
        %v1119 = vld [vmem:[%s1110] sm:$0x1]
        %v1120 = vunpack.c.l.bf16 %v1119
        %v1121 = vsub.f32 %v1120, 1.0
        %v1122 = vmul.f32 %v1121, 1e+09
        %v1123 = vld [vmem:[%s51] sm:$0x1]
        %v1124 = vld [vmem:[%s53] sm:$0x1]
        %vm1125 = vcmask 261120
        %v1126 = vsel %vm1125, %v1112, 0.0
        %1127 = vadd.xlane.f32.xlu0 %v1126
        %v1128 = vpop.xlane.xlu0 %1127
        %v1129 = vrcp.pop 32.0
        %v1130 = vmul.f32 32.0, %v1129
        %v1131 = vsub.f32 1.0, %v1130
        %v1132 = vmul.f32 %v1129, %v1131
        %v1133 = vadd.f32 %v1129, %v1132
        %vm1134 = vweird.f32 %v1129
        %v1135 = vsel %vm1134, %v1129, %v1133
        %v1136 = vmul.f32 %v1128, %v1135
        %v1137 = vsub.f32 %v1112, %v1136
        %v1138 = vmul.f32 %v1137, %v1137
        %v1139 = vsel %vm1125, %v1138, 0.0
        %1140 = vadd.xlane.f32.xlu0 %v1139
        %v1141 = vpop.xlane.xlu0 %1140
        %v1142 = vrcp.pop 31.0
        %v1143 = vmul.f32 31.0, %v1142
        %v1144 = vsub.f32 1.0, %v1143
        %v1145 = vmul.f32 %v1142, %v1144
        %v1146 = vadd.f32 %v1142, %v1145
        %vm1147 = vweird.f32 %v1142
        %v1148 = vsel %vm1147, %v1142, %v1146
        %v1149 = vmul.f32 %v1141, %v1148
        %v1151 = vperm.slane %v1123, 0
        %v1153 = vmul.f32 %v1151, %v1137
        %v1154 = vrsqrt.pop %v1149
        %v1155 = vmul.f32 %v1154, %v1149
        %v1156 = vmul.f32 %v1155, %v1154
        %v1157 = vmul.f32 0.5, %v1156
        %v1158 = vsub.f32 1.5, %v1157
        %v1159 = vmul.f32 %v1154, %v1158
        %v1160 = vmul.f32 %v1149, %v1159
        %vm1161 = vcmp.eq.f32.partialorder %v1149, inf
        %v1162 = vsel %vm1161, %v1149, %v1160
        %vm1163 = vcmp.eq.f32.partialorder %v1149, 0.0
        %v1164 = vand.u32 %v1149, 2147483648
        %v1165 = vsel %vm1163, %v1164, %v1162
        %v1166 = vadd.f32 %v1165, 1e-06
        %v1167 = vrcp.pop %v1166
        %v1168 = vmul.f32 %v1166, %v1167
        %v1169 = vsub.f32 1.0, %v1168
        %v1170 = vmul.f32 %v1167, %v1169
        %v1171 = vadd.f32 %v1167, %v1170
        %vm1172 = vweird.f32 %v1166
        %vm1173 = vweird.f32 %v1167
        %vm1174 = vmor %vm1172, %vm1173
        %v1175 = vsel %vm1174, %v1167, %v1171
        %v1176 = vand.u32 2147483647, %v1166
        %vm1177 = vcmp.eq.f32.partialorder %v1176, 8.507059e+37
        %v1178 = vand.u32 %v1166, 2147483648
        %v1179 = vor.u32 1.1754944e-38, %v1178
        %v1180 = vsel %vm1177, %v1179, %v1175
        %v1181 = vmul.f32 %v1153, %v1180
        %v1183 = vperm.slane %v1124, 0
        %v1185 = vadd.f32 %v1181, %v1183
        %v1186 = vsel %vm1125, %v1113, 0.0
        %1187 = vadd.xlane.f32.xlu0 %v1186
        %v1188 = vpop.xlane.xlu0 %1187
        %v1189 = vmul.f32 %v1188, %v1135
        %v1190 = vsub.f32 %v1113, %v1189
        %v1191 = vmul.f32 %v1190, %v1190
        %v1192 = vsel %vm1125, %v1191, 0.0
        %1193 = vadd.xlane.f32.xlu0 %v1192
        %v1194 = vpop.xlane.xlu0 %1193
        %v1195 = vmul.f32 %v1194, %v1148
        %v1196 = vmul.f32 %v1151, %v1190
        %v1197 = vrsqrt.pop %v1195
        %v1198 = vmul.f32 %v1197, %v1195
        %v1199 = vmul.f32 %v1198, %v1197
        %v1200 = vmul.f32 0.5, %v1199
        %v1201 = vsub.f32 1.5, %v1200
        %v1202 = vmul.f32 %v1197, %v1201
        %v1203 = vmul.f32 %v1195, %v1202
        %vm1204 = vcmp.eq.f32.partialorder %v1195, inf
        %v1205 = vsel %vm1204, %v1195, %v1203
        %vm1206 = vcmp.eq.f32.partialorder %v1195, 0.0
        %v1207 = vand.u32 %v1195, 2147483648
        %v1208 = vsel %vm1206, %v1207, %v1205
        %v1209 = vadd.f32 %v1208, 1e-06
        %v1210 = vrcp.pop %v1209
        %v1211 = vmul.f32 %v1209, %v1210
        %v1212 = vsub.f32 1.0, %v1211
        %v1213 = vmul.f32 %v1210, %v1212
        %v1214 = vadd.f32 %v1210, %v1213
        %vm1215 = vweird.f32 %v1209
        %vm1216 = vweird.f32 %v1210
        %vm1217 = vmor %vm1215, %vm1216
        %v1218 = vsel %vm1217, %v1210, %v1214
        %v1219 = vand.u32 2147483647, %v1209
        %vm1220 = vcmp.eq.f32.partialorder %v1219, 8.507059e+37
        %v1221 = vand.u32 %v1209, 2147483648
        %v1222 = vor.u32 1.1754944e-38, %v1221
        %v1223 = vsel %vm1220, %v1222, %v1218
        %v1224 = vmul.f32 %v1196, %v1223
        %v1225 = vadd.f32 %v1224, %v1183
        %v1226 = vld [vmem:[%s11] sm:$0xf]
        %v1227 = vld [vmem:[%s11 + $0x4] sm:$0xf]
        %v1228 = vld [vmem:[%s11 + $0x8] sm:$0xf]
        %v1229 = vld [vmem:[%s11 + $0xc] sm:$0xf]
        %v1230 = vld [vmem:[%s11 + $0x10] sm:$0xf]
        %v1231 = vld [vmem:[%s11 + $0x14] sm:$0xf]
        %v1232 = vld [vmem:[%s11 + $0x18] sm:$0xf]
        %v1233 = vld [vmem:[%s11 + $0x1c] sm:$0xf]
        %v1234 = vld [vmem:[%s11 + $0x20] sm:$0xf]
        %v1235 = vld [vmem:[%s11 + $0x24] sm:$0xf]
        %v1236 = vld [vmem:[%s11 + $0x28] sm:$0xf]
        %v1237 = vld [vmem:[%s11 + $0x2c] sm:$0xf]
        %v1238 = vld [vmem:[%s11 + $0x30] sm:$0xf]
        %v1239 = vld [vmem:[%s11 + $0x34] sm:$0xf]
        %v1240 = vld [vmem:[%s11 + $0x38] sm:$0xf]
        %v1241 = vld [vmem:[%s11 + $0x3c] sm:$0xf]
        %v1242 = vld [vmem:[%s13] sm:$0x1]
        %v1243 = vld [vmem:[%s13 + $0x1] sm:$0x1]
        %v1244 = vld [vmem:[%s13 + $0x2] sm:$0x1]
        %v1245 = vld [vmem:[%s13 + $0x3] sm:$0x1]
        %v1246 = vld [vmem:[%s15] sm:$0xf]
        %v1247 = vld [vmem:[%s15 + $0x4] sm:$0xf]
        %v1248 = vld [vmem:[%s15 + $0x8] sm:$0xf]
        %v1249 = vld [vmem:[%s15 + $0xc] sm:$0xf]
        %v1250 = vld [vmem:[%s15 + $0x10] sm:$0xf]
        %v1251 = vld [vmem:[%s15 + $0x14] sm:$0xf]
        %v1252 = vld [vmem:[%s15 + $0x18] sm:$0xf]
        %v1253 = vld [vmem:[%s15 + $0x1c] sm:$0xf]
        %v1254 = vld [vmem:[%s15 + $0x20] sm:$0xf]
        %v1255 = vld [vmem:[%s15 + $0x24] sm:$0xf]
        %v1256 = vld [vmem:[%s15 + $0x28] sm:$0xf]
        %v1257 = vld [vmem:[%s15 + $0x2c] sm:$0xf]
        %v1258 = vld [vmem:[%s15 + $0x30] sm:$0xf]
        %v1259 = vld [vmem:[%s15 + $0x34] sm:$0xf]
        %v1260 = vld [vmem:[%s15 + $0x38] sm:$0xf]
        %v1261 = vld [vmem:[%s15 + $0x3c] sm:$0xf]
        %v1262 = vld [vmem:[%s17] sm:$0x1]
        %v1263 = vld [vmem:[%s17 + $0x1] sm:$0x1]
        %v1264 = vld [vmem:[%s17 + $0x2] sm:$0x1]
        %v1265 = vld [vmem:[%s17 + $0x3] sm:$0x1]
        %v1266 = vld [vmem:[%s19] sm:$0xf]
        %v1267 = vld [vmem:[%s19 + $0x4] sm:$0xf]
        %v1268 = vld [vmem:[%s19 + $0x8] sm:$0xf]
        %v1269 = vld [vmem:[%s19 + $0xc] sm:$0xf]
        %v1270 = vld [vmem:[%s19 + $0x10] sm:$0xf]
        %v1271 = vld [vmem:[%s19 + $0x14] sm:$0xf]
        %v1272 = vld [vmem:[%s19 + $0x18] sm:$0xf]
        %v1273 = vld [vmem:[%s19 + $0x1c] sm:$0xf]
        %v1274 = vld [vmem:[%s19 + $0x20] sm:$0xf]
        %v1275 = vld [vmem:[%s19 + $0x24] sm:$0xf]
        %v1276 = vld [vmem:[%s19 + $0x28] sm:$0xf]
        %v1277 = vld [vmem:[%s19 + $0x2c] sm:$0xf]
        %v1278 = vld [vmem:[%s19 + $0x30] sm:$0xf]
        %v1279 = vld [vmem:[%s19 + $0x34] sm:$0xf]
        %v1280 = vld [vmem:[%s19 + $0x38] sm:$0xf]
        %v1281 = vld [vmem:[%s19 + $0x3c] sm:$0xf]
        %v1282 = vld [vmem:[%s21] sm:$0x1]
        %v1283 = vld [vmem:[%s21 + $0x1] sm:$0x1]
        %v1284 = vld [vmem:[%s21 + $0x2] sm:$0x1]
        %v1285 = vld [vmem:[%s21 + $0x3] sm:$0x1]
        %v1286 = vld [vmem:[%s23] sm:$0xf]
        %v1287 = vld [vmem:[%s23 + $0x4] sm:$0xf]
        %v1288 = vld [vmem:[%s23 + $0x8] sm:$0xf]
        %v1289 = vld [vmem:[%s23 + $0xc] sm:$0xf]
        %v1290 = vld [vmem:[%s25] sm:$0x1]
        %v1291 = vpack.c.bf16 %v1185, %v1185
        %v1292 = vpack.c.bf16 %v1225, %v1225
        %v1297 = vperm.slane %v1242, 0
        %v1298 = vperm.slane %v1243, 0
        %v1299 = vperm.slane %v1244, 0
        %v1300 = vperm.slane %v1245, 0
        %v1309 = vunpack.c.l.b16 %v1226
        %v1310 = vunpack.c.l.b16 %v1227
        %v1311 = vunpack.c.l.b16 %v1228
        %v1312 = vunpack.c.l.b16 %v1229
        %v1313 = vpack.c.b16 %v1310, %v1309
        %v1314 = vpack.c.b16 %v1312, %v1311
        %v1318 = vsel %vm1125, %v1291, 0
        %1320 = vmatpush.bf16.msra.mxu0 0
        %1321 = vmatpush.bf16.msra.mxu0 0
        %1322 = vmatpush.bf16.msra.mxu0 0
        %1323 = vmatpush.bf16.msra.mxu0 0
        %1324 = vmatpush.bf16.msra.mxu0 0
        %1325 = vmatpush.bf16.msra.mxu0 0
        %1326 = vmatpush.bf16.msra.mxu0 %v1314
        %1327 = vmatpush.bf16.msra.mxu0 %v1313
        %1328 = vmatmul.bf16.gmra.mxu0 %v1318
        %v1329 = vpop.f32.mrf.mxu0
        %v1330 = vadd.f32 %v1297, %v1329
        %v1331 = vpop.f32.mrf.mxu0
        %1332 = vdwg.mxu0
        %v1337 = vunpack.c.l.b16 %v1230
        %v1338 = vunpack.c.l.b16 %v1231
        %v1339 = vunpack.c.l.b16 %v1232
        %v1340 = vunpack.c.l.b16 %v1233
        %v1341 = vpack.c.b16 %v1338, %v1337
        %v1342 = vpack.c.b16 %v1340, %v1339
        %1345 = vmatpush.bf16.msra.mxu0 0
        %1346 = vmatpush.bf16.msra.mxu0 0
        %1347 = vmatpush.bf16.msra.mxu0 0
        %1348 = vmatpush.bf16.msra.mxu0 0
        %1349 = vmatpush.bf16.msra.mxu0 0
        %1350 = vmatpush.bf16.msra.mxu0 0
        %1351 = vmatpush.bf16.msra.mxu0 %v1342
        %1352 = vmatpush.bf16.msra.mxu0 %v1341
        %1353 = vmatmul.bf16.gmra.mxu0 %v1318
        %v1354 = vpop.f32.mrf.mxu0
        %v1355 = vadd.f32 %v1298, %v1354
        %v1356 = vpop.f32.mrf.mxu0
        %1357 = vdwg.mxu0
        %v1362 = vunpack.c.l.b16 %v1234
        %v1363 = vunpack.c.l.b16 %v1235
        %v1364 = vunpack.c.l.b16 %v1236
        %v1365 = vunpack.c.l.b16 %v1237
        %v1366 = vpack.c.b16 %v1363, %v1362
        %v1367 = vpack.c.b16 %v1365, %v1364
        %1370 = vmatpush.bf16.msra.mxu0 0
        %1371 = vmatpush.bf16.msra.mxu0 0
        %1372 = vmatpush.bf16.msra.mxu0 0
        %1373 = vmatpush.bf16.msra.mxu0 0
        %1374 = vmatpush.bf16.msra.mxu0 0
        %1375 = vmatpush.bf16.msra.mxu0 0
        %1376 = vmatpush.bf16.msra.mxu0 %v1367
        %1377 = vmatpush.bf16.msra.mxu0 %v1366
        %1378 = vmatmul.bf16.gmra.mxu0 %v1318
        %v1379 = vpop.f32.mrf.mxu0
        %v1380 = vadd.f32 %v1299, %v1379
        %v1381 = vpop.f32.mrf.mxu0
        %1382 = vdwg.mxu0
        %v1387 = vunpack.c.l.b16 %v1238
        %v1388 = vunpack.c.l.b16 %v1239
        %v1389 = vunpack.c.l.b16 %v1240
        %v1390 = vunpack.c.l.b16 %v1241
        %v1391 = vpack.c.b16 %v1388, %v1387
        %v1392 = vpack.c.b16 %v1390, %v1389
        %1395 = vmatpush.bf16.msra.mxu0 0
        %1396 = vmatpush.bf16.msra.mxu0 0
        %1397 = vmatpush.bf16.msra.mxu0 0
        %1398 = vmatpush.bf16.msra.mxu0 0
        %1399 = vmatpush.bf16.msra.mxu0 0
        %1400 = vmatpush.bf16.msra.mxu0 0
        %1401 = vmatpush.bf16.msra.mxu0 %v1392
        %1402 = vmatpush.bf16.msra.mxu0 %v1391
        %1403 = vmatmul.bf16.gmra.mxu0 %v1318
        %v1404 = vpop.f32.mrf.mxu0
        %v1405 = vadd.f32 %v1300, %v1404
        %v1406 = vpop.f32.mrf.mxu0
        %1407 = vdwg.mxu0
        %v1412 = vperm.slane %v1262, 0
        %v1413 = vperm.slane %v1263, 0
        %v1414 = vperm.slane %v1264, 0
        %v1415 = vperm.slane %v1265, 0
        %v1424 = vunpack.c.l.b16 %v1246
        %v1425 = vunpack.c.l.b16 %v1247
        %v1426 = vunpack.c.l.b16 %v1248
        %v1427 = vunpack.c.l.b16 %v1249
        %v1428 = vpack.c.b16 %v1425, %v1424
        %v1429 = vpack.c.b16 %v1427, %v1426
        %v1433 = vsel %vm1125, %v1292, 0
        %1435 = vmatpush.bf16.msra.mxu0 0
        %1436 = vmatpush.bf16.msra.mxu0 0
        %1437 = vmatpush.bf16.msra.mxu0 0
        %1438 = vmatpush.bf16.msra.mxu0 0
        %1439 = vmatpush.bf16.msra.mxu0 0
        %1440 = vmatpush.bf16.msra.mxu0 0
        %1441 = vmatpush.bf16.msra.mxu0 %v1429
        %1442 = vmatpush.bf16.msra.mxu0 %v1428
        %1443 = vmatmul.bf16.gmra.mxu0 %v1433
        %v1444 = vpop.f32.mrf.mxu0
        %v1445 = vadd.f32 %v1412, %v1444
        %v1446 = vpop.f32.mrf.mxu0
        %1447 = vdwg.mxu0
        %v1452 = vunpack.c.l.b16 %v1250
        %v1453 = vunpack.c.l.b16 %v1251
        %v1454 = vunpack.c.l.b16 %v1252
        %v1455 = vunpack.c.l.b16 %v1253
        %v1456 = vpack.c.b16 %v1453, %v1452
        %v1457 = vpack.c.b16 %v1455, %v1454
        %1460 = vmatpush.bf16.msra.mxu0 0
        %1461 = vmatpush.bf16.msra.mxu0 0
        %1462 = vmatpush.bf16.msra.mxu0 0
        %1463 = vmatpush.bf16.msra.mxu0 0
        %1464 = vmatpush.bf16.msra.mxu0 0
        %1465 = vmatpush.bf16.msra.mxu0 0
        %1466 = vmatpush.bf16.msra.mxu0 %v1457
        %1467 = vmatpush.bf16.msra.mxu0 %v1456
        %1468 = vmatmul.bf16.gmra.mxu0 %v1433
        %v1469 = vpop.f32.mrf.mxu0
        %v1470 = vadd.f32 %v1413, %v1469
        %v1471 = vpop.f32.mrf.mxu0
        %1472 = vdwg.mxu0
        %v1477 = vunpack.c.l.b16 %v1254
        %v1478 = vunpack.c.l.b16 %v1255
        %v1479 = vunpack.c.l.b16 %v1256
        %v1480 = vunpack.c.l.b16 %v1257
        %v1481 = vpack.c.b16 %v1478, %v1477
        %v1482 = vpack.c.b16 %v1480, %v1479
        %1485 = vmatpush.bf16.msra.mxu0 0
        %1486 = vmatpush.bf16.msra.mxu0 0
        %1487 = vmatpush.bf16.msra.mxu0 0
        %1488 = vmatpush.bf16.msra.mxu0 0
        %1489 = vmatpush.bf16.msra.mxu0 0
        %1490 = vmatpush.bf16.msra.mxu0 0
        %1491 = vmatpush.bf16.msra.mxu0 %v1482
        %1492 = vmatpush.bf16.msra.mxu0 %v1481
        %1493 = vmatmul.bf16.gmra.mxu0 %v1433
        %v1494 = vpop.f32.mrf.mxu0
        %v1495 = vadd.f32 %v1414, %v1494
        %v1496 = vpop.f32.mrf.mxu0
        %1497 = vdwg.mxu0
        %v1502 = vunpack.c.l.b16 %v1258
        %v1503 = vunpack.c.l.b16 %v1259
        %v1504 = vunpack.c.l.b16 %v1260
        %v1505 = vunpack.c.l.b16 %v1261
        %v1506 = vpack.c.b16 %v1503, %v1502
        %v1507 = vpack.c.b16 %v1505, %v1504
        %1510 = vmatpush.bf16.msra.mxu0 0
        %1511 = vmatpush.bf16.msra.mxu0 0
        %1512 = vmatpush.bf16.msra.mxu0 0
        %1513 = vmatpush.bf16.msra.mxu0 0
        %1514 = vmatpush.bf16.msra.mxu0 0
        %1515 = vmatpush.bf16.msra.mxu0 0
        %1516 = vmatpush.bf16.msra.mxu0 %v1507
        %1517 = vmatpush.bf16.msra.mxu0 %v1506
        %1518 = vmatmul.bf16.gmra.mxu0 %v1433
        %v1519 = vpop.f32.mrf.mxu0
        %v1520 = vadd.f32 %v1415, %v1519
        %v1521 = vpop.f32.mrf.mxu0
        %1522 = vdwg.mxu0
        %v1527 = vperm.slane %v1282, 0
        %v1528 = vperm.slane %v1283, 0
        %v1529 = vperm.slane %v1284, 0
        %v1530 = vperm.slane %v1285, 0
        %v1539 = vunpack.c.l.b16 %v1266
        %v1540 = vunpack.c.l.b16 %v1267
        %v1541 = vunpack.c.l.b16 %v1268
        %v1542 = vunpack.c.l.b16 %v1269
        %v1543 = vpack.c.b16 %v1540, %v1539
        %v1544 = vpack.c.b16 %v1542, %v1541
        %1547 = vmatpush.bf16.msra.mxu0 0
        %1548 = vmatpush.bf16.msra.mxu0 0
        %1549 = vmatpush.bf16.msra.mxu0 0
        %1550 = vmatpush.bf16.msra.mxu0 0
        %1551 = vmatpush.bf16.msra.mxu0 0
        %1552 = vmatpush.bf16.msra.mxu0 0
        %1553 = vmatpush.bf16.msra.mxu0 %v1544
        %1554 = vmatpush.bf16.msra.mxu0 %v1543
        %1555 = vmatmul.bf16.gmra.mxu0 %v1433
        %v1556 = vpop.f32.mrf.mxu0
        %v1557 = vadd.f32 %v1527, %v1556
        %v1558 = vpop.f32.mrf.mxu0
        %1559 = vdwg.mxu0
        %v1564 = vunpack.c.l.b16 %v1270
        %v1565 = vunpack.c.l.b16 %v1271
        %v1566 = vunpack.c.l.b16 %v1272
        %v1567 = vunpack.c.l.b16 %v1273
        %v1568 = vpack.c.b16 %v1565, %v1564
        %v1569 = vpack.c.b16 %v1567, %v1566
        %1572 = vmatpush.bf16.msra.mxu0 0
        %1573 = vmatpush.bf16.msra.mxu0 0
        %1574 = vmatpush.bf16.msra.mxu0 0
        %1575 = vmatpush.bf16.msra.mxu0 0
        %1576 = vmatpush.bf16.msra.mxu0 0
        %1577 = vmatpush.bf16.msra.mxu0 0
        %1578 = vmatpush.bf16.msra.mxu0 %v1569
        %1579 = vmatpush.bf16.msra.mxu0 %v1568
        %1580 = vmatmul.bf16.gmra.mxu0 %v1433
        %v1581 = vpop.f32.mrf.mxu0
        %v1582 = vadd.f32 %v1528, %v1581
        %v1583 = vpop.f32.mrf.mxu0
        %1584 = vdwg.mxu0
        %v1589 = vunpack.c.l.b16 %v1274
        %v1590 = vunpack.c.l.b16 %v1275
        %v1591 = vunpack.c.l.b16 %v1276
        %v1592 = vunpack.c.l.b16 %v1277
        %v1593 = vpack.c.b16 %v1590, %v1589
        %v1594 = vpack.c.b16 %v1592, %v1591
        %1597 = vmatpush.bf16.msra.mxu0 0
        %1598 = vmatpush.bf16.msra.mxu0 0
        %1599 = vmatpush.bf16.msra.mxu0 0
        %1600 = vmatpush.bf16.msra.mxu0 0
        %1601 = vmatpush.bf16.msra.mxu0 0
        %1602 = vmatpush.bf16.msra.mxu0 0
        %1603 = vmatpush.bf16.msra.mxu0 %v1594
        %1604 = vmatpush.bf16.msra.mxu0 %v1593
        %1605 = vmatmul.bf16.gmra.mxu0 %v1433
        %v1606 = vpop.f32.mrf.mxu0
        %v1607 = vadd.f32 %v1529, %v1606
        %v1608 = vpop.f32.mrf.mxu0
        %1609 = vdwg.mxu0
        %v1614 = vunpack.c.l.b16 %v1278
        %v1615 = vunpack.c.l.b16 %v1279
        %v1616 = vunpack.c.l.b16 %v1280
        %v1617 = vunpack.c.l.b16 %v1281
        %v1618 = vpack.c.b16 %v1615, %v1614
        %v1619 = vpack.c.b16 %v1617, %v1616
        %1622 = vmatpush.bf16.msra.mxu0 0
        %1623 = vmatpush.bf16.msra.mxu0 0
        %1624 = vmatpush.bf16.msra.mxu0 0
        %1625 = vmatpush.bf16.msra.mxu0 0
        %1626 = vmatpush.bf16.msra.mxu0 0
        %1627 = vmatpush.bf16.msra.mxu0 0
        %1628 = vmatpush.bf16.msra.mxu0 %v1619
        %1629 = vmatpush.bf16.msra.mxu0 %v1618
        %1630 = vmatmul.bf16.gmra.mxu0 %v1433
        %v1631 = vpop.f32.mrf.mxu0
        %v1632 = vadd.f32 %v1530, %v1631
        %v1633 = vpop.f32.mrf.mxu0
        %1634 = vdwg.mxu0
        %v1635 = vmul.f32 %v1330, 0.35355338
        %v1636 = vmul.f32 %v1355, 0.35355338
        %v1637 = vmul.f32 %v1380, 0.35355338
        %v1638 = vmul.f32 %v1405, 0.35355338
        %v1639 = vpack.c.bf16 %v1635, %v1635
        %v1640 = vpack.c.bf16 %v1636, %v1636
        %v1641 = vpack.c.bf16 %v1637, %v1637
        %v1642 = vpack.c.bf16 %v1638, %v1638
        %v1643 = vpack.c.bf16 %v1445, %v1445
        %v1644 = vpack.c.bf16 %v1470, %v1470
        %v1645 = vpack.c.bf16 %v1495, %v1495
        %v1646 = vpack.c.bf16 %v1520, %v1520
        %v1647 = vpack.c.bf16 %v1557, %v1557
        %v1648 = vpack.c.bf16 %v1582, %v1582
        %v1649 = vpack.c.bf16 %v1607, %v1607
        %v1650 = vpack.c.bf16 %v1632, %v1632
        %vm1651 = vcmask 64512
        %v1653 = vsel %vm1651, %v1639, 0
        %v1656 = vsel %vm1651, %v1643, 0
        %1658 = vmatpush.bf16.xpose.msra.mxu0 0
        %1659 = vmatpush.bf16.xpose.msra.mxu0 0
        %1660 = vmatpush.bf16.xpose.msra.mxu0 0
        %1661 = vmatpush.bf16.xpose.msra.mxu0 0
        %1662 = vmatpush.bf16.xpose.msra.mxu0 0
        %1663 = vmatpush.bf16.xpose.msra.mxu0 0
        %1664 = vmatpush.bf16.xpose.msra.mxu0 0
        %1665 = vmatpush.bf16.xpose.msra.mxu0 %v1656
        %1666 = vmatmul.bf16.gmra.mxu0 %v1653
        %v1667 = vpop.f32.mrf.mxu0
        %v1668 = vadd.f32 %v1118, %v1667
        %v1669 = vpop.f32.mrf.mxu0
        %1670 = vdwg.mxu0
        %v1672 = vsel %vm1651, %v1640, 0
        %v1675 = vsel %vm1651, %v1644, 0
        %1677 = vmatpush.bf16.xpose.msra.mxu0 0
        %1678 = vmatpush.bf16.xpose.msra.mxu0 0
        %1679 = vmatpush.bf16.xpose.msra.mxu0 0
        %1680 = vmatpush.bf16.xpose.msra.mxu0 0
        %1681 = vmatpush.bf16.xpose.msra.mxu0 0
        %1682 = vmatpush.bf16.xpose.msra.mxu0 0
        %1683 = vmatpush.bf16.xpose.msra.mxu0 0
        %1684 = vmatpush.bf16.xpose.msra.mxu0 %v1675
        %1685 = vmatmul.bf16.gmra.mxu0 %v1672
        %v1686 = vpop.f32.mrf.mxu0
        %v1687 = vadd.f32 %v1118, %v1686
        %v1688 = vpop.f32.mrf.mxu0
        %1689 = vdwg.mxu0
        %v1691 = vsel %vm1651, %v1641, 0
        %v1694 = vsel %vm1651, %v1645, 0
        %1696 = vmatpush.bf16.xpose.msra.mxu0 0
        %1697 = vmatpush.bf16.xpose.msra.mxu0 0
        %1698 = vmatpush.bf16.xpose.msra.mxu0 0
        %1699 = vmatpush.bf16.xpose.msra.mxu0 0
        %1700 = vmatpush.bf16.xpose.msra.mxu0 0
        %1701 = vmatpush.bf16.xpose.msra.mxu0 0
        %1702 = vmatpush.bf16.xpose.msra.mxu0 0
        %1703 = vmatpush.bf16.xpose.msra.mxu0 %v1694
        %1704 = vmatmul.bf16.gmra.mxu0 %v1691
        %v1705 = vpop.f32.mrf.mxu0
        %v1706 = vadd.f32 %v1118, %v1705
        %v1707 = vpop.f32.mrf.mxu0
        %1708 = vdwg.mxu0
        %v1710 = vsel %vm1651, %v1642, 0
        %v1713 = vsel %vm1651, %v1646, 0
        %1715 = vmatpush.bf16.xpose.msra.mxu0 0
        %1716 = vmatpush.bf16.xpose.msra.mxu0 0
        %1717 = vmatpush.bf16.xpose.msra.mxu0 0
        %1718 = vmatpush.bf16.xpose.msra.mxu0 0
        %1719 = vmatpush.bf16.xpose.msra.mxu0 0
        %1720 = vmatpush.bf16.xpose.msra.mxu0 0
        %1721 = vmatpush.bf16.xpose.msra.mxu0 0
        %1722 = vmatpush.bf16.xpose.msra.mxu0 %v1713
        %1723 = vmatmul.bf16.gmra.mxu0 %v1710
        %v1724 = vpop.f32.mrf.mxu0
        %v1725 = vadd.f32 %v1118, %v1724
        %v1726 = vpop.f32.mrf.mxu0
        %1727 = vdwg.mxu0
        %v1728 = vsel %vm1651, %v1668, -inf
        %1729 = vmax.xlane.f32.xlu0 %v1728
        %v1730 = vpop.xlane.xlu0 %1729
        %v1731 = vsel %vm1651, %v1687, -inf
        %1732 = vmax.xlane.f32.xlu0 %v1731
        %v1733 = vpop.xlane.xlu0 %1732
        %v1734 = vsel %vm1651, %v1706, -inf
        %1735 = vmax.xlane.f32.xlu0 %v1734
        %v1736 = vpop.xlane.xlu0 %1735
        %v1737 = vsel %vm1651, %v1725, -inf
        %1738 = vmax.xlane.f32.xlu0 %v1737
        %v1739 = vpop.xlane.xlu0 %1738
        %v1740 = vsub.f32 %v1668, %v1730
        %v1741 = vsub.f32 %v1687, %v1733
        %v1742 = vsub.f32 %v1706, %v1736
        %v1743 = vsub.f32 %v1725, %v1739
        %v1744 = vmul.f32 %v1740, 1.442695
        %v1745 = vpow.pop %v1744
        %v1746 = vmul.f32 %v1741, 1.442695
        %v1747 = vpow.pop %v1746
        %v1748 = vmul.f32 %v1742, 1.442695
        %v1749 = vpow.pop %v1748
        %v1750 = vmul.f32 %v1743, 1.442695
        %v1751 = vpow.pop %v1750
        %v1752 = vsel %vm1651, %v1745, 0.0
        %1753 = vadd.xlane.f32.xlu0 %v1752
        %v1754 = vpop.xlane.xlu0 %1753
        %v1755 = vsel %vm1651, %v1747, 0.0
        %1756 = vadd.xlane.f32.xlu0 %v1755
        %v1757 = vpop.xlane.xlu0 %1756
        %v1758 = vsel %vm1651, %v1749, 0.0
        %1759 = vadd.xlane.f32.xlu0 %v1758
        %v1760 = vpop.xlane.xlu0 %1759
        %v1761 = vsel %vm1651, %v1751, 0.0
        %1762 = vadd.xlane.f32.xlu0 %v1761
        %v1763 = vpop.xlane.xlu0 %1762
        %v1764 = vrcp.pop %v1754
        %v1765 = vrcp.pop %v1757
        %v1766 = vrcp.pop %v1760
        %v1767 = vrcp.pop %v1763
        %v1768 = vmul.f32 %v1745, %v1764
        %v1769 = vmul.f32 %v1747, %v1765
        %v1770 = vmul.f32 %v1749, %v1766
        %v1771 = vmul.f32 %v1751, %v1767
        %v1772 = vpack.c.bf16 %v1768, %v1768
        %v1773 = vpack.c.bf16 %v1769, %v1769
        %v1774 = vpack.c.bf16 %v1770, %v1770
        %v1775 = vpack.c.bf16 %v1771, %v1771
        %v1777 = vsel %vm1651, %v1772, 0
        %vm1779 = vcmask 1043456
        %v1781 = vsel %vm1779, %v1647, 0
        %1783 = vmatpush.bf16.msra.mxu0 0
        %1784 = vmatpush.bf16.msra.mxu0 0
        %1785 = vmatpush.bf16.msra.mxu0 0
        %1786 = vmatpush.bf16.msra.mxu0 0
        %1787 = vmatpush.bf16.msra.mxu0 0
        %1788 = vmatpush.bf16.msra.mxu0 0
        %1789 = vmatpush.bf16.msra.mxu0 0
        %1790 = vmatpush.bf16.msra.mxu0 %v1781
        %1791 = vmatmul.bf16.gmra.mxu0 %v1777
        %v1792 = vpop.f32.mrf.mxu0
        %v1793 = vadd.f32 0.0, %v1792
        %v1794 = vpop.f32.mrf.mxu0
        %1795 = vdwg.mxu0
        %v1797 = vsel %vm1651, %v1773, 0
        %v1800 = vsel %vm1779, %v1648, 0
        %1802 = vmatpush.bf16.msra.mxu0 0
        %1803 = vmatpush.bf16.msra.mxu0 0
        %1804 = vmatpush.bf16.msra.mxu0 0
        %1805 = vmatpush.bf16.msra.mxu0 0
        %1806 = vmatpush.bf16.msra.mxu0 0
        %1807 = vmatpush.bf16.msra.mxu0 0
        %1808 = vmatpush.bf16.msra.mxu0 0
        %1809 = vmatpush.bf16.msra.mxu0 %v1800
        %1810 = vmatmul.bf16.gmra.mxu0 %v1797
        %v1811 = vpop.f32.mrf.mxu0
        %v1812 = vadd.f32 0.0, %v1811
        %v1813 = vpop.f32.mrf.mxu0
        %1814 = vdwg.mxu0
        %v1816 = vsel %vm1651, %v1774, 0
        %v1819 = vsel %vm1779, %v1649, 0
        %1821 = vmatpush.bf16.msra.mxu0 0
        %1822 = vmatpush.bf16.msra.mxu0 0
        %1823 = vmatpush.bf16.msra.mxu0 0
        %1824 = vmatpush.bf16.msra.mxu0 0
        %1825 = vmatpush.bf16.msra.mxu0 0
        %1826 = vmatpush.bf16.msra.mxu0 0
        %1827 = vmatpush.bf16.msra.mxu0 0
        %1828 = vmatpush.bf16.msra.mxu0 %v1819
        %1829 = vmatmul.bf16.gmra.mxu0 %v1816
        %v1830 = vpop.f32.mrf.mxu0
        %v1831 = vadd.f32 0.0, %v1830
        %v1832 = vpop.f32.mrf.mxu0
        %1833 = vdwg.mxu0
        %v1835 = vsel %vm1651, %v1775, 0
        %v1838 = vsel %vm1779, %v1650, 0
        %1840 = vmatpush.bf16.msra.mxu0 0
        %1841 = vmatpush.bf16.msra.mxu0 0
        %1842 = vmatpush.bf16.msra.mxu0 0
        %1843 = vmatpush.bf16.msra.mxu0 0
        %1844 = vmatpush.bf16.msra.mxu0 0
        %1845 = vmatpush.bf16.msra.mxu0 0
        %1846 = vmatpush.bf16.msra.mxu0 0
        %1847 = vmatpush.bf16.msra.mxu0 %v1838
        %1848 = vmatmul.bf16.gmra.mxu0 %v1835
        %v1849 = vpop.f32.mrf.mxu0
        %v1850 = vadd.f32 0.0, %v1849
        %v1851 = vpop.f32.mrf.mxu0
        %1852 = vdwg.mxu0
        %v1853 = vpack.c.bf16 %v1793, %v1793
        %v1854 = vpack.c.bf16 %v1812, %v1812
        %v1855 = vpack.c.bf16 %v1831, %v1831
        %v1856 = vpack.c.bf16 %v1850, %v1850
        %v1858 = vsel %vm1651, %v1853, 0
        %v1861 = vsel %vm1779, %v1286, 0
        %1863 = vmatpush.bf16.msra.mxu0 0
        %1864 = vmatpush.bf16.msra.mxu0 0
        %1865 = vmatpush.bf16.msra.mxu0 0
        %1866 = vmatpush.bf16.msra.mxu0 0
        %1867 = vmatpush.bf16.msra.mxu0 0
        %1868 = vmatpush.bf16.msra.mxu0 0
        %1869 = vmatpush.bf16.msra.mxu0 0
        %1870 = vmatpush.bf16.msra.mxu0 %v1861
        %1871 = vmatmul.bf16.gmra.mxu0 %v1858
        %v1872 = vpop.f32.mrf.mxu0
        %v1873 = vadd.f32 0.0, %v1872
        %v1874 = vpop.f32.mrf.mxu0
        %1875 = vdwg.mxu0
        %v1877 = vsel %vm1651, %v1854, 0
        %v1880 = vsel %vm1779, %v1287, 0
        %1882 = vmatpush.bf16.msra.mxu0 0
        %1883 = vmatpush.bf16.msra.mxu0 0
        %1884 = vmatpush.bf16.msra.mxu0 0
        %1885 = vmatpush.bf16.msra.mxu0 0
        %1886 = vmatpush.bf16.msra.mxu0 0
        %1887 = vmatpush.bf16.msra.mxu0 0
        %1888 = vmatpush.bf16.msra.mxu0 0
        %1889 = vmatpush.bf16.msra.mxu0 %v1880
        %1890 = vmatmul.bf16.gmra.mxu0 %v1877
        %v1891 = vpop.f32.mrf.mxu0
        %v1892 = vadd.f32 0.0, %v1891
        %v1893 = vpop.f32.mrf.mxu0
        %1894 = vdwg.mxu0
        %v1896 = vsel %vm1651, %v1855, 0
        %v1899 = vsel %vm1779, %v1288, 0
        %1901 = vmatpush.bf16.msra.mxu0 0
        %1902 = vmatpush.bf16.msra.mxu0 0
        %1903 = vmatpush.bf16.msra.mxu0 0
        %1904 = vmatpush.bf16.msra.mxu0 0
        %1905 = vmatpush.bf16.msra.mxu0 0
        %1906 = vmatpush.bf16.msra.mxu0 0
        %1907 = vmatpush.bf16.msra.mxu0 0
        %1908 = vmatpush.bf16.msra.mxu0 %v1899
        %1909 = vmatmul.bf16.gmra.mxu0 %v1896
        %v1910 = vpop.f32.mrf.mxu0
        %v1911 = vadd.f32 0.0, %v1910
        %v1912 = vpop.f32.mrf.mxu0
        %1913 = vdwg.mxu0
        %v1915 = vsel %vm1651, %v1856, 0
        %v1918 = vsel %vm1779, %v1289, 0
        %1920 = vmatpush.bf16.msra.mxu0 0
        %1921 = vmatpush.bf16.msra.mxu0 0
        %1922 = vmatpush.bf16.msra.mxu0 0
        %1923 = vmatpush.bf16.msra.mxu0 0
        %1924 = vmatpush.bf16.msra.mxu0 0
        %1925 = vmatpush.bf16.msra.mxu0 0
        %1926 = vmatpush.bf16.msra.mxu0 0
        %1927 = vmatpush.bf16.msra.mxu0 %v1918
        %1928 = vmatmul.bf16.gmra.mxu0 %v1915
        %v1929 = vpop.f32.mrf.mxu0
        %v1930 = vadd.f32 0.0, %v1929
        %v1931 = vpop.f32.mrf.mxu0
        %1932 = vdwg.mxu0
        %v1933 = vsel %vm1125, %v1873, 0.0
        %v1934 = vsel %vm1125, %v1892, 0.0
        %v1935 = vadd.f32 %v1933, %v1934
        %v1936 = vsel %vm1125, %v1911, 0.0
        %v1937 = vadd.f32 %v1935, %v1936
        %v1938 = vsel %vm1125, %v1930, 0.0
        %v1939 = vadd.f32 %v1937, %v1938
        %v1941 = vperm.slane %v1290, 0
        %v1943 = vadd.f32 %v1939, %v1941
        %v1944 = vadd.f32 %v1112, %v1943
        %v1945 = vld [vmem:[%s55] sm:$0x1]
        %v1946 = vld [vmem:[%s57] sm:$0x1]
        %v1947 = vsel %vm1125, %v1944, 0.0
        %1948 = vadd.xlane.f32.xlu0 %v1947
        %v1949 = vpop.xlane.xlu0 %1948
        %v1950 = vmul.f32 %v1949, %v1135
        %v1951 = vsub.f32 %v1944, %v1950
        %v1952 = vmul.f32 %v1951, %v1951
        %v1953 = vsel %vm1125, %v1952, 0.0
        %1954 = vadd.xlane.f32.xlu0 %v1953
        %v1955 = vpop.xlane.xlu0 %1954
        %v1956 = vmul.f32 %v1955, %v1148
        %v1958 = vperm.slane %v1945, 0
        %v1960 = vmul.f32 %v1958, %v1951
        %v1961 = vrsqrt.pop %v1956
        %v1962 = vmul.f32 %v1961, %v1956
        %v1963 = vmul.f32 %v1962, %v1961
        %v1964 = vmul.f32 0.5, %v1963
        %v1965 = vsub.f32 1.5, %v1964
        %v1966 = vmul.f32 %v1961, %v1965
        %v1967 = vmul.f32 %v1956, %v1966
        %vm1968 = vcmp.eq.f32.partialorder %v1956, inf
        %v1969 = vsel %vm1968, %v1956, %v1967
        %vm1970 = vcmp.eq.f32.partialorder %v1956, 0.0
        %v1971 = vand.u32 %v1956, 2147483648
        %v1972 = vsel %vm1970, %v1971, %v1969
        %v1973 = vadd.f32 %v1972, 1e-06
        %v1974 = vrcp.pop %v1973
        %v1975 = vmul.f32 %v1973, %v1974
        %v1976 = vsub.f32 1.0, %v1975
        %v1977 = vmul.f32 %v1974, %v1976
        %v1978 = vadd.f32 %v1974, %v1977
        %vm1979 = vweird.f32 %v1973
        %vm1980 = vweird.f32 %v1974
        %vm1981 = vmor %vm1979, %vm1980
        %v1982 = vsel %vm1981, %v1974, %v1978
        %v1983 = vand.u32 2147483647, %v1973
        %vm1984 = vcmp.eq.f32.partialorder %v1983, 8.507059e+37
        %v1985 = vand.u32 %v1973, 2147483648
        %v1986 = vor.u32 1.1754944e-38, %v1985
        %v1987 = vsel %vm1984, %v1986, %v1982
        %v1988 = vmul.f32 %v1960, %v1987
        %v1990 = vperm.slane %v1946, 0
        %v1992 = vadd.f32 %v1988, %v1990
        %v1993 = vld [vmem:[%s27] sm:$0xf]
        %v1994 = vld [vmem:[%s27 + $0x4] sm:$0xf]
        %v1995 = vld [vmem:[%s27 + $0x8] sm:$0xf]
        %v1996 = vld [vmem:[%s27 + $0xc] sm:$0xf]
        %v1997 = vld [vmem:[%s27 + $0x10] sm:$0xf]
        %v1998 = vld [vmem:[%s27 + $0x14] sm:$0xf]
        %v1999 = vld [vmem:[%s27 + $0x18] sm:$0xf]
        %v2000 = vld [vmem:[%s27 + $0x1c] sm:$0xf]
        %v2001 = vld [vmem:[%s27 + $0x20] sm:$0xf]
        %v2002 = vld [vmem:[%s27 + $0x24] sm:$0xf]
        %v2003 = vld [vmem:[%s27 + $0x28] sm:$0xf]
        %v2004 = vld [vmem:[%s27 + $0x2c] sm:$0xf]
        %v2005 = vld [vmem:[%s27 + $0x30] sm:$0xf]
        %v2006 = vld [vmem:[%s27 + $0x34] sm:$0xf]
        %v2007 = vld [vmem:[%s27 + $0x38] sm:$0xf]
        %v2008 = vld [vmem:[%s27 + $0x3c] sm:$0xf]
        %v2009 = vld [vmem:[%s29] sm:$0x1]
        %v2010 = vld [vmem:[%s29 + $0x1] sm:$0x1]
        %v2011 = vld [vmem:[%s29 + $0x2] sm:$0x1]
        %v2012 = vld [vmem:[%s29 + $0x3] sm:$0x1]
        %v2013 = vld [vmem:[%s31] sm:$0xf]
        %v2014 = vld [vmem:[%s31 + $0x4] sm:$0xf]
        %v2015 = vld [vmem:[%s31 + $0x8] sm:$0xf]
        %v2016 = vld [vmem:[%s31 + $0xc] sm:$0xf]
        %v2017 = vld [vmem:[%s31 + $0x10] sm:$0xf]
        %v2018 = vld [vmem:[%s31 + $0x14] sm:$0xf]
        %v2019 = vld [vmem:[%s31 + $0x18] sm:$0xf]
        %v2020 = vld [vmem:[%s31 + $0x1c] sm:$0xf]
        %v2021 = vld [vmem:[%s31 + $0x20] sm:$0xf]
        %v2022 = vld [vmem:[%s31 + $0x24] sm:$0xf]
        %v2023 = vld [vmem:[%s31 + $0x28] sm:$0xf]
        %v2024 = vld [vmem:[%s31 + $0x2c] sm:$0xf]
        %v2025 = vld [vmem:[%s31 + $0x30] sm:$0xf]
        %v2026 = vld [vmem:[%s31 + $0x34] sm:$0xf]
        %v2027 = vld [vmem:[%s31 + $0x38] sm:$0xf]
        %v2028 = vld [vmem:[%s31 + $0x3c] sm:$0xf]
        %v2029 = vld [vmem:[%s33] sm:$0x1]
        %v2030 = vld [vmem:[%s33 + $0x1] sm:$0x1]
        %v2031 = vld [vmem:[%s33 + $0x2] sm:$0x1]
        %v2032 = vld [vmem:[%s33 + $0x3] sm:$0x1]
        %v2033 = vld [vmem:[%s35] sm:$0xf]
        %v2034 = vld [vmem:[%s35 + $0x4] sm:$0xf]
        %v2035 = vld [vmem:[%s35 + $0x8] sm:$0xf]
        %v2036 = vld [vmem:[%s35 + $0xc] sm:$0xf]
        %v2037 = vld [vmem:[%s35 + $0x10] sm:$0xf]
        %v2038 = vld [vmem:[%s35 + $0x14] sm:$0xf]
        %v2039 = vld [vmem:[%s35 + $0x18] sm:$0xf]
        %v2040 = vld [vmem:[%s35 + $0x1c] sm:$0xf]
        %v2041 = vld [vmem:[%s35 + $0x20] sm:$0xf]
        %v2042 = vld [vmem:[%s35 + $0x24] sm:$0xf]
        %v2043 = vld [vmem:[%s35 + $0x28] sm:$0xf]
        %v2044 = vld [vmem:[%s35 + $0x2c] sm:$0xf]
        %v2045 = vld [vmem:[%s35 + $0x30] sm:$0xf]
        %v2046 = vld [vmem:[%s35 + $0x34] sm:$0xf]
        %v2047 = vld [vmem:[%s35 + $0x38] sm:$0xf]
        %v2048 = vld [vmem:[%s35 + $0x3c] sm:$0xf]
        %v2049 = vld [vmem:[%s37] sm:$0x1]
        %v2050 = vld [vmem:[%s37 + $0x1] sm:$0x1]
        %v2051 = vld [vmem:[%s37 + $0x2] sm:$0x1]
        %v2052 = vld [vmem:[%s37 + $0x3] sm:$0x1]
        %v2053 = vld [vmem:[%s39] sm:$0xf]
        %v2054 = vld [vmem:[%s39 + $0x4] sm:$0xf]
        %v2055 = vld [vmem:[%s39 + $0x8] sm:$0xf]
        %v2056 = vld [vmem:[%s39 + $0xc] sm:$0xf]
        %v2057 = vld [vmem:[%s41] sm:$0x1]
        %v2058 = vpack.c.bf16 %v1992, %v1992
        %v2059 = vpack.c.bf16 %v1114, %v1114
        %v2064 = vperm.slane %v2009, 0
        %v2065 = vperm.slane %v2010, 0
        %v2066 = vperm.slane %v2011, 0
        %v2067 = vperm.slane %v2012, 0
        %v2076 = vunpack.c.l.b16 %v1993
        %v2077 = vunpack.c.l.b16 %v1994
        %v2078 = vunpack.c.l.b16 %v1995
        %v2079 = vunpack.c.l.b16 %v1996
        %v2080 = vpack.c.b16 %v2077, %v2076
        %v2081 = vpack.c.b16 %v2079, %v2078
        %v2085 = vsel %vm1125, %v2058, 0
        %2087 = vmatpush.bf16.msra.mxu0 0
        %2088 = vmatpush.bf16.msra.mxu0 0
        %2089 = vmatpush.bf16.msra.mxu0 0
        %2090 = vmatpush.bf16.msra.mxu0 0
        %2091 = vmatpush.bf16.msra.mxu0 0
        %2092 = vmatpush.bf16.msra.mxu0 0
        %2093 = vmatpush.bf16.msra.mxu0 %v2081
        %2094 = vmatpush.bf16.msra.mxu0 %v2080
        %2095 = vmatmul.bf16.gmra.mxu0 %v2085
        %v2096 = vpop.f32.mrf.mxu0
        %v2097 = vadd.f32 %v2064, %v2096
        %v2098 = vpop.f32.mrf.mxu0
        %2099 = vdwg.mxu0
        %v2104 = vunpack.c.l.b16 %v1997
        %v2105 = vunpack.c.l.b16 %v1998
        %v2106 = vunpack.c.l.b16 %v1999
        %v2107 = vunpack.c.l.b16 %v2000
        %v2108 = vpack.c.b16 %v2105, %v2104
        %v2109 = vpack.c.b16 %v2107, %v2106
        %2112 = vmatpush.bf16.msra.mxu0 0
        %2113 = vmatpush.bf16.msra.mxu0 0
        %2114 = vmatpush.bf16.msra.mxu0 0
        %2115 = vmatpush.bf16.msra.mxu0 0
        %2116 = vmatpush.bf16.msra.mxu0 0
        %2117 = vmatpush.bf16.msra.mxu0 0
        %2118 = vmatpush.bf16.msra.mxu0 %v2109
        %2119 = vmatpush.bf16.msra.mxu0 %v2108
        %2120 = vmatmul.bf16.gmra.mxu0 %v2085
        %v2121 = vpop.f32.mrf.mxu0
        %v2122 = vadd.f32 %v2065, %v2121
        %v2123 = vpop.f32.mrf.mxu0
        %2124 = vdwg.mxu0
        %v2129 = vunpack.c.l.b16 %v2001
        %v2130 = vunpack.c.l.b16 %v2002
        %v2131 = vunpack.c.l.b16 %v2003
        %v2132 = vunpack.c.l.b16 %v2004
        %v2133 = vpack.c.b16 %v2130, %v2129
        %v2134 = vpack.c.b16 %v2132, %v2131
        %2137 = vmatpush.bf16.msra.mxu0 0
        %2138 = vmatpush.bf16.msra.mxu0 0
        %2139 = vmatpush.bf16.msra.mxu0 0
        %2140 = vmatpush.bf16.msra.mxu0 0
        %2141 = vmatpush.bf16.msra.mxu0 0
        %2142 = vmatpush.bf16.msra.mxu0 0
        %2143 = vmatpush.bf16.msra.mxu0 %v2134
        %2144 = vmatpush.bf16.msra.mxu0 %v2133
        %2145 = vmatmul.bf16.gmra.mxu0 %v2085
        %v2146 = vpop.f32.mrf.mxu0
        %v2147 = vadd.f32 %v2066, %v2146
        %v2148 = vpop.f32.mrf.mxu0
        %2149 = vdwg.mxu0
        %v2154 = vunpack.c.l.b16 %v2005
        %v2155 = vunpack.c.l.b16 %v2006
        %v2156 = vunpack.c.l.b16 %v2007
        %v2157 = vunpack.c.l.b16 %v2008
        %v2158 = vpack.c.b16 %v2155, %v2154
        %v2159 = vpack.c.b16 %v2157, %v2156
        %2162 = vmatpush.bf16.msra.mxu0 0
        %2163 = vmatpush.bf16.msra.mxu0 0
        %2164 = vmatpush.bf16.msra.mxu0 0
        %2165 = vmatpush.bf16.msra.mxu0 0
        %2166 = vmatpush.bf16.msra.mxu0 0
        %2167 = vmatpush.bf16.msra.mxu0 0
        %2168 = vmatpush.bf16.msra.mxu0 %v2159
        %2169 = vmatpush.bf16.msra.mxu0 %v2158
        %2170 = vmatmul.bf16.gmra.mxu0 %v2085
        %v2171 = vpop.f32.mrf.mxu0
        %v2172 = vadd.f32 %v2067, %v2171
        %v2173 = vpop.f32.mrf.mxu0
        %2174 = vdwg.mxu0
        %v2179 = vperm.slane %v2029, 0
        %v2180 = vperm.slane %v2030, 0
        %v2181 = vperm.slane %v2031, 0
        %v2182 = vperm.slane %v2032, 0
        %v2191 = vunpack.c.l.b16 %v2013
        %v2192 = vunpack.c.l.b16 %v2014
        %v2193 = vunpack.c.l.b16 %v2015
        %v2194 = vunpack.c.l.b16 %v2016
        %v2195 = vpack.c.b16 %v2192, %v2191
        %v2196 = vpack.c.b16 %v2194, %v2193
        %v2200 = vsel %vm1125, %v2059, 0
        %2202 = vmatpush.bf16.msra.mxu0 0
        %2203 = vmatpush.bf16.msra.mxu0 0
        %2204 = vmatpush.bf16.msra.mxu0 0
        %2205 = vmatpush.bf16.msra.mxu0 0
        %2206 = vmatpush.bf16.msra.mxu0 0
        %2207 = vmatpush.bf16.msra.mxu0 0
        %2208 = vmatpush.bf16.msra.mxu0 %v2196
        %2209 = vmatpush.bf16.msra.mxu0 %v2195
        %2210 = vmatmul.bf16.gmra.mxu0 %v2200
        %v2211 = vpop.f32.mrf.mxu0
        %v2212 = vadd.f32 %v2179, %v2211
        %v2213 = vpop.f32.mrf.mxu0
        %2214 = vdwg.mxu0
        %v2219 = vunpack.c.l.b16 %v2017
        %v2220 = vunpack.c.l.b16 %v2018
        %v2221 = vunpack.c.l.b16 %v2019
        %v2222 = vunpack.c.l.b16 %v2020
        %v2223 = vpack.c.b16 %v2220, %v2219
        %v2224 = vpack.c.b16 %v2222, %v2221
        %2227 = vmatpush.bf16.msra.mxu0 0
        %2228 = vmatpush.bf16.msra.mxu0 0
        %2229 = vmatpush.bf16.msra.mxu0 0
        %2230 = vmatpush.bf16.msra.mxu0 0
        %2231 = vmatpush.bf16.msra.mxu0 0
        %2232 = vmatpush.bf16.msra.mxu0 0
        %2233 = vmatpush.bf16.msra.mxu0 %v2224
        %2234 = vmatpush.bf16.msra.mxu0 %v2223
        %2235 = vmatmul.bf16.gmra.mxu0 %v2200
        %v2236 = vpop.f32.mrf.mxu0
        %v2237 = vadd.f32 %v2180, %v2236
        %v2238 = vpop.f32.mrf.mxu0
        %2239 = vdwg.mxu0
        %v2244 = vunpack.c.l.b16 %v2021
        %v2245 = vunpack.c.l.b16 %v2022
        %v2246 = vunpack.c.l.b16 %v2023
        %v2247 = vunpack.c.l.b16 %v2024
        %v2248 = vpack.c.b16 %v2245, %v2244
        %v2249 = vpack.c.b16 %v2247, %v2246
        %2252 = vmatpush.bf16.msra.mxu0 0
        %2253 = vmatpush.bf16.msra.mxu0 0
        %2254 = vmatpush.bf16.msra.mxu0 0
        %2255 = vmatpush.bf16.msra.mxu0 0
        %2256 = vmatpush.bf16.msra.mxu0 0
        %2257 = vmatpush.bf16.msra.mxu0 0
        %2258 = vmatpush.bf16.msra.mxu0 %v2249
        %2259 = vmatpush.bf16.msra.mxu0 %v2248
        %2260 = vmatmul.bf16.gmra.mxu0 %v2200
        %v2261 = vpop.f32.mrf.mxu0
        %v2262 = vadd.f32 %v2181, %v2261
        %v2263 = vpop.f32.mrf.mxu0
        %2264 = vdwg.mxu0
        %v2269 = vunpack.c.l.b16 %v2025
        %v2270 = vunpack.c.l.b16 %v2026
        %v2271 = vunpack.c.l.b16 %v2027
        %v2272 = vunpack.c.l.b16 %v2028
        %v2273 = vpack.c.b16 %v2270, %v2269
        %v2274 = vpack.c.b16 %v2272, %v2271
        %2277 = vmatpush.bf16.msra.mxu0 0
        %2278 = vmatpush.bf16.msra.mxu0 0
        %2279 = vmatpush.bf16.msra.mxu0 0
        %2280 = vmatpush.bf16.msra.mxu0 0
        %2281 = vmatpush.bf16.msra.mxu0 0
        %2282 = vmatpush.bf16.msra.mxu0 0
        %2283 = vmatpush.bf16.msra.mxu0 %v2274
        %2284 = vmatpush.bf16.msra.mxu0 %v2273
        %2285 = vmatmul.bf16.gmra.mxu0 %v2200
        %v2286 = vpop.f32.mrf.mxu0
        %v2287 = vadd.f32 %v2182, %v2286
        %v2288 = vpop.f32.mrf.mxu0
        %2289 = vdwg.mxu0
        %v2294 = vperm.slane %v2049, 0
        %v2295 = vperm.slane %v2050, 0
        %v2296 = vperm.slane %v2051, 0
        %v2297 = vperm.slane %v2052, 0
        %v2306 = vunpack.c.l.b16 %v2033
        %v2307 = vunpack.c.l.b16 %v2034
        %v2308 = vunpack.c.l.b16 %v2035
        %v2309 = vunpack.c.l.b16 %v2036
        %v2310 = vpack.c.b16 %v2307, %v2306
        %v2311 = vpack.c.b16 %v2309, %v2308
        %2314 = vmatpush.bf16.msra.mxu0 0
        %2315 = vmatpush.bf16.msra.mxu0 0
        %2316 = vmatpush.bf16.msra.mxu0 0
        %2317 = vmatpush.bf16.msra.mxu0 0
        %2318 = vmatpush.bf16.msra.mxu0 0
        %2319 = vmatpush.bf16.msra.mxu0 0
        %2320 = vmatpush.bf16.msra.mxu0 %v2311
        %2321 = vmatpush.bf16.msra.mxu0 %v2310
        %2322 = vmatmul.bf16.gmra.mxu0 %v2200
        %v2323 = vpop.f32.mrf.mxu0
        %v2324 = vadd.f32 %v2294, %v2323
        %v2325 = vpop.f32.mrf.mxu0
        %2326 = vdwg.mxu0
        %v2331 = vunpack.c.l.b16 %v2037
        %v2332 = vunpack.c.l.b16 %v2038
        %v2333 = vunpack.c.l.b16 %v2039
        %v2334 = vunpack.c.l.b16 %v2040
        %v2335 = vpack.c.b16 %v2332, %v2331
        %v2336 = vpack.c.b16 %v2334, %v2333
        %2339 = vmatpush.bf16.msra.mxu0 0
        %2340 = vmatpush.bf16.msra.mxu0 0
        %2341 = vmatpush.bf16.msra.mxu0 0
        %2342 = vmatpush.bf16.msra.mxu0 0
        %2343 = vmatpush.bf16.msra.mxu0 0
        %2344 = vmatpush.bf16.msra.mxu0 0
        %2345 = vmatpush.bf16.msra.mxu0 %v2336
        %2346 = vmatpush.bf16.msra.mxu0 %v2335
        %2347 = vmatmul.bf16.gmra.mxu0 %v2200
        %v2348 = vpop.f32.mrf.mxu0
        %v2349 = vadd.f32 %v2295, %v2348
        %v2350 = vpop.f32.mrf.mxu0
        %2351 = vdwg.mxu0
        %v2356 = vunpack.c.l.b16 %v2041
        %v2357 = vunpack.c.l.b16 %v2042
        %v2358 = vunpack.c.l.b16 %v2043
        %v2359 = vunpack.c.l.b16 %v2044
        %v2360 = vpack.c.b16 %v2357, %v2356
        %v2361 = vpack.c.b16 %v2359, %v2358
        %2364 = vmatpush.bf16.msra.mxu0 0
        %2365 = vmatpush.bf16.msra.mxu0 0
        %2366 = vmatpush.bf16.msra.mxu0 0
        %2367 = vmatpush.bf16.msra.mxu0 0
        %2368 = vmatpush.bf16.msra.mxu0 0
        %2369 = vmatpush.bf16.msra.mxu0 0
        %2370 = vmatpush.bf16.msra.mxu0 %v2361
        %2371 = vmatpush.bf16.msra.mxu0 %v2360
        %2372 = vmatmul.bf16.gmra.mxu0 %v2200
        %v2373 = vpop.f32.mrf.mxu0
        %v2374 = vadd.f32 %v2296, %v2373
        %v2375 = vpop.f32.mrf.mxu0
        %2376 = vdwg.mxu0
        %v2381 = vunpack.c.l.b16 %v2045
        %v2382 = vunpack.c.l.b16 %v2046
        %v2383 = vunpack.c.l.b16 %v2047
        %v2384 = vunpack.c.l.b16 %v2048
        %v2385 = vpack.c.b16 %v2382, %v2381
        %v2386 = vpack.c.b16 %v2384, %v2383
        %2389 = vmatpush.bf16.msra.mxu0 0
        %2390 = vmatpush.bf16.msra.mxu0 0
        %2391 = vmatpush.bf16.msra.mxu0 0
        %2392 = vmatpush.bf16.msra.mxu0 0
        %2393 = vmatpush.bf16.msra.mxu0 0
        %2394 = vmatpush.bf16.msra.mxu0 0
        %2395 = vmatpush.bf16.msra.mxu0 %v2386
        %2396 = vmatpush.bf16.msra.mxu0 %v2385
        %2397 = vmatmul.bf16.gmra.mxu0 %v2200
        %v2398 = vpop.f32.mrf.mxu0
        %v2399 = vadd.f32 %v2297, %v2398
        %v2400 = vpop.f32.mrf.mxu0
        %2401 = vdwg.mxu0
        %v2402 = vmul.f32 %v2097, 0.35355338
        %v2403 = vmul.f32 %v2122, 0.35355338
        %v2404 = vmul.f32 %v2147, 0.35355338
        %v2405 = vmul.f32 %v2172, 0.35355338
        %v2406 = vpack.c.bf16 %v2402, %v2402
        %v2407 = vpack.c.bf16 %v2403, %v2403
        %v2408 = vpack.c.bf16 %v2404, %v2404
        %v2409 = vpack.c.bf16 %v2405, %v2405
        %v2410 = vpack.c.bf16 %v2212, %v2212
        %v2411 = vpack.c.bf16 %v2237, %v2237
        %v2412 = vpack.c.bf16 %v2262, %v2262
        %v2413 = vpack.c.bf16 %v2287, %v2287
        %v2414 = vpack.c.bf16 %v2324, %v2324
        %v2415 = vpack.c.bf16 %v2349, %v2349
        %v2416 = vpack.c.bf16 %v2374, %v2374
        %v2417 = vpack.c.bf16 %v2399, %v2399
        %v2418 = vperm.slane %v1122, 0
        %v2420 = vsel %vm1651, %v2406, 0
        %v2423 = vsel %vm1651, %v2410, 0
        %2425 = vmatpush.bf16.xpose.msra.mxu0 0
        %2426 = vmatpush.bf16.xpose.msra.mxu0 0
        %2427 = vmatpush.bf16.xpose.msra.mxu0 0
        %2428 = vmatpush.bf16.xpose.msra.mxu0 0
        %2429 = vmatpush.bf16.xpose.msra.mxu0 0
        %2430 = vmatpush.bf16.xpose.msra.mxu0 0
        %2431 = vmatpush.bf16.xpose.msra.mxu0 0
        %2432 = vmatpush.bf16.xpose.msra.mxu0 %v2423
        %2433 = vmatmul.bf16.gmra.mxu0 %v2420
        %v2434 = vpop.f32.mrf.mxu0
        %v2435 = vadd.f32 %v2418, %v2434
        %v2436 = vpop.f32.mrf.mxu0
        %2437 = vdwg.mxu0
        %v2439 = vsel %vm1651, %v2407, 0
        %v2442 = vsel %vm1651, %v2411, 0
        %2444 = vmatpush.bf16.xpose.msra.mxu0 0
        %2445 = vmatpush.bf16.xpose.msra.mxu0 0
        %2446 = vmatpush.bf16.xpose.msra.mxu0 0
        %2447 = vmatpush.bf16.xpose.msra.mxu0 0
        %2448 = vmatpush.bf16.xpose.msra.mxu0 0
        %2449 = vmatpush.bf16.xpose.msra.mxu0 0
        %2450 = vmatpush.bf16.xpose.msra.mxu0 0
        %2451 = vmatpush.bf16.xpose.msra.mxu0 %v2442
        %2452 = vmatmul.bf16.gmra.mxu0 %v2439
        %v2453 = vpop.f32.mrf.mxu0
        %v2454 = vadd.f32 %v2418, %v2453
        %v2455 = vpop.f32.mrf.mxu0
        %2456 = vdwg.mxu0
        %v2458 = vsel %vm1651, %v2408, 0
        %v2461 = vsel %vm1651, %v2412, 0
        %2463 = vmatpush.bf16.xpose.msra.mxu0 0
        %2464 = vmatpush.bf16.xpose.msra.mxu0 0
        %2465 = vmatpush.bf16.xpose.msra.mxu0 0
        %2466 = vmatpush.bf16.xpose.msra.mxu0 0
        %2467 = vmatpush.bf16.xpose.msra.mxu0 0
        %2468 = vmatpush.bf16.xpose.msra.mxu0 0
        %2469 = vmatpush.bf16.xpose.msra.mxu0 0
        %2470 = vmatpush.bf16.xpose.msra.mxu0 %v2461
        %2471 = vmatmul.bf16.gmra.mxu0 %v2458
        %v2472 = vpop.f32.mrf.mxu0
        %v2473 = vadd.f32 %v2418, %v2472
        %v2474 = vpop.f32.mrf.mxu0
        %2475 = vdwg.mxu0
        %v2477 = vsel %vm1651, %v2409, 0
        %v2480 = vsel %vm1651, %v2413, 0
        %2482 = vmatpush.bf16.xpose.msra.mxu0 0
        %2483 = vmatpush.bf16.xpose.msra.mxu0 0
        %2484 = vmatpush.bf16.xpose.msra.mxu0 0
        %2485 = vmatpush.bf16.xpose.msra.mxu0 0
        %2486 = vmatpush.bf16.xpose.msra.mxu0 0
        %2487 = vmatpush.bf16.xpose.msra.mxu0 0
        %2488 = vmatpush.bf16.xpose.msra.mxu0 0
        %2489 = vmatpush.bf16.xpose.msra.mxu0 %v2480
        %2490 = vmatmul.bf16.gmra.mxu0 %v2477
        %v2491 = vpop.f32.mrf.mxu0
        %v2492 = vadd.f32 %v2418, %v2491
        %v2493 = vpop.f32.mrf.mxu0
        %2494 = vdwg.mxu0
        %v2495 = vsel %vm1651, %v2435, -inf
        %2496 = vmax.xlane.f32.xlu0 %v2495
        %v2497 = vpop.xlane.xlu0 %2496
        %v2498 = vsel %vm1651, %v2454, -inf
        %2499 = vmax.xlane.f32.xlu0 %v2498
        %v2500 = vpop.xlane.xlu0 %2499
        %v2501 = vsel %vm1651, %v2473, -inf
        %2502 = vmax.xlane.f32.xlu0 %v2501
        %v2503 = vpop.xlane.xlu0 %2502
        %v2504 = vsel %vm1651, %v2492, -inf
        %2505 = vmax.xlane.f32.xlu0 %v2504
        %v2506 = vpop.xlane.xlu0 %2505
        %v2507 = vsub.f32 %v2435, %v2497
        %v2508 = vsub.f32 %v2454, %v2500
        %v2509 = vsub.f32 %v2473, %v2503
        %v2510 = vsub.f32 %v2492, %v2506
        %v2511 = vmul.f32 %v2507, 1.442695
        %v2512 = vpow.pop %v2511
        %v2513 = vmul.f32 %v2508, 1.442695
        %v2514 = vpow.pop %v2513
        %v2515 = vmul.f32 %v2509, 1.442695
        %v2516 = vpow.pop %v2515
        %v2517 = vmul.f32 %v2510, 1.442695
        %v2518 = vpow.pop %v2517
        %v2519 = vsel %vm1651, %v2512, 0.0
        %2520 = vadd.xlane.f32.xlu0 %v2519
        %v2521 = vpop.xlane.xlu0 %2520
        %v2522 = vsel %vm1651, %v2514, 0.0
        %2523 = vadd.xlane.f32.xlu0 %v2522
        %v2524 = vpop.xlane.xlu0 %2523
        %v2525 = vsel %vm1651, %v2516, 0.0
        %2526 = vadd.xlane.f32.xlu0 %v2525
        %v2527 = vpop.xlane.xlu0 %2526
        %v2528 = vsel %vm1651, %v2518, 0.0
        %2529 = vadd.xlane.f32.xlu0 %v2528
        %v2530 = vpop.xlane.xlu0 %2529
        %v2531 = vrcp.pop %v2521
        %v2532 = vrcp.pop %v2524
        %v2533 = vrcp.pop %v2527
        %v2534 = vrcp.pop %v2530
        %v2535 = vmul.f32 %v2512, %v2531
        %v2536 = vmul.f32 %v2514, %v2532
        %v2537 = vmul.f32 %v2516, %v2533
        %v2538 = vmul.f32 %v2518, %v2534
        %v2539 = vpack.c.bf16 %v2535, %v2535
        %v2540 = vpack.c.bf16 %v2536, %v2536
        %v2541 = vpack.c.bf16 %v2537, %v2537
        %v2542 = vpack.c.bf16 %v2538, %v2538
        %v2544 = vsel %vm1651, %v2539, 0
        %v2547 = vsel %vm1779, %v2414, 0
        %2549 = vmatpush.bf16.msra.mxu0 0
        %2550 = vmatpush.bf16.msra.mxu0 0
        %2551 = vmatpush.bf16.msra.mxu0 0
        %2552 = vmatpush.bf16.msra.mxu0 0
        %2553 = vmatpush.bf16.msra.mxu0 0
        %2554 = vmatpush.bf16.msra.mxu0 0
        %2555 = vmatpush.bf16.msra.mxu0 0
        %2556 = vmatpush.bf16.msra.mxu0 %v2547
        %2557 = vmatmul.bf16.gmra.mxu0 %v2544
        %v2558 = vpop.f32.mrf.mxu0
        %v2559 = vadd.f32 0.0, %v2558
        %v2560 = vpop.f32.mrf.mxu0
        %2561 = vdwg.mxu0
        %v2563 = vsel %vm1651, %v2540, 0
        %v2566 = vsel %vm1779, %v2415, 0
        %2568 = vmatpush.bf16.msra.mxu0 0
        %2569 = vmatpush.bf16.msra.mxu0 0
        %2570 = vmatpush.bf16.msra.mxu0 0
        %2571 = vmatpush.bf16.msra.mxu0 0
        %2572 = vmatpush.bf16.msra.mxu0 0
        %2573 = vmatpush.bf16.msra.mxu0 0
        %2574 = vmatpush.bf16.msra.mxu0 0
        %2575 = vmatpush.bf16.msra.mxu0 %v2566
        %2576 = vmatmul.bf16.gmra.mxu0 %v2563
        %v2577 = vpop.f32.mrf.mxu0
        %v2578 = vadd.f32 0.0, %v2577
        %v2579 = vpop.f32.mrf.mxu0
        %2580 = vdwg.mxu0
        %v2582 = vsel %vm1651, %v2541, 0
        %v2585 = vsel %vm1779, %v2416, 0
        %2587 = vmatpush.bf16.msra.mxu0 0
        %2588 = vmatpush.bf16.msra.mxu0 0
        %2589 = vmatpush.bf16.msra.mxu0 0
        %2590 = vmatpush.bf16.msra.mxu0 0
        %2591 = vmatpush.bf16.msra.mxu0 0
        %2592 = vmatpush.bf16.msra.mxu0 0
        %2593 = vmatpush.bf16.msra.mxu0 0
        %2594 = vmatpush.bf16.msra.mxu0 %v2585
        %2595 = vmatmul.bf16.gmra.mxu0 %v2582
        %v2596 = vpop.f32.mrf.mxu0
        %v2597 = vadd.f32 0.0, %v2596
        %v2598 = vpop.f32.mrf.mxu0
        %2599 = vdwg.mxu0
        %v2601 = vsel %vm1651, %v2542, 0
        %v2604 = vsel %vm1779, %v2417, 0
        %2606 = vmatpush.bf16.msra.mxu0 0
        %2607 = vmatpush.bf16.msra.mxu0 0
        %2608 = vmatpush.bf16.msra.mxu0 0
        %2609 = vmatpush.bf16.msra.mxu0 0
        %2610 = vmatpush.bf16.msra.mxu0 0
        %2611 = vmatpush.bf16.msra.mxu0 0
        %2612 = vmatpush.bf16.msra.mxu0 0
        %2613 = vmatpush.bf16.msra.mxu0 %v2604
        %2614 = vmatmul.bf16.gmra.mxu0 %v2601
        %v2615 = vpop.f32.mrf.mxu0
        %v2616 = vadd.f32 0.0, %v2615
        %v2617 = vpop.f32.mrf.mxu0
        %2618 = vdwg.mxu0
        %v2619 = vpack.c.bf16 %v2559, %v2559
        %v2620 = vpack.c.bf16 %v2578, %v2578
        %v2621 = vpack.c.bf16 %v2597, %v2597
        %v2622 = vpack.c.bf16 %v2616, %v2616
        %v2624 = vsel %vm1651, %v2619, 0
        %v2627 = vsel %vm1779, %v2053, 0
        %2629 = vmatpush.bf16.msra.mxu0 0
        %2630 = vmatpush.bf16.msra.mxu0 0
        %2631 = vmatpush.bf16.msra.mxu0 0
        %2632 = vmatpush.bf16.msra.mxu0 0
        %2633 = vmatpush.bf16.msra.mxu0 0
        %2634 = vmatpush.bf16.msra.mxu0 0
        %2635 = vmatpush.bf16.msra.mxu0 0
        %2636 = vmatpush.bf16.msra.mxu0 %v2627
        %2637 = vmatmul.bf16.gmra.mxu0 %v2624
        %v2638 = vpop.f32.mrf.mxu0
        %v2639 = vadd.f32 0.0, %v2638
        %v2640 = vpop.f32.mrf.mxu0
        %2641 = vdwg.mxu0
        %v2643 = vsel %vm1651, %v2620, 0
        %v2646 = vsel %vm1779, %v2054, 0
        %2648 = vmatpush.bf16.msra.mxu0 0
        %2649 = vmatpush.bf16.msra.mxu0 0
        %2650 = vmatpush.bf16.msra.mxu0 0
        %2651 = vmatpush.bf16.msra.mxu0 0
        %2652 = vmatpush.bf16.msra.mxu0 0
        %2653 = vmatpush.bf16.msra.mxu0 0
        %2654 = vmatpush.bf16.msra.mxu0 0
        %2655 = vmatpush.bf16.msra.mxu0 %v2646
        %2656 = vmatmul.bf16.gmra.mxu0 %v2643
        %v2657 = vpop.f32.mrf.mxu0
        %v2658 = vadd.f32 0.0, %v2657
        %v2659 = vpop.f32.mrf.mxu0
        %2660 = vdwg.mxu0
        %v2662 = vsel %vm1651, %v2621, 0
        %v2665 = vsel %vm1779, %v2055, 0
        %2667 = vmatpush.bf16.msra.mxu0 0
        %2668 = vmatpush.bf16.msra.mxu0 0
        %2669 = vmatpush.bf16.msra.mxu0 0
        %2670 = vmatpush.bf16.msra.mxu0 0
        %2671 = vmatpush.bf16.msra.mxu0 0
        %2672 = vmatpush.bf16.msra.mxu0 0
        %2673 = vmatpush.bf16.msra.mxu0 0
        %2674 = vmatpush.bf16.msra.mxu0 %v2665
        %2675 = vmatmul.bf16.gmra.mxu0 %v2662
        %v2676 = vpop.f32.mrf.mxu0
        %v2677 = vadd.f32 0.0, %v2676
        %v2678 = vpop.f32.mrf.mxu0
        %2679 = vdwg.mxu0
        %v2681 = vsel %vm1651, %v2622, 0
        %v2684 = vsel %vm1779, %v2056, 0
        %2686 = vmatpush.bf16.msra.mxu0 0
        %2687 = vmatpush.bf16.msra.mxu0 0
        %2688 = vmatpush.bf16.msra.mxu0 0
        %2689 = vmatpush.bf16.msra.mxu0 0
        %2690 = vmatpush.bf16.msra.mxu0 0
        %2691 = vmatpush.bf16.msra.mxu0 0
        %2692 = vmatpush.bf16.msra.mxu0 0
        %2693 = vmatpush.bf16.msra.mxu0 %v2684
        %2694 = vmatmul.bf16.gmra.mxu0 %v2681
        %v2695 = vpop.f32.mrf.mxu0
        %v2696 = vadd.f32 0.0, %v2695
        %v2697 = vpop.f32.mrf.mxu0
        %2698 = vdwg.mxu0
        %v2699 = vsel %vm1125, %v2639, 0.0
        %v2700 = vsel %vm1125, %v2658, 0.0
        %v2701 = vadd.f32 %v2699, %v2700
        %v2702 = vsel %vm1125, %v2677, 0.0
        %v2703 = vadd.f32 %v2701, %v2702
        %v2704 = vsel %vm1125, %v2696, 0.0
        %v2705 = vadd.f32 %v2703, %v2704
        %v2707 = vperm.slane %v2057, 0
        %v2709 = vadd.f32 %v2705, %v2707
        %v2710 = vadd.f32 %v1944, %v2709
        %v2711 = vld [vmem:[%s59] sm:$0x1]
        %v2712 = vld [vmem:[%s61] sm:$0x1]
        %v2713 = vsel %vm1125, %v2710, 0.0
        %2714 = vadd.xlane.f32.xlu0 %v2713
        %v2715 = vpop.xlane.xlu0 %2714
        %v2716 = vmul.f32 %v2715, %v1135
        %v2717 = vsub.f32 %v2710, %v2716
        %v2718 = vmul.f32 %v2717, %v2717
        %v2719 = vsel %vm1125, %v2718, 0.0
        %2720 = vadd.xlane.f32.xlu0 %v2719
        %v2721 = vpop.xlane.xlu0 %2720
        %v2722 = vmul.f32 %v2721, %v1148
        %v2724 = vperm.slane %v2711, 0
        %v2726 = vmul.f32 %v2724, %v2717
        %v2727 = vrsqrt.pop %v2722
        %v2728 = vmul.f32 %v2727, %v2722
        %v2729 = vmul.f32 %v2728, %v2727
        %v2730 = vmul.f32 0.5, %v2729
        %v2731 = vsub.f32 1.5, %v2730
        %v2732 = vmul.f32 %v2727, %v2731
        %v2733 = vmul.f32 %v2722, %v2732
        %vm2734 = vcmp.eq.f32.partialorder %v2722, inf
        %v2735 = vsel %vm2734, %v2722, %v2733
        %vm2736 = vcmp.eq.f32.partialorder %v2722, 0.0
        %v2737 = vand.u32 %v2722, 2147483648
        %v2738 = vsel %vm2736, %v2737, %v2735
        %v2739 = vadd.f32 %v2738, 1e-06
        %v2740 = vrcp.pop %v2739
        %v2741 = vmul.f32 %v2739, %v2740
        %v2742 = vsub.f32 1.0, %v2741
        %v2743 = vmul.f32 %v2740, %v2742
        %v2744 = vadd.f32 %v2740, %v2743
        %vm2745 = vweird.f32 %v2739
        %vm2746 = vweird.f32 %v2740
        %vm2747 = vmor %vm2745, %vm2746
        %v2748 = vsel %vm2747, %v2740, %v2744
        %v2749 = vand.u32 2147483647, %v2739
        %vm2750 = vcmp.eq.f32.partialorder %v2749, 8.507059e+37
        %v2751 = vand.u32 %v2739, 2147483648
        %v2752 = vor.u32 1.1754944e-38, %v2751
        %v2753 = vsel %vm2750, %v2752, %v2748
        %v2754 = vmul.f32 %v2726, %v2753
        %v2756 = vperm.slane %v2712, 0
        %v2758 = vadd.f32 %v2754, %v2756
        %v2759 = vpack.c.bf16 %v2758, %v2758
        %v2760 = vld [vmem:[%s43] sm:$0xf]
        %v2761 = vld [vmem:[%s43 + $0x4] sm:$0xf]
        %v2762 = vld [vmem:[%s43 + $0x8] sm:$0xf]
        %v2763 = vld [vmem:[%s43 + $0xc] sm:$0xf]
        %v2764 = vld [vmem:[%s45] sm:$0x1]
        %v2766 = vperm.slane %v2764, 0
        %v2772 = vunpack.c.l.b16 %v2760
        %v2773 = vunpack.c.l.b16 %v2761
        %v2774 = vunpack.c.l.b16 %v2762
        %v2775 = vunpack.c.l.b16 %v2763
        %v2776 = vpack.c.b16 %v2773, %v2772
        %v2777 = vpack.c.b16 %v2775, %v2774
        %v2781 = vsel %vm1125, %v2759, 0
        %2783 = vmatpush.bf16.msra.mxu0 0
        %2784 = vmatpush.bf16.msra.mxu0 0
        %2785 = vmatpush.bf16.msra.mxu0 0
        %2786 = vmatpush.bf16.msra.mxu0 0
        %2787 = vmatpush.bf16.msra.mxu0 0
        %2788 = vmatpush.bf16.msra.mxu0 0
        %2789 = vmatpush.bf16.msra.mxu0 %v2777
        %2790 = vmatpush.bf16.msra.mxu0 %v2776
        %2791 = vmatmul.bf16.gmra.mxu0 %v2781
        %v2792 = vpop.f32.mrf.mxu0
        %v2793 = vadd.f32 %v2766, %v2792
        %v2794 = vpop.f32.mrf.mxu0
        %2795 = vdwg.mxu0
        %v2796 = vmax.f32 %v2793, 0.0
        %v2797 = vpack.c.bf16 %v2796, %v2796
        %v2798 = vld [vmem:[%s47] sm:$0xf]
        %v2799 = vld [vmem:[%s47 + $0x4] sm:$0xf]
        %v2800 = vld [vmem:[%s47 + $0x8] sm:$0xf]
        %v2801 = vld [vmem:[%s47 + $0xc] sm:$0xf]
        %v2802 = vld [vmem:[%s47 + $0x10] sm:$0xf]
        %v2803 = vld [vmem:[%s47 + $0x14] sm:$0xf]
        %v2804 = vld [vmem:[%s47 + $0x18] sm:$0xf]
        %v2805 = vld [vmem:[%s47 + $0x1c] sm:$0xf]
        %v2814 = vunpack.c.l.b16 %v2798
        %v2815 = vunpack.c.l.b16 %v2799
        %v2816 = vunpack.c.l.b16 %v2800
        %v2817 = vunpack.c.l.b16 %v2801
        %v2818 = vunpack.c.l.b16 %v2802
        %v2819 = vunpack.c.l.b16 %v2803
        %v2820 = vunpack.c.l.b16 %v2804
        %v2821 = vunpack.c.l.b16 %v2805
        %v2822 = vpack.c.b16 %v2815, %v2814
        %v2823 = vpack.c.b16 %v2817, %v2816
        %v2824 = vpack.c.b16 %v2819, %v2818
        %v2825 = vpack.c.b16 %v2821, %v2820
        %vm2830 = vcmask 523264
        %v2832 = vsel %vm2830, %v2797, 0
        %2834 = vmatpush.bf16.msra.mxu0 0
        %2835 = vmatpush.bf16.msra.mxu0 0
        %2836 = vmatpush.bf16.msra.mxu0 0
        %2837 = vmatpush.bf16.msra.mxu0 0
        %2838 = vmatpush.bf16.msra.mxu0 %v2825
        %2839 = vmatpush.bf16.msra.mxu0 %v2824
        %2840 = vmatpush.bf16.msra.mxu0 %v2823
        %2841 = vmatpush.bf16.msra.mxu0 %v2822
        %2842 = vmatmul.bf16.gmra.mxu0 %v2832
        %v2843 = vpop.f32.mrf.mxu0
        %v2844 = vadd.f32 0.0, %v2843
        %v2845 = vpop.f32.mrf.mxu0
        %2846 = vdwg.mxu0
        %v2847 = vadd.f32 %v2710, %v2844
        %v2848 = vld [vmem:[%s49] sm:$0x1]
        %v2850 = vperm.slane %v2848, 0
        %v2852 = vadd.f32 %v2847, %v2850
        %v2853 = vld [vmem:[%s63] sm:$0x1]
        %v2854 = vld [vmem:[%s65] sm:$0x1]
        %v2855 = vsel %vm1125, %v2852, 0.0
        %2856 = vadd.xlane.f32.xlu0 %v2855
        %v2857 = vpop.xlane.xlu0 %2856
        %v2858 = vmul.f32 %v2857, %v1135
        %v2859 = vsub.f32 %v2852, %v2858
        %v2860 = vmul.f32 %v2859, %v2859
        %v2861 = vsel %vm1125, %v2860, 0.0
        %2862 = vadd.xlane.f32.xlu0 %v2861
        %v2863 = vpop.xlane.xlu0 %2862
        %v2864 = vmul.f32 %v2863, %v1148
        %v2866 = vperm.slane %v2853, 0
        %v2868 = vmul.f32 %v2866, %v2859
        %v2869 = vrsqrt.pop %v2864
        %v2870 = vmul.f32 %v2869, %v2864
        %v2871 = vmul.f32 %v2870, %v2869
        %v2872 = vmul.f32 0.5, %v2871
        %v2873 = vsub.f32 1.5, %v2872
        %v2874 = vmul.f32 %v2869, %v2873
        %v2875 = vmul.f32 %v2864, %v2874
        %vm2876 = vcmp.eq.f32.partialorder %v2864, inf
        %v2877 = vsel %vm2876, %v2864, %v2875
        %vm2878 = vcmp.eq.f32.partialorder %v2864, 0.0
        %v2879 = vand.u32 %v2864, 2147483648
        %v2880 = vsel %vm2878, %v2879, %v2877
        %v2881 = vadd.f32 %v2880, 1e-06
        %v2882 = vrcp.pop %v2881
        %v2883 = vmul.f32 %v2881, %v2882
        %v2884 = vsub.f32 1.0, %v2883
        %v2885 = vmul.f32 %v2882, %v2884
        %v2886 = vadd.f32 %v2882, %v2885
        %vm2887 = vweird.f32 %v2881
        %vm2888 = vweird.f32 %v2882
        %vm2889 = vmor %vm2887, %vm2888
        %v2890 = vsel %vm2889, %v2882, %v2886
        %v2891 = vand.u32 2147483647, %v2881
        %vm2892 = vcmp.eq.f32.partialorder %v2891, 8.507059e+37
        %v2893 = vand.u32 %v2881, 2147483648
        %v2894 = vor.u32 1.1754944e-38, %v2893
        %v2895 = vsel %vm2892, %v2894, %v2890
        %v2896 = vmul.f32 %v2868, %v2895
        %v2898 = vperm.slane %v2854, 0
        %v2900 = vadd.f32 %v2896, %v2898
        %2901 = vst.msk [vmem:[%s1085] sm:$0xff] %vm1125, %v2900
        %s2902 = sand.u32 %s825, 1
        %s2903 = scalar_lea.sflag [#allocation3], %s2902
        %s2904 = sand.u32 %s825, 1
        %s2905 = smul.addr %s2904, 8
        %s2906 = scalar_lea.vmem [#allocation2], %s2905
        // Predicated region
        $region153: #{decoder_forward.3} parent=151 // pred_check
          %p2907 = pneg %p835
        $region154: #{decoder_forward.3} parent=151 // pred_check_branch
          %2909 = sbr.rel (%p2907) target = $region156
        $region155: #{decoder_forward.3} parent=151 // pred_region
          %2911 = vsyncadd %s2903, 0
          %s2912 = sadd.s32 %s86, %s85
          %s2913 = smul.addr %s2912, 8
          %s2914 = scalar_lea.hbm %s67, %s2913
          %s2916 = sshll.u32 %s2906, 4
          %s2917 = int_to_ptr.vmem [resolvable:$true] %s2916
          %s2918 = sshll.u32 %s2914, 4
          %s2919 = int_to_ptr.hbm [resolvable:$true] %s2918
          %2921 = dma.vmem_to_hbm [thread:$0]  %s2917, 128, %s2919, %s2903
        $region156: #{decoder_forward.3} parent=151 // pred_fallthru
          _
      $region152: #{decoder_forward.3} parent=5 // pred_fallthru
        _
      %p2922 = scmp.le.s32.totalorder 2, %s76
      // Predicated region
      $region157: #{decoder_forward.3} parent=5 // pred_check
        %p2923 = pneg %p2922
      $region158: #{decoder_forward.3} parent=5 // pred_check_branch
        %2925 = sbr.rel (%p2923) target = $region160
      $region159: #{decoder_forward.3} parent=5 // pred_region
        %s2926 = ssub.s32 %s76, 2
        // Predicated region
        $region161: #{decoder_forward.3} parent=159 // pred_check
          %p2927 = pneg %p841
        $region162: #{decoder_forward.3} parent=159 // pred_check_branch
          %2929 = sbr.rel (%p2927) target = $region164
        $region163: #{decoder_forward.3} parent=159 // pred_region
          %s2930 = sand.u32 %s826, 1
          %s2931 = scalar_lea.sflag [#allocation3], %s2930
          %s2932 = sand.u32 %s826, 1
          %s2933 = smul.addr %s2932, 8
          %s2934 = scalar_lea.vmem [#allocation2], %s2933
          %2936 = dma.done %s2931, 128
        $region164: #{decoder_forward.3} parent=159 // pred_fallthru
          _
      $region160: #{decoder_forward.3} parent=5 // pred_fallthru
        _
    $region6: #{decoder_forward.3} parent=1 // loop_footer
      %s80 = sadd.s32 1, %s76
    $region7: #{decoder_forward.3} parent=1 // loop_footer_branch
      %75 = sbr.rel target = $region3
    $region8: #{decoder_forward.3} parent=1 // loop_exit
      _
    %2937 = vsyncpa [#allocation3], 1
    %s2938 = scalar_lea.sflag [#allocation3], 1
    %2939 = vsyncpa %s2938, 1

</llo_original>
